<compile_context>
chip_gen: v7x
topology: tpu7x:2x2x1
jax: 0.10.0
libtpu: 0.0.40
codegen_flags: <defaults>
</compile_context>

<pallas_src>
import functools

import jax
import jax.numpy as jnp
from jax import lax
from jax.experimental import pallas as pl
from jax.experimental.pallas import tpu as pltpu

# ---- RayTracing.__init__ defaults ----
OBJECT_BOUNDING_SPHERE = 1.0
SDF_THRESHOLD = 5e-05
LINE_SEARCH_STEP = 0.5
LINE_STEP_ITERS = 1
SPHERE_TRACING_ITERS = 10
N_STEPS = 100
N_SECANT_STEPS = 8

# ---- synthetic SDF network sizes ----
H = 8          # hidden units of the tiny SDF MLP perturbation
D_ID = 16      # id latent dim
D_EXP = 16     # exp latent dim
R0 = 0.6       # base sphere radius of the synthetic SDF
PERT = 0.05    # perturbation scale

# ---- kernel tiling: rays on (sublane, lane) axes ----
LANES = 128
SUB = 8
TILE_RAYS = SUB * LANES        # 1024 rays per 8x128 sub-tile


def _ray_tracing_kernel(wp_ref, c1_ref, w2_ref,            # SMEM weights
                        cam_ref, dir_ref, omask_ref,        # VMEM per-ray inputs
                        pts_ref, flags_ref, dist_ref,       # VMEM outputs
                        *, subtiles):
    f32 = jnp.float32
    i32 = jnp.int32

    # ---- hoist SMEM weight scalar reads (once per grid program) ----
    wpx = [wp_ref[0, j] for j in range(H)]
    wpy = [wp_ref[1, j] for j in range(H)]
    wpz = [wp_ref[2, j] for j in range(H)]
    c1s = [c1_ref[j] for j in range(H)]
    w2s = [w2_ref[j] for j in range(H)]

    @pl.loop(0, subtiles)
    def _sub_tile(s):
        camx = cam_ref[0, s]
        camy = cam_ref[1, s]
        camz = cam_ref[2, s]
        dx = dir_ref[0, s]
        dy = dir_ref[1, s]
        dz = dir_ref[2, s]

        # ---- per-ray constants of the t-parameterised SDF ----
        qa = camx * camx + camy * camy + camz * camz        # cam . cam
        rcd = camx * dx + camy * dy + camz * dz             # cam . d
        qb = 2.0 * rcd
        qc = dx * dx + dy * dy + dz * dz                    # d . d
        a_j = [camx * wpx[j] + camy * wpy[j] + camz * wpz[j] + c1s[j] for j in range(H)]
        b_j = [dx * wpx[j] + dy * wpy[j] + dz * wpz[j] for j in range(H)]

        def sdf_t(t):
            r2 = qa + t * (qb + qc * t)                     # Horner form
            base = jnp.sqrt(jnp.maximum(r2, 0.0)) - R0
            pert = w2s[0] * jnp.tanh(a_j[0] + b_j[0] * t)
            for j in range(1, H):
                pert = pert + w2s[j] * jnp.tanh(a_j[j] + b_j[j] * t)
            return base + PERT * pert

        # ---------------- rend_util.get_sphere_intersection ----------------
        under = rcd * rcd - (qa - OBJECT_BOUNDING_SPHERE ** 2)
        mask_int = under > 0.0
        sq = jnp.sqrt(jnp.maximum(under, 0.0))
        s0 = jnp.where(mask_int, jnp.maximum(-sq - rcd, 0.0), 0.0)   # near intersection
        s1 = jnp.where(mask_int, jnp.maximum(sq - rcd, 0.0), 0.0)    # far intersection

        # ---------------- sphere tracing (fully unrolled, masked updates) ----------------
        acc_s = s0
        acc_e = s1
        unf_s = mask_int
        unf_e = mask_int
        nsdf_s = jnp.where(mask_int, sdf_t(acc_s), 0.0)
        nsdf_e = jnp.where(mask_int, sdf_t(acc_e), 0.0)
        no_inter = (nsdf_e < 0.0) & (nsdf_s < 0.0)
        # per-ray "unfinished after loop header 0"  -> global while-entry bit in the wrapper
        unf0 = mask_int & ((nsdf_s > SDF_THRESHOLD) | (nsdf_e > SDF_THRESHOLD))

        for _ in range(SPHERE_TRACING_ITERS):
            # loop header (merged mask update)
            unf_s = unf_s & (nsdf_s > SDF_THRESHOLD)
            unf_e = unf_e & (nsdf_e > SDF_THRESHOLD)
            cur_s = jnp.where(unf_s, nsdf_s, 0.0)
            cur_e = jnp.where(unf_e, nsdf_e, 0.0)
            # loop body (masked full-width updates == torch boolean indexing)
            cur_s = jnp.clip(cur_s, -0.5, 0.5)
            cur_e = jnp.clip(cur_e, -0.5, 0.5)
            acc_s = acc_s + cur_s * 1.2
            acc_e = acc_e - cur_e * 1.2
            nsdf_s = jnp.where(unf_s, sdf_t(acc_s), 0.0)
            nsdf_e = jnp.where(unf_e, sdf_t(acc_e), 0.0)
            for i in range(LINE_STEP_ITERS):                # line-search back-off (masked)
                np_s = nsdf_s < 0.0
                np_e = nsdf_e < 0.0
                fac = (1.0 - LINE_SEARCH_STEP) / (2.0 ** i)
                acc_s = jnp.where(np_s, acc_s - fac * cur_s, acc_s)
                acc_e = jnp.where(np_e, acc_e + fac * cur_e, acc_e)
                nsdf_s = jnp.where(np_s, sdf_t(acc_s), nsdf_s)
                nsdf_e = jnp.where(np_e, sdf_t(acc_e), nsdf_e)
            lt = acc_s < acc_e
            unf_s = unf_s & lt
            unf_e = unf_e & lt

        # final loop header before the break (mask update only; only unf_s is used later)
        unf_s = unf_s & (nsdf_s > SDF_THRESHOLD)

        net_obj_mask = (acc_s < acc_e) & jnp.logical_not(no_inter)
        sampler_mask = unf_s

        # ---------------- default outputs (sphere-tracing result) ----------------
        pts_ref[0, s] = camx + acc_s * dx
        pts_ref[1, s] = camy + acc_s * dy
        pts_ref[2, s] = camz + acc_s * dz
        dist_ref[s] = acc_s
        # packed flags: bit0 = net_object_mask, bit1 = mask_intersect, bit2 = unf0
        flags_ref[s] = (net_obj_mask.astype(i32)
                        + 2 * mask_int.astype(i32)
                        + 4 * unf0.astype(i32))

        # ---------------- streaming ray sampler + secant (skipped when unused) ----------
        need_sampler = jnp.max(sampler_mask.astype(i32)) > 0

        @pl.when(need_sampler)
        def _sampler():
            delta = (acc_e - acc_s) * f32(1.0 / (N_STEPS - 1))

            def z_at(idx_f):        # z at step index, analytic (no pts_int slab / gathers)
                return acc_s + idx_f * delta

            pos_inf = jnp.full((SUB, LANES), jnp.inf, f32)
            zeros_f = jnp.zeros((SUB, LANES), f32)
            zeros_i = jnp.zeros((SUB, LANES), i32)

            def step_body(i, carry):
                (best_tmp, best_idx, sdf_best, sdf_prev_at_best,
                 min_sdf, min_idx, prev_sdf) = carry
                fi = i.astype(f32)
                sv = sdf_t(acc_s + fi * delta)
                w = f32(N_STEPS) - fi                       # arange(n_steps, 0, -1)
                sgn = jnp.where(sv > 0.0, 1.0, jnp.where(sv < 0.0, -1.0, 0.0))
                tmp = sgn * w
                upd = tmp < best_tmp                        # strict < == first occurrence
                best_tmp = jnp.where(upd, tmp, best_tmp)
                best_idx = jnp.where(upd, i, best_idx)
                sdf_best = jnp.where(upd, sv, sdf_best)
                sdf_prev_at_best = jnp.where(upd, prev_sdf, sdf_prev_at_best)
                upd2 = sv < min_sdf                         # torch.argmin(sdf_val)
                min_sdf = jnp.where(upd2, sv, min_sdf)
                min_idx = jnp.where(upd2, i, min_idx)
                return (best_tmp, best_idx, sdf_best, sdf_prev_at_best,
                        min_sdf, min_idx, sv)

            (_, ind, sdf_ind, sdf_prev_at_best, _, out_idx, sdf_last) = lax.fori_loop(
                0, N_STEPS, step_body,
                (pos_inf, zeros_i, zeros_f, zeros_f, pos_inf, zeros_i, zeros_f))

            z_ind = z_at(ind.astype(f32))
            true_surf = omask_ref[s] != 0
            net_surf = sdf_ind < 0.0
            p_out = jnp.logical_not(true_surf & net_surf)
            z_out = z_at(out_idx.astype(f32))

            # secant bracket; torch's `ind - 1 == -1` wraps to the last step (99)
            wrap = ind == 0
            idx_low = jnp.where(wrap, N_STEPS - 1, ind - 1)
            z_low = z_at(idx_low.astype(f32))
            sdf_low = jnp.where(wrap, sdf_last, sdf_prev_at_best)
            z_high = z_ind
            sdf_high = sdf_ind

            def z_step(zl, sl, zh, sh):
                den = sh - sl
                ok = den != 0.0
                r = pl.reciprocal(jnp.where(ok, den, 1.0), approx=True)  # guard BEFORE recip
                return jnp.where(ok, zl - sl * (zh - zl) * r, zl)

            z_pred = z_step(z_low, sdf_low, z_high, sdf_high)
            for _ in range(N_SECANT_STEPS):
                sm = sdf_t(z_pred)
                il = sm > 0.0
                ih = sm < 0.0
                z_low = jnp.where(il, z_pred, z_low)
                sdf_low = jnp.where(il, sm, sdf_low)
                z_high = jnp.where(ih, z_pred, z_high)
                sdf_high = jnp.where(ih, sm, sdf_high)
                z_pred = z_step(z_low, sdf_low, z_high, sdf_high)

            # module is in training mode -> secant points = net_surface & true_surface
            secant_mask = net_surf & true_surf
            samp_dist = jnp.where(p_out, z_out, z_ind)
            samp_dist = jnp.where(secant_mask, z_pred, samp_dist)

            # overwrite only where the sampler applies
            dist_final = jnp.where(sampler_mask, samp_dist, acc_s)
            dist_ref[s] = dist_final
            pts_ref[0, s] = camx + dist_final * dx
            pts_ref[1, s] = camy + dist_final * dy
            pts_ref[2, s] = camz + dist_final * dz
            old = flags_ref[s]                               # keep mask_int / unf0 bits
            bit0 = jnp.where(sampler_mask, net_surf.astype(i32), old & 1)
            flags_ref[s] = (old & (-2)) | bit0


def make_sdf_params(key):
    k1, k2, k3, k4, k5 = jax.random.split(key, 5)
    return dict(
        wp=0.5 * jax.random.normal(k1, (3, H), jnp.float32),
        wid=0.1 * jax.random.normal(k2, (D_ID, H), jnp.float32),
        wexp=0.1 * jax.random.normal(k3, (D_EXP, H), jnp.float32),
        b1=0.1 * jax.random.normal(k4, (H,), jnp.float32),
        w2=jax.random.normal(k5, (H,), jnp.float32),
    )


def ray_tracing_forward(params, cam_loc, object_mask, ray_directions, id_latent, exp_latent,
                        *, subtiles=None):
    """Returns (curr_start_points (R,3), network_object_mask (R,) bool, acc_start_dis (R,))."""
    B, N, _ = ray_directions.shape
    R = B * N
    dirs = ray_directions.reshape(R, 3).astype(jnp.float32)
    cam = jnp.broadcast_to(cam_loc[:, None, :], (B, N, 3)).reshape(R, 3).astype(jnp.float32)
    omask = object_mask.reshape(R).astype(jnp.int32)

    # fold the latents into a per-hidden-unit bias (constant across all evaluated points)
    c1 = (params["b1"]
          + id_latent.reshape(-1) @ params["wid"]
          + exp_latent.reshape(-1) @ params["wexp"]).astype(jnp.float32)
    wp = params["wp"].astype(jnp.float32)
    w2 = params["w2"].astype(jnp.float32)

    # ---- tile sizing: amortize per-grid-step overhead, keep >= several programs for v7x ----
    nb = max(1, -(-R // TILE_RAYS))          # number of 8x128 base tiles
    if subtiles is None:
        subtiles = max(1, min(4, nb // 8))   # grow program size only when there is lots of work
    tile_rays = subtiles * TILE_RAYS
    num_tiles = max(1, -(-R // tile_rays))
    Rp = num_tiles * tile_rays
    pad = Rp - R
    # padded rays are guaranteed non-intersecting (|cam| >> 1, d = 0)
    pad_cam = jnp.broadcast_to(jnp.array([10.0, 0.0, 0.0], jnp.float32), (pad, 3))
    cam_p = jnp.concatenate([cam, pad_cam], axis=0)
    dirs_p = jnp.concatenate([dirs, jnp.zeros((pad, 3), jnp.float32)], axis=0)
    omask_p = jnp.concatenate([omask, jnp.zeros((pad,), jnp.int32)], axis=0)

    NT = num_tiles * subtiles                # total 8x128 sub-tiles
    cam4 = cam_p.T.reshape(3, NT, SUB, LANES)
    dir4 = dirs_p.T.reshape(3, NT, SUB, LANES)
    omask3 = omask_p.reshape(NT, SUB, LANES)

    smem = pl.BlockSpec(memory_space=pltpu.MemorySpace.SMEM)
    vec3 = pl.BlockSpec((3, subtiles, SUB, LANES), lambda i: (0, i, 0, 0))
    vec1 = pl.BlockSpec((subtiles, SUB, LANES), lambda i: (i, 0, 0))

    kernel = functools.partial(_ray_tracing_kernel, subtiles=subtiles)
    pts, flags, dist = pl.pallas_call(
        kernel,
        out_shape=(jax.ShapeDtypeStruct((3, NT, SUB, LANES), jnp.float32),
                   jax.ShapeDtypeStruct((NT, SUB, LANES), jnp.int32),
                   jax.ShapeDtypeStruct((NT, SUB, LANES), jnp.float32)),
        grid=(num_tiles,),
        in_specs=[smem, smem, smem, vec3, vec3, vec1],
        out_specs=(vec3, vec1, vec1),
        compiler_params=pltpu.CompilerParams(
            dimension_semantics=("parallel",),
            vmem_limit_bytes=32 * 1024 * 1024),
    )(wp, c1, w2, cam4, dir4, omask3)

    # The PyTorch while-loop body is gated on a *global* any(unfinished) condition; whether it
    # ran at least once only changes curr_start_points of non-intersecting rays (cam_loc vs 0).
    flags_flat = flags.reshape(Rp)
    body_ran = jnp.any((flags_flat & 4) != 0)        # padded rays contribute 0
    flags_r = flags_flat[:R]
    network_object_mask = (flags_r & 1) != 0
    mask_int = (flags_r & 2) != 0

    dist_rows = dist.reshape(Rp)[:R]
    pts_rows = pts.reshape(3, Rp).T[:R]                        # (R, 3)
    pts_rows = jnp.where((mask_int | body_ran)[:, None], pts_rows, 0.0)
    return pts_rows, network_object_mask, dist_rows


if __name__ == "__main__":
    key = jax.random.PRNGKey(0)
    kp, kc, kd, km, ki, ke = jax.random.split(key, 6)

    params = make_sdf_params(kp)

    B, N = 2, 600   # batch, num_pixels  (-> 1200 rays)
    cam_loc = jnp.array([[0.0, 0.0, 2.0]] * B, jnp.float32) + 0.05 * jax.random.normal(kc, (B, 3), jnp.float32)
    xy = 0.4 * jax.random.normal(kd, (B, N, 2), jnp.float32)
    ray_directions = jnp.concatenate([xy, -jnp.ones((B, N, 1), jnp.float32)], axis=-1)
    ray_directions = ray_directions / jnp.linalg.norm(ray_directions, axis=-1, keepdims=True)
    object_mask = jax.random.bernoulli(km, 0.7, (B, N))
    id_latent = jax.random.normal(ki, (1, D_ID), jnp.float32)
    exp_latent = jax.random.normal(ke, (1, D_EXP), jnp.float32)

    # default tiling (one 8x128 sub-tile per grid program at this size)
    fwd = jax.jit(functools.partial(ray_tracing_forward, params))
    curr_start_points, network_object_mask, acc_start_dis = fwd(
        cam_loc, object_mask, ray_directions, id_latent, exp_latent)
    jax.block_until_ready((curr_start_points, network_object_mask, acc_start_dis))

    # second run exercising the multi-sub-tile (amortized grid overhead) path
    fwd2 = jax.jit(functools.partial(ray_tracing_forward, params, subtiles=2))
    pts2, nmask2, dist2 = fwd2(cam_loc, object_mask, ray_directions, id_latent, exp_latent)
    jax.block_until_ready((pts2, nmask2, dist2))

    assert curr_start_points.shape == (B * N, 3)
    assert network_object_mask.shape == (B * N,) and network_object_mask.dtype == jnp.bool_
    assert acc_start_dis.shape == (B * N,)
    assert bool(jnp.all(network_object_mask == nmask2))
    assert bool(jnp.allclose(curr_start_points, pts2, atol=1e-5))
    assert bool(jnp.allclose(acc_start_dis, dist2, atol=1e-5))
    print("KERNEL_OK")
</pallas_src>

<mosaic_0001>
module attributes {stable_mosaic.version = 11 : i64} {
  func.func @_ray_tracing_kernel(%arg0: i32, %arg1: memref<3x8xf32, #tpu.memory_space<smem>>, %arg2: memref<8xf32, #tpu.memory_space<smem>>, %arg3: memref<8xf32, #tpu.memory_space<smem>>, %arg4: memref<3x1x8x128xf32, #tpu.memory_space<vmem>>, %arg5: memref<3x1x8x128xf32, #tpu.memory_space<vmem>>, %arg6: memref<1x8x128xi32, #tpu.memory_space<vmem>>, %arg7: memref<3x1x8x128xf32, #tpu.memory_space<vmem>>, %arg8: memref<1x8x128xi32, #tpu.memory_space<vmem>>, %arg9: memref<1x8x128xf32, #tpu.memory_space<vmem>>) attributes {dimension_semantics = [#tpu.dimension_semantics<parallel>], iteration_bounds = array<i64: 2>, scalar_prefetch = 0 : i64, scratch_operands = 0 : i64, tpu.core_type = #tpu.core_type<tc>, window_params = [{transform_indices = @transform_0, window_bounds = array<i64: 3, 8>}, {transform_indices = @transform_1, window_bounds = array<i64: 8>}, {transform_indices = @transform_2, window_bounds = array<i64: 8>}, {transform_indices = @transform_3, window_bounds = array<i64: 3, 1, 8, 128>}, {transform_indices = @transform_4, window_bounds = array<i64: 3, 1, 8, 128>}, {transform_indices = @transform_5, window_bounds = array<i64: 1, 8, 128>}, {transform_indices = @transform_6, window_bounds = array<i64: 3, 1, 8, 128>}, {transform_indices = @transform_7, window_bounds = array<i64: 1, 8, 128>}, {transform_indices = @transform_8, window_bounds = array<i64: 1, 8, 128>}]} {
    %c0 = arith.constant 0 : index
    %c0_0 = arith.constant 0 : index
    %0 = memref.load %arg1[%c0, %c0_0] : memref<3x8xf32, #tpu.memory_space<smem>>
    %c0_1 = arith.constant 0 : index
    %c1 = arith.constant 1 : index
    %1 = memref.load %arg1[%c0_1, %c1] : memref<3x8xf32, #tpu.memory_space<smem>>
    %c0_2 = arith.constant 0 : index
    %c2 = arith.constant 2 : index
    %2 = memref.load %arg1[%c0_2, %c2] : memref<3x8xf32, #tpu.memory_space<smem>>
    %c0_3 = arith.constant 0 : index
    %c3 = arith.constant 3 : index
    %3 = memref.load %arg1[%c0_3, %c3] : memref<3x8xf32, #tpu.memory_space<smem>>
    %c0_4 = arith.constant 0 : index
    %c4 = arith.constant 4 : index
    %4 = memref.load %arg1[%c0_4, %c4] : memref<3x8xf32, #tpu.memory_space<smem>>
    %c0_5 = arith.constant 0 : index
    %c5 = arith.constant 5 : index
    %5 = memref.load %arg1[%c0_5, %c5] : memref<3x8xf32, #tpu.memory_space<smem>>
    %c0_6 = arith.constant 0 : index
    %c6 = arith.constant 6 : index
    %6 = memref.load %arg1[%c0_6, %c6] : memref<3x8xf32, #tpu.memory_space<smem>>
    %c0_7 = arith.constant 0 : index
    %c7 = arith.constant 7 : index
    %7 = memref.load %arg1[%c0_7, %c7] : memref<3x8xf32, #tpu.memory_space<smem>>
    %c1_8 = arith.constant 1 : index
    %c0_9 = arith.constant 0 : index
    %8 = memref.load %arg1[%c1_8, %c0_9] : memref<3x8xf32, #tpu.memory_space<smem>>
    %c1_10 = arith.constant 1 : index
    %c1_11 = arith.constant 1 : index
    %9 = memref.load %arg1[%c1_10, %c1_11] : memref<3x8xf32, #tpu.memory_space<smem>>
    %c1_12 = arith.constant 1 : index
    %c2_13 = arith.constant 2 : index
    %10 = memref.load %arg1[%c1_12, %c2_13] : memref<3x8xf32, #tpu.memory_space<smem>>
    %c1_14 = arith.constant 1 : index
    %c3_15 = arith.constant 3 : index
    %11 = memref.load %arg1[%c1_14, %c3_15] : memref<3x8xf32, #tpu.memory_space<smem>>
    %c1_16 = arith.constant 1 : index
    %c4_17 = arith.constant 4 : index
    %12 = memref.load %arg1[%c1_16, %c4_17] : memref<3x8xf32, #tpu.memory_space<smem>>
    %c1_18 = arith.constant 1 : index
    %c5_19 = arith.constant 5 : index
    %13 = memref.load %arg1[%c1_18, %c5_19] : memref<3x8xf32, #tpu.memory_space<smem>>
    %c1_20 = arith.constant 1 : index
    %c6_21 = arith.constant 6 : index
    %14 = memref.load %arg1[%c1_20, %c6_21] : memref<3x8xf32, #tpu.memory_space<smem>>
    %c1_22 = arith.constant 1 : index
    %c7_23 = arith.constant 7 : index
    %15 = memref.load %arg1[%c1_22, %c7_23] : memref<3x8xf32, #tpu.memory_space<smem>>
    %c2_24 = arith.constant 2 : index
    %c0_25 = arith.constant 0 : index
    %16 = memref.load %arg1[%c2_24, %c0_25] : memref<3x8xf32, #tpu.memory_space<smem>>
    %c2_26 = arith.constant 2 : index
    %c1_27 = arith.constant 1 : index
    %17 = memref.load %arg1[%c2_26, %c1_27] : memref<3x8xf32, #tpu.memory_space<smem>>
    %c2_28 = arith.constant 2 : index
    %c2_29 = arith.constant 2 : index
    %18 = memref.load %arg1[%c2_28, %c2_29] : memref<3x8xf32, #tpu.memory_space<smem>>
    %c2_30 = arith.constant 2 : index
    %c3_31 = arith.constant 3 : index
    %19 = memref.load %arg1[%c2_30, %c3_31] : memref<3x8xf32, #tpu.memory_space<smem>>
    %c2_32 = arith.constant 2 : index
    %c4_33 = arith.constant 4 : index
    %20 = memref.load %arg1[%c2_32, %c4_33] : memref<3x8xf32, #tpu.memory_space<smem>>
    %c2_34 = arith.constant 2 : index
    %c5_35 = arith.constant 5 : index
    %21 = memref.load %arg1[%c2_34, %c5_35] : memref<3x8xf32, #tpu.memory_space<smem>>
    %c2_36 = arith.constant 2 : index
    %c6_37 = arith.constant 6 : index
    %22 = memref.load %arg1[%c2_36, %c6_37] : memref<3x8xf32, #tpu.memory_space<smem>>
    %c2_38 = arith.constant 2 : index
    %c7_39 = arith.constant 7 : index
    %23 = memref.load %arg1[%c2_38, %c7_39] : memref<3x8xf32, #tpu.memory_space<smem>>
    %c0_40 = arith.constant 0 : index
    %24 = memref.load %arg2[%c0_40] : memref<8xf32, #tpu.memory_space<smem>>
    %c1_41 = arith.constant 1 : index
    %25 = memref.load %arg2[%c1_41] : memref<8xf32, #tpu.memory_space<smem>>
    %c2_42 = arith.constant 2 : index
    %26 = memref.load %arg2[%c2_42] : memref<8xf32, #tpu.memory_space<smem>>
    %c3_43 = arith.constant 3 : index
    %27 = memref.load %arg2[%c3_43] : memref<8xf32, #tpu.memory_space<smem>>
    %c4_44 = arith.constant 4 : index
    %28 = memref.load %arg2[%c4_44] : memref<8xf32, #tpu.memory_space<smem>>
    %c5_45 = arith.constant 5 : index
    %29 = memref.load %arg2[%c5_45] : memref<8xf32, #tpu.memory_space<smem>>
    %c6_46 = arith.constant 6 : index
    %30 = memref.load %arg2[%c6_46] : memref<8xf32, #tpu.memory_space<smem>>
    %c7_47 = arith.constant 7 : index
    %31 = memref.load %arg2[%c7_47] : memref<8xf32, #tpu.memory_space<smem>>
    %c0_48 = arith.constant 0 : index
    %32 = memref.load %arg3[%c0_48] : memref<8xf32, #tpu.memory_space<smem>>
    %c1_49 = arith.constant 1 : index
    %33 = memref.load %arg3[%c1_49] : memref<8xf32, #tpu.memory_space<smem>>
    %c2_50 = arith.constant 2 : index
    %34 = memref.load %arg3[%c2_50] : memref<8xf32, #tpu.memory_space<smem>>
    %c3_51 = arith.constant 3 : index
    %35 = memref.load %arg3[%c3_51] : memref<8xf32, #tpu.memory_space<smem>>
    %c4_52 = arith.constant 4 : index
    %36 = memref.load %arg3[%c4_52] : memref<8xf32, #tpu.memory_space<smem>>
    %c5_53 = arith.constant 5 : index
    %37 = memref.load %arg3[%c5_53] : memref<8xf32, #tpu.memory_space<smem>>
    %c6_54 = arith.constant 6 : index
    %38 = memref.load %arg3[%c6_54] : memref<8xf32, #tpu.memory_space<smem>>
    %c7_55 = arith.constant 7 : index
    %39 = memref.load %arg3[%c7_55] : memref<8xf32, #tpu.memory_space<smem>>
    %c0_i32 = arith.constant 0 : i32
    %c1_i32 = arith.constant 1 : i32
    %40 = arith.muli %c0_i32, %c1_i32 : i32
    %c0_i32_56 = arith.constant 0 : i32
    %41 = arith.addi %c0_i32_56, %40 : i32
    %c0_57 = arith.constant 0 : index
    %42 = arith.index_cast %41 : i32 to index
    %c0_58 = arith.constant 0 : index
    %c0_59 = arith.constant 0 : index
    %43 = vector.load %arg4[%c0_57, %42, %c0_58, %c0_59] : memref<3x1x8x128xf32, #tpu.memory_space<vmem>>, vector<1x1x8x128xf32>
    %44 = vector.shape_cast %43 : vector<1x1x8x128xf32> to vector<8x128xf32>
    %c1_60 = arith.constant 1 : index
    %45 = arith.index_cast %41 : i32 to index
    %c0_61 = arith.constant 0 : index
    %c0_62 = arith.constant 0 : index
    %46 = vector.load %arg4[%c1_60, %45, %c0_61, %c0_62] : memref<3x1x8x128xf32, #tpu.memory_space<vmem>>, vector<1x1x8x128xf32>
    %47 = vector.shape_cast %46 : vector<1x1x8x128xf32> to vector<8x128xf32>
    %c2_63 = arith.constant 2 : index
    %48 = arith.index_cast %41 : i32 to index
    %c0_64 = arith.constant 0 : index
    %c0_65 = arith.constant 0 : index
    %49 = vector.load %arg4[%c2_63, %48, %c0_64, %c0_65] : memref<3x1x8x128xf32, #tpu.memory_space<vmem>>, vector<1x1x8x128xf32>
    %50 = vector.shape_cast %49 : vector<1x1x8x128xf32> to vector<8x128xf32>
    %c0_66 = arith.constant 0 : index
    %51 = arith.index_cast %41 : i32 to index
    %c0_67 = arith.constant 0 : index
    %c0_68 = arith.constant 0 : index
    %52 = vector.load %arg5[%c0_66, %51, %c0_67, %c0_68] : memref<3x1x8x128xf32, #tpu.memory_space<vmem>>, vector<1x1x8x128xf32>
    %53 = vector.shape_cast %52 : vector<1x1x8x128xf32> to vector<8x128xf32>
    %c1_69 = arith.constant 1 : index
    %54 = arith.index_cast %41 : i32 to index
    %c0_70 = arith.constant 0 : index
    %c0_71 = arith.constant 0 : index
    %55 = vector.load %arg5[%c1_69, %54, %c0_70, %c0_71] : memref<3x1x8x128xf32, #tpu.memory_space<vmem>>, vector<1x1x8x128xf32>
    %56 = vector.shape_cast %55 : vector<1x1x8x128xf32> to vector<8x128xf32>
    %c2_72 = arith.constant 2 : index
    %57 = arith.index_cast %41 : i32 to index
    %c0_73 = arith.constant 0 : index
    %c0_74 = arith.constant 0 : index
    %58 = vector.load %arg5[%c2_72, %57, %c0_73, %c0_74] : memref<3x1x8x128xf32, #tpu.memory_space<vmem>>, vector<1x1x8x128xf32>
    %59 = vector.shape_cast %58 : vector<1x1x8x128xf32> to vector<8x128xf32>
    %60 = arith.mulf %44, %44 : vector<8x128xf32>
    %61 = arith.mulf %47, %47 : vector<8x128xf32>
    %62 = arith.addf %60, %61 : vector<8x128xf32>
    %63 = arith.mulf %50, %50 : vector<8x128xf32>
    %64 = arith.addf %62, %63 : vector<8x128xf32>
    %65 = arith.mulf %44, %53 : vector<8x128xf32>
    %66 = arith.mulf %47, %56 : vector<8x128xf32>
    %67 = arith.addf %65, %66 : vector<8x128xf32>
    %68 = arith.mulf %50, %59 : vector<8x128xf32>
    %69 = arith.addf %67, %68 : vector<8x128xf32>
    %cst = arith.constant 2.000000e+00 : f32
    %70 = vector.broadcast %cst : f32 to vector<8x128xf32>
    %71 = arith.mulf %70, %69 : vector<8x128xf32>
    %72 = arith.mulf %53, %53 : vector<8x128xf32>
    %73 = arith.mulf %56, %56 : vector<8x128xf32>
    %74 = arith.addf %72, %73 : vector<8x128xf32>
    %75 = arith.mulf %59, %59 : vector<8x128xf32>
    %76 = arith.addf %74, %75 : vector<8x128xf32>
    %77 = vector.broadcast %0 : f32 to vector<8x128xf32>
    %78 = arith.mulf %44, %77 : vector<8x128xf32>
    %79 = vector.broadcast %8 : f32 to vector<8x128xf32>
    %80 = arith.mulf %47, %79 : vector<8x128xf32>
    %81 = arith.addf %78, %80 : vector<8x128xf32>
    %82 = vector.broadcast %16 : f32 to vector<8x128xf32>
    %83 = arith.mulf %50, %82 : vector<8x128xf32>
    %84 = arith.addf %81, %83 : vector<8x128xf32>
    %85 = vector.broadcast %24 : f32 to vector<8x128xf32>
    %86 = arith.addf %84, %85 : vector<8x128xf32>
    %87 = vector.broadcast %1 : f32 to vector<8x128xf32>
    %88 = arith.mulf %44, %87 : vector<8x128xf32>
    %89 = vector.broadcast %9 : f32 to vector<8x128xf32>
    %90 = arith.mulf %47, %89 : vector<8x128xf32>
    %91 = arith.addf %88, %90 : vector<8x128xf32>
    %92 = vector.broadcast %17 : f32 to vector<8x128xf32>
    %93 = arith.mulf %50, %92 : vector<8x128xf32>
    %94 = arith.addf %91, %93 : vector<8x128xf32>
    %95 = vector.broadcast %25 : f32 to vector<8x128xf32>
    %96 = arith.addf %94, %95 : vector<8x128xf32>
    %97 = vector.broadcast %2 : f32 to vector<8x128xf32>
    %98 = arith.mulf %44, %97 : vector<8x128xf32>
    %99 = vector.broadcast %10 : f32 to vector<8x128xf32>
    %100 = arith.mulf %47, %99 : vector<8x128xf32>
    %101 = arith.addf %98, %100 : vector<8x128xf32>
    %102 = vector.broadcast %18 : f32 to vector<8x128xf32>
    %103 = arith.mulf %50, %102 : vector<8x128xf32>
    %104 = arith.addf %101, %103 : vector<8x128xf32>
    %105 = vector.broadcast %26 : f32 to vector<8x128xf32>
    %106 = arith.addf %104, %105 : vector<8x128xf32>
    %107 = vector.broadcast %3 : f32 to vector<8x128xf32>
    %108 = arith.mulf %44, %107 : vector<8x128xf32>
    %109 = vector.broadcast %11 : f32 to vector<8x128xf32>
    %110 = arith.mulf %47, %109 : vector<8x128xf32>
    %111 = arith.addf %108, %110 : vector<8x128xf32>
    %112 = vector.broadcast %19 : f32 to vector<8x128xf32>
    %113 = arith.mulf %50, %112 : vector<8x128xf32>
    %114 = arith.addf %111, %113 : vector<8x128xf32>
    %115 = vector.broadcast %27 : f32 to vector<8x128xf32>
    %116 = arith.addf %114, %115 : vector<8x128xf32>
    %117 = vector.broadcast %4 : f32 to vector<8x128xf32>
    %118 = arith.mulf %44, %117 : vector<8x128xf32>
    %119 = vector.broadcast %12 : f32 to vector<8x128xf32>
    %120 = arith.mulf %47, %119 : vector<8x128xf32>
    %121 = arith.addf %118, %120 : vector<8x128xf32>
    %122 = vector.broadcast %20 : f32 to vector<8x128xf32>
    %123 = arith.mulf %50, %122 : vector<8x128xf32>
    %124 = arith.addf %121, %123 : vector<8x128xf32>
    %125 = vector.broadcast %28 : f32 to vector<8x128xf32>
    %126 = arith.addf %124, %125 : vector<8x128xf32>
    %127 = vector.broadcast %5 : f32 to vector<8x128xf32>
    %128 = arith.mulf %44, %127 : vector<8x128xf32>
    %129 = vector.broadcast %13 : f32 to vector<8x128xf32>
    %130 = arith.mulf %47, %129 : vector<8x128xf32>
    %131 = arith.addf %128, %130 : vector<8x128xf32>
    %132 = vector.broadcast %21 : f32 to vector<8x128xf32>
    %133 = arith.mulf %50, %132 : vector<8x128xf32>
    %134 = arith.addf %131, %133 : vector<8x128xf32>
    %135 = vector.broadcast %29 : f32 to vector<8x128xf32>
    %136 = arith.addf %134, %135 : vector<8x128xf32>
    %137 = vector.broadcast %6 : f32 to vector<8x128xf32>
    %138 = arith.mulf %44, %137 : vector<8x128xf32>
    %139 = vector.broadcast %14 : f32 to vector<8x128xf32>
    %140 = arith.mulf %47, %139 : vector<8x128xf32>
    %141 = arith.addf %138, %140 : vector<8x128xf32>
    %142 = vector.broadcast %22 : f32 to vector<8x128xf32>
    %143 = arith.mulf %50, %142 : vector<8x128xf32>
    %144 = arith.addf %141, %143 : vector<8x128xf32>
    %145 = vector.broadcast %30 : f32 to vector<8x128xf32>
    %146 = arith.addf %144, %145 : vector<8x128xf32>
    %147 = vector.broadcast %7 : f32 to vector<8x128xf32>
    %148 = arith.mulf %44, %147 : vector<8x128xf32>
    %149 = vector.broadcast %15 : f32 to vector<8x128xf32>
    %150 = arith.mulf %47, %149 : vector<8x128xf32>
    %151 = arith.addf %148, %150 : vector<8x128xf32>
    %152 = vector.broadcast %23 : f32 to vector<8x128xf32>
    %153 = arith.mulf %50, %152 : vector<8x128xf32>
    %154 = arith.addf %151, %153 : vector<8x128xf32>
    %155 = vector.broadcast %31 : f32 to vector<8x128xf32>
    %156 = arith.addf %154, %155 : vector<8x128xf32>
    %157 = vector.broadcast %0 : f32 to vector<8x128xf32>
    %158 = arith.mulf %53, %157 : vector<8x128xf32>
    %159 = vector.broadcast %8 : f32 to vector<8x128xf32>
    %160 = arith.mulf %56, %159 : vector<8x128xf32>
    %161 = arith.addf %158, %160 : vector<8x128xf32>
    %162 = vector.broadcast %16 : f32 to vector<8x128xf32>
    %163 = arith.mulf %59, %162 : vector<8x128xf32>
    %164 = arith.addf %161, %163 : vector<8x128xf32>
    %165 = vector.broadcast %1 : f32 to vector<8x128xf32>
    %166 = arith.mulf %53, %165 : vector<8x128xf32>
    %167 = vector.broadcast %9 : f32 to vector<8x128xf32>
    %168 = arith.mulf %56, %167 : vector<8x128xf32>
    %169 = arith.addf %166, %168 : vector<8x128xf32>
    %170 = vector.broadcast %17 : f32 to vector<8x128xf32>
    %171 = arith.mulf %59, %170 : vector<8x128xf32>
    %172 = arith.addf %169, %171 : vector<8x128xf32>
    %173 = vector.broadcast %2 : f32 to vector<8x128xf32>
    %174 = arith.mulf %53, %173 : vector<8x128xf32>
    %175 = vector.broadcast %10 : f32 to vector<8x128xf32>
    %176 = arith.mulf %56, %175 : vector<8x128xf32>
    %177 = arith.addf %174, %176 : vector<8x128xf32>
    %178 = vector.broadcast %18 : f32 to vector<8x128xf32>
    %179 = arith.mulf %59, %178 : vector<8x128xf32>
    %180 = arith.addf %177, %179 : vector<8x128xf32>
    %181 = vector.broadcast %3 : f32 to vector<8x128xf32>
    %182 = arith.mulf %53, %181 : vector<8x128xf32>
    %183 = vector.broadcast %11 : f32 to vector<8x128xf32>
    %184 = arith.mulf %56, %183 : vector<8x128xf32>
    %185 = arith.addf %182, %184 : vector<8x128xf32>
    %186 = vector.broadcast %19 : f32 to vector<8x128xf32>
    %187 = arith.mulf %59, %186 : vector<8x128xf32>
    %188 = arith.addf %185, %187 : vector<8x128xf32>
    %189 = vector.broadcast %4 : f32 to vector<8x128xf32>
    %190 = arith.mulf %53, %189 : vector<8x128xf32>
    %191 = vector.broadcast %12 : f32 to vector<8x128xf32>
    %192 = arith.mulf %56, %191 : vector<8x128xf32>
    %193 = arith.addf %190, %192 : vector<8x128xf32>
    %194 = vector.broadcast %20 : f32 to vector<8x128xf32>
    %195 = arith.mulf %59, %194 : vector<8x128xf32>
    %196 = arith.addf %193, %195 : vector<8x128xf32>
    %197 = vector.broadcast %5 : f32 to vector<8x128xf32>
    %198 = arith.mulf %53, %197 : vector<8x128xf32>
    %199 = vector.broadcast %13 : f32 to vector<8x128xf32>
    %200 = arith.mulf %56, %199 : vector<8x128xf32>
    %201 = arith.addf %198, %200 : vector<8x128xf32>
    %202 = vector.broadcast %21 : f32 to vector<8x128xf32>
    %203 = arith.mulf %59, %202 : vector<8x128xf32>
    %204 = arith.addf %201, %203 : vector<8x128xf32>
    %205 = vector.broadcast %6 : f32 to vector<8x128xf32>
    %206 = arith.mulf %53, %205 : vector<8x128xf32>
    %207 = vector.broadcast %14 : f32 to vector<8x128xf32>
    %208 = arith.mulf %56, %207 : vector<8x128xf32>
    %209 = arith.addf %206, %208 : vector<8x128xf32>
    %210 = vector.broadcast %22 : f32 to vector<8x128xf32>
    %211 = arith.mulf %59, %210 : vector<8x128xf32>
    %212 = arith.addf %209, %211 : vector<8x128xf32>
    %213 = vector.broadcast %7 : f32 to vector<8x128xf32>
    %214 = arith.mulf %53, %213 : vector<8x128xf32>
    %215 = vector.broadcast %15 : f32 to vector<8x128xf32>
    %216 = arith.mulf %56, %215 : vector<8x128xf32>
    %217 = arith.addf %214, %216 : vector<8x128xf32>
    %218 = vector.broadcast %23 : f32 to vector<8x128xf32>
    %219 = arith.mulf %59, %218 : vector<8x128xf32>
    %220 = arith.addf %217, %219 : vector<8x128xf32>
    %221 = arith.mulf %69, %69 : vector<8x128xf32>
    %cst_75 = arith.constant 1.000000e+00 : f32
    %222 = vector.broadcast %cst_75 : f32 to vector<8x128xf32>
    %223 = arith.subf %64, %222 : vector<8x128xf32>
    %224 = arith.subf %221, %223 : vector<8x128xf32>
    %cst_76 = arith.constant 0.000000e+00 : f32
    %225 = vector.broadcast %cst_76 : f32 to vector<8x128xf32>
    %226 = arith.cmpf ogt, %224, %225 : vector<8x128xf32>
    %cst_77 = arith.constant 0.000000e+00 : f32
    %227 = vector.broadcast %cst_77 : f32 to vector<8x128xf32>
    %228 = arith.maximumf %224, %227 : vector<8x128xf32>
    %229 = math.sqrt %228 : vector<8x128xf32>
    %cst_78 = arith.constant 0.000000e+00 : f32
    %230 = vector.broadcast %cst_78 : f32 to vector<8x128xf32>
    %231 = arith.subf %230, %229 : vector<8x128xf32>
    %232 = arith.subf %231, %69 : vector<8x128xf32>
    %cst_79 = arith.constant 0.000000e+00 : f32
    %233 = vector.broadcast %cst_79 : f32 to vector<8x128xf32>
    %234 = arith.maximumf %232, %233 : vector<8x128xf32>
    %cst_80 = arith.constant 0.000000e+00 : f32
    %235 = vector.broadcast %cst_80 : f32 to vector<8x128xf32>
    %236 = arith.select %226, %234, %235 : vector<8x128xi1>, vector<8x128xf32>
    %237 = arith.subf %229, %69 : vector<8x128xf32>
    %cst_81 = arith.constant 0.000000e+00 : f32
    %238 = vector.broadcast %cst_81 : f32 to vector<8x128xf32>
    %239 = arith.maximumf %237, %238 : vector<8x128xf32>
    %cst_82 = arith.constant 0.000000e+00 : f32
    %240 = vector.broadcast %cst_82 : f32 to vector<8x128xf32>
    %241 = arith.select %226, %239, %240 : vector<8x128xi1>, vector<8x128xf32>
    %242 = arith.mulf %76, %236 : vector<8x128xf32>
    %243 = arith.addf %71, %242 : vector<8x128xf32>
    %244 = arith.mulf %236, %243 : vector<8x128xf32>
    %245 = arith.addf %64, %244 : vector<8x128xf32>
    %cst_83 = arith.constant 0.000000e+00 : f32
    %246 = vector.broadcast %cst_83 : f32 to vector<8x128xf32>
    %247 = arith.maximumf %245, %246 : vector<8x128xf32>
    %248 = math.sqrt %247 : vector<8x128xf32>
    %cst_84 = arith.constant 6.000000e-01 : f32
    %249 = vector.broadcast %cst_84 : f32 to vector<8x128xf32>
    %250 = arith.subf %248, %249 : vector<8x128xf32>
    %251 = arith.mulf %164, %236 : vector<8x128xf32>
    %252 = arith.addf %86, %251 : vector<8x128xf32>
    %253 = math.tanh %252 : vector<8x128xf32>
    %254 = vector.broadcast %32 : f32 to vector<8x128xf32>
    %255 = arith.mulf %254, %253 : vector<8x128xf32>
    %256 = arith.mulf %172, %236 : vector<8x128xf32>
    %257 = arith.addf %96, %256 : vector<8x128xf32>
    %258 = math.tanh %257 : vector<8x128xf32>
    %259 = vector.broadcast %33 : f32 to vector<8x128xf32>
    %260 = arith.mulf %259, %258 : vector<8x128xf32>
    %261 = arith.addf %255, %260 : vector<8x128xf32>
    %262 = arith.mulf %180, %236 : vector<8x128xf32>
    %263 = arith.addf %106, %262 : vector<8x128xf32>
    %264 = math.tanh %263 : vector<8x128xf32>
    %265 = vector.broadcast %34 : f32 to vector<8x128xf32>
    %266 = arith.mulf %265, %264 : vector<8x128xf32>
    %267 = arith.addf %261, %266 : vector<8x128xf32>
    %268 = arith.mulf %188, %236 : vector<8x128xf32>
    %269 = arith.addf %116, %268 : vector<8x128xf32>
    %270 = math.tanh %269 : vector<8x128xf32>
    %271 = vector.broadcast %35 : f32 to vector<8x128xf32>
    %272 = arith.mulf %271, %270 : vector<8x128xf32>
    %273 = arith.addf %267, %272 : vector<8x128xf32>
    %274 = arith.mulf %196, %236 : vector<8x128xf32>
    %275 = arith.addf %126, %274 : vector<8x128xf32>
    %276 = math.tanh %275 : vector<8x128xf32>
    %277 = vector.broadcast %36 : f32 to vector<8x128xf32>
    %278 = arith.mulf %277, %276 : vector<8x128xf32>
    %279 = arith.addf %273, %278 : vector<8x128xf32>
    %280 = arith.mulf %204, %236 : vector<8x128xf32>
    %281 = arith.addf %136, %280 : vector<8x128xf32>
    %282 = math.tanh %281 : vector<8x128xf32>
    %283 = vector.broadcast %37 : f32 to vector<8x128xf32>
    %284 = arith.mulf %283, %282 : vector<8x128xf32>
    %285 = arith.addf %279, %284 : vector<8x128xf32>
    %286 = arith.mulf %212, %236 : vector<8x128xf32>
    %287 = arith.addf %146, %286 : vector<8x128xf32>
    %288 = math.tanh %287 : vector<8x128xf32>
    %289 = vector.broadcast %38 : f32 to vector<8x128xf32>
    %290 = arith.mulf %289, %288 : vector<8x128xf32>
    %291 = arith.addf %285, %290 : vector<8x128xf32>
    %292 = arith.mulf %220, %236 : vector<8x128xf32>
    %293 = arith.addf %156, %292 : vector<8x128xf32>
    %294 = math.tanh %293 : vector<8x128xf32>
    %295 = vector.broadcast %39 : f32 to vector<8x128xf32>
    %296 = arith.mulf %295, %294 : vector<8x128xf32>
    %297 = arith.addf %291, %296 : vector<8x128xf32>
    %cst_85 = arith.constant 5.000000e-02 : f32
    %298 = vector.broadcast %cst_85 : f32 to vector<8x128xf32>
    %299 = arith.mulf %298, %297 : vector<8x128xf32>
    %300 = arith.addf %250, %299 : vector<8x128xf32>
    %cst_86 = arith.constant 0.000000e+00 : f32
    %301 = vector.broadcast %cst_86 : f32 to vector<8x128xf32>
    %302 = arith.select %226, %300, %301 : vector<8x128xi1>, vector<8x128xf32>
    %303 = arith.mulf %76, %241 : vector<8x128xf32>
    %304 = arith.addf %71, %303 : vector<8x128xf32>
    %305 = arith.mulf %241, %304 : vector<8x128xf32>
    %306 = arith.addf %64, %305 : vector<8x128xf32>
    %cst_87 = arith.constant 0.000000e+00 : f32
    %307 = vector.broadcast %cst_87 : f32 to vector<8x128xf32>
    %308 = arith.maximumf %306, %307 : vector<8x128xf32>
    %309 = math.sqrt %308 : vector<8x128xf32>
    %cst_88 = arith.constant 6.000000e-01 : f32
    %310 = vector.broadcast %cst_88 : f32 to vector<8x128xf32>
    %311 = arith.subf %309, %310 : vector<8x128xf32>
    %312 = arith.mulf %164, %241 : vector<8x128xf32>
    %313 = arith.addf %86, %312 : vector<8x128xf32>
    %314 = math.tanh %313 : vector<8x128xf32>
    %315 = vector.broadcast %32 : f32 to vector<8x128xf32>
    %316 = arith.mulf %315, %314 : vector<8x128xf32>
    %317 = arith.mulf %172, %241 : vector<8x128xf32>
    %318 = arith.addf %96, %317 : vector<8x128xf32>
    %319 = math.tanh %318 : vector<8x128xf32>
    %320 = vector.broadcast %33 : f32 to vector<8x128xf32>
    %321 = arith.mulf %320, %319 : vector<8x128xf32>
    %322 = arith.addf %316, %321 : vector<8x128xf32>
    %323 = arith.mulf %180, %241 : vector<8x128xf32>
    %324 = arith.addf %106, %323 : vector<8x128xf32>
    %325 = math.tanh %324 : vector<8x128xf32>
    %326 = vector.broadcast %34 : f32 to vector<8x128xf32>
    %327 = arith.mulf %326, %325 : vector<8x128xf32>
    %328 = arith.addf %322, %327 : vector<8x128xf32>
    %329 = arith.mulf %188, %241 : vector<8x128xf32>
    %330 = arith.addf %116, %329 : vector<8x128xf32>
    %331 = math.tanh %330 : vector<8x128xf32>
    %332 = vector.broadcast %35 : f32 to vector<8x128xf32>
    %333 = arith.mulf %332, %331 : vector<8x128xf32>
    %334 = arith.addf %328, %333 : vector<8x128xf32>
    %335 = arith.mulf %196, %241 : vector<8x128xf32>
    %336 = arith.addf %126, %335 : vector<8x128xf32>
    %337 = math.tanh %336 : vector<8x128xf32>
    %338 = vector.broadcast %36 : f32 to vector<8x128xf32>
    %339 = arith.mulf %338, %337 : vector<8x128xf32>
    %340 = arith.addf %334, %339 : vector<8x128xf32>
    %341 = arith.mulf %204, %241 : vector<8x128xf32>
    %342 = arith.addf %136, %341 : vector<8x128xf32>
    %343 = math.tanh %342 : vector<8x128xf32>
    %344 = vector.broadcast %37 : f32 to vector<8x128xf32>
    %345 = arith.mulf %344, %343 : vector<8x128xf32>
    %346 = arith.addf %340, %345 : vector<8x128xf32>
    %347 = arith.mulf %212, %241 : vector<8x128xf32>
    %348 = arith.addf %146, %347 : vector<8x128xf32>
    %349 = math.tanh %348 : vector<8x128xf32>
    %350 = vector.broadcast %38 : f32 to vector<8x128xf32>
    %351 = arith.mulf %350, %349 : vector<8x128xf32>
    %352 = arith.addf %346, %351 : vector<8x128xf32>
    %353 = arith.mulf %220, %241 : vector<8x128xf32>
    %354 = arith.addf %156, %353 : vector<8x128xf32>
    %355 = math.tanh %354 : vector<8x128xf32>
    %356 = vector.broadcast %39 : f32 to vector<8x128xf32>
    %357 = arith.mulf %356, %355 : vector<8x128xf32>
    %358 = arith.addf %352, %357 : vector<8x128xf32>
    %cst_89 = arith.constant 5.000000e-02 : f32
    %359 = vector.broadcast %cst_89 : f32 to vector<8x128xf32>
    %360 = arith.mulf %359, %358 : vector<8x128xf32>
    %361 = arith.addf %311, %360 : vector<8x128xf32>
    %cst_90 = arith.constant 0.000000e+00 : f32
    %362 = vector.broadcast %cst_90 : f32 to vector<8x128xf32>
    %363 = arith.select %226, %361, %362 : vector<8x128xi1>, vector<8x128xf32>
    %cst_91 = arith.constant 0.000000e+00 : f32
    %364 = vector.broadcast %cst_91 : f32 to vector<8x128xf32>
    %365 = arith.cmpf olt, %363, %364 : vector<8x128xf32>
    %cst_92 = arith.constant 0.000000e+00 : f32
    %366 = vector.broadcast %cst_92 : f32 to vector<8x128xf32>
    %367 = arith.cmpf olt, %302, %366 : vector<8x128xf32>
    %368 = arith.andi %365, %367 : vector<8x128xi1>
    %cst_93 = arith.constant 5.000000e-05 : f32
    %369 = vector.broadcast %cst_93 : f32 to vector<8x128xf32>
    %370 = arith.cmpf ogt, %302, %369 : vector<8x128xf32>
    %cst_94 = arith.constant 5.000000e-05 : f32
    %371 = vector.broadcast %cst_94 : f32 to vector<8x128xf32>
    %372 = arith.cmpf ogt, %363, %371 : vector<8x128xf32>
    %373 = arith.ori %370, %372 : vector<8x128xi1>
    %374 = arith.andi %226, %373 : vector<8x128xi1>
    %cst_95 = arith.constant 5.000000e-05 : f32
    %375 = vector.broadcast %cst_95 : f32 to vector<8x128xf32>
    %376 = arith.cmpf ogt, %302, %375 : vector<8x128xf32>
    %377 = arith.andi %226, %376 : vector<8x128xi1>
    %cst_96 = arith.constant 5.000000e-05 : f32
    %378 = vector.broadcast %cst_96 : f32 to vector<8x128xf32>
    %379 = arith.cmpf ogt, %363, %378 : vector<8x128xf32>
    %380 = arith.andi %226, %379 : vector<8x128xi1>
    %cst_97 = arith.constant 0.000000e+00 : f32
    %381 = vector.broadcast %cst_97 : f32 to vector<8x128xf32>
    %382 = arith.select %377, %302, %381 : vector<8x128xi1>, vector<8x128xf32>
    %cst_98 = arith.constant 0.000000e+00 : f32
    %383 = vector.broadcast %cst_98 : f32 to vector<8x128xf32>
    %384 = arith.select %380, %363, %383 : vector<8x128xi1>, vector<8x128xf32>
    %cst_99 = arith.constant -5.000000e-01 : f32
    %cst_100 = arith.constant 5.000000e-01 : f32
    %385 = vector.broadcast %cst_99 : f32 to vector<8x128xf32>
    %386 = arith.maximumf %385, %382 : vector<8x128xf32>
    %387 = vector.broadcast %cst_100 : f32 to vector<8x128xf32>
    %388 = arith.minimumf %387, %386 : vector<8x128xf32>
    %cst_101 = arith.constant -5.000000e-01 : f32
    %cst_102 = arith.constant 5.000000e-01 : f32
    %389 = vector.broadcast %cst_101 : f32 to vector<8x128xf32>
    %390 = arith.maximumf %389, %384 : vector<8x128xf32>
    %391 = vector.broadcast %cst_102 : f32 to vector<8x128xf32>
    %392 = arith.minimumf %391, %390 : vector<8x128xf32>
    %cst_103 = arith.constant 1.200000e+00 : f32
    %393 = vector.broadcast %cst_103 : f32 to vector<8x128xf32>
    %394 = arith.mulf %388, %393 : vector<8x128xf32>
    %395 = arith.addf %236, %394 : vector<8x128xf32>
    %cst_104 = arith.constant 1.200000e+00 : f32
    %396 = vector.broadcast %cst_104 : f32 to vector<8x128xf32>
    %397 = arith.mulf %392, %396 : vector<8x128xf32>
    %398 = arith.subf %241, %397 : vector<8x128xf32>
    %399 = arith.mulf %76, %395 : vector<8x128xf32>
    %400 = arith.addf %71, %399 : vector<8x128xf32>
    %401 = arith.mulf %395, %400 : vector<8x128xf32>
    %402 = arith.addf %64, %401 : vector<8x128xf32>
    %cst_105 = arith.constant 0.000000e+00 : f32
    %403 = vector.broadcast %cst_105 : f32 to vector<8x128xf32>
    %404 = arith.maximumf %402, %403 : vector<8x128xf32>
    %405 = math.sqrt %404 : vector<8x128xf32>
    %cst_106 = arith.constant 6.000000e-01 : f32
    %406 = vector.broadcast %cst_106 : f32 to vector<8x128xf32>
    %407 = arith.subf %405, %406 : vector<8x128xf32>
    %408 = arith.mulf %164, %395 : vector<8x128xf32>
    %409 = arith.addf %86, %408 : vector<8x128xf32>
    %410 = math.tanh %409 : vector<8x128xf32>
    %411 = vector.broadcast %32 : f32 to vector<8x128xf32>
    %412 = arith.mulf %411, %410 : vector<8x128xf32>
    %413 = arith.mulf %172, %395 : vector<8x128xf32>
    %414 = arith.addf %96, %413 : vector<8x128xf32>
    %415 = math.tanh %414 : vector<8x128xf32>
    %416 = vector.broadcast %33 : f32 to vector<8x128xf32>
    %417 = arith.mulf %416, %415 : vector<8x128xf32>
    %418 = arith.addf %412, %417 : vector<8x128xf32>
    %419 = arith.mulf %180, %395 : vector<8x128xf32>
    %420 = arith.addf %106, %419 : vector<8x128xf32>
    %421 = math.tanh %420 : vector<8x128xf32>
    %422 = vector.broadcast %34 : f32 to vector<8x128xf32>
    %423 = arith.mulf %422, %421 : vector<8x128xf32>
    %424 = arith.addf %418, %423 : vector<8x128xf32>
    %425 = arith.mulf %188, %395 : vector<8x128xf32>
    %426 = arith.addf %116, %425 : vector<8x128xf32>
    %427 = math.tanh %426 : vector<8x128xf32>
    %428 = vector.broadcast %35 : f32 to vector<8x128xf32>
    %429 = arith.mulf %428, %427 : vector<8x128xf32>
    %430 = arith.addf %424, %429 : vector<8x128xf32>
    %431 = arith.mulf %196, %395 : vector<8x128xf32>
    %432 = arith.addf %126, %431 : vector<8x128xf32>
    %433 = math.tanh %432 : vector<8x128xf32>
    %434 = vector.broadcast %36 : f32 to vector<8x128xf32>
    %435 = arith.mulf %434, %433 : vector<8x128xf32>
    %436 = arith.addf %430, %435 : vector<8x128xf32>
    %437 = arith.mulf %204, %395 : vector<8x128xf32>
    %438 = arith.addf %136, %437 : vector<8x128xf32>
    %439 = math.tanh %438 : vector<8x128xf32>
    %440 = vector.broadcast %37 : f32 to vector<8x128xf32>
    %441 = arith.mulf %440, %439 : vector<8x128xf32>
    %442 = arith.addf %436, %441 : vector<8x128xf32>
    %443 = arith.mulf %212, %395 : vector<8x128xf32>
    %444 = arith.addf %146, %443 : vector<8x128xf32>
    %445 = math.tanh %444 : vector<8x128xf32>
    %446 = vector.broadcast %38 : f32 to vector<8x128xf32>
    %447 = arith.mulf %446, %445 : vector<8x128xf32>
    %448 = arith.addf %442, %447 : vector<8x128xf32>
    %449 = arith.mulf %220, %395 : vector<8x128xf32>
    %450 = arith.addf %156, %449 : vector<8x128xf32>
    %451 = math.tanh %450 : vector<8x128xf32>
    %452 = vector.broadcast %39 : f32 to vector<8x128xf32>
    %453 = arith.mulf %452, %451 : vector<8x128xf32>
    %454 = arith.addf %448, %453 : vector<8x128xf32>
    %cst_107 = arith.constant 5.000000e-02 : f32
    %455 = vector.broadcast %cst_107 : f32 to vector<8x128xf32>
    %456 = arith.mulf %455, %454 : vector<8x128xf32>
    %457 = arith.addf %407, %456 : vector<8x128xf32>
    %cst_108 = arith.constant 0.000000e+00 : f32
    %458 = vector.broadcast %cst_108 : f32 to vector<8x128xf32>
    %459 = arith.select %377, %457, %458 : vector<8x128xi1>, vector<8x128xf32>
    %460 = arith.mulf %76, %398 : vector<8x128xf32>
    %461 = arith.addf %71, %460 : vector<8x128xf32>
    %462 = arith.mulf %398, %461 : vector<8x128xf32>
    %463 = arith.addf %64, %462 : vector<8x128xf32>
    %cst_109 = arith.constant 0.000000e+00 : f32
    %464 = vector.broadcast %cst_109 : f32 to vector<8x128xf32>
    %465 = arith.maximumf %463, %464 : vector<8x128xf32>
    %466 = math.sqrt %465 : vector<8x128xf32>
    %cst_110 = arith.constant 6.000000e-01 : f32
    %467 = vector.broadcast %cst_110 : f32 to vector<8x128xf32>
    %468 = arith.subf %466, %467 : vector<8x128xf32>
    %469 = arith.mulf %164, %398 : vector<8x128xf32>
    %470 = arith.addf %86, %469 : vector<8x128xf32>
    %471 = math.tanh %470 : vector<8x128xf32>
    %472 = vector.broadcast %32 : f32 to vector<8x128xf32>
    %473 = arith.mulf %472, %471 : vector<8x128xf32>
    %474 = arith.mulf %172, %398 : vector<8x128xf32>
    %475 = arith.addf %96, %474 : vector<8x128xf32>
    %476 = math.tanh %475 : vector<8x128xf32>
    %477 = vector.broadcast %33 : f32 to vector<8x128xf32>
    %478 = arith.mulf %477, %476 : vector<8x128xf32>
    %479 = arith.addf %473, %478 : vector<8x128xf32>
    %480 = arith.mulf %180, %398 : vector<8x128xf32>
    %481 = arith.addf %106, %480 : vector<8x128xf32>
    %482 = math.tanh %481 : vector<8x128xf32>
    %483 = vector.broadcast %34 : f32 to vector<8x128xf32>
    %484 = arith.mulf %483, %482 : vector<8x128xf32>
    %485 = arith.addf %479, %484 : vector<8x128xf32>
    %486 = arith.mulf %188, %398 : vector<8x128xf32>
    %487 = arith.addf %116, %486 : vector<8x128xf32>
    %488 = math.tanh %487 : vector<8x128xf32>
    %489 = vector.broadcast %35 : f32 to vector<8x128xf32>
    %490 = arith.mulf %489, %488 : vector<8x128xf32>
    %491 = arith.addf %485, %490 : vector<8x128xf32>
    %492 = arith.mulf %196, %398 : vector<8x128xf32>
    %493 = arith.addf %126, %492 : vector<8x128xf32>
    %494 = math.tanh %493 : vector<8x128xf32>
    %495 = vector.broadcast %36 : f32 to vector<8x128xf32>
    %496 = arith.mulf %495, %494 : vector<8x128xf32>
    %497 = arith.addf %491, %496 : vector<8x128xf32>
    %498 = arith.mulf %204, %398 : vector<8x128xf32>
    %499 = arith.addf %136, %498 : vector<8x128xf32>
    %500 = math.tanh %499 : vector<8x128xf32>
    %501 = vector.broadcast %37 : f32 to vector<8x128xf32>
    %502 = arith.mulf %501, %500 : vector<8x128xf32>
    %503 = arith.addf %497, %502 : vector<8x128xf32>
    %504 = arith.mulf %212, %398 : vector<8x128xf32>
    %505 = arith.addf %146, %504 : vector<8x128xf32>
    %506 = math.tanh %505 : vector<8x128xf32>
    %507 = vector.broadcast %38 : f32 to vector<8x128xf32>
    %508 = arith.mulf %507, %506 : vector<8x128xf32>
    %509 = arith.addf %503, %508 : vector<8x128xf32>
    %510 = arith.mulf %220, %398 : vector<8x128xf32>
    %511 = arith.addf %156, %510 : vector<8x128xf32>
    %512 = math.tanh %511 : vector<8x128xf32>
    %513 = vector.broadcast %39 : f32 to vector<8x128xf32>
    %514 = arith.mulf %513, %512 : vector<8x128xf32>
    %515 = arith.addf %509, %514 : vector<8x128xf32>
    %cst_111 = arith.constant 5.000000e-02 : f32
    %516 = vector.broadcast %cst_111 : f32 to vector<8x128xf32>
    %517 = arith.mulf %516, %515 : vector<8x128xf32>
    %518 = arith.addf %468, %517 : vector<8x128xf32>
    %cst_112 = arith.constant 0.000000e+00 : f32
    %519 = vector.broadcast %cst_112 : f32 to vector<8x128xf32>
    %520 = arith.select %380, %518, %519 : vector<8x128xi1>, vector<8x128xf32>
    %cst_113 = arith.constant 0.000000e+00 : f32
    %521 = vector.broadcast %cst_113 : f32 to vector<8x128xf32>
    %522 = arith.cmpf olt, %459, %521 : vector<8x128xf32>
    %cst_114 = arith.constant 0.000000e+00 : f32
    %523 = vector.broadcast %cst_114 : f32 to vector<8x128xf32>
    %524 = arith.cmpf olt, %520, %523 : vector<8x128xf32>
    %cst_115 = arith.constant 5.000000e-01 : f32
    %525 = vector.broadcast %cst_115 : f32 to vector<8x128xf32>
    %526 = arith.mulf %525, %388 : vector<8x128xf32>
    %527 = arith.subf %395, %526 : vector<8x128xf32>
    %528 = arith.select %522, %527, %395 : vector<8x128xi1>, vector<8x128xf32>
    %cst_116 = arith.constant 5.000000e-01 : f32
    %529 = vector.broadcast %cst_116 : f32 to vector<8x128xf32>
    %530 = arith.mulf %529, %392 : vector<8x128xf32>
    %531 = arith.addf %398, %530 : vector<8x128xf32>
    %532 = arith.select %524, %531, %398 : vector<8x128xi1>, vector<8x128xf32>
    %533 = arith.mulf %76, %528 : vector<8x128xf32>
    %534 = arith.addf %71, %533 : vector<8x128xf32>
    %535 = arith.mulf %528, %534 : vector<8x128xf32>
    %536 = arith.addf %64, %535 : vector<8x128xf32>
    %cst_117 = arith.constant 0.000000e+00 : f32
    %537 = vector.broadcast %cst_117 : f32 to vector<8x128xf32>
    %538 = arith.maximumf %536, %537 : vector<8x128xf32>
    %539 = math.sqrt %538 : vector<8x128xf32>
    %cst_118 = arith.constant 6.000000e-01 : f32
    %540 = vector.broadcast %cst_118 : f32 to vector<8x128xf32>
    %541 = arith.subf %539, %540 : vector<8x128xf32>
    %542 = arith.mulf %164, %528 : vector<8x128xf32>
    %543 = arith.addf %86, %542 : vector<8x128xf32>
    %544 = math.tanh %543 : vector<8x128xf32>
    %545 = vector.broadcast %32 : f32 to vector<8x128xf32>
    %546 = arith.mulf %545, %544 : vector<8x128xf32>
    %547 = arith.mulf %172, %528 : vector<8x128xf32>
    %548 = arith.addf %96, %547 : vector<8x128xf32>
    %549 = math.tanh %548 : vector<8x128xf32>
    %550 = vector.broadcast %33 : f32 to vector<8x128xf32>
    %551 = arith.mulf %550, %549 : vector<8x128xf32>
    %552 = arith.addf %546, %551 : vector<8x128xf32>
    %553 = arith.mulf %180, %528 : vector<8x128xf32>
    %554 = arith.addf %106, %553 : vector<8x128xf32>
    %555 = math.tanh %554 : vector<8x128xf32>
    %556 = vector.broadcast %34 : f32 to vector<8x128xf32>
    %557 = arith.mulf %556, %555 : vector<8x128xf32>
    %558 = arith.addf %552, %557 : vector<8x128xf32>
    %559 = arith.mulf %188, %528 : vector<8x128xf32>
    %560 = arith.addf %116, %559 : vector<8x128xf32>
    %561 = math.tanh %560 : vector<8x128xf32>
    %562 = vector.broadcast %35 : f32 to vector<8x128xf32>
    %563 = arith.mulf %562, %561 : vector<8x128xf32>
    %564 = arith.addf %558, %563 : vector<8x128xf32>
    %565 = arith.mulf %196, %528 : vector<8x128xf32>
    %566 = arith.addf %126, %565 : vector<8x128xf32>
    %567 = math.tanh %566 : vector<8x128xf32>
    %568 = vector.broadcast %36 : f32 to vector<8x128xf32>
    %569 = arith.mulf %568, %567 : vector<8x128xf32>
    %570 = arith.addf %564, %569 : vector<8x128xf32>
    %571 = arith.mulf %204, %528 : vector<8x128xf32>
    %572 = arith.addf %136, %571 : vector<8x128xf32>
    %573 = math.tanh %572 : vector<8x128xf32>
    %574 = vector.broadcast %37 : f32 to vector<8x128xf32>
    %575 = arith.mulf %574, %573 : vector<8x128xf32>
    %576 = arith.addf %570, %575 : vector<8x128xf32>
    %577 = arith.mulf %212, %528 : vector<8x128xf32>
    %578 = arith.addf %146, %577 : vector<8x128xf32>
    %579 = math.tanh %578 : vector<8x128xf32>
    %580 = vector.broadcast %38 : f32 to vector<8x128xf32>
    %581 = arith.mulf %580, %579 : vector<8x128xf32>
    %582 = arith.addf %576, %581 : vector<8x128xf32>
    %583 = arith.mulf %220, %528 : vector<8x128xf32>
    %584 = arith.addf %156, %583 : vector<8x128xf32>
    %585 = math.tanh %584 : vector<8x128xf32>
    %586 = vector.broadcast %39 : f32 to vector<8x128xf32>
    %587 = arith.mulf %586, %585 : vector<8x128xf32>
    %588 = arith.addf %582, %587 : vector<8x128xf32>
    %cst_119 = arith.constant 5.000000e-02 : f32
    %589 = vector.broadcast %cst_119 : f32 to vector<8x128xf32>
    %590 = arith.mulf %589, %588 : vector<8x128xf32>
    %591 = arith.addf %541, %590 : vector<8x128xf32>
    %592 = arith.select %522, %591, %459 : vector<8x128xi1>, vector<8x128xf32>
    %593 = arith.mulf %76, %532 : vector<8x128xf32>
    %594 = arith.addf %71, %593 : vector<8x128xf32>
    %595 = arith.mulf %532, %594 : vector<8x128xf32>
    %596 = arith.addf %64, %595 : vector<8x128xf32>
    %cst_120 = arith.constant 0.000000e+00 : f32
    %597 = vector.broadcast %cst_120 : f32 to vector<8x128xf32>
    %598 = arith.maximumf %596, %597 : vector<8x128xf32>
    %599 = math.sqrt %598 : vector<8x128xf32>
    %cst_121 = arith.constant 6.000000e-01 : f32
    %600 = vector.broadcast %cst_121 : f32 to vector<8x128xf32>
    %601 = arith.subf %599, %600 : vector<8x128xf32>
    %602 = arith.mulf %164, %532 : vector<8x128xf32>
    %603 = arith.addf %86, %602 : vector<8x128xf32>
    %604 = math.tanh %603 : vector<8x128xf32>
    %605 = vector.broadcast %32 : f32 to vector<8x128xf32>
    %606 = arith.mulf %605, %604 : vector<8x128xf32>
    %607 = arith.mulf %172, %532 : vector<8x128xf32>
    %608 = arith.addf %96, %607 : vector<8x128xf32>
    %609 = math.tanh %608 : vector<8x128xf32>
    %610 = vector.broadcast %33 : f32 to vector<8x128xf32>
    %611 = arith.mulf %610, %609 : vector<8x128xf32>
    %612 = arith.addf %606, %611 : vector<8x128xf32>
    %613 = arith.mulf %180, %532 : vector<8x128xf32>
    %614 = arith.addf %106, %613 : vector<8x128xf32>
    %615 = math.tanh %614 : vector<8x128xf32>
    %616 = vector.broadcast %34 : f32 to vector<8x128xf32>
    %617 = arith.mulf %616, %615 : vector<8x128xf32>
    %618 = arith.addf %612, %617 : vector<8x128xf32>
    %619 = arith.mulf %188, %532 : vector<8x128xf32>
    %620 = arith.addf %116, %619 : vector<8x128xf32>
    %621 = math.tanh %620 : vector<8x128xf32>
    %622 = vector.broadcast %35 : f32 to vector<8x128xf32>
    %623 = arith.mulf %622, %621 : vector<8x128xf32>
    %624 = arith.addf %618, %623 : vector<8x128xf32>
    %625 = arith.mulf %196, %532 : vector<8x128xf32>
    %626 = arith.addf %126, %625 : vector<8x128xf32>
    %627 = math.tanh %626 : vector<8x128xf32>
    %628 = vector.broadcast %36 : f32 to vector<8x128xf32>
    %629 = arith.mulf %628, %627 : vector<8x128xf32>
    %630 = arith.addf %624, %629 : vector<8x128xf32>
    %631 = arith.mulf %204, %532 : vector<8x128xf32>
    %632 = arith.addf %136, %631 : vector<8x128xf32>
    %633 = math.tanh %632 : vector<8x128xf32>
    %634 = vector.broadcast %37 : f32 to vector<8x128xf32>
    %635 = arith.mulf %634, %633 : vector<8x128xf32>
    %636 = arith.addf %630, %635 : vector<8x128xf32>
    %637 = arith.mulf %212, %532 : vector<8x128xf32>
    %638 = arith.addf %146, %637 : vector<8x128xf32>
    %639 = math.tanh %638 : vector<8x128xf32>
    %640 = vector.broadcast %38 : f32 to vector<8x128xf32>
    %641 = arith.mulf %640, %639 : vector<8x128xf32>
    %642 = arith.addf %636, %641 : vector<8x128xf32>
    %643 = arith.mulf %220, %532 : vector<8x128xf32>
    %644 = arith.addf %156, %643 : vector<8x128xf32>
    %645 = math.tanh %644 : vector<8x128xf32>
    %646 = vector.broadcast %39 : f32 to vector<8x128xf32>
    %647 = arith.mulf %646, %645 : vector<8x128xf32>
    %648 = arith.addf %642, %647 : vector<8x128xf32>
    %cst_122 = arith.constant 5.000000e-02 : f32
    %649 = vector.broadcast %cst_122 : f32 to vector<8x128xf32>
    %650 = arith.mulf %649, %648 : vector<8x128xf32>
    %651 = arith.addf %601, %650 : vector<8x128xf32>
    %652 = arith.select %524, %651, %520 : vector<8x128xi1>, vector<8x128xf32>
    %653 = arith.cmpf olt, %528, %532 : vector<8x128xf32>
    %654 = arith.andi %377, %653 : vector<8x128xi1>
    %655 = arith.andi %380, %653 : vector<8x128xi1>
    %cst_123 = arith.constant 5.000000e-05 : f32
    %656 = vector.broadcast %cst_123 : f32 to vector<8x128xf32>
    %657 = arith.cmpf ogt, %592, %656 : vector<8x128xf32>
    %658 = arith.andi %654, %657 : vector<8x128xi1>
    %cst_124 = arith.constant 5.000000e-05 : f32
    %659 = vector.broadcast %cst_124 : f32 to vector<8x128xf32>
    %660 = arith.cmpf ogt, %652, %659 : vector<8x128xf32>
    %661 = arith.andi %655, %660 : vector<8x128xi1>
    %cst_125 = arith.constant 0.000000e+00 : f32
    %662 = vector.broadcast %cst_125 : f32 to vector<8x128xf32>
    %663 = arith.select %658, %592, %662 : vector<8x128xi1>, vector<8x128xf32>
    %cst_126 = arith.constant 0.000000e+00 : f32
    %664 = vector.broadcast %cst_126 : f32 to vector<8x128xf32>
    %665 = arith.select %661, %652, %664 : vector<8x128xi1>, vector<8x128xf32>
    %cst_127 = arith.constant -5.000000e-01 : f32
    %cst_128 = arith.constant 5.000000e-01 : f32
    %666 = vector.broadcast %cst_127 : f32 to vector<8x128xf32>
    %667 = arith.maximumf %666, %663 : vector<8x128xf32>
    %668 = vector.broadcast %cst_128 : f32 to vector<8x128xf32>
    %669 = arith.minimumf %668, %667 : vector<8x128xf32>
    %cst_129 = arith.constant -5.000000e-01 : f32
    %cst_130 = arith.constant 5.000000e-01 : f32
    %670 = vector.broadcast %cst_129 : f32 to vector<8x128xf32>
    %671 = arith.maximumf %670, %665 : vector<8x128xf32>
    %672 = vector.broadcast %cst_130 : f32 to vector<8x128xf32>
    %673 = arith.minimumf %672, %671 : vector<8x128xf32>
    %cst_131 = arith.constant 1.200000e+00 : f32
    %674 = vector.broadcast %cst_131 : f32 to vector<8x128xf32>
    %675 = arith.mulf %669, %674 : vector<8x128xf32>
    %676 = arith.addf %528, %675 : vector<8x128xf32>
    %cst_132 = arith.constant 1.200000e+00 : f32
    %677 = vector.broadcast %cst_132 : f32 to vector<8x128xf32>
    %678 = arith.mulf %673, %677 : vector<8x128xf32>
    %679 = arith.subf %532, %678 : vector<8x128xf32>
    %680 = arith.mulf %76, %676 : vector<8x128xf32>
    %681 = arith.addf %71, %680 : vector<8x128xf32>
    %682 = arith.mulf %676, %681 : vector<8x128xf32>
    %683 = arith.addf %64, %682 : vector<8x128xf32>
    %cst_133 = arith.constant 0.000000e+00 : f32
    %684 = vector.broadcast %cst_133 : f32 to vector<8x128xf32>
    %685 = arith.maximumf %683, %684 : vector<8x128xf32>
    %686 = math.sqrt %685 : vector<8x128xf32>
    %cst_134 = arith.constant 6.000000e-01 : f32
    %687 = vector.broadcast %cst_134 : f32 to vector<8x128xf32>
    %688 = arith.subf %686, %687 : vector<8x128xf32>
    %689 = arith.mulf %164, %676 : vector<8x128xf32>
    %690 = arith.addf %86, %689 : vector<8x128xf32>
    %691 = math.tanh %690 : vector<8x128xf32>
    %692 = vector.broadcast %32 : f32 to vector<8x128xf32>
    %693 = arith.mulf %692, %691 : vector<8x128xf32>
    %694 = arith.mulf %172, %676 : vector<8x128xf32>
    %695 = arith.addf %96, %694 : vector<8x128xf32>
    %696 = math.tanh %695 : vector<8x128xf32>
    %697 = vector.broadcast %33 : f32 to vector<8x128xf32>
    %698 = arith.mulf %697, %696 : vector<8x128xf32>
    %699 = arith.addf %693, %698 : vector<8x128xf32>
    %700 = arith.mulf %180, %676 : vector<8x128xf32>
    %701 = arith.addf %106, %700 : vector<8x128xf32>
    %702 = math.tanh %701 : vector<8x128xf32>
    %703 = vector.broadcast %34 : f32 to vector<8x128xf32>
    %704 = arith.mulf %703, %702 : vector<8x128xf32>
    %705 = arith.addf %699, %704 : vector<8x128xf32>
    %706 = arith.mulf %188, %676 : vector<8x128xf32>
    %707 = arith.addf %116, %706 : vector<8x128xf32>
    %708 = math.tanh %707 : vector<8x128xf32>
    %709 = vector.broadcast %35 : f32 to vector<8x128xf32>
    %710 = arith.mulf %709, %708 : vector<8x128xf32>
    %711 = arith.addf %705, %710 : vector<8x128xf32>
    %712 = arith.mulf %196, %676 : vector<8x128xf32>
    %713 = arith.addf %126, %712 : vector<8x128xf32>
    %714 = math.tanh %713 : vector<8x128xf32>
    %715 = vector.broadcast %36 : f32 to vector<8x128xf32>
    %716 = arith.mulf %715, %714 : vector<8x128xf32>
    %717 = arith.addf %711, %716 : vector<8x128xf32>
    %718 = arith.mulf %204, %676 : vector<8x128xf32>
    %719 = arith.addf %136, %718 : vector<8x128xf32>
    %720 = math.tanh %719 : vector<8x128xf32>
    %721 = vector.broadcast %37 : f32 to vector<8x128xf32>
    %722 = arith.mulf %721, %720 : vector<8x128xf32>
    %723 = arith.addf %717, %722 : vector<8x128xf32>
    %724 = arith.mulf %212, %676 : vector<8x128xf32>
    %725 = arith.addf %146, %724 : vector<8x128xf32>
    %726 = math.tanh %725 : vector<8x128xf32>
    %727 = vector.broadcast %38 : f32 to vector<8x128xf32>
    %728 = arith.mulf %727, %726 : vector<8x128xf32>
    %729 = arith.addf %723, %728 : vector<8x128xf32>
    %730 = arith.mulf %220, %676 : vector<8x128xf32>
    %731 = arith.addf %156, %730 : vector<8x128xf32>
    %732 = math.tanh %731 : vector<8x128xf32>
    %733 = vector.broadcast %39 : f32 to vector<8x128xf32>
    %734 = arith.mulf %733, %732 : vector<8x128xf32>
    %735 = arith.addf %729, %734 : vector<8x128xf32>
    %cst_135 = arith.constant 5.000000e-02 : f32
    %736 = vector.broadcast %cst_135 : f32 to vector<8x128xf32>
    %737 = arith.mulf %736, %735 : vector<8x128xf32>
    %738 = arith.addf %688, %737 : vector<8x128xf32>
    %cst_136 = arith.constant 0.000000e+00 : f32
    %739 = vector.broadcast %cst_136 : f32 to vector<8x128xf32>
    %740 = arith.select %658, %738, %739 : vector<8x128xi1>, vector<8x128xf32>
    %741 = arith.mulf %76, %679 : vector<8x128xf32>
    %742 = arith.addf %71, %741 : vector<8x128xf32>
    %743 = arith.mulf %679, %742 : vector<8x128xf32>
    %744 = arith.addf %64, %743 : vector<8x128xf32>
    %cst_137 = arith.constant 0.000000e+00 : f32
    %745 = vector.broadcast %cst_137 : f32 to vector<8x128xf32>
    %746 = arith.maximumf %744, %745 : vector<8x128xf32>
    %747 = math.sqrt %746 : vector<8x128xf32>
    %cst_138 = arith.constant 6.000000e-01 : f32
    %748 = vector.broadcast %cst_138 : f32 to vector<8x128xf32>
    %749 = arith.subf %747, %748 : vector<8x128xf32>
    %750 = arith.mulf %164, %679 : vector<8x128xf32>
    %751 = arith.addf %86, %750 : vector<8x128xf32>
    %752 = math.tanh %751 : vector<8x128xf32>
    %753 = vector.broadcast %32 : f32 to vector<8x128xf32>
    %754 = arith.mulf %753, %752 : vector<8x128xf32>
    %755 = arith.mulf %172, %679 : vector<8x128xf32>
    %756 = arith.addf %96, %755 : vector<8x128xf32>
    %757 = math.tanh %756 : vector<8x128xf32>
    %758 = vector.broadcast %33 : f32 to vector<8x128xf32>
    %759 = arith.mulf %758, %757 : vector<8x128xf32>
    %760 = arith.addf %754, %759 : vector<8x128xf32>
    %761 = arith.mulf %180, %679 : vector<8x128xf32>
    %762 = arith.addf %106, %761 : vector<8x128xf32>
    %763 = math.tanh %762 : vector<8x128xf32>
    %764 = vector.broadcast %34 : f32 to vector<8x128xf32>
    %765 = arith.mulf %764, %763 : vector<8x128xf32>
    %766 = arith.addf %760, %765 : vector<8x128xf32>
    %767 = arith.mulf %188, %679 : vector<8x128xf32>
    %768 = arith.addf %116, %767 : vector<8x128xf32>
    %769 = math.tanh %768 : vector<8x128xf32>
    %770 = vector.broadcast %35 : f32 to vector<8x128xf32>
    %771 = arith.mulf %770, %769 : vector<8x128xf32>
    %772 = arith.addf %766, %771 : vector<8x128xf32>
    %773 = arith.mulf %196, %679 : vector<8x128xf32>
    %774 = arith.addf %126, %773 : vector<8x128xf32>
    %775 = math.tanh %774 : vector<8x128xf32>
    %776 = vector.broadcast %36 : f32 to vector<8x128xf32>
    %777 = arith.mulf %776, %775 : vector<8x128xf32>
    %778 = arith.addf %772, %777 : vector<8x128xf32>
    %779 = arith.mulf %204, %679 : vector<8x128xf32>
    %780 = arith.addf %136, %779 : vector<8x128xf32>
    %781 = math.tanh %780 : vector<8x128xf32>
    %782 = vector.broadcast %37 : f32 to vector<8x128xf32>
    %783 = arith.mulf %782, %781 : vector<8x128xf32>
    %784 = arith.addf %778, %783 : vector<8x128xf32>
    %785 = arith.mulf %212, %679 : vector<8x128xf32>
    %786 = arith.addf %146, %785 : vector<8x128xf32>
    %787 = math.tanh %786 : vector<8x128xf32>
    %788 = vector.broadcast %38 : f32 to vector<8x128xf32>
    %789 = arith.mulf %788, %787 : vector<8x128xf32>
    %790 = arith.addf %784, %789 : vector<8x128xf32>
    %791 = arith.mulf %220, %679 : vector<8x128xf32>
    %792 = arith.addf %156, %791 : vector<8x128xf32>
    %793 = math.tanh %792 : vector<8x128xf32>
    %794 = vector.broadcast %39 : f32 to vector<8x128xf32>
    %795 = arith.mulf %794, %793 : vector<8x128xf32>
    %796 = arith.addf %790, %795 : vector<8x128xf32>
    %cst_139 = arith.constant 5.000000e-02 : f32
    %797 = vector.broadcast %cst_139 : f32 to vector<8x128xf32>
    %798 = arith.mulf %797, %796 : vector<8x128xf32>
    %799 = arith.addf %749, %798 : vector<8x128xf32>
    %cst_140 = arith.constant 0.000000e+00 : f32
    %800 = vector.broadcast %cst_140 : f32 to vector<8x128xf32>
    %801 = arith.select %661, %799, %800 : vector<8x128xi1>, vector<8x128xf32>
    %cst_141 = arith.constant 0.000000e+00 : f32
    %802 = vector.broadcast %cst_141 : f32 to vector<8x128xf32>
    %803 = arith.cmpf olt, %740, %802 : vector<8x128xf32>
    %cst_142 = arith.constant 0.000000e+00 : f32
    %804 = vector.broadcast %cst_142 : f32 to vector<8x128xf32>
    %805 = arith.cmpf olt, %801, %804 : vector<8x128xf32>
    %cst_143 = arith.constant 5.000000e-01 : f32
    %806 = vector.broadcast %cst_143 : f32 to vector<8x128xf32>
    %807 = arith.mulf %806, %669 : vector<8x128xf32>
    %808 = arith.subf %676, %807 : vector<8x128xf32>
    %809 = arith.select %803, %808, %676 : vector<8x128xi1>, vector<8x128xf32>
    %cst_144 = arith.constant 5.000000e-01 : f32
    %810 = vector.broadcast %cst_144 : f32 to vector<8x128xf32>
    %811 = arith.mulf %810, %673 : vector<8x128xf32>
    %812 = arith.addf %679, %811 : vector<8x128xf32>
    %813 = arith.select %805, %812, %679 : vector<8x128xi1>, vector<8x128xf32>
    %814 = arith.mulf %76, %809 : vector<8x128xf32>
    %815 = arith.addf %71, %814 : vector<8x128xf32>
    %816 = arith.mulf %809, %815 : vector<8x128xf32>
    %817 = arith.addf %64, %816 : vector<8x128xf32>
    %cst_145 = arith.constant 0.000000e+00 : f32
    %818 = vector.broadcast %cst_145 : f32 to vector<8x128xf32>
    %819 = arith.maximumf %817, %818 : vector<8x128xf32>
    %820 = math.sqrt %819 : vector<8x128xf32>
    %cst_146 = arith.constant 6.000000e-01 : f32
    %821 = vector.broadcast %cst_146 : f32 to vector<8x128xf32>
    %822 = arith.subf %820, %821 : vector<8x128xf32>
    %823 = arith.mulf %164, %809 : vector<8x128xf32>
    %824 = arith.addf %86, %823 : vector<8x128xf32>
    %825 = math.tanh %824 : vector<8x128xf32>
    %826 = vector.broadcast %32 : f32 to vector<8x128xf32>
    %827 = arith.mulf %826, %825 : vector<8x128xf32>
    %828 = arith.mulf %172, %809 : vector<8x128xf32>
    %829 = arith.addf %96, %828 : vector<8x128xf32>
    %830 = math.tanh %829 : vector<8x128xf32>
    %831 = vector.broadcast %33 : f32 to vector<8x128xf32>
    %832 = arith.mulf %831, %830 : vector<8x128xf32>
    %833 = arith.addf %827, %832 : vector<8x128xf32>
    %834 = arith.mulf %180, %809 : vector<8x128xf32>
    %835 = arith.addf %106, %834 : vector<8x128xf32>
    %836 = math.tanh %835 : vector<8x128xf32>
    %837 = vector.broadcast %34 : f32 to vector<8x128xf32>
    %838 = arith.mulf %837, %836 : vector<8x128xf32>
    %839 = arith.addf %833, %838 : vector<8x128xf32>
    %840 = arith.mulf %188, %809 : vector<8x128xf32>
    %841 = arith.addf %116, %840 : vector<8x128xf32>
    %842 = math.tanh %841 : vector<8x128xf32>
    %843 = vector.broadcast %35 : f32 to vector<8x128xf32>
    %844 = arith.mulf %843, %842 : vector<8x128xf32>
    %845 = arith.addf %839, %844 : vector<8x128xf32>
    %846 = arith.mulf %196, %809 : vector<8x128xf32>
    %847 = arith.addf %126, %846 : vector<8x128xf32>
    %848 = math.tanh %847 : vector<8x128xf32>
    %849 = vector.broadcast %36 : f32 to vector<8x128xf32>
    %850 = arith.mulf %849, %848 : vector<8x128xf32>
    %851 = arith.addf %845, %850 : vector<8x128xf32>
    %852 = arith.mulf %204, %809 : vector<8x128xf32>
    %853 = arith.addf %136, %852 : vector<8x128xf32>
    %854 = math.tanh %853 : vector<8x128xf32>
    %855 = vector.broadcast %37 : f32 to vector<8x128xf32>
    %856 = arith.mulf %855, %854 : vector<8x128xf32>
    %857 = arith.addf %851, %856 : vector<8x128xf32>
    %858 = arith.mulf %212, %809 : vector<8x128xf32>
    %859 = arith.addf %146, %858 : vector<8x128xf32>
    %860 = math.tanh %859 : vector<8x128xf32>
    %861 = vector.broadcast %38 : f32 to vector<8x128xf32>
    %862 = arith.mulf %861, %860 : vector<8x128xf32>
    %863 = arith.addf %857, %862 : vector<8x128xf32>
    %864 = arith.mulf %220, %809 : vector<8x128xf32>
    %865 = arith.addf %156, %864 : vector<8x128xf32>
    %866 = math.tanh %865 : vector<8x128xf32>
    %867 = vector.broadcast %39 : f32 to vector<8x128xf32>
    %868 = arith.mulf %867, %866 : vector<8x128xf32>
    %869 = arith.addf %863, %868 : vector<8x128xf32>
    %cst_147 = arith.constant 5.000000e-02 : f32
    %870 = vector.broadcast %cst_147 : f32 to vector<8x128xf32>
    %871 = arith.mulf %870, %869 : vector<8x128xf32>
    %872 = arith.addf %822, %871 : vector<8x128xf32>
    %873 = arith.select %803, %872, %740 : vector<8x128xi1>, vector<8x128xf32>
    %874 = arith.mulf %76, %813 : vector<8x128xf32>
    %875 = arith.addf %71, %874 : vector<8x128xf32>
    %876 = arith.mulf %813, %875 : vector<8x128xf32>
    %877 = arith.addf %64, %876 : vector<8x128xf32>
    %cst_148 = arith.constant 0.000000e+00 : f32
    %878 = vector.broadcast %cst_148 : f32 to vector<8x128xf32>
    %879 = arith.maximumf %877, %878 : vector<8x128xf32>
    %880 = math.sqrt %879 : vector<8x128xf32>
    %cst_149 = arith.constant 6.000000e-01 : f32
    %881 = vector.broadcast %cst_149 : f32 to vector<8x128xf32>
    %882 = arith.subf %880, %881 : vector<8x128xf32>
    %883 = arith.mulf %164, %813 : vector<8x128xf32>
    %884 = arith.addf %86, %883 : vector<8x128xf32>
    %885 = math.tanh %884 : vector<8x128xf32>
    %886 = vector.broadcast %32 : f32 to vector<8x128xf32>
    %887 = arith.mulf %886, %885 : vector<8x128xf32>
    %888 = arith.mulf %172, %813 : vector<8x128xf32>
    %889 = arith.addf %96, %888 : vector<8x128xf32>
    %890 = math.tanh %889 : vector<8x128xf32>
    %891 = vector.broadcast %33 : f32 to vector<8x128xf32>
    %892 = arith.mulf %891, %890 : vector<8x128xf32>
    %893 = arith.addf %887, %892 : vector<8x128xf32>
    %894 = arith.mulf %180, %813 : vector<8x128xf32>
    %895 = arith.addf %106, %894 : vector<8x128xf32>
    %896 = math.tanh %895 : vector<8x128xf32>
    %897 = vector.broadcast %34 : f32 to vector<8x128xf32>
    %898 = arith.mulf %897, %896 : vector<8x128xf32>
    %899 = arith.addf %893, %898 : vector<8x128xf32>
    %900 = arith.mulf %188, %813 : vector<8x128xf32>
    %901 = arith.addf %116, %900 : vector<8x128xf32>
    %902 = math.tanh %901 : vector<8x128xf32>
    %903 = vector.broadcast %35 : f32 to vector<8x128xf32>
    %904 = arith.mulf %903, %902 : vector<8x128xf32>
    %905 = arith.addf %899, %904 : vector<8x128xf32>
    %906 = arith.mulf %196, %813 : vector<8x128xf32>
    %907 = arith.addf %126, %906 : vector<8x128xf32>
    %908 = math.tanh %907 : vector<8x128xf32>
    %909 = vector.broadcast %36 : f32 to vector<8x128xf32>
    %910 = arith.mulf %909, %908 : vector<8x128xf32>
    %911 = arith.addf %905, %910 : vector<8x128xf32>
    %912 = arith.mulf %204, %813 : vector<8x128xf32>
    %913 = arith.addf %136, %912 : vector<8x128xf32>
    %914 = math.tanh %913 : vector<8x128xf32>
    %915 = vector.broadcast %37 : f32 to vector<8x128xf32>
    %916 = arith.mulf %915, %914 : vector<8x128xf32>
    %917 = arith.addf %911, %916 : vector<8x128xf32>
    %918 = arith.mulf %212, %813 : vector<8x128xf32>
    %919 = arith.addf %146, %918 : vector<8x128xf32>
    %920 = math.tanh %919 : vector<8x128xf32>
    %921 = vector.broadcast %38 : f32 to vector<8x128xf32>
    %922 = arith.mulf %921, %920 : vector<8x128xf32>
    %923 = arith.addf %917, %922 : vector<8x128xf32>
    %924 = arith.mulf %220, %813 : vector<8x128xf32>
    %925 = arith.addf %156, %924 : vector<8x128xf32>
    %926 = math.tanh %925 : vector<8x128xf32>
    %927 = vector.broadcast %39 : f32 to vector<8x128xf32>
    %928 = arith.mulf %927, %926 : vector<8x128xf32>
    %929 = arith.addf %923, %928 : vector<8x128xf32>
    %cst_150 = arith.constant 5.000000e-02 : f32
    %930 = vector.broadcast %cst_150 : f32 to vector<8x128xf32>
    %931 = arith.mulf %930, %929 : vector<8x128xf32>
    %932 = arith.addf %882, %931 : vector<8x128xf32>
    %933 = arith.select %805, %932, %801 : vector<8x128xi1>, vector<8x128xf32>
    %934 = arith.cmpf olt, %809, %813 : vector<8x128xf32>
    %935 = arith.andi %658, %934 : vector<8x128xi1>
    %936 = arith.andi %661, %934 : vector<8x128xi1>
    %cst_151 = arith.constant 5.000000e-05 : f32
    %937 = vector.broadcast %cst_151 : f32 to vector<8x128xf32>
    %938 = arith.cmpf ogt, %873, %937 : vector<8x128xf32>
    %939 = arith.andi %935, %938 : vector<8x128xi1>
    %cst_152 = arith.constant 5.000000e-05 : f32
    %940 = vector.broadcast %cst_152 : f32 to vector<8x128xf32>
    %941 = arith.cmpf ogt, %933, %940 : vector<8x128xf32>
    %942 = arith.andi %936, %941 : vector<8x128xi1>
    %cst_153 = arith.constant 0.000000e+00 : f32
    %943 = vector.broadcast %cst_153 : f32 to vector<8x128xf32>
    %944 = arith.select %939, %873, %943 : vector<8x128xi1>, vector<8x128xf32>
    %cst_154 = arith.constant 0.000000e+00 : f32
    %945 = vector.broadcast %cst_154 : f32 to vector<8x128xf32>
    %946 = arith.select %942, %933, %945 : vector<8x128xi1>, vector<8x128xf32>
    %cst_155 = arith.constant -5.000000e-01 : f32
    %cst_156 = arith.constant 5.000000e-01 : f32
    %947 = vector.broadcast %cst_155 : f32 to vector<8x128xf32>
    %948 = arith.maximumf %947, %944 : vector<8x128xf32>
    %949 = vector.broadcast %cst_156 : f32 to vector<8x128xf32>
    %950 = arith.minimumf %949, %948 : vector<8x128xf32>
    %cst_157 = arith.constant -5.000000e-01 : f32
    %cst_158 = arith.constant 5.000000e-01 : f32
    %951 = vector.broadcast %cst_157 : f32 to vector<8x128xf32>
    %952 = arith.maximumf %951, %946 : vector<8x128xf32>
    %953 = vector.broadcast %cst_158 : f32 to vector<8x128xf32>
    %954 = arith.minimumf %953, %952 : vector<8x128xf32>
    %cst_159 = arith.constant 1.200000e+00 : f32
    %955 = vector.broadcast %cst_159 : f32 to vector<8x128xf32>
    %956 = arith.mulf %950, %955 : vector<8x128xf32>
    %957 = arith.addf %809, %956 : vector<8x128xf32>
    %cst_160 = arith.constant 1.200000e+00 : f32
    %958 = vector.broadcast %cst_160 : f32 to vector<8x128xf32>
    %959 = arith.mulf %954, %958 : vector<8x128xf32>
    %960 = arith.subf %813, %959 : vector<8x128xf32>
    %961 = arith.mulf %76, %957 : vector<8x128xf32>
    %962 = arith.addf %71, %961 : vector<8x128xf32>
    %963 = arith.mulf %957, %962 : vector<8x128xf32>
    %964 = arith.addf %64, %963 : vector<8x128xf32>
    %cst_161 = arith.constant 0.000000e+00 : f32
    %965 = vector.broadcast %cst_161 : f32 to vector<8x128xf32>
    %966 = arith.maximumf %964, %965 : vector<8x128xf32>
    %967 = math.sqrt %966 : vector<8x128xf32>
    %cst_162 = arith.constant 6.000000e-01 : f32
    %968 = vector.broadcast %cst_162 : f32 to vector<8x128xf32>
    %969 = arith.subf %967, %968 : vector<8x128xf32>
    %970 = arith.mulf %164, %957 : vector<8x128xf32>
    %971 = arith.addf %86, %970 : vector<8x128xf32>
    %972 = math.tanh %971 : vector<8x128xf32>
    %973 = vector.broadcast %32 : f32 to vector<8x128xf32>
    %974 = arith.mulf %973, %972 : vector<8x128xf32>
    %975 = arith.mulf %172, %957 : vector<8x128xf32>
    %976 = arith.addf %96, %975 : vector<8x128xf32>
    %977 = math.tanh %976 : vector<8x128xf32>
    %978 = vector.broadcast %33 : f32 to vector<8x128xf32>
    %979 = arith.mulf %978, %977 : vector<8x128xf32>
    %980 = arith.addf %974, %979 : vector<8x128xf32>
    %981 = arith.mulf %180, %957 : vector<8x128xf32>
    %982 = arith.addf %106, %981 : vector<8x128xf32>
    %983 = math.tanh %982 : vector<8x128xf32>
    %984 = vector.broadcast %34 : f32 to vector<8x128xf32>
    %985 = arith.mulf %984, %983 : vector<8x128xf32>
    %986 = arith.addf %980, %985 : vector<8x128xf32>
    %987 = arith.mulf %188, %957 : vector<8x128xf32>
    %988 = arith.addf %116, %987 : vector<8x128xf32>
    %989 = math.tanh %988 : vector<8x128xf32>
    %990 = vector.broadcast %35 : f32 to vector<8x128xf32>
    %991 = arith.mulf %990, %989 : vector<8x128xf32>
    %992 = arith.addf %986, %991 : vector<8x128xf32>
    %993 = arith.mulf %196, %957 : vector<8x128xf32>
    %994 = arith.addf %126, %993 : vector<8x128xf32>
    %995 = math.tanh %994 : vector<8x128xf32>
    %996 = vector.broadcast %36 : f32 to vector<8x128xf32>
    %997 = arith.mulf %996, %995 : vector<8x128xf32>
    %998 = arith.addf %992, %997 : vector<8x128xf32>
    %999 = arith.mulf %204, %957 : vector<8x128xf32>
    %1000 = arith.addf %136, %999 : vector<8x128xf32>
    %1001 = math.tanh %1000 : vector<8x128xf32>
    %1002 = vector.broadcast %37 : f32 to vector<8x128xf32>
    %1003 = arith.mulf %1002, %1001 : vector<8x128xf32>
    %1004 = arith.addf %998, %1003 : vector<8x128xf32>
    %1005 = arith.mulf %212, %957 : vector<8x128xf32>
    %1006 = arith.addf %146, %1005 : vector<8x128xf32>
    %1007 = math.tanh %1006 : vector<8x128xf32>
    %1008 = vector.broadcast %38 : f32 to vector<8x128xf32>
    %1009 = arith.mulf %1008, %1007 : vector<8x128xf32>
    %1010 = arith.addf %1004, %1009 : vector<8x128xf32>
    %1011 = arith.mulf %220, %957 : vector<8x128xf32>
    %1012 = arith.addf %156, %1011 : vector<8x128xf32>
    %1013 = math.tanh %1012 : vector<8x128xf32>
    %1014 = vector.broadcast %39 : f32 to vector<8x128xf32>
    %1015 = arith.mulf %1014, %1013 : vector<8x128xf32>
    %1016 = arith.addf %1010, %1015 : vector<8x128xf32>
    %cst_163 = arith.constant 5.000000e-02 : f32
    %1017 = vector.broadcast %cst_163 : f32 to vector<8x128xf32>
    %1018 = arith.mulf %1017, %1016 : vector<8x128xf32>
    %1019 = arith.addf %969, %1018 : vector<8x128xf32>
    %cst_164 = arith.constant 0.000000e+00 : f32
    %1020 = vector.broadcast %cst_164 : f32 to vector<8x128xf32>
    %1021 = arith.select %939, %1019, %1020 : vector<8x128xi1>, vector<8x128xf32>
    %1022 = arith.mulf %76, %960 : vector<8x128xf32>
    %1023 = arith.addf %71, %1022 : vector<8x128xf32>
    %1024 = arith.mulf %960, %1023 : vector<8x128xf32>
    %1025 = arith.addf %64, %1024 : vector<8x128xf32>
    %cst_165 = arith.constant 0.000000e+00 : f32
    %1026 = vector.broadcast %cst_165 : f32 to vector<8x128xf32>
    %1027 = arith.maximumf %1025, %1026 : vector<8x128xf32>
    %1028 = math.sqrt %1027 : vector<8x128xf32>
    %cst_166 = arith.constant 6.000000e-01 : f32
    %1029 = vector.broadcast %cst_166 : f32 to vector<8x128xf32>
    %1030 = arith.subf %1028, %1029 : vector<8x128xf32>
    %1031 = arith.mulf %164, %960 : vector<8x128xf32>
    %1032 = arith.addf %86, %1031 : vector<8x128xf32>
    %1033 = math.tanh %1032 : vector<8x128xf32>
    %1034 = vector.broadcast %32 : f32 to vector<8x128xf32>
    %1035 = arith.mulf %1034, %1033 : vector<8x128xf32>
    %1036 = arith.mulf %172, %960 : vector<8x128xf32>
    %1037 = arith.addf %96, %1036 : vector<8x128xf32>
    %1038 = math.tanh %1037 : vector<8x128xf32>
    %1039 = vector.broadcast %33 : f32 to vector<8x128xf32>
    %1040 = arith.mulf %1039, %1038 : vector<8x128xf32>
    %1041 = arith.addf %1035, %1040 : vector<8x128xf32>
    %1042 = arith.mulf %180, %960 : vector<8x128xf32>
    %1043 = arith.addf %106, %1042 : vector<8x128xf32>
    %1044 = math.tanh %1043 : vector<8x128xf32>
    %1045 = vector.broadcast %34 : f32 to vector<8x128xf32>
    %1046 = arith.mulf %1045, %1044 : vector<8x128xf32>
    %1047 = arith.addf %1041, %1046 : vector<8x128xf32>
    %1048 = arith.mulf %188, %960 : vector<8x128xf32>
    %1049 = arith.addf %116, %1048 : vector<8x128xf32>
    %1050 = math.tanh %1049 : vector<8x128xf32>
    %1051 = vector.broadcast %35 : f32 to vector<8x128xf32>
    %1052 = arith.mulf %1051, %1050 : vector<8x128xf32>
    %1053 = arith.addf %1047, %1052 : vector<8x128xf32>
    %1054 = arith.mulf %196, %960 : vector<8x128xf32>
    %1055 = arith.addf %126, %1054 : vector<8x128xf32>
    %1056 = math.tanh %1055 : vector<8x128xf32>
    %1057 = vector.broadcast %36 : f32 to vector<8x128xf32>
    %1058 = arith.mulf %1057, %1056 : vector<8x128xf32>
    %1059 = arith.addf %1053, %1058 : vector<8x128xf32>
    %1060 = arith.mulf %204, %960 : vector<8x128xf32>
    %1061 = arith.addf %136, %1060 : vector<8x128xf32>
    %1062 = math.tanh %1061 : vector<8x128xf32>
    %1063 = vector.broadcast %37 : f32 to vector<8x128xf32>
    %1064 = arith.mulf %1063, %1062 : vector<8x128xf32>
    %1065 = arith.addf %1059, %1064 : vector<8x128xf32>
    %1066 = arith.mulf %212, %960 : vector<8x128xf32>
    %1067 = arith.addf %146, %1066 : vector<8x128xf32>
    %1068 = math.tanh %1067 : vector<8x128xf32>
    %1069 = vector.broadcast %38 : f32 to vector<8x128xf32>
    %1070 = arith.mulf %1069, %1068 : vector<8x128xf32>
    %1071 = arith.addf %1065, %1070 : vector<8x128xf32>
    %1072 = arith.mulf %220, %960 : vector<8x128xf32>
    %1073 = arith.addf %156, %1072 : vector<8x128xf32>
    %1074 = math.tanh %1073 : vector<8x128xf32>
    %1075 = vector.broadcast %39 : f32 to vector<8x128xf32>
    %1076 = arith.mulf %1075, %1074 : vector<8x128xf32>
    %1077 = arith.addf %1071, %1076 : vector<8x128xf32>
    %cst_167 = arith.constant 5.000000e-02 : f32
    %1078 = vector.broadcast %cst_167 : f32 to vector<8x128xf32>
    %1079 = arith.mulf %1078, %1077 : vector<8x128xf32>
    %1080 = arith.addf %1030, %1079 : vector<8x128xf32>
    %cst_168 = arith.constant 0.000000e+00 : f32
    %1081 = vector.broadcast %cst_168 : f32 to vector<8x128xf32>
    %1082 = arith.select %942, %1080, %1081 : vector<8x128xi1>, vector<8x128xf32>
    %cst_169 = arith.constant 0.000000e+00 : f32
    %1083 = vector.broadcast %cst_169 : f32 to vector<8x128xf32>
    %1084 = arith.cmpf olt, %1021, %1083 : vector<8x128xf32>
    %cst_170 = arith.constant 0.000000e+00 : f32
    %1085 = vector.broadcast %cst_170 : f32 to vector<8x128xf32>
    %1086 = arith.cmpf olt, %1082, %1085 : vector<8x128xf32>
    %cst_171 = arith.constant 5.000000e-01 : f32
    %1087 = vector.broadcast %cst_171 : f32 to vector<8x128xf32>
    %1088 = arith.mulf %1087, %950 : vector<8x128xf32>
    %1089 = arith.subf %957, %1088 : vector<8x128xf32>
    %1090 = arith.select %1084, %1089, %957 : vector<8x128xi1>, vector<8x128xf32>
    %cst_172 = arith.constant 5.000000e-01 : f32
    %1091 = vector.broadcast %cst_172 : f32 to vector<8x128xf32>
    %1092 = arith.mulf %1091, %954 : vector<8x128xf32>
    %1093 = arith.addf %960, %1092 : vector<8x128xf32>
    %1094 = arith.select %1086, %1093, %960 : vector<8x128xi1>, vector<8x128xf32>
    %1095 = arith.mulf %76, %1090 : vector<8x128xf32>
    %1096 = arith.addf %71, %1095 : vector<8x128xf32>
    %1097 = arith.mulf %1090, %1096 : vector<8x128xf32>
    %1098 = arith.addf %64, %1097 : vector<8x128xf32>
    %cst_173 = arith.constant 0.000000e+00 : f32
    %1099 = vector.broadcast %cst_173 : f32 to vector<8x128xf32>
    %1100 = arith.maximumf %1098, %1099 : vector<8x128xf32>
    %1101 = math.sqrt %1100 : vector<8x128xf32>
    %cst_174 = arith.constant 6.000000e-01 : f32
    %1102 = vector.broadcast %cst_174 : f32 to vector<8x128xf32>
    %1103 = arith.subf %1101, %1102 : vector<8x128xf32>
    %1104 = arith.mulf %164, %1090 : vector<8x128xf32>
    %1105 = arith.addf %86, %1104 : vector<8x128xf32>
    %1106 = math.tanh %1105 : vector<8x128xf32>
    %1107 = vector.broadcast %32 : f32 to vector<8x128xf32>
    %1108 = arith.mulf %1107, %1106 : vector<8x128xf32>
    %1109 = arith.mulf %172, %1090 : vector<8x128xf32>
    %1110 = arith.addf %96, %1109 : vector<8x128xf32>
    %1111 = math.tanh %1110 : vector<8x128xf32>
    %1112 = vector.broadcast %33 : f32 to vector<8x128xf32>
    %1113 = arith.mulf %1112, %1111 : vector<8x128xf32>
    %1114 = arith.addf %1108, %1113 : vector<8x128xf32>
    %1115 = arith.mulf %180, %1090 : vector<8x128xf32>
    %1116 = arith.addf %106, %1115 : vector<8x128xf32>
    %1117 = math.tanh %1116 : vector<8x128xf32>
    %1118 = vector.broadcast %34 : f32 to vector<8x128xf32>
    %1119 = arith.mulf %1118, %1117 : vector<8x128xf32>
    %1120 = arith.addf %1114, %1119 : vector<8x128xf32>
    %1121 = arith.mulf %188, %1090 : vector<8x128xf32>
    %1122 = arith.addf %116, %1121 : vector<8x128xf32>
    %1123 = math.tanh %1122 : vector<8x128xf32>
    %1124 = vector.broadcast %35 : f32 to vector<8x128xf32>
    %1125 = arith.mulf %1124, %1123 : vector<8x128xf32>
    %1126 = arith.addf %1120, %1125 : vector<8x128xf32>
    %1127 = arith.mulf %196, %1090 : vector<8x128xf32>
    %1128 = arith.addf %126, %1127 : vector<8x128xf32>
    %1129 = math.tanh %1128 : vector<8x128xf32>
    %1130 = vector.broadcast %36 : f32 to vector<8x128xf32>
    %1131 = arith.mulf %1130, %1129 : vector<8x128xf32>
    %1132 = arith.addf %1126, %1131 : vector<8x128xf32>
    %1133 = arith.mulf %204, %1090 : vector<8x128xf32>
    %1134 = arith.addf %136, %1133 : vector<8x128xf32>
    %1135 = math.tanh %1134 : vector<8x128xf32>
    %1136 = vector.broadcast %37 : f32 to vector<8x128xf32>
    %1137 = arith.mulf %1136, %1135 : vector<8x128xf32>
    %1138 = arith.addf %1132, %1137 : vector<8x128xf32>
    %1139 = arith.mulf %212, %1090 : vector<8x128xf32>
    %1140 = arith.addf %146, %1139 : vector<8x128xf32>
    %1141 = math.tanh %1140 : vector<8x128xf32>
    %1142 = vector.broadcast %38 : f32 to vector<8x128xf32>
    %1143 = arith.mulf %1142, %1141 : vector<8x128xf32>
    %1144 = arith.addf %1138, %1143 : vector<8x128xf32>
    %1145 = arith.mulf %220, %1090 : vector<8x128xf32>
    %1146 = arith.addf %156, %1145 : vector<8x128xf32>
    %1147 = math.tanh %1146 : vector<8x128xf32>
    %1148 = vector.broadcast %39 : f32 to vector<8x128xf32>
    %1149 = arith.mulf %1148, %1147 : vector<8x128xf32>
    %1150 = arith.addf %1144, %1149 : vector<8x128xf32>
    %cst_175 = arith.constant 5.000000e-02 : f32
    %1151 = vector.broadcast %cst_175 : f32 to vector<8x128xf32>
    %1152 = arith.mulf %1151, %1150 : vector<8x128xf32>
    %1153 = arith.addf %1103, %1152 : vector<8x128xf32>
    %1154 = arith.select %1084, %1153, %1021 : vector<8x128xi1>, vector<8x128xf32>
    %1155 = arith.mulf %76, %1094 : vector<8x128xf32>
    %1156 = arith.addf %71, %1155 : vector<8x128xf32>
    %1157 = arith.mulf %1094, %1156 : vector<8x128xf32>
    %1158 = arith.addf %64, %1157 : vector<8x128xf32>
    %cst_176 = arith.constant 0.000000e+00 : f32
    %1159 = vector.broadcast %cst_176 : f32 to vector<8x128xf32>
    %1160 = arith.maximumf %1158, %1159 : vector<8x128xf32>
    %1161 = math.sqrt %1160 : vector<8x128xf32>
    %cst_177 = arith.constant 6.000000e-01 : f32
    %1162 = vector.broadcast %cst_177 : f32 to vector<8x128xf32>
    %1163 = arith.subf %1161, %1162 : vector<8x128xf32>
    %1164 = arith.mulf %164, %1094 : vector<8x128xf32>
    %1165 = arith.addf %86, %1164 : vector<8x128xf32>
    %1166 = math.tanh %1165 : vector<8x128xf32>
    %1167 = vector.broadcast %32 : f32 to vector<8x128xf32>
    %1168 = arith.mulf %1167, %1166 : vector<8x128xf32>
    %1169 = arith.mulf %172, %1094 : vector<8x128xf32>
    %1170 = arith.addf %96, %1169 : vector<8x128xf32>
    %1171 = math.tanh %1170 : vector<8x128xf32>
    %1172 = vector.broadcast %33 : f32 to vector<8x128xf32>
    %1173 = arith.mulf %1172, %1171 : vector<8x128xf32>
    %1174 = arith.addf %1168, %1173 : vector<8x128xf32>
    %1175 = arith.mulf %180, %1094 : vector<8x128xf32>
    %1176 = arith.addf %106, %1175 : vector<8x128xf32>
    %1177 = math.tanh %1176 : vector<8x128xf32>
    %1178 = vector.broadcast %34 : f32 to vector<8x128xf32>
    %1179 = arith.mulf %1178, %1177 : vector<8x128xf32>
    %1180 = arith.addf %1174, %1179 : vector<8x128xf32>
    %1181 = arith.mulf %188, %1094 : vector<8x128xf32>
    %1182 = arith.addf %116, %1181 : vector<8x128xf32>
    %1183 = math.tanh %1182 : vector<8x128xf32>
    %1184 = vector.broadcast %35 : f32 to vector<8x128xf32>
    %1185 = arith.mulf %1184, %1183 : vector<8x128xf32>
    %1186 = arith.addf %1180, %1185 : vector<8x128xf32>
    %1187 = arith.mulf %196, %1094 : vector<8x128xf32>
    %1188 = arith.addf %126, %1187 : vector<8x128xf32>
    %1189 = math.tanh %1188 : vector<8x128xf32>
    %1190 = vector.broadcast %36 : f32 to vector<8x128xf32>
    %1191 = arith.mulf %1190, %1189 : vector<8x128xf32>
    %1192 = arith.addf %1186, %1191 : vector<8x128xf32>
    %1193 = arith.mulf %204, %1094 : vector<8x128xf32>
    %1194 = arith.addf %136, %1193 : vector<8x128xf32>
    %1195 = math.tanh %1194 : vector<8x128xf32>
    %1196 = vector.broadcast %37 : f32 to vector<8x128xf32>
    %1197 = arith.mulf %1196, %1195 : vector<8x128xf32>
    %1198 = arith.addf %1192, %1197 : vector<8x128xf32>
    %1199 = arith.mulf %212, %1094 : vector<8x128xf32>
    %1200 = arith.addf %146, %1199 : vector<8x128xf32>
    %1201 = math.tanh %1200 : vector<8x128xf32>
    %1202 = vector.broadcast %38 : f32 to vector<8x128xf32>
    %1203 = arith.mulf %1202, %1201 : vector<8x128xf32>
    %1204 = arith.addf %1198, %1203 : vector<8x128xf32>
    %1205 = arith.mulf %220, %1094 : vector<8x128xf32>
    %1206 = arith.addf %156, %1205 : vector<8x128xf32>
    %1207 = math.tanh %1206 : vector<8x128xf32>
    %1208 = vector.broadcast %39 : f32 to vector<8x128xf32>
    %1209 = arith.mulf %1208, %1207 : vector<8x128xf32>
    %1210 = arith.addf %1204, %1209 : vector<8x128xf32>
    %cst_178 = arith.constant 5.000000e-02 : f32
    %1211 = vector.broadcast %cst_178 : f32 to vector<8x128xf32>
    %1212 = arith.mulf %1211, %1210 : vector<8x128xf32>
    %1213 = arith.addf %1163, %1212 : vector<8x128xf32>
    %1214 = arith.select %1086, %1213, %1082 : vector<8x128xi1>, vector<8x128xf32>
    %1215 = arith.cmpf olt, %1090, %1094 : vector<8x128xf32>
    %1216 = arith.andi %939, %1215 : vector<8x128xi1>
    %1217 = arith.andi %942, %1215 : vector<8x128xi1>
    %cst_179 = arith.constant 5.000000e-05 : f32
    %1218 = vector.broadcast %cst_179 : f32 to vector<8x128xf32>
    %1219 = arith.cmpf ogt, %1154, %1218 : vector<8x128xf32>
    %1220 = arith.andi %1216, %1219 : vector<8x128xi1>
    %cst_180 = arith.constant 5.000000e-05 : f32
    %1221 = vector.broadcast %cst_180 : f32 to vector<8x128xf32>
    %1222 = arith.cmpf ogt, %1214, %1221 : vector<8x128xf32>
    %1223 = arith.andi %1217, %1222 : vector<8x128xi1>
    %cst_181 = arith.constant 0.000000e+00 : f32
    %1224 = vector.broadcast %cst_181 : f32 to vector<8x128xf32>
    %1225 = arith.select %1220, %1154, %1224 : vector<8x128xi1>, vector<8x128xf32>
    %cst_182 = arith.constant 0.000000e+00 : f32
    %1226 = vector.broadcast %cst_182 : f32 to vector<8x128xf32>
    %1227 = arith.select %1223, %1214, %1226 : vector<8x128xi1>, vector<8x128xf32>
    %cst_183 = arith.constant -5.000000e-01 : f32
    %cst_184 = arith.constant 5.000000e-01 : f32
    %1228 = vector.broadcast %cst_183 : f32 to vector<8x128xf32>
    %1229 = arith.maximumf %1228, %1225 : vector<8x128xf32>
    %1230 = vector.broadcast %cst_184 : f32 to vector<8x128xf32>
    %1231 = arith.minimumf %1230, %1229 : vector<8x128xf32>
    %cst_185 = arith.constant -5.000000e-01 : f32
    %cst_186 = arith.constant 5.000000e-01 : f32
    %1232 = vector.broadcast %cst_185 : f32 to vector<8x128xf32>
    %1233 = arith.maximumf %1232, %1227 : vector<8x128xf32>
    %1234 = vector.broadcast %cst_186 : f32 to vector<8x128xf32>
    %1235 = arith.minimumf %1234, %1233 : vector<8x128xf32>
    %cst_187 = arith.constant 1.200000e+00 : f32
    %1236 = vector.broadcast %cst_187 : f32 to vector<8x128xf32>
    %1237 = arith.mulf %1231, %1236 : vector<8x128xf32>
    %1238 = arith.addf %1090, %1237 : vector<8x128xf32>
    %cst_188 = arith.constant 1.200000e+00 : f32
    %1239 = vector.broadcast %cst_188 : f32 to vector<8x128xf32>
    %1240 = arith.mulf %1235, %1239 : vector<8x128xf32>
    %1241 = arith.subf %1094, %1240 : vector<8x128xf32>
    %1242 = arith.mulf %76, %1238 : vector<8x128xf32>
    %1243 = arith.addf %71, %1242 : vector<8x128xf32>
    %1244 = arith.mulf %1238, %1243 : vector<8x128xf32>
    %1245 = arith.addf %64, %1244 : vector<8x128xf32>
    %cst_189 = arith.constant 0.000000e+00 : f32
    %1246 = vector.broadcast %cst_189 : f32 to vector<8x128xf32>
    %1247 = arith.maximumf %1245, %1246 : vector<8x128xf32>
    %1248 = math.sqrt %1247 : vector<8x128xf32>
    %cst_190 = arith.constant 6.000000e-01 : f32
    %1249 = vector.broadcast %cst_190 : f32 to vector<8x128xf32>
    %1250 = arith.subf %1248, %1249 : vector<8x128xf32>
    %1251 = arith.mulf %164, %1238 : vector<8x128xf32>
    %1252 = arith.addf %86, %1251 : vector<8x128xf32>
    %1253 = math.tanh %1252 : vector<8x128xf32>
    %1254 = vector.broadcast %32 : f32 to vector<8x128xf32>
    %1255 = arith.mulf %1254, %1253 : vector<8x128xf32>
    %1256 = arith.mulf %172, %1238 : vector<8x128xf32>
    %1257 = arith.addf %96, %1256 : vector<8x128xf32>
    %1258 = math.tanh %1257 : vector<8x128xf32>
    %1259 = vector.broadcast %33 : f32 to vector<8x128xf32>
    %1260 = arith.mulf %1259, %1258 : vector<8x128xf32>
    %1261 = arith.addf %1255, %1260 : vector<8x128xf32>
    %1262 = arith.mulf %180, %1238 : vector<8x128xf32>
    %1263 = arith.addf %106, %1262 : vector<8x128xf32>
    %1264 = math.tanh %1263 : vector<8x128xf32>
    %1265 = vector.broadcast %34 : f32 to vector<8x128xf32>
    %1266 = arith.mulf %1265, %1264 : vector<8x128xf32>
    %1267 = arith.addf %1261, %1266 : vector<8x128xf32>
    %1268 = arith.mulf %188, %1238 : vector<8x128xf32>
    %1269 = arith.addf %116, %1268 : vector<8x128xf32>
    %1270 = math.tanh %1269 : vector<8x128xf32>
    %1271 = vector.broadcast %35 : f32 to vector<8x128xf32>
    %1272 = arith.mulf %1271, %1270 : vector<8x128xf32>
    %1273 = arith.addf %1267, %1272 : vector<8x128xf32>
    %1274 = arith.mulf %196, %1238 : vector<8x128xf32>
    %1275 = arith.addf %126, %1274 : vector<8x128xf32>
    %1276 = math.tanh %1275 : vector<8x128xf32>
    %1277 = vector.broadcast %36 : f32 to vector<8x128xf32>
    %1278 = arith.mulf %1277, %1276 : vector<8x128xf32>
    %1279 = arith.addf %1273, %1278 : vector<8x128xf32>
    %1280 = arith.mulf %204, %1238 : vector<8x128xf32>
    %1281 = arith.addf %136, %1280 : vector<8x128xf32>
    %1282 = math.tanh %1281 : vector<8x128xf32>
    %1283 = vector.broadcast %37 : f32 to vector<8x128xf32>
    %1284 = arith.mulf %1283, %1282 : vector<8x128xf32>
    %1285 = arith.addf %1279, %1284 : vector<8x128xf32>
    %1286 = arith.mulf %212, %1238 : vector<8x128xf32>
    %1287 = arith.addf %146, %1286 : vector<8x128xf32>
    %1288 = math.tanh %1287 : vector<8x128xf32>
    %1289 = vector.broadcast %38 : f32 to vector<8x128xf32>
    %1290 = arith.mulf %1289, %1288 : vector<8x128xf32>
    %1291 = arith.addf %1285, %1290 : vector<8x128xf32>
    %1292 = arith.mulf %220, %1238 : vector<8x128xf32>
    %1293 = arith.addf %156, %1292 : vector<8x128xf32>
    %1294 = math.tanh %1293 : vector<8x128xf32>
    %1295 = vector.broadcast %39 : f32 to vector<8x128xf32>
    %1296 = arith.mulf %1295, %1294 : vector<8x128xf32>
    %1297 = arith.addf %1291, %1296 : vector<8x128xf32>
    %cst_191 = arith.constant 5.000000e-02 : f32
    %1298 = vector.broadcast %cst_191 : f32 to vector<8x128xf32>
    %1299 = arith.mulf %1298, %1297 : vector<8x128xf32>
    %1300 = arith.addf %1250, %1299 : vector<8x128xf32>
    %cst_192 = arith.constant 0.000000e+00 : f32
    %1301 = vector.broadcast %cst_192 : f32 to vector<8x128xf32>
    %1302 = arith.select %1220, %1300, %1301 : vector<8x128xi1>, vector<8x128xf32>
    %1303 = arith.mulf %76, %1241 : vector<8x128xf32>
    %1304 = arith.addf %71, %1303 : vector<8x128xf32>
    %1305 = arith.mulf %1241, %1304 : vector<8x128xf32>
    %1306 = arith.addf %64, %1305 : vector<8x128xf32>
    %cst_193 = arith.constant 0.000000e+00 : f32
    %1307 = vector.broadcast %cst_193 : f32 to vector<8x128xf32>
    %1308 = arith.maximumf %1306, %1307 : vector<8x128xf32>
    %1309 = math.sqrt %1308 : vector<8x128xf32>
    %cst_194 = arith.constant 6.000000e-01 : f32
    %1310 = vector.broadcast %cst_194 : f32 to vector<8x128xf32>
    %1311 = arith.subf %1309, %1310 : vector<8x128xf32>
    %1312 = arith.mulf %164, %1241 : vector<8x128xf32>
    %1313 = arith.addf %86, %1312 : vector<8x128xf32>
    %1314 = math.tanh %1313 : vector<8x128xf32>
    %1315 = vector.broadcast %32 : f32 to vector<8x128xf32>
    %1316 = arith.mulf %1315, %1314 : vector<8x128xf32>
    %1317 = arith.mulf %172, %1241 : vector<8x128xf32>
    %1318 = arith.addf %96, %1317 : vector<8x128xf32>
    %1319 = math.tanh %1318 : vector<8x128xf32>
    %1320 = vector.broadcast %33 : f32 to vector<8x128xf32>
    %1321 = arith.mulf %1320, %1319 : vector<8x128xf32>
    %1322 = arith.addf %1316, %1321 : vector<8x128xf32>
    %1323 = arith.mulf %180, %1241 : vector<8x128xf32>
    %1324 = arith.addf %106, %1323 : vector<8x128xf32>
    %1325 = math.tanh %1324 : vector<8x128xf32>
    %1326 = vector.broadcast %34 : f32 to vector<8x128xf32>
    %1327 = arith.mulf %1326, %1325 : vector<8x128xf32>
    %1328 = arith.addf %1322, %1327 : vector<8x128xf32>
    %1329 = arith.mulf %188, %1241 : vector<8x128xf32>
    %1330 = arith.addf %116, %1329 : vector<8x128xf32>
    %1331 = math.tanh %1330 : vector<8x128xf32>
    %1332 = vector.broadcast %35 : f32 to vector<8x128xf32>
    %1333 = arith.mulf %1332, %1331 : vector<8x128xf32>
    %1334 = arith.addf %1328, %1333 : vector<8x128xf32>
    %1335 = arith.mulf %196, %1241 : vector<8x128xf32>
    %1336 = arith.addf %126, %1335 : vector<8x128xf32>
    %1337 = math.tanh %1336 : vector<8x128xf32>
    %1338 = vector.broadcast %36 : f32 to vector<8x128xf32>
    %1339 = arith.mulf %1338, %1337 : vector<8x128xf32>
    %1340 = arith.addf %1334, %1339 : vector<8x128xf32>
    %1341 = arith.mulf %204, %1241 : vector<8x128xf32>
    %1342 = arith.addf %136, %1341 : vector<8x128xf32>
    %1343 = math.tanh %1342 : vector<8x128xf32>
    %1344 = vector.broadcast %37 : f32 to vector<8x128xf32>
    %1345 = arith.mulf %1344, %1343 : vector<8x128xf32>
    %1346 = arith.addf %1340, %1345 : vector<8x128xf32>
    %1347 = arith.mulf %212, %1241 : vector<8x128xf32>
    %1348 = arith.addf %146, %1347 : vector<8x128xf32>
    %1349 = math.tanh %1348 : vector<8x128xf32>
    %1350 = vector.broadcast %38 : f32 to vector<8x128xf32>
    %1351 = arith.mulf %1350, %1349 : vector<8x128xf32>
    %1352 = arith.addf %1346, %1351 : vector<8x128xf32>
    %1353 = arith.mulf %220, %1241 : vector<8x128xf32>
    %1354 = arith.addf %156, %1353 : vector<8x128xf32>
    %1355 = math.tanh %1354 : vector<8x128xf32>
    %1356 = vector.broadcast %39 : f32 to vector<8x128xf32>
    %1357 = arith.mulf %1356, %1355 : vector<8x128xf32>
    %1358 = arith.addf %1352, %1357 : vector<8x128xf32>
    %cst_195 = arith.constant 5.000000e-02 : f32
    %1359 = vector.broadcast %cst_195 : f32 to vector<8x128xf32>
    %1360 = arith.mulf %1359, %1358 : vector<8x128xf32>
    %1361 = arith.addf %1311, %1360 : vector<8x128xf32>
    %cst_196 = arith.constant 0.000000e+00 : f32
    %1362 = vector.broadcast %cst_196 : f32 to vector<8x128xf32>
    %1363 = arith.select %1223, %1361, %1362 : vector<8x128xi1>, vector<8x128xf32>
    %cst_197 = arith.constant 0.000000e+00 : f32
    %1364 = vector.broadcast %cst_197 : f32 to vector<8x128xf32>
    %1365 = arith.cmpf olt, %1302, %1364 : vector<8x128xf32>
    %cst_198 = arith.constant 0.000000e+00 : f32
    %1366 = vector.broadcast %cst_198 : f32 to vector<8x128xf32>
    %1367 = arith.cmpf olt, %1363, %1366 : vector<8x128xf32>
    %cst_199 = arith.constant 5.000000e-01 : f32
    %1368 = vector.broadcast %cst_199 : f32 to vector<8x128xf32>
    %1369 = arith.mulf %1368, %1231 : vector<8x128xf32>
    %1370 = arith.subf %1238, %1369 : vector<8x128xf32>
    %1371 = arith.select %1365, %1370, %1238 : vector<8x128xi1>, vector<8x128xf32>
    %cst_200 = arith.constant 5.000000e-01 : f32
    %1372 = vector.broadcast %cst_200 : f32 to vector<8x128xf32>
    %1373 = arith.mulf %1372, %1235 : vector<8x128xf32>
    %1374 = arith.addf %1241, %1373 : vector<8x128xf32>
    %1375 = arith.select %1367, %1374, %1241 : vector<8x128xi1>, vector<8x128xf32>
    %1376 = arith.mulf %76, %1371 : vector<8x128xf32>
    %1377 = arith.addf %71, %1376 : vector<8x128xf32>
    %1378 = arith.mulf %1371, %1377 : vector<8x128xf32>
    %1379 = arith.addf %64, %1378 : vector<8x128xf32>
    %cst_201 = arith.constant 0.000000e+00 : f32
    %1380 = vector.broadcast %cst_201 : f32 to vector<8x128xf32>
    %1381 = arith.maximumf %1379, %1380 : vector<8x128xf32>
    %1382 = math.sqrt %1381 : vector<8x128xf32>
    %cst_202 = arith.constant 6.000000e-01 : f32
    %1383 = vector.broadcast %cst_202 : f32 to vector<8x128xf32>
    %1384 = arith.subf %1382, %1383 : vector<8x128xf32>
    %1385 = arith.mulf %164, %1371 : vector<8x128xf32>
    %1386 = arith.addf %86, %1385 : vector<8x128xf32>
    %1387 = math.tanh %1386 : vector<8x128xf32>
    %1388 = vector.broadcast %32 : f32 to vector<8x128xf32>
    %1389 = arith.mulf %1388, %1387 : vector<8x128xf32>
    %1390 = arith.mulf %172, %1371 : vector<8x128xf32>
    %1391 = arith.addf %96, %1390 : vector<8x128xf32>
    %1392 = math.tanh %1391 : vector<8x128xf32>
    %1393 = vector.broadcast %33 : f32 to vector<8x128xf32>
    %1394 = arith.mulf %1393, %1392 : vector<8x128xf32>
    %1395 = arith.addf %1389, %1394 : vector<8x128xf32>
    %1396 = arith.mulf %180, %1371 : vector<8x128xf32>
    %1397 = arith.addf %106, %1396 : vector<8x128xf32>
    %1398 = math.tanh %1397 : vector<8x128xf32>
    %1399 = vector.broadcast %34 : f32 to vector<8x128xf32>
    %1400 = arith.mulf %1399, %1398 : vector<8x128xf32>
    %1401 = arith.addf %1395, %1400 : vector<8x128xf32>
    %1402 = arith.mulf %188, %1371 : vector<8x128xf32>
    %1403 = arith.addf %116, %1402 : vector<8x128xf32>
    %1404 = math.tanh %1403 : vector<8x128xf32>
    %1405 = vector.broadcast %35 : f32 to vector<8x128xf32>
    %1406 = arith.mulf %1405, %1404 : vector<8x128xf32>
    %1407 = arith.addf %1401, %1406 : vector<8x128xf32>
    %1408 = arith.mulf %196, %1371 : vector<8x128xf32>
    %1409 = arith.addf %126, %1408 : vector<8x128xf32>
    %1410 = math.tanh %1409 : vector<8x128xf32>
    %1411 = vector.broadcast %36 : f32 to vector<8x128xf32>
    %1412 = arith.mulf %1411, %1410 : vector<8x128xf32>
    %1413 = arith.addf %1407, %1412 : vector<8x128xf32>
    %1414 = arith.mulf %204, %1371 : vector<8x128xf32>
    %1415 = arith.addf %136, %1414 : vector<8x128xf32>
    %1416 = math.tanh %1415 : vector<8x128xf32>
    %1417 = vector.broadcast %37 : f32 to vector<8x128xf32>
    %1418 = arith.mulf %1417, %1416 : vector<8x128xf32>
    %1419 = arith.addf %1413, %1418 : vector<8x128xf32>
    %1420 = arith.mulf %212, %1371 : vector<8x128xf32>
    %1421 = arith.addf %146, %1420 : vector<8x128xf32>
    %1422 = math.tanh %1421 : vector<8x128xf32>
    %1423 = vector.broadcast %38 : f32 to vector<8x128xf32>
    %1424 = arith.mulf %1423, %1422 : vector<8x128xf32>
    %1425 = arith.addf %1419, %1424 : vector<8x128xf32>
    %1426 = arith.mulf %220, %1371 : vector<8x128xf32>
    %1427 = arith.addf %156, %1426 : vector<8x128xf32>
    %1428 = math.tanh %1427 : vector<8x128xf32>
    %1429 = vector.broadcast %39 : f32 to vector<8x128xf32>
    %1430 = arith.mulf %1429, %1428 : vector<8x128xf32>
    %1431 = arith.addf %1425, %1430 : vector<8x128xf32>
    %cst_203 = arith.constant 5.000000e-02 : f32
    %1432 = vector.broadcast %cst_203 : f32 to vector<8x128xf32>
    %1433 = arith.mulf %1432, %1431 : vector<8x128xf32>
    %1434 = arith.addf %1384, %1433 : vector<8x128xf32>
    %1435 = arith.select %1365, %1434, %1302 : vector<8x128xi1>, vector<8x128xf32>
    %1436 = arith.mulf %76, %1375 : vector<8x128xf32>
    %1437 = arith.addf %71, %1436 : vector<8x128xf32>
    %1438 = arith.mulf %1375, %1437 : vector<8x128xf32>
    %1439 = arith.addf %64, %1438 : vector<8x128xf32>
    %cst_204 = arith.constant 0.000000e+00 : f32
    %1440 = vector.broadcast %cst_204 : f32 to vector<8x128xf32>
    %1441 = arith.maximumf %1439, %1440 : vector<8x128xf32>
    %1442 = math.sqrt %1441 : vector<8x128xf32>
    %cst_205 = arith.constant 6.000000e-01 : f32
    %1443 = vector.broadcast %cst_205 : f32 to vector<8x128xf32>
    %1444 = arith.subf %1442, %1443 : vector<8x128xf32>
    %1445 = arith.mulf %164, %1375 : vector<8x128xf32>
    %1446 = arith.addf %86, %1445 : vector<8x128xf32>
    %1447 = math.tanh %1446 : vector<8x128xf32>
    %1448 = vector.broadcast %32 : f32 to vector<8x128xf32>
    %1449 = arith.mulf %1448, %1447 : vector<8x128xf32>
    %1450 = arith.mulf %172, %1375 : vector<8x128xf32>
    %1451 = arith.addf %96, %1450 : vector<8x128xf32>
    %1452 = math.tanh %1451 : vector<8x128xf32>
    %1453 = vector.broadcast %33 : f32 to vector<8x128xf32>
    %1454 = arith.mulf %1453, %1452 : vector<8x128xf32>
    %1455 = arith.addf %1449, %1454 : vector<8x128xf32>
    %1456 = arith.mulf %180, %1375 : vector<8x128xf32>
    %1457 = arith.addf %106, %1456 : vector<8x128xf32>
    %1458 = math.tanh %1457 : vector<8x128xf32>
    %1459 = vector.broadcast %34 : f32 to vector<8x128xf32>
    %1460 = arith.mulf %1459, %1458 : vector<8x128xf32>
    %1461 = arith.addf %1455, %1460 : vector<8x128xf32>
    %1462 = arith.mulf %188, %1375 : vector<8x128xf32>
    %1463 = arith.addf %116, %1462 : vector<8x128xf32>
    %1464 = math.tanh %1463 : vector<8x128xf32>
    %1465 = vector.broadcast %35 : f32 to vector<8x128xf32>
    %1466 = arith.mulf %1465, %1464 : vector<8x128xf32>
    %1467 = arith.addf %1461, %1466 : vector<8x128xf32>
    %1468 = arith.mulf %196, %1375 : vector<8x128xf32>
    %1469 = arith.addf %126, %1468 : vector<8x128xf32>
    %1470 = math.tanh %1469 : vector<8x128xf32>
    %1471 = vector.broadcast %36 : f32 to vector<8x128xf32>
    %1472 = arith.mulf %1471, %1470 : vector<8x128xf32>
    %1473 = arith.addf %1467, %1472 : vector<8x128xf32>
    %1474 = arith.mulf %204, %1375 : vector<8x128xf32>
    %1475 = arith.addf %136, %1474 : vector<8x128xf32>
    %1476 = math.tanh %1475 : vector<8x128xf32>
    %1477 = vector.broadcast %37 : f32 to vector<8x128xf32>
    %1478 = arith.mulf %1477, %1476 : vector<8x128xf32>
    %1479 = arith.addf %1473, %1478 : vector<8x128xf32>
    %1480 = arith.mulf %212, %1375 : vector<8x128xf32>
    %1481 = arith.addf %146, %1480 : vector<8x128xf32>
    %1482 = math.tanh %1481 : vector<8x128xf32>
    %1483 = vector.broadcast %38 : f32 to vector<8x128xf32>
    %1484 = arith.mulf %1483, %1482 : vector<8x128xf32>
    %1485 = arith.addf %1479, %1484 : vector<8x128xf32>
    %1486 = arith.mulf %220, %1375 : vector<8x128xf32>
    %1487 = arith.addf %156, %1486 : vector<8x128xf32>
    %1488 = math.tanh %1487 : vector<8x128xf32>
    %1489 = vector.broadcast %39 : f32 to vector<8x128xf32>
    %1490 = arith.mulf %1489, %1488 : vector<8x128xf32>
    %1491 = arith.addf %1485, %1490 : vector<8x128xf32>
    %cst_206 = arith.constant 5.000000e-02 : f32
    %1492 = vector.broadcast %cst_206 : f32 to vector<8x128xf32>
    %1493 = arith.mulf %1492, %1491 : vector<8x128xf32>
    %1494 = arith.addf %1444, %1493 : vector<8x128xf32>
    %1495 = arith.select %1367, %1494, %1363 : vector<8x128xi1>, vector<8x128xf32>
    %1496 = arith.cmpf olt, %1371, %1375 : vector<8x128xf32>
    %1497 = arith.andi %1220, %1496 : vector<8x128xi1>
    %1498 = arith.andi %1223, %1496 : vector<8x128xi1>
    %cst_207 = arith.constant 5.000000e-05 : f32
    %1499 = vector.broadcast %cst_207 : f32 to vector<8x128xf32>
    %1500 = arith.cmpf ogt, %1435, %1499 : vector<8x128xf32>
    %1501 = arith.andi %1497, %1500 : vector<8x128xi1>
    %cst_208 = arith.constant 5.000000e-05 : f32
    %1502 = vector.broadcast %cst_208 : f32 to vector<8x128xf32>
    %1503 = arith.cmpf ogt, %1495, %1502 : vector<8x128xf32>
    %1504 = arith.andi %1498, %1503 : vector<8x128xi1>
    %cst_209 = arith.constant 0.000000e+00 : f32
    %1505 = vector.broadcast %cst_209 : f32 to vector<8x128xf32>
    %1506 = arith.select %1501, %1435, %1505 : vector<8x128xi1>, vector<8x128xf32>
    %cst_210 = arith.constant 0.000000e+00 : f32
    %1507 = vector.broadcast %cst_210 : f32 to vector<8x128xf32>
    %1508 = arith.select %1504, %1495, %1507 : vector<8x128xi1>, vector<8x128xf32>
    %cst_211 = arith.constant -5.000000e-01 : f32
    %cst_212 = arith.constant 5.000000e-01 : f32
    %1509 = vector.broadcast %cst_211 : f32 to vector<8x128xf32>
    %1510 = arith.maximumf %1509, %1506 : vector<8x128xf32>
    %1511 = vector.broadcast %cst_212 : f32 to vector<8x128xf32>
    %1512 = arith.minimumf %1511, %1510 : vector<8x128xf32>
    %cst_213 = arith.constant -5.000000e-01 : f32
    %cst_214 = arith.constant 5.000000e-01 : f32
    %1513 = vector.broadcast %cst_213 : f32 to vector<8x128xf32>
    %1514 = arith.maximumf %1513, %1508 : vector<8x128xf32>
    %1515 = vector.broadcast %cst_214 : f32 to vector<8x128xf32>
    %1516 = arith.minimumf %1515, %1514 : vector<8x128xf32>
    %cst_215 = arith.constant 1.200000e+00 : f32
    %1517 = vector.broadcast %cst_215 : f32 to vector<8x128xf32>
    %1518 = arith.mulf %1512, %1517 : vector<8x128xf32>
    %1519 = arith.addf %1371, %1518 : vector<8x128xf32>
    %cst_216 = arith.constant 1.200000e+00 : f32
    %1520 = vector.broadcast %cst_216 : f32 to vector<8x128xf32>
    %1521 = arith.mulf %1516, %1520 : vector<8x128xf32>
    %1522 = arith.subf %1375, %1521 : vector<8x128xf32>
    %1523 = arith.mulf %76, %1519 : vector<8x128xf32>
    %1524 = arith.addf %71, %1523 : vector<8x128xf32>
    %1525 = arith.mulf %1519, %1524 : vector<8x128xf32>
    %1526 = arith.addf %64, %1525 : vector<8x128xf32>
    %cst_217 = arith.constant 0.000000e+00 : f32
    %1527 = vector.broadcast %cst_217 : f32 to vector<8x128xf32>
    %1528 = arith.maximumf %1526, %1527 : vector<8x128xf32>
    %1529 = math.sqrt %1528 : vector<8x128xf32>
    %cst_218 = arith.constant 6.000000e-01 : f32
    %1530 = vector.broadcast %cst_218 : f32 to vector<8x128xf32>
    %1531 = arith.subf %1529, %1530 : vector<8x128xf32>
    %1532 = arith.mulf %164, %1519 : vector<8x128xf32>
    %1533 = arith.addf %86, %1532 : vector<8x128xf32>
    %1534 = math.tanh %1533 : vector<8x128xf32>
    %1535 = vector.broadcast %32 : f32 to vector<8x128xf32>
    %1536 = arith.mulf %1535, %1534 : vector<8x128xf32>
    %1537 = arith.mulf %172, %1519 : vector<8x128xf32>
    %1538 = arith.addf %96, %1537 : vector<8x128xf32>
    %1539 = math.tanh %1538 : vector<8x128xf32>
    %1540 = vector.broadcast %33 : f32 to vector<8x128xf32>
    %1541 = arith.mulf %1540, %1539 : vector<8x128xf32>
    %1542 = arith.addf %1536, %1541 : vector<8x128xf32>
    %1543 = arith.mulf %180, %1519 : vector<8x128xf32>
    %1544 = arith.addf %106, %1543 : vector<8x128xf32>
    %1545 = math.tanh %1544 : vector<8x128xf32>
    %1546 = vector.broadcast %34 : f32 to vector<8x128xf32>
    %1547 = arith.mulf %1546, %1545 : vector<8x128xf32>
    %1548 = arith.addf %1542, %1547 : vector<8x128xf32>
    %1549 = arith.mulf %188, %1519 : vector<8x128xf32>
    %1550 = arith.addf %116, %1549 : vector<8x128xf32>
    %1551 = math.tanh %1550 : vector<8x128xf32>
    %1552 = vector.broadcast %35 : f32 to vector<8x128xf32>
    %1553 = arith.mulf %1552, %1551 : vector<8x128xf32>
    %1554 = arith.addf %1548, %1553 : vector<8x128xf32>
    %1555 = arith.mulf %196, %1519 : vector<8x128xf32>
    %1556 = arith.addf %126, %1555 : vector<8x128xf32>
    %1557 = math.tanh %1556 : vector<8x128xf32>
    %1558 = vector.broadcast %36 : f32 to vector<8x128xf32>
    %1559 = arith.mulf %1558, %1557 : vector<8x128xf32>
    %1560 = arith.addf %1554, %1559 : vector<8x128xf32>
    %1561 = arith.mulf %204, %1519 : vector<8x128xf32>
    %1562 = arith.addf %136, %1561 : vector<8x128xf32>
    %1563 = math.tanh %1562 : vector<8x128xf32>
    %1564 = vector.broadcast %37 : f32 to vector<8x128xf32>
    %1565 = arith.mulf %1564, %1563 : vector<8x128xf32>
    %1566 = arith.addf %1560, %1565 : vector<8x128xf32>
    %1567 = arith.mulf %212, %1519 : vector<8x128xf32>
    %1568 = arith.addf %146, %1567 : vector<8x128xf32>
    %1569 = math.tanh %1568 : vector<8x128xf32>
    %1570 = vector.broadcast %38 : f32 to vector<8x128xf32>
    %1571 = arith.mulf %1570, %1569 : vector<8x128xf32>
    %1572 = arith.addf %1566, %1571 : vector<8x128xf32>
    %1573 = arith.mulf %220, %1519 : vector<8x128xf32>
    %1574 = arith.addf %156, %1573 : vector<8x128xf32>
    %1575 = math.tanh %1574 : vector<8x128xf32>
    %1576 = vector.broadcast %39 : f32 to vector<8x128xf32>
    %1577 = arith.mulf %1576, %1575 : vector<8x128xf32>
    %1578 = arith.addf %1572, %1577 : vector<8x128xf32>
    %cst_219 = arith.constant 5.000000e-02 : f32
    %1579 = vector.broadcast %cst_219 : f32 to vector<8x128xf32>
    %1580 = arith.mulf %1579, %1578 : vector<8x128xf32>
    %1581 = arith.addf %1531, %1580 : vector<8x128xf32>
    %cst_220 = arith.constant 0.000000e+00 : f32
    %1582 = vector.broadcast %cst_220 : f32 to vector<8x128xf32>
    %1583 = arith.select %1501, %1581, %1582 : vector<8x128xi1>, vector<8x128xf32>
    %1584 = arith.mulf %76, %1522 : vector<8x128xf32>
    %1585 = arith.addf %71, %1584 : vector<8x128xf32>
    %1586 = arith.mulf %1522, %1585 : vector<8x128xf32>
    %1587 = arith.addf %64, %1586 : vector<8x128xf32>
    %cst_221 = arith.constant 0.000000e+00 : f32
    %1588 = vector.broadcast %cst_221 : f32 to vector<8x128xf32>
    %1589 = arith.maximumf %1587, %1588 : vector<8x128xf32>
    %1590 = math.sqrt %1589 : vector<8x128xf32>
    %cst_222 = arith.constant 6.000000e-01 : f32
    %1591 = vector.broadcast %cst_222 : f32 to vector<8x128xf32>
    %1592 = arith.subf %1590, %1591 : vector<8x128xf32>
    %1593 = arith.mulf %164, %1522 : vector<8x128xf32>
    %1594 = arith.addf %86, %1593 : vector<8x128xf32>
    %1595 = math.tanh %1594 : vector<8x128xf32>
    %1596 = vector.broadcast %32 : f32 to vector<8x128xf32>
    %1597 = arith.mulf %1596, %1595 : vector<8x128xf32>
    %1598 = arith.mulf %172, %1522 : vector<8x128xf32>
    %1599 = arith.addf %96, %1598 : vector<8x128xf32>
    %1600 = math.tanh %1599 : vector<8x128xf32>
    %1601 = vector.broadcast %33 : f32 to vector<8x128xf32>
    %1602 = arith.mulf %1601, %1600 : vector<8x128xf32>
    %1603 = arith.addf %1597, %1602 : vector<8x128xf32>
    %1604 = arith.mulf %180, %1522 : vector<8x128xf32>
    %1605 = arith.addf %106, %1604 : vector<8x128xf32>
    %1606 = math.tanh %1605 : vector<8x128xf32>
    %1607 = vector.broadcast %34 : f32 to vector<8x128xf32>
    %1608 = arith.mulf %1607, %1606 : vector<8x128xf32>
    %1609 = arith.addf %1603, %1608 : vector<8x128xf32>
    %1610 = arith.mulf %188, %1522 : vector<8x128xf32>
    %1611 = arith.addf %116, %1610 : vector<8x128xf32>
    %1612 = math.tanh %1611 : vector<8x128xf32>
    %1613 = vector.broadcast %35 : f32 to vector<8x128xf32>
    %1614 = arith.mulf %1613, %1612 : vector<8x128xf32>
    %1615 = arith.addf %1609, %1614 : vector<8x128xf32>
    %1616 = arith.mulf %196, %1522 : vector<8x128xf32>
    %1617 = arith.addf %126, %1616 : vector<8x128xf32>
    %1618 = math.tanh %1617 : vector<8x128xf32>
    %1619 = vector.broadcast %36 : f32 to vector<8x128xf32>
    %1620 = arith.mulf %1619, %1618 : vector<8x128xf32>
    %1621 = arith.addf %1615, %1620 : vector<8x128xf32>
    %1622 = arith.mulf %204, %1522 : vector<8x128xf32>
    %1623 = arith.addf %136, %1622 : vector<8x128xf32>
    %1624 = math.tanh %1623 : vector<8x128xf32>
    %1625 = vector.broadcast %37 : f32 to vector<8x128xf32>
    %1626 = arith.mulf %1625, %1624 : vector<8x128xf32>
    %1627 = arith.addf %1621, %1626 : vector<8x128xf32>
    %1628 = arith.mulf %212, %1522 : vector<8x128xf32>
    %1629 = arith.addf %146, %1628 : vector<8x128xf32>
    %1630 = math.tanh %1629 : vector<8x128xf32>
    %1631 = vector.broadcast %38 : f32 to vector<8x128xf32>
    %1632 = arith.mulf %1631, %1630 : vector<8x128xf32>
    %1633 = arith.addf %1627, %1632 : vector<8x128xf32>
    %1634 = arith.mulf %220, %1522 : vector<8x128xf32>
    %1635 = arith.addf %156, %1634 : vector<8x128xf32>
    %1636 = math.tanh %1635 : vector<8x128xf32>
    %1637 = vector.broadcast %39 : f32 to vector<8x128xf32>
    %1638 = arith.mulf %1637, %1636 : vector<8x128xf32>
    %1639 = arith.addf %1633, %1638 : vector<8x128xf32>
    %cst_223 = arith.constant 5.000000e-02 : f32
    %1640 = vector.broadcast %cst_223 : f32 to vector<8x128xf32>
    %1641 = arith.mulf %1640, %1639 : vector<8x128xf32>
    %1642 = arith.addf %1592, %1641 : vector<8x128xf32>
    %cst_224 = arith.constant 0.000000e+00 : f32
    %1643 = vector.broadcast %cst_224 : f32 to vector<8x128xf32>
    %1644 = arith.select %1504, %1642, %1643 : vector<8x128xi1>, vector<8x128xf32>
    %cst_225 = arith.constant 0.000000e+00 : f32
    %1645 = vector.broadcast %cst_225 : f32 to vector<8x128xf32>
    %1646 = arith.cmpf olt, %1583, %1645 : vector<8x128xf32>
    %cst_226 = arith.constant 0.000000e+00 : f32
    %1647 = vector.broadcast %cst_226 : f32 to vector<8x128xf32>
    %1648 = arith.cmpf olt, %1644, %1647 : vector<8x128xf32>
    %cst_227 = arith.constant 5.000000e-01 : f32
    %1649 = vector.broadcast %cst_227 : f32 to vector<8x128xf32>
    %1650 = arith.mulf %1649, %1512 : vector<8x128xf32>
    %1651 = arith.subf %1519, %1650 : vector<8x128xf32>
    %1652 = arith.select %1646, %1651, %1519 : vector<8x128xi1>, vector<8x128xf32>
    %cst_228 = arith.constant 5.000000e-01 : f32
    %1653 = vector.broadcast %cst_228 : f32 to vector<8x128xf32>
    %1654 = arith.mulf %1653, %1516 : vector<8x128xf32>
    %1655 = arith.addf %1522, %1654 : vector<8x128xf32>
    %1656 = arith.select %1648, %1655, %1522 : vector<8x128xi1>, vector<8x128xf32>
    %1657 = arith.mulf %76, %1652 : vector<8x128xf32>
    %1658 = arith.addf %71, %1657 : vector<8x128xf32>
    %1659 = arith.mulf %1652, %1658 : vector<8x128xf32>
    %1660 = arith.addf %64, %1659 : vector<8x128xf32>
    %cst_229 = arith.constant 0.000000e+00 : f32
    %1661 = vector.broadcast %cst_229 : f32 to vector<8x128xf32>
    %1662 = arith.maximumf %1660, %1661 : vector<8x128xf32>
    %1663 = math.sqrt %1662 : vector<8x128xf32>
    %cst_230 = arith.constant 6.000000e-01 : f32
    %1664 = vector.broadcast %cst_230 : f32 to vector<8x128xf32>
    %1665 = arith.subf %1663, %1664 : vector<8x128xf32>
    %1666 = arith.mulf %164, %1652 : vector<8x128xf32>
    %1667 = arith.addf %86, %1666 : vector<8x128xf32>
    %1668 = math.tanh %1667 : vector<8x128xf32>
    %1669 = vector.broadcast %32 : f32 to vector<8x128xf32>
    %1670 = arith.mulf %1669, %1668 : vector<8x128xf32>
    %1671 = arith.mulf %172, %1652 : vector<8x128xf32>
    %1672 = arith.addf %96, %1671 : vector<8x128xf32>
    %1673 = math.tanh %1672 : vector<8x128xf32>
    %1674 = vector.broadcast %33 : f32 to vector<8x128xf32>
    %1675 = arith.mulf %1674, %1673 : vector<8x128xf32>
    %1676 = arith.addf %1670, %1675 : vector<8x128xf32>
    %1677 = arith.mulf %180, %1652 : vector<8x128xf32>
    %1678 = arith.addf %106, %1677 : vector<8x128xf32>
    %1679 = math.tanh %1678 : vector<8x128xf32>
    %1680 = vector.broadcast %34 : f32 to vector<8x128xf32>
    %1681 = arith.mulf %1680, %1679 : vector<8x128xf32>
    %1682 = arith.addf %1676, %1681 : vector<8x128xf32>
    %1683 = arith.mulf %188, %1652 : vector<8x128xf32>
    %1684 = arith.addf %116, %1683 : vector<8x128xf32>
    %1685 = math.tanh %1684 : vector<8x128xf32>
    %1686 = vector.broadcast %35 : f32 to vector<8x128xf32>
    %1687 = arith.mulf %1686, %1685 : vector<8x128xf32>
    %1688 = arith.addf %1682, %1687 : vector<8x128xf32>
    %1689 = arith.mulf %196, %1652 : vector<8x128xf32>
    %1690 = arith.addf %126, %1689 : vector<8x128xf32>
    %1691 = math.tanh %1690 : vector<8x128xf32>
    %1692 = vector.broadcast %36 : f32 to vector<8x128xf32>
    %1693 = arith.mulf %1692, %1691 : vector<8x128xf32>
    %1694 = arith.addf %1688, %1693 : vector<8x128xf32>
    %1695 = arith.mulf %204, %1652 : vector<8x128xf32>
    %1696 = arith.addf %136, %1695 : vector<8x128xf32>
    %1697 = math.tanh %1696 : vector<8x128xf32>
    %1698 = vector.broadcast %37 : f32 to vector<8x128xf32>
    %1699 = arith.mulf %1698, %1697 : vector<8x128xf32>
    %1700 = arith.addf %1694, %1699 : vector<8x128xf32>
    %1701 = arith.mulf %212, %1652 : vector<8x128xf32>
    %1702 = arith.addf %146, %1701 : vector<8x128xf32>
    %1703 = math.tanh %1702 : vector<8x128xf32>
    %1704 = vector.broadcast %38 : f32 to vector<8x128xf32>
    %1705 = arith.mulf %1704, %1703 : vector<8x128xf32>
    %1706 = arith.addf %1700, %1705 : vector<8x128xf32>
    %1707 = arith.mulf %220, %1652 : vector<8x128xf32>
    %1708 = arith.addf %156, %1707 : vector<8x128xf32>
    %1709 = math.tanh %1708 : vector<8x128xf32>
    %1710 = vector.broadcast %39 : f32 to vector<8x128xf32>
    %1711 = arith.mulf %1710, %1709 : vector<8x128xf32>
    %1712 = arith.addf %1706, %1711 : vector<8x128xf32>
    %cst_231 = arith.constant 5.000000e-02 : f32
    %1713 = vector.broadcast %cst_231 : f32 to vector<8x128xf32>
    %1714 = arith.mulf %1713, %1712 : vector<8x128xf32>
    %1715 = arith.addf %1665, %1714 : vector<8x128xf32>
    %1716 = arith.select %1646, %1715, %1583 : vector<8x128xi1>, vector<8x128xf32>
    %1717 = arith.mulf %76, %1656 : vector<8x128xf32>
    %1718 = arith.addf %71, %1717 : vector<8x128xf32>
    %1719 = arith.mulf %1656, %1718 : vector<8x128xf32>
    %1720 = arith.addf %64, %1719 : vector<8x128xf32>
    %cst_232 = arith.constant 0.000000e+00 : f32
    %1721 = vector.broadcast %cst_232 : f32 to vector<8x128xf32>
    %1722 = arith.maximumf %1720, %1721 : vector<8x128xf32>
    %1723 = math.sqrt %1722 : vector<8x128xf32>
    %cst_233 = arith.constant 6.000000e-01 : f32
    %1724 = vector.broadcast %cst_233 : f32 to vector<8x128xf32>
    %1725 = arith.subf %1723, %1724 : vector<8x128xf32>
    %1726 = arith.mulf %164, %1656 : vector<8x128xf32>
    %1727 = arith.addf %86, %1726 : vector<8x128xf32>
    %1728 = math.tanh %1727 : vector<8x128xf32>
    %1729 = vector.broadcast %32 : f32 to vector<8x128xf32>
    %1730 = arith.mulf %1729, %1728 : vector<8x128xf32>
    %1731 = arith.mulf %172, %1656 : vector<8x128xf32>
    %1732 = arith.addf %96, %1731 : vector<8x128xf32>
    %1733 = math.tanh %1732 : vector<8x128xf32>
    %1734 = vector.broadcast %33 : f32 to vector<8x128xf32>
    %1735 = arith.mulf %1734, %1733 : vector<8x128xf32>
    %1736 = arith.addf %1730, %1735 : vector<8x128xf32>
    %1737 = arith.mulf %180, %1656 : vector<8x128xf32>
    %1738 = arith.addf %106, %1737 : vector<8x128xf32>
    %1739 = math.tanh %1738 : vector<8x128xf32>
    %1740 = vector.broadcast %34 : f32 to vector<8x128xf32>
    %1741 = arith.mulf %1740, %1739 : vector<8x128xf32>
    %1742 = arith.addf %1736, %1741 : vector<8x128xf32>
    %1743 = arith.mulf %188, %1656 : vector<8x128xf32>
    %1744 = arith.addf %116, %1743 : vector<8x128xf32>
    %1745 = math.tanh %1744 : vector<8x128xf32>
    %1746 = vector.broadcast %35 : f32 to vector<8x128xf32>
    %1747 = arith.mulf %1746, %1745 : vector<8x128xf32>
    %1748 = arith.addf %1742, %1747 : vector<8x128xf32>
    %1749 = arith.mulf %196, %1656 : vector<8x128xf32>
    %1750 = arith.addf %126, %1749 : vector<8x128xf32>
    %1751 = math.tanh %1750 : vector<8x128xf32>
    %1752 = vector.broadcast %36 : f32 to vector<8x128xf32>
    %1753 = arith.mulf %1752, %1751 : vector<8x128xf32>
    %1754 = arith.addf %1748, %1753 : vector<8x128xf32>
    %1755 = arith.mulf %204, %1656 : vector<8x128xf32>
    %1756 = arith.addf %136, %1755 : vector<8x128xf32>
    %1757 = math.tanh %1756 : vector<8x128xf32>
    %1758 = vector.broadcast %37 : f32 to vector<8x128xf32>
    %1759 = arith.mulf %1758, %1757 : vector<8x128xf32>
    %1760 = arith.addf %1754, %1759 : vector<8x128xf32>
    %1761 = arith.mulf %212, %1656 : vector<8x128xf32>
    %1762 = arith.addf %146, %1761 : vector<8x128xf32>
    %1763 = math.tanh %1762 : vector<8x128xf32>
    %1764 = vector.broadcast %38 : f32 to vector<8x128xf32>
    %1765 = arith.mulf %1764, %1763 : vector<8x128xf32>
    %1766 = arith.addf %1760, %1765 : vector<8x128xf32>
    %1767 = arith.mulf %220, %1656 : vector<8x128xf32>
    %1768 = arith.addf %156, %1767 : vector<8x128xf32>
    %1769 = math.tanh %1768 : vector<8x128xf32>
    %1770 = vector.broadcast %39 : f32 to vector<8x128xf32>
    %1771 = arith.mulf %1770, %1769 : vector<8x128xf32>
    %1772 = arith.addf %1766, %1771 : vector<8x128xf32>
    %cst_234 = arith.constant 5.000000e-02 : f32
    %1773 = vector.broadcast %cst_234 : f32 to vector<8x128xf32>
    %1774 = arith.mulf %1773, %1772 : vector<8x128xf32>
    %1775 = arith.addf %1725, %1774 : vector<8x128xf32>
    %1776 = arith.select %1648, %1775, %1644 : vector<8x128xi1>, vector<8x128xf32>
    %1777 = arith.cmpf olt, %1652, %1656 : vector<8x128xf32>
    %1778 = arith.andi %1501, %1777 : vector<8x128xi1>
    %1779 = arith.andi %1504, %1777 : vector<8x128xi1>
    %cst_235 = arith.constant 5.000000e-05 : f32
    %1780 = vector.broadcast %cst_235 : f32 to vector<8x128xf32>
    %1781 = arith.cmpf ogt, %1716, %1780 : vector<8x128xf32>
    %1782 = arith.andi %1778, %1781 : vector<8x128xi1>
    %cst_236 = arith.constant 5.000000e-05 : f32
    %1783 = vector.broadcast %cst_236 : f32 to vector<8x128xf32>
    %1784 = arith.cmpf ogt, %1776, %1783 : vector<8x128xf32>
    %1785 = arith.andi %1779, %1784 : vector<8x128xi1>
    %cst_237 = arith.constant 0.000000e+00 : f32
    %1786 = vector.broadcast %cst_237 : f32 to vector<8x128xf32>
    %1787 = arith.select %1782, %1716, %1786 : vector<8x128xi1>, vector<8x128xf32>
    %cst_238 = arith.constant 0.000000e+00 : f32
    %1788 = vector.broadcast %cst_238 : f32 to vector<8x128xf32>
    %1789 = arith.select %1785, %1776, %1788 : vector<8x128xi1>, vector<8x128xf32>
    %cst_239 = arith.constant -5.000000e-01 : f32
    %cst_240 = arith.constant 5.000000e-01 : f32
    %1790 = vector.broadcast %cst_239 : f32 to vector<8x128xf32>
    %1791 = arith.maximumf %1790, %1787 : vector<8x128xf32>
    %1792 = vector.broadcast %cst_240 : f32 to vector<8x128xf32>
    %1793 = arith.minimumf %1792, %1791 : vector<8x128xf32>
    %cst_241 = arith.constant -5.000000e-01 : f32
    %cst_242 = arith.constant 5.000000e-01 : f32
    %1794 = vector.broadcast %cst_241 : f32 to vector<8x128xf32>
    %1795 = arith.maximumf %1794, %1789 : vector<8x128xf32>
    %1796 = vector.broadcast %cst_242 : f32 to vector<8x128xf32>
    %1797 = arith.minimumf %1796, %1795 : vector<8x128xf32>
    %cst_243 = arith.constant 1.200000e+00 : f32
    %1798 = vector.broadcast %cst_243 : f32 to vector<8x128xf32>
    %1799 = arith.mulf %1793, %1798 : vector<8x128xf32>
    %1800 = arith.addf %1652, %1799 : vector<8x128xf32>
    %cst_244 = arith.constant 1.200000e+00 : f32
    %1801 = vector.broadcast %cst_244 : f32 to vector<8x128xf32>
    %1802 = arith.mulf %1797, %1801 : vector<8x128xf32>
    %1803 = arith.subf %1656, %1802 : vector<8x128xf32>
    %1804 = arith.mulf %76, %1800 : vector<8x128xf32>
    %1805 = arith.addf %71, %1804 : vector<8x128xf32>
    %1806 = arith.mulf %1800, %1805 : vector<8x128xf32>
    %1807 = arith.addf %64, %1806 : vector<8x128xf32>
    %cst_245 = arith.constant 0.000000e+00 : f32
    %1808 = vector.broadcast %cst_245 : f32 to vector<8x128xf32>
    %1809 = arith.maximumf %1807, %1808 : vector<8x128xf32>
    %1810 = math.sqrt %1809 : vector<8x128xf32>
    %cst_246 = arith.constant 6.000000e-01 : f32
    %1811 = vector.broadcast %cst_246 : f32 to vector<8x128xf32>
    %1812 = arith.subf %1810, %1811 : vector<8x128xf32>
    %1813 = arith.mulf %164, %1800 : vector<8x128xf32>
    %1814 = arith.addf %86, %1813 : vector<8x128xf32>
    %1815 = math.tanh %1814 : vector<8x128xf32>
    %1816 = vector.broadcast %32 : f32 to vector<8x128xf32>
    %1817 = arith.mulf %1816, %1815 : vector<8x128xf32>
    %1818 = arith.mulf %172, %1800 : vector<8x128xf32>
    %1819 = arith.addf %96, %1818 : vector<8x128xf32>
    %1820 = math.tanh %1819 : vector<8x128xf32>
    %1821 = vector.broadcast %33 : f32 to vector<8x128xf32>
    %1822 = arith.mulf %1821, %1820 : vector<8x128xf32>
    %1823 = arith.addf %1817, %1822 : vector<8x128xf32>
    %1824 = arith.mulf %180, %1800 : vector<8x128xf32>
    %1825 = arith.addf %106, %1824 : vector<8x128xf32>
    %1826 = math.tanh %1825 : vector<8x128xf32>
    %1827 = vector.broadcast %34 : f32 to vector<8x128xf32>
    %1828 = arith.mulf %1827, %1826 : vector<8x128xf32>
    %1829 = arith.addf %1823, %1828 : vector<8x128xf32>
    %1830 = arith.mulf %188, %1800 : vector<8x128xf32>
    %1831 = arith.addf %116, %1830 : vector<8x128xf32>
    %1832 = math.tanh %1831 : vector<8x128xf32>
    %1833 = vector.broadcast %35 : f32 to vector<8x128xf32>
    %1834 = arith.mulf %1833, %1832 : vector<8x128xf32>
    %1835 = arith.addf %1829, %1834 : vector<8x128xf32>
    %1836 = arith.mulf %196, %1800 : vector<8x128xf32>
    %1837 = arith.addf %126, %1836 : vector<8x128xf32>
    %1838 = math.tanh %1837 : vector<8x128xf32>
    %1839 = vector.broadcast %36 : f32 to vector<8x128xf32>
    %1840 = arith.mulf %1839, %1838 : vector<8x128xf32>
    %1841 = arith.addf %1835, %1840 : vector<8x128xf32>
    %1842 = arith.mulf %204, %1800 : vector<8x128xf32>
    %1843 = arith.addf %136, %1842 : vector<8x128xf32>
    %1844 = math.tanh %1843 : vector<8x128xf32>
    %1845 = vector.broadcast %37 : f32 to vector<8x128xf32>
    %1846 = arith.mulf %1845, %1844 : vector<8x128xf32>
    %1847 = arith.addf %1841, %1846 : vector<8x128xf32>
    %1848 = arith.mulf %212, %1800 : vector<8x128xf32>
    %1849 = arith.addf %146, %1848 : vector<8x128xf32>
    %1850 = math.tanh %1849 : vector<8x128xf32>
    %1851 = vector.broadcast %38 : f32 to vector<8x128xf32>
    %1852 = arith.mulf %1851, %1850 : vector<8x128xf32>
    %1853 = arith.addf %1847, %1852 : vector<8x128xf32>
    %1854 = arith.mulf %220, %1800 : vector<8x128xf32>
    %1855 = arith.addf %156, %1854 : vector<8x128xf32>
    %1856 = math.tanh %1855 : vector<8x128xf32>
    %1857 = vector.broadcast %39 : f32 to vector<8x128xf32>
    %1858 = arith.mulf %1857, %1856 : vector<8x128xf32>
    %1859 = arith.addf %1853, %1858 : vector<8x128xf32>
    %cst_247 = arith.constant 5.000000e-02 : f32
    %1860 = vector.broadcast %cst_247 : f32 to vector<8x128xf32>
    %1861 = arith.mulf %1860, %1859 : vector<8x128xf32>
    %1862 = arith.addf %1812, %1861 : vector<8x128xf32>
    %cst_248 = arith.constant 0.000000e+00 : f32
    %1863 = vector.broadcast %cst_248 : f32 to vector<8x128xf32>
    %1864 = arith.select %1782, %1862, %1863 : vector<8x128xi1>, vector<8x128xf32>
    %1865 = arith.mulf %76, %1803 : vector<8x128xf32>
    %1866 = arith.addf %71, %1865 : vector<8x128xf32>
    %1867 = arith.mulf %1803, %1866 : vector<8x128xf32>
    %1868 = arith.addf %64, %1867 : vector<8x128xf32>
    %cst_249 = arith.constant 0.000000e+00 : f32
    %1869 = vector.broadcast %cst_249 : f32 to vector<8x128xf32>
    %1870 = arith.maximumf %1868, %1869 : vector<8x128xf32>
    %1871 = math.sqrt %1870 : vector<8x128xf32>
    %cst_250 = arith.constant 6.000000e-01 : f32
    %1872 = vector.broadcast %cst_250 : f32 to vector<8x128xf32>
    %1873 = arith.subf %1871, %1872 : vector<8x128xf32>
    %1874 = arith.mulf %164, %1803 : vector<8x128xf32>
    %1875 = arith.addf %86, %1874 : vector<8x128xf32>
    %1876 = math.tanh %1875 : vector<8x128xf32>
    %1877 = vector.broadcast %32 : f32 to vector<8x128xf32>
    %1878 = arith.mulf %1877, %1876 : vector<8x128xf32>
    %1879 = arith.mulf %172, %1803 : vector<8x128xf32>
    %1880 = arith.addf %96, %1879 : vector<8x128xf32>
    %1881 = math.tanh %1880 : vector<8x128xf32>
    %1882 = vector.broadcast %33 : f32 to vector<8x128xf32>
    %1883 = arith.mulf %1882, %1881 : vector<8x128xf32>
    %1884 = arith.addf %1878, %1883 : vector<8x128xf32>
    %1885 = arith.mulf %180, %1803 : vector<8x128xf32>
    %1886 = arith.addf %106, %1885 : vector<8x128xf32>
    %1887 = math.tanh %1886 : vector<8x128xf32>
    %1888 = vector.broadcast %34 : f32 to vector<8x128xf32>
    %1889 = arith.mulf %1888, %1887 : vector<8x128xf32>
    %1890 = arith.addf %1884, %1889 : vector<8x128xf32>
    %1891 = arith.mulf %188, %1803 : vector<8x128xf32>
    %1892 = arith.addf %116, %1891 : vector<8x128xf32>
    %1893 = math.tanh %1892 : vector<8x128xf32>
    %1894 = vector.broadcast %35 : f32 to vector<8x128xf32>
    %1895 = arith.mulf %1894, %1893 : vector<8x128xf32>
    %1896 = arith.addf %1890, %1895 : vector<8x128xf32>
    %1897 = arith.mulf %196, %1803 : vector<8x128xf32>
    %1898 = arith.addf %126, %1897 : vector<8x128xf32>
    %1899 = math.tanh %1898 : vector<8x128xf32>
    %1900 = vector.broadcast %36 : f32 to vector<8x128xf32>
    %1901 = arith.mulf %1900, %1899 : vector<8x128xf32>
    %1902 = arith.addf %1896, %1901 : vector<8x128xf32>
    %1903 = arith.mulf %204, %1803 : vector<8x128xf32>
    %1904 = arith.addf %136, %1903 : vector<8x128xf32>
    %1905 = math.tanh %1904 : vector<8x128xf32>
    %1906 = vector.broadcast %37 : f32 to vector<8x128xf32>
    %1907 = arith.mulf %1906, %1905 : vector<8x128xf32>
    %1908 = arith.addf %1902, %1907 : vector<8x128xf32>
    %1909 = arith.mulf %212, %1803 : vector<8x128xf32>
    %1910 = arith.addf %146, %1909 : vector<8x128xf32>
    %1911 = math.tanh %1910 : vector<8x128xf32>
    %1912 = vector.broadcast %38 : f32 to vector<8x128xf32>
    %1913 = arith.mulf %1912, %1911 : vector<8x128xf32>
    %1914 = arith.addf %1908, %1913 : vector<8x128xf32>
    %1915 = arith.mulf %220, %1803 : vector<8x128xf32>
    %1916 = arith.addf %156, %1915 : vector<8x128xf32>
    %1917 = math.tanh %1916 : vector<8x128xf32>
    %1918 = vector.broadcast %39 : f32 to vector<8x128xf32>
    %1919 = arith.mulf %1918, %1917 : vector<8x128xf32>
    %1920 = arith.addf %1914, %1919 : vector<8x128xf32>
    %cst_251 = arith.constant 5.000000e-02 : f32
    %1921 = vector.broadcast %cst_251 : f32 to vector<8x128xf32>
    %1922 = arith.mulf %1921, %1920 : vector<8x128xf32>
    %1923 = arith.addf %1873, %1922 : vector<8x128xf32>
    %cst_252 = arith.constant 0.000000e+00 : f32
    %1924 = vector.broadcast %cst_252 : f32 to vector<8x128xf32>
    %1925 = arith.select %1785, %1923, %1924 : vector<8x128xi1>, vector<8x128xf32>
    %cst_253 = arith.constant 0.000000e+00 : f32
    %1926 = vector.broadcast %cst_253 : f32 to vector<8x128xf32>
    %1927 = arith.cmpf olt, %1864, %1926 : vector<8x128xf32>
    %cst_254 = arith.constant 0.000000e+00 : f32
    %1928 = vector.broadcast %cst_254 : f32 to vector<8x128xf32>
    %1929 = arith.cmpf olt, %1925, %1928 : vector<8x128xf32>
    %cst_255 = arith.constant 5.000000e-01 : f32
    %1930 = vector.broadcast %cst_255 : f32 to vector<8x128xf32>
    %1931 = arith.mulf %1930, %1793 : vector<8x128xf32>
    %1932 = arith.subf %1800, %1931 : vector<8x128xf32>
    %1933 = arith.select %1927, %1932, %1800 : vector<8x128xi1>, vector<8x128xf32>
    %cst_256 = arith.constant 5.000000e-01 : f32
    %1934 = vector.broadcast %cst_256 : f32 to vector<8x128xf32>
    %1935 = arith.mulf %1934, %1797 : vector<8x128xf32>
    %1936 = arith.addf %1803, %1935 : vector<8x128xf32>
    %1937 = arith.select %1929, %1936, %1803 : vector<8x128xi1>, vector<8x128xf32>
    %1938 = arith.mulf %76, %1933 : vector<8x128xf32>
    %1939 = arith.addf %71, %1938 : vector<8x128xf32>
    %1940 = arith.mulf %1933, %1939 : vector<8x128xf32>
    %1941 = arith.addf %64, %1940 : vector<8x128xf32>
    %cst_257 = arith.constant 0.000000e+00 : f32
    %1942 = vector.broadcast %cst_257 : f32 to vector<8x128xf32>
    %1943 = arith.maximumf %1941, %1942 : vector<8x128xf32>
    %1944 = math.sqrt %1943 : vector<8x128xf32>
    %cst_258 = arith.constant 6.000000e-01 : f32
    %1945 = vector.broadcast %cst_258 : f32 to vector<8x128xf32>
    %1946 = arith.subf %1944, %1945 : vector<8x128xf32>
    %1947 = arith.mulf %164, %1933 : vector<8x128xf32>
    %1948 = arith.addf %86, %1947 : vector<8x128xf32>
    %1949 = math.tanh %1948 : vector<8x128xf32>
    %1950 = vector.broadcast %32 : f32 to vector<8x128xf32>
    %1951 = arith.mulf %1950, %1949 : vector<8x128xf32>
    %1952 = arith.mulf %172, %1933 : vector<8x128xf32>
    %1953 = arith.addf %96, %1952 : vector<8x128xf32>
    %1954 = math.tanh %1953 : vector<8x128xf32>
    %1955 = vector.broadcast %33 : f32 to vector<8x128xf32>
    %1956 = arith.mulf %1955, %1954 : vector<8x128xf32>
    %1957 = arith.addf %1951, %1956 : vector<8x128xf32>
    %1958 = arith.mulf %180, %1933 : vector<8x128xf32>
    %1959 = arith.addf %106, %1958 : vector<8x128xf32>
    %1960 = math.tanh %1959 : vector<8x128xf32>
    %1961 = vector.broadcast %34 : f32 to vector<8x128xf32>
    %1962 = arith.mulf %1961, %1960 : vector<8x128xf32>
    %1963 = arith.addf %1957, %1962 : vector<8x128xf32>
    %1964 = arith.mulf %188, %1933 : vector<8x128xf32>
    %1965 = arith.addf %116, %1964 : vector<8x128xf32>
    %1966 = math.tanh %1965 : vector<8x128xf32>
    %1967 = vector.broadcast %35 : f32 to vector<8x128xf32>
    %1968 = arith.mulf %1967, %1966 : vector<8x128xf32>
    %1969 = arith.addf %1963, %1968 : vector<8x128xf32>
    %1970 = arith.mulf %196, %1933 : vector<8x128xf32>
    %1971 = arith.addf %126, %1970 : vector<8x128xf32>
    %1972 = math.tanh %1971 : vector<8x128xf32>
    %1973 = vector.broadcast %36 : f32 to vector<8x128xf32>
    %1974 = arith.mulf %1973, %1972 : vector<8x128xf32>
    %1975 = arith.addf %1969, %1974 : vector<8x128xf32>
    %1976 = arith.mulf %204, %1933 : vector<8x128xf32>
    %1977 = arith.addf %136, %1976 : vector<8x128xf32>
    %1978 = math.tanh %1977 : vector<8x128xf32>
    %1979 = vector.broadcast %37 : f32 to vector<8x128xf32>
    %1980 = arith.mulf %1979, %1978 : vector<8x128xf32>
    %1981 = arith.addf %1975, %1980 : vector<8x128xf32>
    %1982 = arith.mulf %212, %1933 : vector<8x128xf32>
    %1983 = arith.addf %146, %1982 : vector<8x128xf32>
    %1984 = math.tanh %1983 : vector<8x128xf32>
    %1985 = vector.broadcast %38 : f32 to vector<8x128xf32>
    %1986 = arith.mulf %1985, %1984 : vector<8x128xf32>
    %1987 = arith.addf %1981, %1986 : vector<8x128xf32>
    %1988 = arith.mulf %220, %1933 : vector<8x128xf32>
    %1989 = arith.addf %156, %1988 : vector<8x128xf32>
    %1990 = math.tanh %1989 : vector<8x128xf32>
    %1991 = vector.broadcast %39 : f32 to vector<8x128xf32>
    %1992 = arith.mulf %1991, %1990 : vector<8x128xf32>
    %1993 = arith.addf %1987, %1992 : vector<8x128xf32>
    %cst_259 = arith.constant 5.000000e-02 : f32
    %1994 = vector.broadcast %cst_259 : f32 to vector<8x128xf32>
    %1995 = arith.mulf %1994, %1993 : vector<8x128xf32>
    %1996 = arith.addf %1946, %1995 : vector<8x128xf32>
    %1997 = arith.select %1927, %1996, %1864 : vector<8x128xi1>, vector<8x128xf32>
    %1998 = arith.mulf %76, %1937 : vector<8x128xf32>
    %1999 = arith.addf %71, %1998 : vector<8x128xf32>
    %2000 = arith.mulf %1937, %1999 : vector<8x128xf32>
    %2001 = arith.addf %64, %2000 : vector<8x128xf32>
    %cst_260 = arith.constant 0.000000e+00 : f32
    %2002 = vector.broadcast %cst_260 : f32 to vector<8x128xf32>
    %2003 = arith.maximumf %2001, %2002 : vector<8x128xf32>
    %2004 = math.sqrt %2003 : vector<8x128xf32>
    %cst_261 = arith.constant 6.000000e-01 : f32
    %2005 = vector.broadcast %cst_261 : f32 to vector<8x128xf32>
    %2006 = arith.subf %2004, %2005 : vector<8x128xf32>
    %2007 = arith.mulf %164, %1937 : vector<8x128xf32>
    %2008 = arith.addf %86, %2007 : vector<8x128xf32>
    %2009 = math.tanh %2008 : vector<8x128xf32>
    %2010 = vector.broadcast %32 : f32 to vector<8x128xf32>
    %2011 = arith.mulf %2010, %2009 : vector<8x128xf32>
    %2012 = arith.mulf %172, %1937 : vector<8x128xf32>
    %2013 = arith.addf %96, %2012 : vector<8x128xf32>
    %2014 = math.tanh %2013 : vector<8x128xf32>
    %2015 = vector.broadcast %33 : f32 to vector<8x128xf32>
    %2016 = arith.mulf %2015, %2014 : vector<8x128xf32>
    %2017 = arith.addf %2011, %2016 : vector<8x128xf32>
    %2018 = arith.mulf %180, %1937 : vector<8x128xf32>
    %2019 = arith.addf %106, %2018 : vector<8x128xf32>
    %2020 = math.tanh %2019 : vector<8x128xf32>
    %2021 = vector.broadcast %34 : f32 to vector<8x128xf32>
    %2022 = arith.mulf %2021, %2020 : vector<8x128xf32>
    %2023 = arith.addf %2017, %2022 : vector<8x128xf32>
    %2024 = arith.mulf %188, %1937 : vector<8x128xf32>
    %2025 = arith.addf %116, %2024 : vector<8x128xf32>
    %2026 = math.tanh %2025 : vector<8x128xf32>
    %2027 = vector.broadcast %35 : f32 to vector<8x128xf32>
    %2028 = arith.mulf %2027, %2026 : vector<8x128xf32>
    %2029 = arith.addf %2023, %2028 : vector<8x128xf32>
    %2030 = arith.mulf %196, %1937 : vector<8x128xf32>
    %2031 = arith.addf %126, %2030 : vector<8x128xf32>
    %2032 = math.tanh %2031 : vector<8x128xf32>
    %2033 = vector.broadcast %36 : f32 to vector<8x128xf32>
    %2034 = arith.mulf %2033, %2032 : vector<8x128xf32>
    %2035 = arith.addf %2029, %2034 : vector<8x128xf32>
    %2036 = arith.mulf %204, %1937 : vector<8x128xf32>
    %2037 = arith.addf %136, %2036 : vector<8x128xf32>
    %2038 = math.tanh %2037 : vector<8x128xf32>
    %2039 = vector.broadcast %37 : f32 to vector<8x128xf32>
    %2040 = arith.mulf %2039, %2038 : vector<8x128xf32>
    %2041 = arith.addf %2035, %2040 : vector<8x128xf32>
    %2042 = arith.mulf %212, %1937 : vector<8x128xf32>
    %2043 = arith.addf %146, %2042 : vector<8x128xf32>
    %2044 = math.tanh %2043 : vector<8x128xf32>
    %2045 = vector.broadcast %38 : f32 to vector<8x128xf32>
    %2046 = arith.mulf %2045, %2044 : vector<8x128xf32>
    %2047 = arith.addf %2041, %2046 : vector<8x128xf32>
    %2048 = arith.mulf %220, %1937 : vector<8x128xf32>
    %2049 = arith.addf %156, %2048 : vector<8x128xf32>
    %2050 = math.tanh %2049 : vector<8x128xf32>
    %2051 = vector.broadcast %39 : f32 to vector<8x128xf32>
    %2052 = arith.mulf %2051, %2050 : vector<8x128xf32>
    %2053 = arith.addf %2047, %2052 : vector<8x128xf32>
    %cst_262 = arith.constant 5.000000e-02 : f32
    %2054 = vector.broadcast %cst_262 : f32 to vector<8x128xf32>
    %2055 = arith.mulf %2054, %2053 : vector<8x128xf32>
    %2056 = arith.addf %2006, %2055 : vector<8x128xf32>
    %2057 = arith.select %1929, %2056, %1925 : vector<8x128xi1>, vector<8x128xf32>
    %2058 = arith.cmpf olt, %1933, %1937 : vector<8x128xf32>
    %2059 = arith.andi %1782, %2058 : vector<8x128xi1>
    %2060 = arith.andi %1785, %2058 : vector<8x128xi1>
    %cst_263 = arith.constant 5.000000e-05 : f32
    %2061 = vector.broadcast %cst_263 : f32 to vector<8x128xf32>
    %2062 = arith.cmpf ogt, %1997, %2061 : vector<8x128xf32>
    %2063 = arith.andi %2059, %2062 : vector<8x128xi1>
    %cst_264 = arith.constant 5.000000e-05 : f32
    %2064 = vector.broadcast %cst_264 : f32 to vector<8x128xf32>
    %2065 = arith.cmpf ogt, %2057, %2064 : vector<8x128xf32>
    %2066 = arith.andi %2060, %2065 : vector<8x128xi1>
    %cst_265 = arith.constant 0.000000e+00 : f32
    %2067 = vector.broadcast %cst_265 : f32 to vector<8x128xf32>
    %2068 = arith.select %2063, %1997, %2067 : vector<8x128xi1>, vector<8x128xf32>
    %cst_266 = arith.constant 0.000000e+00 : f32
    %2069 = vector.broadcast %cst_266 : f32 to vector<8x128xf32>
    %2070 = arith.select %2066, %2057, %2069 : vector<8x128xi1>, vector<8x128xf32>
    %cst_267 = arith.constant -5.000000e-01 : f32
    %cst_268 = arith.constant 5.000000e-01 : f32
    %2071 = vector.broadcast %cst_267 : f32 to vector<8x128xf32>
    %2072 = arith.maximumf %2071, %2068 : vector<8x128xf32>
    %2073 = vector.broadcast %cst_268 : f32 to vector<8x128xf32>
    %2074 = arith.minimumf %2073, %2072 : vector<8x128xf32>
    %cst_269 = arith.constant -5.000000e-01 : f32
    %cst_270 = arith.constant 5.000000e-01 : f32
    %2075 = vector.broadcast %cst_269 : f32 to vector<8x128xf32>
    %2076 = arith.maximumf %2075, %2070 : vector<8x128xf32>
    %2077 = vector.broadcast %cst_270 : f32 to vector<8x128xf32>
    %2078 = arith.minimumf %2077, %2076 : vector<8x128xf32>
    %cst_271 = arith.constant 1.200000e+00 : f32
    %2079 = vector.broadcast %cst_271 : f32 to vector<8x128xf32>
    %2080 = arith.mulf %2074, %2079 : vector<8x128xf32>
    %2081 = arith.addf %1933, %2080 : vector<8x128xf32>
    %cst_272 = arith.constant 1.200000e+00 : f32
    %2082 = vector.broadcast %cst_272 : f32 to vector<8x128xf32>
    %2083 = arith.mulf %2078, %2082 : vector<8x128xf32>
    %2084 = arith.subf %1937, %2083 : vector<8x128xf32>
    %2085 = arith.mulf %76, %2081 : vector<8x128xf32>
    %2086 = arith.addf %71, %2085 : vector<8x128xf32>
    %2087 = arith.mulf %2081, %2086 : vector<8x128xf32>
    %2088 = arith.addf %64, %2087 : vector<8x128xf32>
    %cst_273 = arith.constant 0.000000e+00 : f32
    %2089 = vector.broadcast %cst_273 : f32 to vector<8x128xf32>
    %2090 = arith.maximumf %2088, %2089 : vector<8x128xf32>
    %2091 = math.sqrt %2090 : vector<8x128xf32>
    %cst_274 = arith.constant 6.000000e-01 : f32
    %2092 = vector.broadcast %cst_274 : f32 to vector<8x128xf32>
    %2093 = arith.subf %2091, %2092 : vector<8x128xf32>
    %2094 = arith.mulf %164, %2081 : vector<8x128xf32>
    %2095 = arith.addf %86, %2094 : vector<8x128xf32>
    %2096 = math.tanh %2095 : vector<8x128xf32>
    %2097 = vector.broadcast %32 : f32 to vector<8x128xf32>
    %2098 = arith.mulf %2097, %2096 : vector<8x128xf32>
    %2099 = arith.mulf %172, %2081 : vector<8x128xf32>
    %2100 = arith.addf %96, %2099 : vector<8x128xf32>
    %2101 = math.tanh %2100 : vector<8x128xf32>
    %2102 = vector.broadcast %33 : f32 to vector<8x128xf32>
    %2103 = arith.mulf %2102, %2101 : vector<8x128xf32>
    %2104 = arith.addf %2098, %2103 : vector<8x128xf32>
    %2105 = arith.mulf %180, %2081 : vector<8x128xf32>
    %2106 = arith.addf %106, %2105 : vector<8x128xf32>
    %2107 = math.tanh %2106 : vector<8x128xf32>
    %2108 = vector.broadcast %34 : f32 to vector<8x128xf32>
    %2109 = arith.mulf %2108, %2107 : vector<8x128xf32>
    %2110 = arith.addf %2104, %2109 : vector<8x128xf32>
    %2111 = arith.mulf %188, %2081 : vector<8x128xf32>
    %2112 = arith.addf %116, %2111 : vector<8x128xf32>
    %2113 = math.tanh %2112 : vector<8x128xf32>
    %2114 = vector.broadcast %35 : f32 to vector<8x128xf32>
    %2115 = arith.mulf %2114, %2113 : vector<8x128xf32>
    %2116 = arith.addf %2110, %2115 : vector<8x128xf32>
    %2117 = arith.mulf %196, %2081 : vector<8x128xf32>
    %2118 = arith.addf %126, %2117 : vector<8x128xf32>
    %2119 = math.tanh %2118 : vector<8x128xf32>
    %2120 = vector.broadcast %36 : f32 to vector<8x128xf32>
    %2121 = arith.mulf %2120, %2119 : vector<8x128xf32>
    %2122 = arith.addf %2116, %2121 : vector<8x128xf32>
    %2123 = arith.mulf %204, %2081 : vector<8x128xf32>
    %2124 = arith.addf %136, %2123 : vector<8x128xf32>
    %2125 = math.tanh %2124 : vector<8x128xf32>
    %2126 = vector.broadcast %37 : f32 to vector<8x128xf32>
    %2127 = arith.mulf %2126, %2125 : vector<8x128xf32>
    %2128 = arith.addf %2122, %2127 : vector<8x128xf32>
    %2129 = arith.mulf %212, %2081 : vector<8x128xf32>
    %2130 = arith.addf %146, %2129 : vector<8x128xf32>
    %2131 = math.tanh %2130 : vector<8x128xf32>
    %2132 = vector.broadcast %38 : f32 to vector<8x128xf32>
    %2133 = arith.mulf %2132, %2131 : vector<8x128xf32>
    %2134 = arith.addf %2128, %2133 : vector<8x128xf32>
    %2135 = arith.mulf %220, %2081 : vector<8x128xf32>
    %2136 = arith.addf %156, %2135 : vector<8x128xf32>
    %2137 = math.tanh %2136 : vector<8x128xf32>
    %2138 = vector.broadcast %39 : f32 to vector<8x128xf32>
    %2139 = arith.mulf %2138, %2137 : vector<8x128xf32>
    %2140 = arith.addf %2134, %2139 : vector<8x128xf32>
    %cst_275 = arith.constant 5.000000e-02 : f32
    %2141 = vector.broadcast %cst_275 : f32 to vector<8x128xf32>
    %2142 = arith.mulf %2141, %2140 : vector<8x128xf32>
    %2143 = arith.addf %2093, %2142 : vector<8x128xf32>
    %cst_276 = arith.constant 0.000000e+00 : f32
    %2144 = vector.broadcast %cst_276 : f32 to vector<8x128xf32>
    %2145 = arith.select %2063, %2143, %2144 : vector<8x128xi1>, vector<8x128xf32>
    %2146 = arith.mulf %76, %2084 : vector<8x128xf32>
    %2147 = arith.addf %71, %2146 : vector<8x128xf32>
    %2148 = arith.mulf %2084, %2147 : vector<8x128xf32>
    %2149 = arith.addf %64, %2148 : vector<8x128xf32>
    %cst_277 = arith.constant 0.000000e+00 : f32
    %2150 = vector.broadcast %cst_277 : f32 to vector<8x128xf32>
    %2151 = arith.maximumf %2149, %2150 : vector<8x128xf32>
    %2152 = math.sqrt %2151 : vector<8x128xf32>
    %cst_278 = arith.constant 6.000000e-01 : f32
    %2153 = vector.broadcast %cst_278 : f32 to vector<8x128xf32>
    %2154 = arith.subf %2152, %2153 : vector<8x128xf32>
    %2155 = arith.mulf %164, %2084 : vector<8x128xf32>
    %2156 = arith.addf %86, %2155 : vector<8x128xf32>
    %2157 = math.tanh %2156 : vector<8x128xf32>
    %2158 = vector.broadcast %32 : f32 to vector<8x128xf32>
    %2159 = arith.mulf %2158, %2157 : vector<8x128xf32>
    %2160 = arith.mulf %172, %2084 : vector<8x128xf32>
    %2161 = arith.addf %96, %2160 : vector<8x128xf32>
    %2162 = math.tanh %2161 : vector<8x128xf32>
    %2163 = vector.broadcast %33 : f32 to vector<8x128xf32>
    %2164 = arith.mulf %2163, %2162 : vector<8x128xf32>
    %2165 = arith.addf %2159, %2164 : vector<8x128xf32>
    %2166 = arith.mulf %180, %2084 : vector<8x128xf32>
    %2167 = arith.addf %106, %2166 : vector<8x128xf32>
    %2168 = math.tanh %2167 : vector<8x128xf32>
    %2169 = vector.broadcast %34 : f32 to vector<8x128xf32>
    %2170 = arith.mulf %2169, %2168 : vector<8x128xf32>
    %2171 = arith.addf %2165, %2170 : vector<8x128xf32>
    %2172 = arith.mulf %188, %2084 : vector<8x128xf32>
    %2173 = arith.addf %116, %2172 : vector<8x128xf32>
    %2174 = math.tanh %2173 : vector<8x128xf32>
    %2175 = vector.broadcast %35 : f32 to vector<8x128xf32>
    %2176 = arith.mulf %2175, %2174 : vector<8x128xf32>
    %2177 = arith.addf %2171, %2176 : vector<8x128xf32>
    %2178 = arith.mulf %196, %2084 : vector<8x128xf32>
    %2179 = arith.addf %126, %2178 : vector<8x128xf32>
    %2180 = math.tanh %2179 : vector<8x128xf32>
    %2181 = vector.broadcast %36 : f32 to vector<8x128xf32>
    %2182 = arith.mulf %2181, %2180 : vector<8x128xf32>
    %2183 = arith.addf %2177, %2182 : vector<8x128xf32>
    %2184 = arith.mulf %204, %2084 : vector<8x128xf32>
    %2185 = arith.addf %136, %2184 : vector<8x128xf32>
    %2186 = math.tanh %2185 : vector<8x128xf32>
    %2187 = vector.broadcast %37 : f32 to vector<8x128xf32>
    %2188 = arith.mulf %2187, %2186 : vector<8x128xf32>
    %2189 = arith.addf %2183, %2188 : vector<8x128xf32>
    %2190 = arith.mulf %212, %2084 : vector<8x128xf32>
    %2191 = arith.addf %146, %2190 : vector<8x128xf32>
    %2192 = math.tanh %2191 : vector<8x128xf32>
    %2193 = vector.broadcast %38 : f32 to vector<8x128xf32>
    %2194 = arith.mulf %2193, %2192 : vector<8x128xf32>
    %2195 = arith.addf %2189, %2194 : vector<8x128xf32>
    %2196 = arith.mulf %220, %2084 : vector<8x128xf32>
    %2197 = arith.addf %156, %2196 : vector<8x128xf32>
    %2198 = math.tanh %2197 : vector<8x128xf32>
    %2199 = vector.broadcast %39 : f32 to vector<8x128xf32>
    %2200 = arith.mulf %2199, %2198 : vector<8x128xf32>
    %2201 = arith.addf %2195, %2200 : vector<8x128xf32>
    %cst_279 = arith.constant 5.000000e-02 : f32
    %2202 = vector.broadcast %cst_279 : f32 to vector<8x128xf32>
    %2203 = arith.mulf %2202, %2201 : vector<8x128xf32>
    %2204 = arith.addf %2154, %2203 : vector<8x128xf32>
    %cst_280 = arith.constant 0.000000e+00 : f32
    %2205 = vector.broadcast %cst_280 : f32 to vector<8x128xf32>
    %2206 = arith.select %2066, %2204, %2205 : vector<8x128xi1>, vector<8x128xf32>
    %cst_281 = arith.constant 0.000000e+00 : f32
    %2207 = vector.broadcast %cst_281 : f32 to vector<8x128xf32>
    %2208 = arith.cmpf olt, %2145, %2207 : vector<8x128xf32>
    %cst_282 = arith.constant 0.000000e+00 : f32
    %2209 = vector.broadcast %cst_282 : f32 to vector<8x128xf32>
    %2210 = arith.cmpf olt, %2206, %2209 : vector<8x128xf32>
    %cst_283 = arith.constant 5.000000e-01 : f32
    %2211 = vector.broadcast %cst_283 : f32 to vector<8x128xf32>
    %2212 = arith.mulf %2211, %2074 : vector<8x128xf32>
    %2213 = arith.subf %2081, %2212 : vector<8x128xf32>
    %2214 = arith.select %2208, %2213, %2081 : vector<8x128xi1>, vector<8x128xf32>
    %cst_284 = arith.constant 5.000000e-01 : f32
    %2215 = vector.broadcast %cst_284 : f32 to vector<8x128xf32>
    %2216 = arith.mulf %2215, %2078 : vector<8x128xf32>
    %2217 = arith.addf %2084, %2216 : vector<8x128xf32>
    %2218 = arith.select %2210, %2217, %2084 : vector<8x128xi1>, vector<8x128xf32>
    %2219 = arith.mulf %76, %2214 : vector<8x128xf32>
    %2220 = arith.addf %71, %2219 : vector<8x128xf32>
    %2221 = arith.mulf %2214, %2220 : vector<8x128xf32>
    %2222 = arith.addf %64, %2221 : vector<8x128xf32>
    %cst_285 = arith.constant 0.000000e+00 : f32
    %2223 = vector.broadcast %cst_285 : f32 to vector<8x128xf32>
    %2224 = arith.maximumf %2222, %2223 : vector<8x128xf32>
    %2225 = math.sqrt %2224 : vector<8x128xf32>
    %cst_286 = arith.constant 6.000000e-01 : f32
    %2226 = vector.broadcast %cst_286 : f32 to vector<8x128xf32>
    %2227 = arith.subf %2225, %2226 : vector<8x128xf32>
    %2228 = arith.mulf %164, %2214 : vector<8x128xf32>
    %2229 = arith.addf %86, %2228 : vector<8x128xf32>
    %2230 = math.tanh %2229 : vector<8x128xf32>
    %2231 = vector.broadcast %32 : f32 to vector<8x128xf32>
    %2232 = arith.mulf %2231, %2230 : vector<8x128xf32>
    %2233 = arith.mulf %172, %2214 : vector<8x128xf32>
    %2234 = arith.addf %96, %2233 : vector<8x128xf32>
    %2235 = math.tanh %2234 : vector<8x128xf32>
    %2236 = vector.broadcast %33 : f32 to vector<8x128xf32>
    %2237 = arith.mulf %2236, %2235 : vector<8x128xf32>
    %2238 = arith.addf %2232, %2237 : vector<8x128xf32>
    %2239 = arith.mulf %180, %2214 : vector<8x128xf32>
    %2240 = arith.addf %106, %2239 : vector<8x128xf32>
    %2241 = math.tanh %2240 : vector<8x128xf32>
    %2242 = vector.broadcast %34 : f32 to vector<8x128xf32>
    %2243 = arith.mulf %2242, %2241 : vector<8x128xf32>
    %2244 = arith.addf %2238, %2243 : vector<8x128xf32>
    %2245 = arith.mulf %188, %2214 : vector<8x128xf32>
    %2246 = arith.addf %116, %2245 : vector<8x128xf32>
    %2247 = math.tanh %2246 : vector<8x128xf32>
    %2248 = vector.broadcast %35 : f32 to vector<8x128xf32>
    %2249 = arith.mulf %2248, %2247 : vector<8x128xf32>
    %2250 = arith.addf %2244, %2249 : vector<8x128xf32>
    %2251 = arith.mulf %196, %2214 : vector<8x128xf32>
    %2252 = arith.addf %126, %2251 : vector<8x128xf32>
    %2253 = math.tanh %2252 : vector<8x128xf32>
    %2254 = vector.broadcast %36 : f32 to vector<8x128xf32>
    %2255 = arith.mulf %2254, %2253 : vector<8x128xf32>
    %2256 = arith.addf %2250, %2255 : vector<8x128xf32>
    %2257 = arith.mulf %204, %2214 : vector<8x128xf32>
    %2258 = arith.addf %136, %2257 : vector<8x128xf32>
    %2259 = math.tanh %2258 : vector<8x128xf32>
    %2260 = vector.broadcast %37 : f32 to vector<8x128xf32>
    %2261 = arith.mulf %2260, %2259 : vector<8x128xf32>
    %2262 = arith.addf %2256, %2261 : vector<8x128xf32>
    %2263 = arith.mulf %212, %2214 : vector<8x128xf32>
    %2264 = arith.addf %146, %2263 : vector<8x128xf32>
    %2265 = math.tanh %2264 : vector<8x128xf32>
    %2266 = vector.broadcast %38 : f32 to vector<8x128xf32>
    %2267 = arith.mulf %2266, %2265 : vector<8x128xf32>
    %2268 = arith.addf %2262, %2267 : vector<8x128xf32>
    %2269 = arith.mulf %220, %2214 : vector<8x128xf32>
    %2270 = arith.addf %156, %2269 : vector<8x128xf32>
    %2271 = math.tanh %2270 : vector<8x128xf32>
    %2272 = vector.broadcast %39 : f32 to vector<8x128xf32>
    %2273 = arith.mulf %2272, %2271 : vector<8x128xf32>
    %2274 = arith.addf %2268, %2273 : vector<8x128xf32>
    %cst_287 = arith.constant 5.000000e-02 : f32
    %2275 = vector.broadcast %cst_287 : f32 to vector<8x128xf32>
    %2276 = arith.mulf %2275, %2274 : vector<8x128xf32>
    %2277 = arith.addf %2227, %2276 : vector<8x128xf32>
    %2278 = arith.select %2208, %2277, %2145 : vector<8x128xi1>, vector<8x128xf32>
    %2279 = arith.mulf %76, %2218 : vector<8x128xf32>
    %2280 = arith.addf %71, %2279 : vector<8x128xf32>
    %2281 = arith.mulf %2218, %2280 : vector<8x128xf32>
    %2282 = arith.addf %64, %2281 : vector<8x128xf32>
    %cst_288 = arith.constant 0.000000e+00 : f32
    %2283 = vector.broadcast %cst_288 : f32 to vector<8x128xf32>
    %2284 = arith.maximumf %2282, %2283 : vector<8x128xf32>
    %2285 = math.sqrt %2284 : vector<8x128xf32>
    %cst_289 = arith.constant 6.000000e-01 : f32
    %2286 = vector.broadcast %cst_289 : f32 to vector<8x128xf32>
    %2287 = arith.subf %2285, %2286 : vector<8x128xf32>
    %2288 = arith.mulf %164, %2218 : vector<8x128xf32>
    %2289 = arith.addf %86, %2288 : vector<8x128xf32>
    %2290 = math.tanh %2289 : vector<8x128xf32>
    %2291 = vector.broadcast %32 : f32 to vector<8x128xf32>
    %2292 = arith.mulf %2291, %2290 : vector<8x128xf32>
    %2293 = arith.mulf %172, %2218 : vector<8x128xf32>
    %2294 = arith.addf %96, %2293 : vector<8x128xf32>
    %2295 = math.tanh %2294 : vector<8x128xf32>
    %2296 = vector.broadcast %33 : f32 to vector<8x128xf32>
    %2297 = arith.mulf %2296, %2295 : vector<8x128xf32>
    %2298 = arith.addf %2292, %2297 : vector<8x128xf32>
    %2299 = arith.mulf %180, %2218 : vector<8x128xf32>
    %2300 = arith.addf %106, %2299 : vector<8x128xf32>
    %2301 = math.tanh %2300 : vector<8x128xf32>
    %2302 = vector.broadcast %34 : f32 to vector<8x128xf32>
    %2303 = arith.mulf %2302, %2301 : vector<8x128xf32>
    %2304 = arith.addf %2298, %2303 : vector<8x128xf32>
    %2305 = arith.mulf %188, %2218 : vector<8x128xf32>
    %2306 = arith.addf %116, %2305 : vector<8x128xf32>
    %2307 = math.tanh %2306 : vector<8x128xf32>
    %2308 = vector.broadcast %35 : f32 to vector<8x128xf32>
    %2309 = arith.mulf %2308, %2307 : vector<8x128xf32>
    %2310 = arith.addf %2304, %2309 : vector<8x128xf32>
    %2311 = arith.mulf %196, %2218 : vector<8x128xf32>
    %2312 = arith.addf %126, %2311 : vector<8x128xf32>
    %2313 = math.tanh %2312 : vector<8x128xf32>
    %2314 = vector.broadcast %36 : f32 to vector<8x128xf32>
    %2315 = arith.mulf %2314, %2313 : vector<8x128xf32>
    %2316 = arith.addf %2310, %2315 : vector<8x128xf32>
    %2317 = arith.mulf %204, %2218 : vector<8x128xf32>
    %2318 = arith.addf %136, %2317 : vector<8x128xf32>
    %2319 = math.tanh %2318 : vector<8x128xf32>
    %2320 = vector.broadcast %37 : f32 to vector<8x128xf32>
    %2321 = arith.mulf %2320, %2319 : vector<8x128xf32>
    %2322 = arith.addf %2316, %2321 : vector<8x128xf32>
    %2323 = arith.mulf %212, %2218 : vector<8x128xf32>
    %2324 = arith.addf %146, %2323 : vector<8x128xf32>
    %2325 = math.tanh %2324 : vector<8x128xf32>
    %2326 = vector.broadcast %38 : f32 to vector<8x128xf32>
    %2327 = arith.mulf %2326, %2325 : vector<8x128xf32>
    %2328 = arith.addf %2322, %2327 : vector<8x128xf32>
    %2329 = arith.mulf %220, %2218 : vector<8x128xf32>
    %2330 = arith.addf %156, %2329 : vector<8x128xf32>
    %2331 = math.tanh %2330 : vector<8x128xf32>
    %2332 = vector.broadcast %39 : f32 to vector<8x128xf32>
    %2333 = arith.mulf %2332, %2331 : vector<8x128xf32>
    %2334 = arith.addf %2328, %2333 : vector<8x128xf32>
    %cst_290 = arith.constant 5.000000e-02 : f32
    %2335 = vector.broadcast %cst_290 : f32 to vector<8x128xf32>
    %2336 = arith.mulf %2335, %2334 : vector<8x128xf32>
    %2337 = arith.addf %2287, %2336 : vector<8x128xf32>
    %2338 = arith.select %2210, %2337, %2206 : vector<8x128xi1>, vector<8x128xf32>
    %2339 = arith.cmpf olt, %2214, %2218 : vector<8x128xf32>
    %2340 = arith.andi %2063, %2339 : vector<8x128xi1>
    %2341 = arith.andi %2066, %2339 : vector<8x128xi1>
    %cst_291 = arith.constant 5.000000e-05 : f32
    %2342 = vector.broadcast %cst_291 : f32 to vector<8x128xf32>
    %2343 = arith.cmpf ogt, %2278, %2342 : vector<8x128xf32>
    %2344 = arith.andi %2340, %2343 : vector<8x128xi1>
    %cst_292 = arith.constant 5.000000e-05 : f32
    %2345 = vector.broadcast %cst_292 : f32 to vector<8x128xf32>
    %2346 = arith.cmpf ogt, %2338, %2345 : vector<8x128xf32>
    %2347 = arith.andi %2341, %2346 : vector<8x128xi1>
    %cst_293 = arith.constant 0.000000e+00 : f32
    %2348 = vector.broadcast %cst_293 : f32 to vector<8x128xf32>
    %2349 = arith.select %2344, %2278, %2348 : vector<8x128xi1>, vector<8x128xf32>
    %cst_294 = arith.constant 0.000000e+00 : f32
    %2350 = vector.broadcast %cst_294 : f32 to vector<8x128xf32>
    %2351 = arith.select %2347, %2338, %2350 : vector<8x128xi1>, vector<8x128xf32>
    %cst_295 = arith.constant -5.000000e-01 : f32
    %cst_296 = arith.constant 5.000000e-01 : f32
    %2352 = vector.broadcast %cst_295 : f32 to vector<8x128xf32>
    %2353 = arith.maximumf %2352, %2349 : vector<8x128xf32>
    %2354 = vector.broadcast %cst_296 : f32 to vector<8x128xf32>
    %2355 = arith.minimumf %2354, %2353 : vector<8x128xf32>
    %cst_297 = arith.constant -5.000000e-01 : f32
    %cst_298 = arith.constant 5.000000e-01 : f32
    %2356 = vector.broadcast %cst_297 : f32 to vector<8x128xf32>
    %2357 = arith.maximumf %2356, %2351 : vector<8x128xf32>
    %2358 = vector.broadcast %cst_298 : f32 to vector<8x128xf32>
    %2359 = arith.minimumf %2358, %2357 : vector<8x128xf32>
    %cst_299 = arith.constant 1.200000e+00 : f32
    %2360 = vector.broadcast %cst_299 : f32 to vector<8x128xf32>
    %2361 = arith.mulf %2355, %2360 : vector<8x128xf32>
    %2362 = arith.addf %2214, %2361 : vector<8x128xf32>
    %cst_300 = arith.constant 1.200000e+00 : f32
    %2363 = vector.broadcast %cst_300 : f32 to vector<8x128xf32>
    %2364 = arith.mulf %2359, %2363 : vector<8x128xf32>
    %2365 = arith.subf %2218, %2364 : vector<8x128xf32>
    %2366 = arith.mulf %76, %2362 : vector<8x128xf32>
    %2367 = arith.addf %71, %2366 : vector<8x128xf32>
    %2368 = arith.mulf %2362, %2367 : vector<8x128xf32>
    %2369 = arith.addf %64, %2368 : vector<8x128xf32>
    %cst_301 = arith.constant 0.000000e+00 : f32
    %2370 = vector.broadcast %cst_301 : f32 to vector<8x128xf32>
    %2371 = arith.maximumf %2369, %2370 : vector<8x128xf32>
    %2372 = math.sqrt %2371 : vector<8x128xf32>
    %cst_302 = arith.constant 6.000000e-01 : f32
    %2373 = vector.broadcast %cst_302 : f32 to vector<8x128xf32>
    %2374 = arith.subf %2372, %2373 : vector<8x128xf32>
    %2375 = arith.mulf %164, %2362 : vector<8x128xf32>
    %2376 = arith.addf %86, %2375 : vector<8x128xf32>
    %2377 = math.tanh %2376 : vector<8x128xf32>
    %2378 = vector.broadcast %32 : f32 to vector<8x128xf32>
    %2379 = arith.mulf %2378, %2377 : vector<8x128xf32>
    %2380 = arith.mulf %172, %2362 : vector<8x128xf32>
    %2381 = arith.addf %96, %2380 : vector<8x128xf32>
    %2382 = math.tanh %2381 : vector<8x128xf32>
    %2383 = vector.broadcast %33 : f32 to vector<8x128xf32>
    %2384 = arith.mulf %2383, %2382 : vector<8x128xf32>
    %2385 = arith.addf %2379, %2384 : vector<8x128xf32>
    %2386 = arith.mulf %180, %2362 : vector<8x128xf32>
    %2387 = arith.addf %106, %2386 : vector<8x128xf32>
    %2388 = math.tanh %2387 : vector<8x128xf32>
    %2389 = vector.broadcast %34 : f32 to vector<8x128xf32>
    %2390 = arith.mulf %2389, %2388 : vector<8x128xf32>
    %2391 = arith.addf %2385, %2390 : vector<8x128xf32>
    %2392 = arith.mulf %188, %2362 : vector<8x128xf32>
    %2393 = arith.addf %116, %2392 : vector<8x128xf32>
    %2394 = math.tanh %2393 : vector<8x128xf32>
    %2395 = vector.broadcast %35 : f32 to vector<8x128xf32>
    %2396 = arith.mulf %2395, %2394 : vector<8x128xf32>
    %2397 = arith.addf %2391, %2396 : vector<8x128xf32>
    %2398 = arith.mulf %196, %2362 : vector<8x128xf32>
    %2399 = arith.addf %126, %2398 : vector<8x128xf32>
    %2400 = math.tanh %2399 : vector<8x128xf32>
    %2401 = vector.broadcast %36 : f32 to vector<8x128xf32>
    %2402 = arith.mulf %2401, %2400 : vector<8x128xf32>
    %2403 = arith.addf %2397, %2402 : vector<8x128xf32>
    %2404 = arith.mulf %204, %2362 : vector<8x128xf32>
    %2405 = arith.addf %136, %2404 : vector<8x128xf32>
    %2406 = math.tanh %2405 : vector<8x128xf32>
    %2407 = vector.broadcast %37 : f32 to vector<8x128xf32>
    %2408 = arith.mulf %2407, %2406 : vector<8x128xf32>
    %2409 = arith.addf %2403, %2408 : vector<8x128xf32>
    %2410 = arith.mulf %212, %2362 : vector<8x128xf32>
    %2411 = arith.addf %146, %2410 : vector<8x128xf32>
    %2412 = math.tanh %2411 : vector<8x128xf32>
    %2413 = vector.broadcast %38 : f32 to vector<8x128xf32>
    %2414 = arith.mulf %2413, %2412 : vector<8x128xf32>
    %2415 = arith.addf %2409, %2414 : vector<8x128xf32>
    %2416 = arith.mulf %220, %2362 : vector<8x128xf32>
    %2417 = arith.addf %156, %2416 : vector<8x128xf32>
    %2418 = math.tanh %2417 : vector<8x128xf32>
    %2419 = vector.broadcast %39 : f32 to vector<8x128xf32>
    %2420 = arith.mulf %2419, %2418 : vector<8x128xf32>
    %2421 = arith.addf %2415, %2420 : vector<8x128xf32>
    %cst_303 = arith.constant 5.000000e-02 : f32
    %2422 = vector.broadcast %cst_303 : f32 to vector<8x128xf32>
    %2423 = arith.mulf %2422, %2421 : vector<8x128xf32>
    %2424 = arith.addf %2374, %2423 : vector<8x128xf32>
    %cst_304 = arith.constant 0.000000e+00 : f32
    %2425 = vector.broadcast %cst_304 : f32 to vector<8x128xf32>
    %2426 = arith.select %2344, %2424, %2425 : vector<8x128xi1>, vector<8x128xf32>
    %2427 = arith.mulf %76, %2365 : vector<8x128xf32>
    %2428 = arith.addf %71, %2427 : vector<8x128xf32>
    %2429 = arith.mulf %2365, %2428 : vector<8x128xf32>
    %2430 = arith.addf %64, %2429 : vector<8x128xf32>
    %cst_305 = arith.constant 0.000000e+00 : f32
    %2431 = vector.broadcast %cst_305 : f32 to vector<8x128xf32>
    %2432 = arith.maximumf %2430, %2431 : vector<8x128xf32>
    %2433 = math.sqrt %2432 : vector<8x128xf32>
    %cst_306 = arith.constant 6.000000e-01 : f32
    %2434 = vector.broadcast %cst_306 : f32 to vector<8x128xf32>
    %2435 = arith.subf %2433, %2434 : vector<8x128xf32>
    %2436 = arith.mulf %164, %2365 : vector<8x128xf32>
    %2437 = arith.addf %86, %2436 : vector<8x128xf32>
    %2438 = math.tanh %2437 : vector<8x128xf32>
    %2439 = vector.broadcast %32 : f32 to vector<8x128xf32>
    %2440 = arith.mulf %2439, %2438 : vector<8x128xf32>
    %2441 = arith.mulf %172, %2365 : vector<8x128xf32>
    %2442 = arith.addf %96, %2441 : vector<8x128xf32>
    %2443 = math.tanh %2442 : vector<8x128xf32>
    %2444 = vector.broadcast %33 : f32 to vector<8x128xf32>
    %2445 = arith.mulf %2444, %2443 : vector<8x128xf32>
    %2446 = arith.addf %2440, %2445 : vector<8x128xf32>
    %2447 = arith.mulf %180, %2365 : vector<8x128xf32>
    %2448 = arith.addf %106, %2447 : vector<8x128xf32>
    %2449 = math.tanh %2448 : vector<8x128xf32>
    %2450 = vector.broadcast %34 : f32 to vector<8x128xf32>
    %2451 = arith.mulf %2450, %2449 : vector<8x128xf32>
    %2452 = arith.addf %2446, %2451 : vector<8x128xf32>
    %2453 = arith.mulf %188, %2365 : vector<8x128xf32>
    %2454 = arith.addf %116, %2453 : vector<8x128xf32>
    %2455 = math.tanh %2454 : vector<8x128xf32>
    %2456 = vector.broadcast %35 : f32 to vector<8x128xf32>
    %2457 = arith.mulf %2456, %2455 : vector<8x128xf32>
    %2458 = arith.addf %2452, %2457 : vector<8x128xf32>
    %2459 = arith.mulf %196, %2365 : vector<8x128xf32>
    %2460 = arith.addf %126, %2459 : vector<8x128xf32>
    %2461 = math.tanh %2460 : vector<8x128xf32>
    %2462 = vector.broadcast %36 : f32 to vector<8x128xf32>
    %2463 = arith.mulf %2462, %2461 : vector<8x128xf32>
    %2464 = arith.addf %2458, %2463 : vector<8x128xf32>
    %2465 = arith.mulf %204, %2365 : vector<8x128xf32>
    %2466 = arith.addf %136, %2465 : vector<8x128xf32>
    %2467 = math.tanh %2466 : vector<8x128xf32>
    %2468 = vector.broadcast %37 : f32 to vector<8x128xf32>
    %2469 = arith.mulf %2468, %2467 : vector<8x128xf32>
    %2470 = arith.addf %2464, %2469 : vector<8x128xf32>
    %2471 = arith.mulf %212, %2365 : vector<8x128xf32>
    %2472 = arith.addf %146, %2471 : vector<8x128xf32>
    %2473 = math.tanh %2472 : vector<8x128xf32>
    %2474 = vector.broadcast %38 : f32 to vector<8x128xf32>
    %2475 = arith.mulf %2474, %2473 : vector<8x128xf32>
    %2476 = arith.addf %2470, %2475 : vector<8x128xf32>
    %2477 = arith.mulf %220, %2365 : vector<8x128xf32>
    %2478 = arith.addf %156, %2477 : vector<8x128xf32>
    %2479 = math.tanh %2478 : vector<8x128xf32>
    %2480 = vector.broadcast %39 : f32 to vector<8x128xf32>
    %2481 = arith.mulf %2480, %2479 : vector<8x128xf32>
    %2482 = arith.addf %2476, %2481 : vector<8x128xf32>
    %cst_307 = arith.constant 5.000000e-02 : f32
    %2483 = vector.broadcast %cst_307 : f32 to vector<8x128xf32>
    %2484 = arith.mulf %2483, %2482 : vector<8x128xf32>
    %2485 = arith.addf %2435, %2484 : vector<8x128xf32>
    %cst_308 = arith.constant 0.000000e+00 : f32
    %2486 = vector.broadcast %cst_308 : f32 to vector<8x128xf32>
    %2487 = arith.select %2347, %2485, %2486 : vector<8x128xi1>, vector<8x128xf32>
    %cst_309 = arith.constant 0.000000e+00 : f32
    %2488 = vector.broadcast %cst_309 : f32 to vector<8x128xf32>
    %2489 = arith.cmpf olt, %2426, %2488 : vector<8x128xf32>
    %cst_310 = arith.constant 0.000000e+00 : f32
    %2490 = vector.broadcast %cst_310 : f32 to vector<8x128xf32>
    %2491 = arith.cmpf olt, %2487, %2490 : vector<8x128xf32>
    %cst_311 = arith.constant 5.000000e-01 : f32
    %2492 = vector.broadcast %cst_311 : f32 to vector<8x128xf32>
    %2493 = arith.mulf %2492, %2355 : vector<8x128xf32>
    %2494 = arith.subf %2362, %2493 : vector<8x128xf32>
    %2495 = arith.select %2489, %2494, %2362 : vector<8x128xi1>, vector<8x128xf32>
    %cst_312 = arith.constant 5.000000e-01 : f32
    %2496 = vector.broadcast %cst_312 : f32 to vector<8x128xf32>
    %2497 = arith.mulf %2496, %2359 : vector<8x128xf32>
    %2498 = arith.addf %2365, %2497 : vector<8x128xf32>
    %2499 = arith.select %2491, %2498, %2365 : vector<8x128xi1>, vector<8x128xf32>
    %2500 = arith.mulf %76, %2495 : vector<8x128xf32>
    %2501 = arith.addf %71, %2500 : vector<8x128xf32>
    %2502 = arith.mulf %2495, %2501 : vector<8x128xf32>
    %2503 = arith.addf %64, %2502 : vector<8x128xf32>
    %cst_313 = arith.constant 0.000000e+00 : f32
    %2504 = vector.broadcast %cst_313 : f32 to vector<8x128xf32>
    %2505 = arith.maximumf %2503, %2504 : vector<8x128xf32>
    %2506 = math.sqrt %2505 : vector<8x128xf32>
    %cst_314 = arith.constant 6.000000e-01 : f32
    %2507 = vector.broadcast %cst_314 : f32 to vector<8x128xf32>
    %2508 = arith.subf %2506, %2507 : vector<8x128xf32>
    %2509 = arith.mulf %164, %2495 : vector<8x128xf32>
    %2510 = arith.addf %86, %2509 : vector<8x128xf32>
    %2511 = math.tanh %2510 : vector<8x128xf32>
    %2512 = vector.broadcast %32 : f32 to vector<8x128xf32>
    %2513 = arith.mulf %2512, %2511 : vector<8x128xf32>
    %2514 = arith.mulf %172, %2495 : vector<8x128xf32>
    %2515 = arith.addf %96, %2514 : vector<8x128xf32>
    %2516 = math.tanh %2515 : vector<8x128xf32>
    %2517 = vector.broadcast %33 : f32 to vector<8x128xf32>
    %2518 = arith.mulf %2517, %2516 : vector<8x128xf32>
    %2519 = arith.addf %2513, %2518 : vector<8x128xf32>
    %2520 = arith.mulf %180, %2495 : vector<8x128xf32>
    %2521 = arith.addf %106, %2520 : vector<8x128xf32>
    %2522 = math.tanh %2521 : vector<8x128xf32>
    %2523 = vector.broadcast %34 : f32 to vector<8x128xf32>
    %2524 = arith.mulf %2523, %2522 : vector<8x128xf32>
    %2525 = arith.addf %2519, %2524 : vector<8x128xf32>
    %2526 = arith.mulf %188, %2495 : vector<8x128xf32>
    %2527 = arith.addf %116, %2526 : vector<8x128xf32>
    %2528 = math.tanh %2527 : vector<8x128xf32>
    %2529 = vector.broadcast %35 : f32 to vector<8x128xf32>
    %2530 = arith.mulf %2529, %2528 : vector<8x128xf32>
    %2531 = arith.addf %2525, %2530 : vector<8x128xf32>
    %2532 = arith.mulf %196, %2495 : vector<8x128xf32>
    %2533 = arith.addf %126, %2532 : vector<8x128xf32>
    %2534 = math.tanh %2533 : vector<8x128xf32>
    %2535 = vector.broadcast %36 : f32 to vector<8x128xf32>
    %2536 = arith.mulf %2535, %2534 : vector<8x128xf32>
    %2537 = arith.addf %2531, %2536 : vector<8x128xf32>
    %2538 = arith.mulf %204, %2495 : vector<8x128xf32>
    %2539 = arith.addf %136, %2538 : vector<8x128xf32>
    %2540 = math.tanh %2539 : vector<8x128xf32>
    %2541 = vector.broadcast %37 : f32 to vector<8x128xf32>
    %2542 = arith.mulf %2541, %2540 : vector<8x128xf32>
    %2543 = arith.addf %2537, %2542 : vector<8x128xf32>
    %2544 = arith.mulf %212, %2495 : vector<8x128xf32>
    %2545 = arith.addf %146, %2544 : vector<8x128xf32>
    %2546 = math.tanh %2545 : vector<8x128xf32>
    %2547 = vector.broadcast %38 : f32 to vector<8x128xf32>
    %2548 = arith.mulf %2547, %2546 : vector<8x128xf32>
    %2549 = arith.addf %2543, %2548 : vector<8x128xf32>
    %2550 = arith.mulf %220, %2495 : vector<8x128xf32>
    %2551 = arith.addf %156, %2550 : vector<8x128xf32>
    %2552 = math.tanh %2551 : vector<8x128xf32>
    %2553 = vector.broadcast %39 : f32 to vector<8x128xf32>
    %2554 = arith.mulf %2553, %2552 : vector<8x128xf32>
    %2555 = arith.addf %2549, %2554 : vector<8x128xf32>
    %cst_315 = arith.constant 5.000000e-02 : f32
    %2556 = vector.broadcast %cst_315 : f32 to vector<8x128xf32>
    %2557 = arith.mulf %2556, %2555 : vector<8x128xf32>
    %2558 = arith.addf %2508, %2557 : vector<8x128xf32>
    %2559 = arith.select %2489, %2558, %2426 : vector<8x128xi1>, vector<8x128xf32>
    %2560 = arith.mulf %76, %2499 : vector<8x128xf32>
    %2561 = arith.addf %71, %2560 : vector<8x128xf32>
    %2562 = arith.mulf %2499, %2561 : vector<8x128xf32>
    %2563 = arith.addf %64, %2562 : vector<8x128xf32>
    %cst_316 = arith.constant 0.000000e+00 : f32
    %2564 = vector.broadcast %cst_316 : f32 to vector<8x128xf32>
    %2565 = arith.maximumf %2563, %2564 : vector<8x128xf32>
    %2566 = math.sqrt %2565 : vector<8x128xf32>
    %cst_317 = arith.constant 6.000000e-01 : f32
    %2567 = vector.broadcast %cst_317 : f32 to vector<8x128xf32>
    %2568 = arith.subf %2566, %2567 : vector<8x128xf32>
    %2569 = arith.mulf %164, %2499 : vector<8x128xf32>
    %2570 = arith.addf %86, %2569 : vector<8x128xf32>
    %2571 = math.tanh %2570 : vector<8x128xf32>
    %2572 = vector.broadcast %32 : f32 to vector<8x128xf32>
    %2573 = arith.mulf %2572, %2571 : vector<8x128xf32>
    %2574 = arith.mulf %172, %2499 : vector<8x128xf32>
    %2575 = arith.addf %96, %2574 : vector<8x128xf32>
    %2576 = math.tanh %2575 : vector<8x128xf32>
    %2577 = vector.broadcast %33 : f32 to vector<8x128xf32>
    %2578 = arith.mulf %2577, %2576 : vector<8x128xf32>
    %2579 = arith.addf %2573, %2578 : vector<8x128xf32>
    %2580 = arith.mulf %180, %2499 : vector<8x128xf32>
    %2581 = arith.addf %106, %2580 : vector<8x128xf32>
    %2582 = math.tanh %2581 : vector<8x128xf32>
    %2583 = vector.broadcast %34 : f32 to vector<8x128xf32>
    %2584 = arith.mulf %2583, %2582 : vector<8x128xf32>
    %2585 = arith.addf %2579, %2584 : vector<8x128xf32>
    %2586 = arith.mulf %188, %2499 : vector<8x128xf32>
    %2587 = arith.addf %116, %2586 : vector<8x128xf32>
    %2588 = math.tanh %2587 : vector<8x128xf32>
    %2589 = vector.broadcast %35 : f32 to vector<8x128xf32>
    %2590 = arith.mulf %2589, %2588 : vector<8x128xf32>
    %2591 = arith.addf %2585, %2590 : vector<8x128xf32>
    %2592 = arith.mulf %196, %2499 : vector<8x128xf32>
    %2593 = arith.addf %126, %2592 : vector<8x128xf32>
    %2594 = math.tanh %2593 : vector<8x128xf32>
    %2595 = vector.broadcast %36 : f32 to vector<8x128xf32>
    %2596 = arith.mulf %2595, %2594 : vector<8x128xf32>
    %2597 = arith.addf %2591, %2596 : vector<8x128xf32>
    %2598 = arith.mulf %204, %2499 : vector<8x128xf32>
    %2599 = arith.addf %136, %2598 : vector<8x128xf32>
    %2600 = math.tanh %2599 : vector<8x128xf32>
    %2601 = vector.broadcast %37 : f32 to vector<8x128xf32>
    %2602 = arith.mulf %2601, %2600 : vector<8x128xf32>
    %2603 = arith.addf %2597, %2602 : vector<8x128xf32>
    %2604 = arith.mulf %212, %2499 : vector<8x128xf32>
    %2605 = arith.addf %146, %2604 : vector<8x128xf32>
    %2606 = math.tanh %2605 : vector<8x128xf32>
    %2607 = vector.broadcast %38 : f32 to vector<8x128xf32>
    %2608 = arith.mulf %2607, %2606 : vector<8x128xf32>
    %2609 = arith.addf %2603, %2608 : vector<8x128xf32>
    %2610 = arith.mulf %220, %2499 : vector<8x128xf32>
    %2611 = arith.addf %156, %2610 : vector<8x128xf32>
    %2612 = math.tanh %2611 : vector<8x128xf32>
    %2613 = vector.broadcast %39 : f32 to vector<8x128xf32>
    %2614 = arith.mulf %2613, %2612 : vector<8x128xf32>
    %2615 = arith.addf %2609, %2614 : vector<8x128xf32>
    %cst_318 = arith.constant 5.000000e-02 : f32
    %2616 = vector.broadcast %cst_318 : f32 to vector<8x128xf32>
    %2617 = arith.mulf %2616, %2615 : vector<8x128xf32>
    %2618 = arith.addf %2568, %2617 : vector<8x128xf32>
    %2619 = arith.select %2491, %2618, %2487 : vector<8x128xi1>, vector<8x128xf32>
    %2620 = arith.cmpf olt, %2495, %2499 : vector<8x128xf32>
    %2621 = arith.andi %2344, %2620 : vector<8x128xi1>
    %2622 = arith.andi %2347, %2620 : vector<8x128xi1>
    %cst_319 = arith.constant 5.000000e-05 : f32
    %2623 = vector.broadcast %cst_319 : f32 to vector<8x128xf32>
    %2624 = arith.cmpf ogt, %2559, %2623 : vector<8x128xf32>
    %2625 = arith.andi %2621, %2624 : vector<8x128xi1>
    %cst_320 = arith.constant 5.000000e-05 : f32
    %2626 = vector.broadcast %cst_320 : f32 to vector<8x128xf32>
    %2627 = arith.cmpf ogt, %2619, %2626 : vector<8x128xf32>
    %2628 = arith.andi %2622, %2627 : vector<8x128xi1>
    %cst_321 = arith.constant 0.000000e+00 : f32
    %2629 = vector.broadcast %cst_321 : f32 to vector<8x128xf32>
    %2630 = arith.select %2625, %2559, %2629 : vector<8x128xi1>, vector<8x128xf32>
    %cst_322 = arith.constant 0.000000e+00 : f32
    %2631 = vector.broadcast %cst_322 : f32 to vector<8x128xf32>
    %2632 = arith.select %2628, %2619, %2631 : vector<8x128xi1>, vector<8x128xf32>
    %cst_323 = arith.constant -5.000000e-01 : f32
    %cst_324 = arith.constant 5.000000e-01 : f32
    %2633 = vector.broadcast %cst_323 : f32 to vector<8x128xf32>
    %2634 = arith.maximumf %2633, %2630 : vector<8x128xf32>
    %2635 = vector.broadcast %cst_324 : f32 to vector<8x128xf32>
    %2636 = arith.minimumf %2635, %2634 : vector<8x128xf32>
    %cst_325 = arith.constant -5.000000e-01 : f32
    %cst_326 = arith.constant 5.000000e-01 : f32
    %2637 = vector.broadcast %cst_325 : f32 to vector<8x128xf32>
    %2638 = arith.maximumf %2637, %2632 : vector<8x128xf32>
    %2639 = vector.broadcast %cst_326 : f32 to vector<8x128xf32>
    %2640 = arith.minimumf %2639, %2638 : vector<8x128xf32>
    %cst_327 = arith.constant 1.200000e+00 : f32
    %2641 = vector.broadcast %cst_327 : f32 to vector<8x128xf32>
    %2642 = arith.mulf %2636, %2641 : vector<8x128xf32>
    %2643 = arith.addf %2495, %2642 : vector<8x128xf32>
    %cst_328 = arith.constant 1.200000e+00 : f32
    %2644 = vector.broadcast %cst_328 : f32 to vector<8x128xf32>
    %2645 = arith.mulf %2640, %2644 : vector<8x128xf32>
    %2646 = arith.subf %2499, %2645 : vector<8x128xf32>
    %2647 = arith.mulf %76, %2643 : vector<8x128xf32>
    %2648 = arith.addf %71, %2647 : vector<8x128xf32>
    %2649 = arith.mulf %2643, %2648 : vector<8x128xf32>
    %2650 = arith.addf %64, %2649 : vector<8x128xf32>
    %cst_329 = arith.constant 0.000000e+00 : f32
    %2651 = vector.broadcast %cst_329 : f32 to vector<8x128xf32>
    %2652 = arith.maximumf %2650, %2651 : vector<8x128xf32>
    %2653 = math.sqrt %2652 : vector<8x128xf32>
    %cst_330 = arith.constant 6.000000e-01 : f32
    %2654 = vector.broadcast %cst_330 : f32 to vector<8x128xf32>
    %2655 = arith.subf %2653, %2654 : vector<8x128xf32>
    %2656 = arith.mulf %164, %2643 : vector<8x128xf32>
    %2657 = arith.addf %86, %2656 : vector<8x128xf32>
    %2658 = math.tanh %2657 : vector<8x128xf32>
    %2659 = vector.broadcast %32 : f32 to vector<8x128xf32>
    %2660 = arith.mulf %2659, %2658 : vector<8x128xf32>
    %2661 = arith.mulf %172, %2643 : vector<8x128xf32>
    %2662 = arith.addf %96, %2661 : vector<8x128xf32>
    %2663 = math.tanh %2662 : vector<8x128xf32>
    %2664 = vector.broadcast %33 : f32 to vector<8x128xf32>
    %2665 = arith.mulf %2664, %2663 : vector<8x128xf32>
    %2666 = arith.addf %2660, %2665 : vector<8x128xf32>
    %2667 = arith.mulf %180, %2643 : vector<8x128xf32>
    %2668 = arith.addf %106, %2667 : vector<8x128xf32>
    %2669 = math.tanh %2668 : vector<8x128xf32>
    %2670 = vector.broadcast %34 : f32 to vector<8x128xf32>
    %2671 = arith.mulf %2670, %2669 : vector<8x128xf32>
    %2672 = arith.addf %2666, %2671 : vector<8x128xf32>
    %2673 = arith.mulf %188, %2643 : vector<8x128xf32>
    %2674 = arith.addf %116, %2673 : vector<8x128xf32>
    %2675 = math.tanh %2674 : vector<8x128xf32>
    %2676 = vector.broadcast %35 : f32 to vector<8x128xf32>
    %2677 = arith.mulf %2676, %2675 : vector<8x128xf32>
    %2678 = arith.addf %2672, %2677 : vector<8x128xf32>
    %2679 = arith.mulf %196, %2643 : vector<8x128xf32>
    %2680 = arith.addf %126, %2679 : vector<8x128xf32>
    %2681 = math.tanh %2680 : vector<8x128xf32>
    %2682 = vector.broadcast %36 : f32 to vector<8x128xf32>
    %2683 = arith.mulf %2682, %2681 : vector<8x128xf32>
    %2684 = arith.addf %2678, %2683 : vector<8x128xf32>
    %2685 = arith.mulf %204, %2643 : vector<8x128xf32>
    %2686 = arith.addf %136, %2685 : vector<8x128xf32>
    %2687 = math.tanh %2686 : vector<8x128xf32>
    %2688 = vector.broadcast %37 : f32 to vector<8x128xf32>
    %2689 = arith.mulf %2688, %2687 : vector<8x128xf32>
    %2690 = arith.addf %2684, %2689 : vector<8x128xf32>
    %2691 = arith.mulf %212, %2643 : vector<8x128xf32>
    %2692 = arith.addf %146, %2691 : vector<8x128xf32>
    %2693 = math.tanh %2692 : vector<8x128xf32>
    %2694 = vector.broadcast %38 : f32 to vector<8x128xf32>
    %2695 = arith.mulf %2694, %2693 : vector<8x128xf32>
    %2696 = arith.addf %2690, %2695 : vector<8x128xf32>
    %2697 = arith.mulf %220, %2643 : vector<8x128xf32>
    %2698 = arith.addf %156, %2697 : vector<8x128xf32>
    %2699 = math.tanh %2698 : vector<8x128xf32>
    %2700 = vector.broadcast %39 : f32 to vector<8x128xf32>
    %2701 = arith.mulf %2700, %2699 : vector<8x128xf32>
    %2702 = arith.addf %2696, %2701 : vector<8x128xf32>
    %cst_331 = arith.constant 5.000000e-02 : f32
    %2703 = vector.broadcast %cst_331 : f32 to vector<8x128xf32>
    %2704 = arith.mulf %2703, %2702 : vector<8x128xf32>
    %2705 = arith.addf %2655, %2704 : vector<8x128xf32>
    %cst_332 = arith.constant 0.000000e+00 : f32
    %2706 = vector.broadcast %cst_332 : f32 to vector<8x128xf32>
    %2707 = arith.select %2625, %2705, %2706 : vector<8x128xi1>, vector<8x128xf32>
    %2708 = arith.mulf %76, %2646 : vector<8x128xf32>
    %2709 = arith.addf %71, %2708 : vector<8x128xf32>
    %2710 = arith.mulf %2646, %2709 : vector<8x128xf32>
    %2711 = arith.addf %64, %2710 : vector<8x128xf32>
    %cst_333 = arith.constant 0.000000e+00 : f32
    %2712 = vector.broadcast %cst_333 : f32 to vector<8x128xf32>
    %2713 = arith.maximumf %2711, %2712 : vector<8x128xf32>
    %2714 = math.sqrt %2713 : vector<8x128xf32>
    %cst_334 = arith.constant 6.000000e-01 : f32
    %2715 = vector.broadcast %cst_334 : f32 to vector<8x128xf32>
    %2716 = arith.subf %2714, %2715 : vector<8x128xf32>
    %2717 = arith.mulf %164, %2646 : vector<8x128xf32>
    %2718 = arith.addf %86, %2717 : vector<8x128xf32>
    %2719 = math.tanh %2718 : vector<8x128xf32>
    %2720 = vector.broadcast %32 : f32 to vector<8x128xf32>
    %2721 = arith.mulf %2720, %2719 : vector<8x128xf32>
    %2722 = arith.mulf %172, %2646 : vector<8x128xf32>
    %2723 = arith.addf %96, %2722 : vector<8x128xf32>
    %2724 = math.tanh %2723 : vector<8x128xf32>
    %2725 = vector.broadcast %33 : f32 to vector<8x128xf32>
    %2726 = arith.mulf %2725, %2724 : vector<8x128xf32>
    %2727 = arith.addf %2721, %2726 : vector<8x128xf32>
    %2728 = arith.mulf %180, %2646 : vector<8x128xf32>
    %2729 = arith.addf %106, %2728 : vector<8x128xf32>
    %2730 = math.tanh %2729 : vector<8x128xf32>
    %2731 = vector.broadcast %34 : f32 to vector<8x128xf32>
    %2732 = arith.mulf %2731, %2730 : vector<8x128xf32>
    %2733 = arith.addf %2727, %2732 : vector<8x128xf32>
    %2734 = arith.mulf %188, %2646 : vector<8x128xf32>
    %2735 = arith.addf %116, %2734 : vector<8x128xf32>
    %2736 = math.tanh %2735 : vector<8x128xf32>
    %2737 = vector.broadcast %35 : f32 to vector<8x128xf32>
    %2738 = arith.mulf %2737, %2736 : vector<8x128xf32>
    %2739 = arith.addf %2733, %2738 : vector<8x128xf32>
    %2740 = arith.mulf %196, %2646 : vector<8x128xf32>
    %2741 = arith.addf %126, %2740 : vector<8x128xf32>
    %2742 = math.tanh %2741 : vector<8x128xf32>
    %2743 = vector.broadcast %36 : f32 to vector<8x128xf32>
    %2744 = arith.mulf %2743, %2742 : vector<8x128xf32>
    %2745 = arith.addf %2739, %2744 : vector<8x128xf32>
    %2746 = arith.mulf %204, %2646 : vector<8x128xf32>
    %2747 = arith.addf %136, %2746 : vector<8x128xf32>
    %2748 = math.tanh %2747 : vector<8x128xf32>
    %2749 = vector.broadcast %37 : f32 to vector<8x128xf32>
    %2750 = arith.mulf %2749, %2748 : vector<8x128xf32>
    %2751 = arith.addf %2745, %2750 : vector<8x128xf32>
    %2752 = arith.mulf %212, %2646 : vector<8x128xf32>
    %2753 = arith.addf %146, %2752 : vector<8x128xf32>
    %2754 = math.tanh %2753 : vector<8x128xf32>
    %2755 = vector.broadcast %38 : f32 to vector<8x128xf32>
    %2756 = arith.mulf %2755, %2754 : vector<8x128xf32>
    %2757 = arith.addf %2751, %2756 : vector<8x128xf32>
    %2758 = arith.mulf %220, %2646 : vector<8x128xf32>
    %2759 = arith.addf %156, %2758 : vector<8x128xf32>
    %2760 = math.tanh %2759 : vector<8x128xf32>
    %2761 = vector.broadcast %39 : f32 to vector<8x128xf32>
    %2762 = arith.mulf %2761, %2760 : vector<8x128xf32>
    %2763 = arith.addf %2757, %2762 : vector<8x128xf32>
    %cst_335 = arith.constant 5.000000e-02 : f32
    %2764 = vector.broadcast %cst_335 : f32 to vector<8x128xf32>
    %2765 = arith.mulf %2764, %2763 : vector<8x128xf32>
    %2766 = arith.addf %2716, %2765 : vector<8x128xf32>
    %cst_336 = arith.constant 0.000000e+00 : f32
    %2767 = vector.broadcast %cst_336 : f32 to vector<8x128xf32>
    %2768 = arith.select %2628, %2766, %2767 : vector<8x128xi1>, vector<8x128xf32>
    %cst_337 = arith.constant 0.000000e+00 : f32
    %2769 = vector.broadcast %cst_337 : f32 to vector<8x128xf32>
    %2770 = arith.cmpf olt, %2707, %2769 : vector<8x128xf32>
    %cst_338 = arith.constant 0.000000e+00 : f32
    %2771 = vector.broadcast %cst_338 : f32 to vector<8x128xf32>
    %2772 = arith.cmpf olt, %2768, %2771 : vector<8x128xf32>
    %cst_339 = arith.constant 5.000000e-01 : f32
    %2773 = vector.broadcast %cst_339 : f32 to vector<8x128xf32>
    %2774 = arith.mulf %2773, %2636 : vector<8x128xf32>
    %2775 = arith.subf %2643, %2774 : vector<8x128xf32>
    %2776 = arith.select %2770, %2775, %2643 : vector<8x128xi1>, vector<8x128xf32>
    %cst_340 = arith.constant 5.000000e-01 : f32
    %2777 = vector.broadcast %cst_340 : f32 to vector<8x128xf32>
    %2778 = arith.mulf %2777, %2640 : vector<8x128xf32>
    %2779 = arith.addf %2646, %2778 : vector<8x128xf32>
    %2780 = arith.select %2772, %2779, %2646 : vector<8x128xi1>, vector<8x128xf32>
    %2781 = arith.mulf %76, %2776 : vector<8x128xf32>
    %2782 = arith.addf %71, %2781 : vector<8x128xf32>
    %2783 = arith.mulf %2776, %2782 : vector<8x128xf32>
    %2784 = arith.addf %64, %2783 : vector<8x128xf32>
    %cst_341 = arith.constant 0.000000e+00 : f32
    %2785 = vector.broadcast %cst_341 : f32 to vector<8x128xf32>
    %2786 = arith.maximumf %2784, %2785 : vector<8x128xf32>
    %2787 = math.sqrt %2786 : vector<8x128xf32>
    %cst_342 = arith.constant 6.000000e-01 : f32
    %2788 = vector.broadcast %cst_342 : f32 to vector<8x128xf32>
    %2789 = arith.subf %2787, %2788 : vector<8x128xf32>
    %2790 = arith.mulf %164, %2776 : vector<8x128xf32>
    %2791 = arith.addf %86, %2790 : vector<8x128xf32>
    %2792 = math.tanh %2791 : vector<8x128xf32>
    %2793 = vector.broadcast %32 : f32 to vector<8x128xf32>
    %2794 = arith.mulf %2793, %2792 : vector<8x128xf32>
    %2795 = arith.mulf %172, %2776 : vector<8x128xf32>
    %2796 = arith.addf %96, %2795 : vector<8x128xf32>
    %2797 = math.tanh %2796 : vector<8x128xf32>
    %2798 = vector.broadcast %33 : f32 to vector<8x128xf32>
    %2799 = arith.mulf %2798, %2797 : vector<8x128xf32>
    %2800 = arith.addf %2794, %2799 : vector<8x128xf32>
    %2801 = arith.mulf %180, %2776 : vector<8x128xf32>
    %2802 = arith.addf %106, %2801 : vector<8x128xf32>
    %2803 = math.tanh %2802 : vector<8x128xf32>
    %2804 = vector.broadcast %34 : f32 to vector<8x128xf32>
    %2805 = arith.mulf %2804, %2803 : vector<8x128xf32>
    %2806 = arith.addf %2800, %2805 : vector<8x128xf32>
    %2807 = arith.mulf %188, %2776 : vector<8x128xf32>
    %2808 = arith.addf %116, %2807 : vector<8x128xf32>
    %2809 = math.tanh %2808 : vector<8x128xf32>
    %2810 = vector.broadcast %35 : f32 to vector<8x128xf32>
    %2811 = arith.mulf %2810, %2809 : vector<8x128xf32>
    %2812 = arith.addf %2806, %2811 : vector<8x128xf32>
    %2813 = arith.mulf %196, %2776 : vector<8x128xf32>
    %2814 = arith.addf %126, %2813 : vector<8x128xf32>
    %2815 = math.tanh %2814 : vector<8x128xf32>
    %2816 = vector.broadcast %36 : f32 to vector<8x128xf32>
    %2817 = arith.mulf %2816, %2815 : vector<8x128xf32>
    %2818 = arith.addf %2812, %2817 : vector<8x128xf32>
    %2819 = arith.mulf %204, %2776 : vector<8x128xf32>
    %2820 = arith.addf %136, %2819 : vector<8x128xf32>
    %2821 = math.tanh %2820 : vector<8x128xf32>
    %2822 = vector.broadcast %37 : f32 to vector<8x128xf32>
    %2823 = arith.mulf %2822, %2821 : vector<8x128xf32>
    %2824 = arith.addf %2818, %2823 : vector<8x128xf32>
    %2825 = arith.mulf %212, %2776 : vector<8x128xf32>
    %2826 = arith.addf %146, %2825 : vector<8x128xf32>
    %2827 = math.tanh %2826 : vector<8x128xf32>
    %2828 = vector.broadcast %38 : f32 to vector<8x128xf32>
    %2829 = arith.mulf %2828, %2827 : vector<8x128xf32>
    %2830 = arith.addf %2824, %2829 : vector<8x128xf32>
    %2831 = arith.mulf %220, %2776 : vector<8x128xf32>
    %2832 = arith.addf %156, %2831 : vector<8x128xf32>
    %2833 = math.tanh %2832 : vector<8x128xf32>
    %2834 = vector.broadcast %39 : f32 to vector<8x128xf32>
    %2835 = arith.mulf %2834, %2833 : vector<8x128xf32>
    %2836 = arith.addf %2830, %2835 : vector<8x128xf32>
    %cst_343 = arith.constant 5.000000e-02 : f32
    %2837 = vector.broadcast %cst_343 : f32 to vector<8x128xf32>
    %2838 = arith.mulf %2837, %2836 : vector<8x128xf32>
    %2839 = arith.addf %2789, %2838 : vector<8x128xf32>
    %2840 = arith.select %2770, %2839, %2707 : vector<8x128xi1>, vector<8x128xf32>
    %2841 = arith.mulf %76, %2780 : vector<8x128xf32>
    %2842 = arith.addf %71, %2841 : vector<8x128xf32>
    %2843 = arith.mulf %2780, %2842 : vector<8x128xf32>
    %2844 = arith.addf %64, %2843 : vector<8x128xf32>
    %cst_344 = arith.constant 0.000000e+00 : f32
    %2845 = vector.broadcast %cst_344 : f32 to vector<8x128xf32>
    %2846 = arith.maximumf %2844, %2845 : vector<8x128xf32>
    %2847 = math.sqrt %2846 : vector<8x128xf32>
    %cst_345 = arith.constant 6.000000e-01 : f32
    %2848 = vector.broadcast %cst_345 : f32 to vector<8x128xf32>
    %2849 = arith.subf %2847, %2848 : vector<8x128xf32>
    %2850 = arith.mulf %164, %2780 : vector<8x128xf32>
    %2851 = arith.addf %86, %2850 : vector<8x128xf32>
    %2852 = math.tanh %2851 : vector<8x128xf32>
    %2853 = vector.broadcast %32 : f32 to vector<8x128xf32>
    %2854 = arith.mulf %2853, %2852 : vector<8x128xf32>
    %2855 = arith.mulf %172, %2780 : vector<8x128xf32>
    %2856 = arith.addf %96, %2855 : vector<8x128xf32>
    %2857 = math.tanh %2856 : vector<8x128xf32>
    %2858 = vector.broadcast %33 : f32 to vector<8x128xf32>
    %2859 = arith.mulf %2858, %2857 : vector<8x128xf32>
    %2860 = arith.addf %2854, %2859 : vector<8x128xf32>
    %2861 = arith.mulf %180, %2780 : vector<8x128xf32>
    %2862 = arith.addf %106, %2861 : vector<8x128xf32>
    %2863 = math.tanh %2862 : vector<8x128xf32>
    %2864 = vector.broadcast %34 : f32 to vector<8x128xf32>
    %2865 = arith.mulf %2864, %2863 : vector<8x128xf32>
    %2866 = arith.addf %2860, %2865 : vector<8x128xf32>
    %2867 = arith.mulf %188, %2780 : vector<8x128xf32>
    %2868 = arith.addf %116, %2867 : vector<8x128xf32>
    %2869 = math.tanh %2868 : vector<8x128xf32>
    %2870 = vector.broadcast %35 : f32 to vector<8x128xf32>
    %2871 = arith.mulf %2870, %2869 : vector<8x128xf32>
    %2872 = arith.addf %2866, %2871 : vector<8x128xf32>
    %2873 = arith.mulf %196, %2780 : vector<8x128xf32>
    %2874 = arith.addf %126, %2873 : vector<8x128xf32>
    %2875 = math.tanh %2874 : vector<8x128xf32>
    %2876 = vector.broadcast %36 : f32 to vector<8x128xf32>
    %2877 = arith.mulf %2876, %2875 : vector<8x128xf32>
    %2878 = arith.addf %2872, %2877 : vector<8x128xf32>
    %2879 = arith.mulf %204, %2780 : vector<8x128xf32>
    %2880 = arith.addf %136, %2879 : vector<8x128xf32>
    %2881 = math.tanh %2880 : vector<8x128xf32>
    %2882 = vector.broadcast %37 : f32 to vector<8x128xf32>
    %2883 = arith.mulf %2882, %2881 : vector<8x128xf32>
    %2884 = arith.addf %2878, %2883 : vector<8x128xf32>
    %2885 = arith.mulf %212, %2780 : vector<8x128xf32>
    %2886 = arith.addf %146, %2885 : vector<8x128xf32>
    %2887 = math.tanh %2886 : vector<8x128xf32>
    %2888 = vector.broadcast %38 : f32 to vector<8x128xf32>
    %2889 = arith.mulf %2888, %2887 : vector<8x128xf32>
    %2890 = arith.addf %2884, %2889 : vector<8x128xf32>
    %2891 = arith.mulf %220, %2780 : vector<8x128xf32>
    %2892 = arith.addf %156, %2891 : vector<8x128xf32>
    %2893 = math.tanh %2892 : vector<8x128xf32>
    %2894 = vector.broadcast %39 : f32 to vector<8x128xf32>
    %2895 = arith.mulf %2894, %2893 : vector<8x128xf32>
    %2896 = arith.addf %2890, %2895 : vector<8x128xf32>
    %cst_346 = arith.constant 5.000000e-02 : f32
    %2897 = vector.broadcast %cst_346 : f32 to vector<8x128xf32>
    %2898 = arith.mulf %2897, %2896 : vector<8x128xf32>
    %2899 = arith.addf %2849, %2898 : vector<8x128xf32>
    %2900 = arith.select %2772, %2899, %2768 : vector<8x128xi1>, vector<8x128xf32>
    %2901 = arith.cmpf olt, %2776, %2780 : vector<8x128xf32>
    %2902 = arith.andi %2625, %2901 : vector<8x128xi1>
    %2903 = arith.andi %2628, %2901 : vector<8x128xi1>
    %cst_347 = arith.constant 5.000000e-05 : f32
    %2904 = vector.broadcast %cst_347 : f32 to vector<8x128xf32>
    %2905 = arith.cmpf ogt, %2840, %2904 : vector<8x128xf32>
    %2906 = arith.andi %2902, %2905 : vector<8x128xi1>
    %cst_348 = arith.constant 5.000000e-05 : f32
    %2907 = vector.broadcast %cst_348 : f32 to vector<8x128xf32>
    %2908 = arith.cmpf ogt, %2900, %2907 : vector<8x128xf32>
    %2909 = arith.andi %2903, %2908 : vector<8x128xi1>
    %cst_349 = arith.constant 0.000000e+00 : f32
    %2910 = vector.broadcast %cst_349 : f32 to vector<8x128xf32>
    %2911 = arith.select %2906, %2840, %2910 : vector<8x128xi1>, vector<8x128xf32>
    %cst_350 = arith.constant 0.000000e+00 : f32
    %2912 = vector.broadcast %cst_350 : f32 to vector<8x128xf32>
    %2913 = arith.select %2909, %2900, %2912 : vector<8x128xi1>, vector<8x128xf32>
    %cst_351 = arith.constant -5.000000e-01 : f32
    %cst_352 = arith.constant 5.000000e-01 : f32
    %2914 = vector.broadcast %cst_351 : f32 to vector<8x128xf32>
    %2915 = arith.maximumf %2914, %2911 : vector<8x128xf32>
    %2916 = vector.broadcast %cst_352 : f32 to vector<8x128xf32>
    %2917 = arith.minimumf %2916, %2915 : vector<8x128xf32>
    %cst_353 = arith.constant -5.000000e-01 : f32
    %cst_354 = arith.constant 5.000000e-01 : f32
    %2918 = vector.broadcast %cst_353 : f32 to vector<8x128xf32>
    %2919 = arith.maximumf %2918, %2913 : vector<8x128xf32>
    %2920 = vector.broadcast %cst_354 : f32 to vector<8x128xf32>
    %2921 = arith.minimumf %2920, %2919 : vector<8x128xf32>
    %cst_355 = arith.constant 1.200000e+00 : f32
    %2922 = vector.broadcast %cst_355 : f32 to vector<8x128xf32>
    %2923 = arith.mulf %2917, %2922 : vector<8x128xf32>
    %2924 = arith.addf %2776, %2923 : vector<8x128xf32>
    %cst_356 = arith.constant 1.200000e+00 : f32
    %2925 = vector.broadcast %cst_356 : f32 to vector<8x128xf32>
    %2926 = arith.mulf %2921, %2925 : vector<8x128xf32>
    %2927 = arith.subf %2780, %2926 : vector<8x128xf32>
    %2928 = arith.mulf %76, %2924 : vector<8x128xf32>
    %2929 = arith.addf %71, %2928 : vector<8x128xf32>
    %2930 = arith.mulf %2924, %2929 : vector<8x128xf32>
    %2931 = arith.addf %64, %2930 : vector<8x128xf32>
    %cst_357 = arith.constant 0.000000e+00 : f32
    %2932 = vector.broadcast %cst_357 : f32 to vector<8x128xf32>
    %2933 = arith.maximumf %2931, %2932 : vector<8x128xf32>
    %2934 = math.sqrt %2933 : vector<8x128xf32>
    %cst_358 = arith.constant 6.000000e-01 : f32
    %2935 = vector.broadcast %cst_358 : f32 to vector<8x128xf32>
    %2936 = arith.subf %2934, %2935 : vector<8x128xf32>
    %2937 = arith.mulf %164, %2924 : vector<8x128xf32>
    %2938 = arith.addf %86, %2937 : vector<8x128xf32>
    %2939 = math.tanh %2938 : vector<8x128xf32>
    %2940 = vector.broadcast %32 : f32 to vector<8x128xf32>
    %2941 = arith.mulf %2940, %2939 : vector<8x128xf32>
    %2942 = arith.mulf %172, %2924 : vector<8x128xf32>
    %2943 = arith.addf %96, %2942 : vector<8x128xf32>
    %2944 = math.tanh %2943 : vector<8x128xf32>
    %2945 = vector.broadcast %33 : f32 to vector<8x128xf32>
    %2946 = arith.mulf %2945, %2944 : vector<8x128xf32>
    %2947 = arith.addf %2941, %2946 : vector<8x128xf32>
    %2948 = arith.mulf %180, %2924 : vector<8x128xf32>
    %2949 = arith.addf %106, %2948 : vector<8x128xf32>
    %2950 = math.tanh %2949 : vector<8x128xf32>
    %2951 = vector.broadcast %34 : f32 to vector<8x128xf32>
    %2952 = arith.mulf %2951, %2950 : vector<8x128xf32>
    %2953 = arith.addf %2947, %2952 : vector<8x128xf32>
    %2954 = arith.mulf %188, %2924 : vector<8x128xf32>
    %2955 = arith.addf %116, %2954 : vector<8x128xf32>
    %2956 = math.tanh %2955 : vector<8x128xf32>
    %2957 = vector.broadcast %35 : f32 to vector<8x128xf32>
    %2958 = arith.mulf %2957, %2956 : vector<8x128xf32>
    %2959 = arith.addf %2953, %2958 : vector<8x128xf32>
    %2960 = arith.mulf %196, %2924 : vector<8x128xf32>
    %2961 = arith.addf %126, %2960 : vector<8x128xf32>
    %2962 = math.tanh %2961 : vector<8x128xf32>
    %2963 = vector.broadcast %36 : f32 to vector<8x128xf32>
    %2964 = arith.mulf %2963, %2962 : vector<8x128xf32>
    %2965 = arith.addf %2959, %2964 : vector<8x128xf32>
    %2966 = arith.mulf %204, %2924 : vector<8x128xf32>
    %2967 = arith.addf %136, %2966 : vector<8x128xf32>
    %2968 = math.tanh %2967 : vector<8x128xf32>
    %2969 = vector.broadcast %37 : f32 to vector<8x128xf32>
    %2970 = arith.mulf %2969, %2968 : vector<8x128xf32>
    %2971 = arith.addf %2965, %2970 : vector<8x128xf32>
    %2972 = arith.mulf %212, %2924 : vector<8x128xf32>
    %2973 = arith.addf %146, %2972 : vector<8x128xf32>
    %2974 = math.tanh %2973 : vector<8x128xf32>
    %2975 = vector.broadcast %38 : f32 to vector<8x128xf32>
    %2976 = arith.mulf %2975, %2974 : vector<8x128xf32>
    %2977 = arith.addf %2971, %2976 : vector<8x128xf32>
    %2978 = arith.mulf %220, %2924 : vector<8x128xf32>
    %2979 = arith.addf %156, %2978 : vector<8x128xf32>
    %2980 = math.tanh %2979 : vector<8x128xf32>
    %2981 = vector.broadcast %39 : f32 to vector<8x128xf32>
    %2982 = arith.mulf %2981, %2980 : vector<8x128xf32>
    %2983 = arith.addf %2977, %2982 : vector<8x128xf32>
    %cst_359 = arith.constant 5.000000e-02 : f32
    %2984 = vector.broadcast %cst_359 : f32 to vector<8x128xf32>
    %2985 = arith.mulf %2984, %2983 : vector<8x128xf32>
    %2986 = arith.addf %2936, %2985 : vector<8x128xf32>
    %cst_360 = arith.constant 0.000000e+00 : f32
    %2987 = vector.broadcast %cst_360 : f32 to vector<8x128xf32>
    %2988 = arith.select %2906, %2986, %2987 : vector<8x128xi1>, vector<8x128xf32>
    %2989 = arith.mulf %76, %2927 : vector<8x128xf32>
    %2990 = arith.addf %71, %2989 : vector<8x128xf32>
    %2991 = arith.mulf %2927, %2990 : vector<8x128xf32>
    %2992 = arith.addf %64, %2991 : vector<8x128xf32>
    %cst_361 = arith.constant 0.000000e+00 : f32
    %2993 = vector.broadcast %cst_361 : f32 to vector<8x128xf32>
    %2994 = arith.maximumf %2992, %2993 : vector<8x128xf32>
    %2995 = math.sqrt %2994 : vector<8x128xf32>
    %cst_362 = arith.constant 6.000000e-01 : f32
    %2996 = vector.broadcast %cst_362 : f32 to vector<8x128xf32>
    %2997 = arith.subf %2995, %2996 : vector<8x128xf32>
    %2998 = arith.mulf %164, %2927 : vector<8x128xf32>
    %2999 = arith.addf %86, %2998 : vector<8x128xf32>
    %3000 = math.tanh %2999 : vector<8x128xf32>
    %3001 = vector.broadcast %32 : f32 to vector<8x128xf32>
    %3002 = arith.mulf %3001, %3000 : vector<8x128xf32>
    %3003 = arith.mulf %172, %2927 : vector<8x128xf32>
    %3004 = arith.addf %96, %3003 : vector<8x128xf32>
    %3005 = math.tanh %3004 : vector<8x128xf32>
    %3006 = vector.broadcast %33 : f32 to vector<8x128xf32>
    %3007 = arith.mulf %3006, %3005 : vector<8x128xf32>
    %3008 = arith.addf %3002, %3007 : vector<8x128xf32>
    %3009 = arith.mulf %180, %2927 : vector<8x128xf32>
    %3010 = arith.addf %106, %3009 : vector<8x128xf32>
    %3011 = math.tanh %3010 : vector<8x128xf32>
    %3012 = vector.broadcast %34 : f32 to vector<8x128xf32>
    %3013 = arith.mulf %3012, %3011 : vector<8x128xf32>
    %3014 = arith.addf %3008, %3013 : vector<8x128xf32>
    %3015 = arith.mulf %188, %2927 : vector<8x128xf32>
    %3016 = arith.addf %116, %3015 : vector<8x128xf32>
    %3017 = math.tanh %3016 : vector<8x128xf32>
    %3018 = vector.broadcast %35 : f32 to vector<8x128xf32>
    %3019 = arith.mulf %3018, %3017 : vector<8x128xf32>
    %3020 = arith.addf %3014, %3019 : vector<8x128xf32>
    %3021 = arith.mulf %196, %2927 : vector<8x128xf32>
    %3022 = arith.addf %126, %3021 : vector<8x128xf32>
    %3023 = math.tanh %3022 : vector<8x128xf32>
    %3024 = vector.broadcast %36 : f32 to vector<8x128xf32>
    %3025 = arith.mulf %3024, %3023 : vector<8x128xf32>
    %3026 = arith.addf %3020, %3025 : vector<8x128xf32>
    %3027 = arith.mulf %204, %2927 : vector<8x128xf32>
    %3028 = arith.addf %136, %3027 : vector<8x128xf32>
    %3029 = math.tanh %3028 : vector<8x128xf32>
    %3030 = vector.broadcast %37 : f32 to vector<8x128xf32>
    %3031 = arith.mulf %3030, %3029 : vector<8x128xf32>
    %3032 = arith.addf %3026, %3031 : vector<8x128xf32>
    %3033 = arith.mulf %212, %2927 : vector<8x128xf32>
    %3034 = arith.addf %146, %3033 : vector<8x128xf32>
    %3035 = math.tanh %3034 : vector<8x128xf32>
    %3036 = vector.broadcast %38 : f32 to vector<8x128xf32>
    %3037 = arith.mulf %3036, %3035 : vector<8x128xf32>
    %3038 = arith.addf %3032, %3037 : vector<8x128xf32>
    %3039 = arith.mulf %220, %2927 : vector<8x128xf32>
    %3040 = arith.addf %156, %3039 : vector<8x128xf32>
    %3041 = math.tanh %3040 : vector<8x128xf32>
    %3042 = vector.broadcast %39 : f32 to vector<8x128xf32>
    %3043 = arith.mulf %3042, %3041 : vector<8x128xf32>
    %3044 = arith.addf %3038, %3043 : vector<8x128xf32>
    %cst_363 = arith.constant 5.000000e-02 : f32
    %3045 = vector.broadcast %cst_363 : f32 to vector<8x128xf32>
    %3046 = arith.mulf %3045, %3044 : vector<8x128xf32>
    %3047 = arith.addf %2997, %3046 : vector<8x128xf32>
    %cst_364 = arith.constant 0.000000e+00 : f32
    %3048 = vector.broadcast %cst_364 : f32 to vector<8x128xf32>
    %3049 = arith.select %2909, %3047, %3048 : vector<8x128xi1>, vector<8x128xf32>
    %cst_365 = arith.constant 0.000000e+00 : f32
    %3050 = vector.broadcast %cst_365 : f32 to vector<8x128xf32>
    %3051 = arith.cmpf olt, %2988, %3050 : vector<8x128xf32>
    %cst_366 = arith.constant 0.000000e+00 : f32
    %3052 = vector.broadcast %cst_366 : f32 to vector<8x128xf32>
    %3053 = arith.cmpf olt, %3049, %3052 : vector<8x128xf32>
    %cst_367 = arith.constant 5.000000e-01 : f32
    %3054 = vector.broadcast %cst_367 : f32 to vector<8x128xf32>
    %3055 = arith.mulf %3054, %2917 : vector<8x128xf32>
    %3056 = arith.subf %2924, %3055 : vector<8x128xf32>
    %3057 = arith.select %3051, %3056, %2924 : vector<8x128xi1>, vector<8x128xf32>
    %cst_368 = arith.constant 5.000000e-01 : f32
    %3058 = vector.broadcast %cst_368 : f32 to vector<8x128xf32>
    %3059 = arith.mulf %3058, %2921 : vector<8x128xf32>
    %3060 = arith.addf %2927, %3059 : vector<8x128xf32>
    %3061 = arith.select %3053, %3060, %2927 : vector<8x128xi1>, vector<8x128xf32>
    %3062 = arith.mulf %76, %3057 : vector<8x128xf32>
    %3063 = arith.addf %71, %3062 : vector<8x128xf32>
    %3064 = arith.mulf %3057, %3063 : vector<8x128xf32>
    %3065 = arith.addf %64, %3064 : vector<8x128xf32>
    %cst_369 = arith.constant 0.000000e+00 : f32
    %3066 = vector.broadcast %cst_369 : f32 to vector<8x128xf32>
    %3067 = arith.maximumf %3065, %3066 : vector<8x128xf32>
    %3068 = math.sqrt %3067 : vector<8x128xf32>
    %cst_370 = arith.constant 6.000000e-01 : f32
    %3069 = vector.broadcast %cst_370 : f32 to vector<8x128xf32>
    %3070 = arith.subf %3068, %3069 : vector<8x128xf32>
    %3071 = arith.mulf %164, %3057 : vector<8x128xf32>
    %3072 = arith.addf %86, %3071 : vector<8x128xf32>
    %3073 = math.tanh %3072 : vector<8x128xf32>
    %3074 = vector.broadcast %32 : f32 to vector<8x128xf32>
    %3075 = arith.mulf %3074, %3073 : vector<8x128xf32>
    %3076 = arith.mulf %172, %3057 : vector<8x128xf32>
    %3077 = arith.addf %96, %3076 : vector<8x128xf32>
    %3078 = math.tanh %3077 : vector<8x128xf32>
    %3079 = vector.broadcast %33 : f32 to vector<8x128xf32>
    %3080 = arith.mulf %3079, %3078 : vector<8x128xf32>
    %3081 = arith.addf %3075, %3080 : vector<8x128xf32>
    %3082 = arith.mulf %180, %3057 : vector<8x128xf32>
    %3083 = arith.addf %106, %3082 : vector<8x128xf32>
    %3084 = math.tanh %3083 : vector<8x128xf32>
    %3085 = vector.broadcast %34 : f32 to vector<8x128xf32>
    %3086 = arith.mulf %3085, %3084 : vector<8x128xf32>
    %3087 = arith.addf %3081, %3086 : vector<8x128xf32>
    %3088 = arith.mulf %188, %3057 : vector<8x128xf32>
    %3089 = arith.addf %116, %3088 : vector<8x128xf32>
    %3090 = math.tanh %3089 : vector<8x128xf32>
    %3091 = vector.broadcast %35 : f32 to vector<8x128xf32>
    %3092 = arith.mulf %3091, %3090 : vector<8x128xf32>
    %3093 = arith.addf %3087, %3092 : vector<8x128xf32>
    %3094 = arith.mulf %196, %3057 : vector<8x128xf32>
    %3095 = arith.addf %126, %3094 : vector<8x128xf32>
    %3096 = math.tanh %3095 : vector<8x128xf32>
    %3097 = vector.broadcast %36 : f32 to vector<8x128xf32>
    %3098 = arith.mulf %3097, %3096 : vector<8x128xf32>
    %3099 = arith.addf %3093, %3098 : vector<8x128xf32>
    %3100 = arith.mulf %204, %3057 : vector<8x128xf32>
    %3101 = arith.addf %136, %3100 : vector<8x128xf32>
    %3102 = math.tanh %3101 : vector<8x128xf32>
    %3103 = vector.broadcast %37 : f32 to vector<8x128xf32>
    %3104 = arith.mulf %3103, %3102 : vector<8x128xf32>
    %3105 = arith.addf %3099, %3104 : vector<8x128xf32>
    %3106 = arith.mulf %212, %3057 : vector<8x128xf32>
    %3107 = arith.addf %146, %3106 : vector<8x128xf32>
    %3108 = math.tanh %3107 : vector<8x128xf32>
    %3109 = vector.broadcast %38 : f32 to vector<8x128xf32>
    %3110 = arith.mulf %3109, %3108 : vector<8x128xf32>
    %3111 = arith.addf %3105, %3110 : vector<8x128xf32>
    %3112 = arith.mulf %220, %3057 : vector<8x128xf32>
    %3113 = arith.addf %156, %3112 : vector<8x128xf32>
    %3114 = math.tanh %3113 : vector<8x128xf32>
    %3115 = vector.broadcast %39 : f32 to vector<8x128xf32>
    %3116 = arith.mulf %3115, %3114 : vector<8x128xf32>
    %3117 = arith.addf %3111, %3116 : vector<8x128xf32>
    %cst_371 = arith.constant 5.000000e-02 : f32
    %3118 = vector.broadcast %cst_371 : f32 to vector<8x128xf32>
    %3119 = arith.mulf %3118, %3117 : vector<8x128xf32>
    %3120 = arith.addf %3070, %3119 : vector<8x128xf32>
    %3121 = arith.select %3051, %3120, %2988 : vector<8x128xi1>, vector<8x128xf32>
    %3122 = arith.cmpf olt, %3057, %3061 : vector<8x128xf32>
    %3123 = arith.andi %2906, %3122 : vector<8x128xi1>
    %cst_372 = arith.constant 5.000000e-05 : f32
    %3124 = vector.broadcast %cst_372 : f32 to vector<8x128xf32>
    %3125 = arith.cmpf ogt, %3121, %3124 : vector<8x128xf32>
    %3126 = arith.andi %3123, %3125 : vector<8x128xi1>
    %3127 = arith.cmpf olt, %3057, %3061 : vector<8x128xf32>
    %cst_373 = arith.constant dense<true> : vector<8x128xi1>
    %3128 = arith.xori %368, %cst_373 : vector<8x128xi1>
    %3129 = arith.andi %3127, %3128 : vector<8x128xi1>
    %3130 = arith.mulf %3057, %53 : vector<8x128xf32>
    %3131 = arith.addf %44, %3130 : vector<8x128xf32>
    %c0_374 = arith.constant 0 : index
    %3132 = arith.index_cast %41 : i32 to index
    %c0_375 = arith.constant 0 : index
    %c0_376 = arith.constant 0 : index
    %3133 = vector.load %arg7[%c0_374, %3132, %c0_375, %c0_376] : memref<3x1x8x128xf32, #tpu.memory_space<vmem>>, vector<1x1x8x128xf32>
    %3134 = vector.shape_cast %3133 : vector<1x1x8x128xf32> to vector<8x128xf32>
    %3135 = vector.shape_cast %3131 : vector<8x128xf32> to vector<1x1x8x128xf32>
    tpu.vector_store %arg7[%c0_374, %3132, %c0_375, %c0_376], %3135 {strides = array<i32>} : memref<3x1x8x128xf32, #tpu.memory_space<vmem>>, vector<1x1x8x128xf32>,
    %3136 = arith.mulf %3057, %56 : vector<8x128xf32>
    %3137 = arith.addf %47, %3136 : vector<8x128xf32>
    %c1_377 = arith.constant 1 : index
    %3138 = arith.index_cast %41 : i32 to index
    %c0_378 = arith.constant 0 : index
    %c0_379 = arith.constant 0 : index
    %3139 = vector.load %arg7[%c1_377, %3138, %c0_378, %c0_379] : memref<3x1x8x128xf32, #tpu.memory_space<vmem>>, vector<1x1x8x128xf32>
    %3140 = vector.shape_cast %3139 : vector<1x1x8x128xf32> to vector<8x128xf32>
    %3141 = vector.shape_cast %3137 : vector<8x128xf32> to vector<1x1x8x128xf32>
    tpu.vector_store %arg7[%c1_377, %3138, %c0_378, %c0_379], %3141 {strides = array<i32>} : memref<3x1x8x128xf32, #tpu.memory_space<vmem>>, vector<1x1x8x128xf32>,
    %3142 = arith.mulf %3057, %59 : vector<8x128xf32>
    %3143 = arith.addf %50, %3142 : vector<8x128xf32>
    %c2_380 = arith.constant 2 : index
    %3144 = arith.index_cast %41 : i32 to index
    %c0_381 = arith.constant 0 : index
    %c0_382 = arith.constant 0 : index
    %3145 = vector.load %arg7[%c2_380, %3144, %c0_381, %c0_382] : memref<3x1x8x128xf32, #tpu.memory_space<vmem>>, vector<1x1x8x128xf32>
    %3146 = vector.shape_cast %3145 : vector<1x1x8x128xf32> to vector<8x128xf32>
    %3147 = vector.shape_cast %3143 : vector<8x128xf32> to vector<1x1x8x128xf32>
    tpu.vector_store %arg7[%c2_380, %3144, %c0_381, %c0_382], %3147 {strides = array<i32>} : memref<3x1x8x128xf32, #tpu.memory_space<vmem>>, vector<1x1x8x128xf32>,
    %3148 = arith.index_cast %41 : i32 to index
    %c0_383 = arith.constant 0 : index
    %c0_384 = arith.constant 0 : index
    %3149 = vector.load %arg9[%3148, %c0_383, %c0_384] : memref<1x8x128xf32, #tpu.memory_space<vmem>>, vector<1x8x128xf32>
    %3150 = vector.shape_cast %3149 : vector<1x8x128xf32> to vector<8x128xf32>
    %3151 = vector.shape_cast %3057 : vector<8x128xf32> to vector<1x8x128xf32>
    tpu.vector_store %arg9[%3148, %c0_383, %c0_384], %3151 {strides = array<i32>} : memref<1x8x128xf32, #tpu.memory_space<vmem>>, vector<1x8x128xf32>,
    %3152 = arith.extui %3129 : vector<8x128xi1> to vector<8x128xi32>
    %3153 = arith.extui %226 : vector<8x128xi1> to vector<8x128xi32>
    %c2_i32 = arith.constant 2 : i32
    %3154 = vector.broadcast %c2_i32 : i32 to vector<8x128xi32>
    %3155 = arith.muli %3154, %3153 : vector<8x128xi32>
    %3156 = arith.addi %3152, %3155 : vector<8x128xi32>
    %3157 = arith.extui %374 : vector<8x128xi1> to vector<8x128xi32>
    %c4_i32 = arith.constant 4 : i32
    %3158 = vector.broadcast %c4_i32 : i32 to vector<8x128xi32>
    %3159 = arith.muli %3158, %3157 : vector<8x128xi32>
    %3160 = arith.addi %3156, %3159 : vector<8x128xi32>
    %3161 = arith.index_cast %41 : i32 to index
    %c0_385 = arith.constant 0 : index
    %c0_386 = arith.constant 0 : index
    %3162 = vector.load %arg8[%3161, %c0_385, %c0_386] : memref<1x8x128xi32, #tpu.memory_space<vmem>>, vector<1x8x128xi32>
    %3163 = vector.shape_cast %3162 : vector<1x8x128xi32> to vector<8x128xi32>
    %3164 = vector.shape_cast %3160 : vector<8x128xi32> to vector<1x8x128xi32>
    tpu.vector_store %arg8[%3161, %c0_385, %c0_386], %3164 {strides = array<i32>} : memref<1x8x128xi32, #tpu.memory_space<vmem>>, vector<1x8x128xi32>,
    %3165 = arith.extui %3126 : vector<8x128xi1> to vector<8x128xi32>
    %3166 = vector.shape_cast %3165 : vector<8x128xi32> to vector<1x8x128xi32>
    %cst_387 = arith.constant dense<-2147483648> : vector<1xi32>
    %3167 = vector.multi_reduction <maxsi>, %3166, %cst_387 [1, 2] : vector<1x8x128xi32> to vector<1xi32>
    %3168 = vector.shape_cast %3167 : vector<1xi32> to vector<1x1x1xi32>
    %3169 = vector.extract %3168[0, 0, 0] : i32 from vector<1x1x1xi32>
    %c0_i32_388 = arith.constant 0 : i32
    %3170 = arith.cmpi sgt, %3169, %c0_i32_388 : i32
    %3171 = arith.extui %3170 : i1 to i32
    %c0_i32_389 = arith.constant 0 : i32
    %3172 = arith.cmpi ne, %3171, %c0_i32_389 : i32
    scf.if %3172 {
      %3173 = arith.subf %3061, %3057 : vector<8x128xf32>
      %cst_391 = arith.constant 0.0101010101 : f32
      %3174 = vector.broadcast %cst_391 : f32 to vector<8x128xf32>
      %3175 = arith.mulf %3173, %3174 : vector<8x128xf32>
      %cst_392 = arith.constant 0x7F800000 : f32
      %3176 = vector.broadcast %cst_392 : f32 to vector<8x128xf32>
      %cst_393 = arith.constant 0.000000e+00 : f32
      %3177 = vector.broadcast %cst_393 : f32 to vector<8x128xf32>
      %c0_i32_394 = arith.constant 0 : i32
      %3178 = vector.broadcast %c0_i32_394 : i32 to vector<8x128xi32>
      %c0_i32_395 = arith.constant 0 : i32
      %c100_i32 = arith.constant 100 : i32
      %3179 = arith.addi %c0_i32_395, %c100_i32 : i32
      %c1_i32_396 = arith.constant 1 : i32
      %3180:7 = scf.for %arg10 = %c0_i32_395 to %3179 step %c1_i32_396 iter_args(%arg11 = %3176, %arg12 = %3178, %arg13 = %3177, %arg14 = %3177, %arg15 = %3176, %arg16 = %3178, %arg17 = %3177) -> (vector<8x128xf32>, vector<8x128xi32>, vector<8x128xf32>, vector<8x128xf32>, vector<8x128xf32>, vector<8x128xi32>, vector<8x128xf32>)  : i32 {
        %3881 = arith.sitofp %arg10 : i32 to f32
        %3882 = vector.broadcast %3881 : f32 to vector<8x128xf32>
        %3883 = arith.mulf %3882, %3175 : vector<8x128xf32>
        %3884 = arith.addf %3057, %3883 : vector<8x128xf32>
        %3885 = arith.mulf %76, %3884 : vector<8x128xf32>
        %3886 = arith.addf %71, %3885 : vector<8x128xf32>
        %3887 = arith.mulf %3884, %3886 : vector<8x128xf32>
        %3888 = arith.addf %64, %3887 : vector<8x128xf32>
        %cst_479 = arith.constant 0.000000e+00 : f32
        %3889 = vector.broadcast %cst_479 : f32 to vector<8x128xf32>
        %3890 = arith.maximumf %3888, %3889 : vector<8x128xf32>
        %3891 = math.sqrt %3890 : vector<8x128xf32>
        %cst_480 = arith.constant 6.000000e-01 : f32
        %3892 = vector.broadcast %cst_480 : f32 to vector<8x128xf32>
        %3893 = arith.subf %3891, %3892 : vector<8x128xf32>
        %3894 = arith.mulf %164, %3884 : vector<8x128xf32>
        %3895 = arith.addf %86, %3894 : vector<8x128xf32>
        %3896 = math.tanh %3895 : vector<8x128xf32>
        %3897 = vector.broadcast %32 : f32 to vector<8x128xf32>
        %3898 = arith.mulf %3897, %3896 : vector<8x128xf32>
        %3899 = arith.mulf %172, %3884 : vector<8x128xf32>
        %3900 = arith.addf %96, %3899 : vector<8x128xf32>
        %3901 = math.tanh %3900 : vector<8x128xf32>
        %3902 = vector.broadcast %33 : f32 to vector<8x128xf32>
        %3903 = arith.mulf %3902, %3901 : vector<8x128xf32>
        %3904 = arith.addf %3898, %3903 : vector<8x128xf32>
        %3905 = arith.mulf %180, %3884 : vector<8x128xf32>
        %3906 = arith.addf %106, %3905 : vector<8x128xf32>
        %3907 = math.tanh %3906 : vector<8x128xf32>
        %3908 = vector.broadcast %34 : f32 to vector<8x128xf32>
        %3909 = arith.mulf %3908, %3907 : vector<8x128xf32>
        %3910 = arith.addf %3904, %3909 : vector<8x128xf32>
        %3911 = arith.mulf %188, %3884 : vector<8x128xf32>
        %3912 = arith.addf %116, %3911 : vector<8x128xf32>
        %3913 = math.tanh %3912 : vector<8x128xf32>
        %3914 = vector.broadcast %35 : f32 to vector<8x128xf32>
        %3915 = arith.mulf %3914, %3913 : vector<8x128xf32>
        %3916 = arith.addf %3910, %3915 : vector<8x128xf32>
        %3917 = arith.mulf %196, %3884 : vector<8x128xf32>
        %3918 = arith.addf %126, %3917 : vector<8x128xf32>
        %3919 = math.tanh %3918 : vector<8x128xf32>
        %3920 = vector.broadcast %36 : f32 to vector<8x128xf32>
        %3921 = arith.mulf %3920, %3919 : vector<8x128xf32>
        %3922 = arith.addf %3916, %3921 : vector<8x128xf32>
        %3923 = arith.mulf %204, %3884 : vector<8x128xf32>
        %3924 = arith.addf %136, %3923 : vector<8x128xf32>
        %3925 = math.tanh %3924 : vector<8x128xf32>
        %3926 = vector.broadcast %37 : f32 to vector<8x128xf32>
        %3927 = arith.mulf %3926, %3925 : vector<8x128xf32>
        %3928 = arith.addf %3922, %3927 : vector<8x128xf32>
        %3929 = arith.mulf %212, %3884 : vector<8x128xf32>
        %3930 = arith.addf %146, %3929 : vector<8x128xf32>
        %3931 = math.tanh %3930 : vector<8x128xf32>
        %3932 = vector.broadcast %38 : f32 to vector<8x128xf32>
        %3933 = arith.mulf %3932, %3931 : vector<8x128xf32>
        %3934 = arith.addf %3928, %3933 : vector<8x128xf32>
        %3935 = arith.mulf %220, %3884 : vector<8x128xf32>
        %3936 = arith.addf %156, %3935 : vector<8x128xf32>
        %3937 = math.tanh %3936 : vector<8x128xf32>
        %3938 = vector.broadcast %39 : f32 to vector<8x128xf32>
        %3939 = arith.mulf %3938, %3937 : vector<8x128xf32>
        %3940 = arith.addf %3934, %3939 : vector<8x128xf32>
        %cst_481 = arith.constant 5.000000e-02 : f32
        %3941 = vector.broadcast %cst_481 : f32 to vector<8x128xf32>
        %3942 = arith.mulf %3941, %3940 : vector<8x128xf32>
        %3943 = arith.addf %3893, %3942 : vector<8x128xf32>
        %cst_482 = arith.constant 1.000000e+02 : f32
        %3944 = arith.subf %cst_482, %3881 : f32
        %cst_483 = arith.constant 0.000000e+00 : f32
        %3945 = vector.broadcast %cst_483 : f32 to vector<8x128xf32>
        %3946 = arith.cmpf ogt, %3943, %3945 : vector<8x128xf32>
        %cst_484 = arith.constant 0.000000e+00 : f32
        %3947 = vector.broadcast %cst_484 : f32 to vector<8x128xf32>
        %3948 = arith.cmpf olt, %3943, %3947 : vector<8x128xf32>
        %cst_485 = arith.constant -1.000000e+00 : f32
        %cst_486 = arith.constant 0.000000e+00 : f32
        %3949 = vector.broadcast %cst_485 : f32 to vector<8x128xf32>
        %3950 = vector.broadcast %cst_486 : f32 to vector<8x128xf32>
        %3951 = arith.select %3948, %3949, %3950 : vector<8x128xi1>, vector<8x128xf32>
        %cst_487 = arith.constant 1.000000e+00 : f32
        %3952 = vector.broadcast %cst_487 : f32 to vector<8x128xf32>
        %3953 = arith.select %3946, %3952, %3951 : vector<8x128xi1>, vector<8x128xf32>
        %3954 = vector.broadcast %3944 : f32 to vector<8x128xf32>
        %3955 = arith.mulf %3953, %3954 : vector<8x128xf32>
        %3956 = arith.cmpf olt, %3955, %arg11 : vector<8x128xf32>
        %3957 = arith.select %3956, %3955, %arg11 : vector<8x128xi1>, vector<8x128xf32>
        %3958 = vector.broadcast %arg10 : i32 to vector<8x128xi32>
        %3959 = arith.select %3956, %3958, %arg12 : vector<8x128xi1>, vector<8x128xi32>
        %3960 = arith.select %3956, %3943, %arg13 : vector<8x128xi1>, vector<8x128xf32>
        %3961 = arith.select %3956, %arg17, %arg14 : vector<8x128xi1>, vector<8x128xf32>
        %3962 = arith.cmpf olt, %3943, %arg15 : vector<8x128xf32>
        %3963 = arith.select %3962, %3943, %arg15 : vector<8x128xi1>, vector<8x128xf32>
        %3964 = vector.broadcast %arg10 : i32 to vector<8x128xi32>
        %3965 = arith.select %3962, %3964, %arg16 : vector<8x128xi1>, vector<8x128xi32>
        scf.yield %3957, %3959, %3960, %3961, %3963, %3965, %3943 : vector<8x128xf32>, vector<8x128xi32>, vector<8x128xf32>, vector<8x128xf32>, vector<8x128xf32>, vector<8x128xi32>, vector<8x128xf32>
      }
      %c100_i32_397 = arith.constant 100 : i32
      %3181 = arith.sitofp %3180#1 : vector<8x128xi32> to vector<8x128xf32>
      %3182 = arith.mulf %3181, %3175 : vector<8x128xf32>
      %3183 = arith.addf %3057, %3182 : vector<8x128xf32>
      %3184 = arith.index_cast %41 : i32 to index
      %c0_398 = arith.constant 0 : index
      %c0_399 = arith.constant 0 : index
      %3185 = vector.load %arg6[%3184, %c0_398, %c0_399] : memref<1x8x128xi32, #tpu.memory_space<vmem>>, vector<1x8x128xi32>
      %3186 = vector.shape_cast %3185 : vector<1x8x128xi32> to vector<8x128xi32>
      %c0_i32_400 = arith.constant 0 : i32
      %3187 = vector.broadcast %c0_i32_400 : i32 to vector<8x128xi32>
      %3188 = arith.cmpi ne, %3186, %3187 : vector<8x128xi32>
      %cst_401 = arith.constant 0.000000e+00 : f32
      %3189 = vector.broadcast %cst_401 : f32 to vector<8x128xf32>
      %3190 = arith.cmpf olt, %3180#2, %3189 : vector<8x128xf32>
      %3191 = arith.andi %3188, %3190 : vector<8x128xi1>
      %cst_402 = arith.constant dense<true> : vector<8x128xi1>
      %3192 = arith.xori %3191, %cst_402 : vector<8x128xi1>
      %3193 = arith.sitofp %3180#5 : vector<8x128xi32> to vector<8x128xf32>
      %3194 = arith.mulf %3193, %3175 : vector<8x128xf32>
      %3195 = arith.addf %3057, %3194 : vector<8x128xf32>
      %c0_i32_403 = arith.constant 0 : i32
      %3196 = vector.broadcast %c0_i32_403 : i32 to vector<8x128xi32>
      %3197 = arith.cmpi eq, %3180#1, %3196 : vector<8x128xi32>
      %c1_i32_404 = arith.constant 1 : i32
      %3198 = vector.broadcast %c1_i32_404 : i32 to vector<8x128xi32>
      %3199 = arith.subi %3180#1, %3198 : vector<8x128xi32>
      %c99_i32 = arith.constant 99 : i32
      %3200 = vector.broadcast %c99_i32 : i32 to vector<8x128xi32>
      %3201 = arith.select %3197, %3200, %3199 : vector<8x128xi1>, vector<8x128xi32>
      %3202 = arith.sitofp %3201 : vector<8x128xi32> to vector<8x128xf32>
      %3203 = arith.mulf %3202, %3175 : vector<8x128xf32>
      %3204 = arith.addf %3057, %3203 : vector<8x128xf32>
      %3205 = arith.select %3197, %3180#6, %3180#3 : vector<8x128xi1>, vector<8x128xf32>
      %3206 = arith.subf %3180#2, %3205 : vector<8x128xf32>
      %cst_405 = arith.constant 0.000000e+00 : f32
      %3207 = vector.broadcast %cst_405 : f32 to vector<8x128xf32>
      %3208 = arith.cmpf one, %3206, %3207 : vector<8x128xf32>
      %cst_406 = arith.constant 1.000000e+00 : f32
      %3209 = vector.broadcast %cst_406 : f32 to vector<8x128xf32>
      %3210 = arith.select %3208, %3206, %3209 : vector<8x128xi1>, vector<8x128xf32>
      %3211 = tpu.reciprocal %3210 {approx = true} : vector<8x128xf32> -> vector<8x128xf32>
      %3212 = arith.subf %3183, %3204 : vector<8x128xf32>
      %3213 = arith.mulf %3205, %3212 : vector<8x128xf32>
      %3214 = arith.mulf %3213, %3211 : vector<8x128xf32>
      %3215 = arith.subf %3204, %3214 : vector<8x128xf32>
      %3216 = arith.select %3208, %3215, %3204 : vector<8x128xi1>, vector<8x128xf32>
      %3217 = arith.mulf %76, %3216 : vector<8x128xf32>
      %3218 = arith.addf %71, %3217 : vector<8x128xf32>
      %3219 = arith.mulf %3216, %3218 : vector<8x128xf32>
      %3220 = arith.addf %64, %3219 : vector<8x128xf32>
      %cst_407 = arith.constant 0.000000e+00 : f32
      %3221 = vector.broadcast %cst_407 : f32 to vector<8x128xf32>
      %3222 = arith.maximumf %3220, %3221 : vector<8x128xf32>
      %3223 = math.sqrt %3222 : vector<8x128xf32>
      %cst_408 = arith.constant 6.000000e-01 : f32
      %3224 = vector.broadcast %cst_408 : f32 to vector<8x128xf32>
      %3225 = arith.subf %3223, %3224 : vector<8x128xf32>
      %3226 = arith.mulf %164, %3216 : vector<8x128xf32>
      %3227 = arith.addf %86, %3226 : vector<8x128xf32>
      %3228 = math.tanh %3227 : vector<8x128xf32>
      %3229 = vector.broadcast %32 : f32 to vector<8x128xf32>
      %3230 = arith.mulf %3229, %3228 : vector<8x128xf32>
      %3231 = arith.mulf %172, %3216 : vector<8x128xf32>
      %3232 = arith.addf %96, %3231 : vector<8x128xf32>
      %3233 = math.tanh %3232 : vector<8x128xf32>
      %3234 = vector.broadcast %33 : f32 to vector<8x128xf32>
      %3235 = arith.mulf %3234, %3233 : vector<8x128xf32>
      %3236 = arith.addf %3230, %3235 : vector<8x128xf32>
      %3237 = arith.mulf %180, %3216 : vector<8x128xf32>
      %3238 = arith.addf %106, %3237 : vector<8x128xf32>
      %3239 = math.tanh %3238 : vector<8x128xf32>
      %3240 = vector.broadcast %34 : f32 to vector<8x128xf32>
      %3241 = arith.mulf %3240, %3239 : vector<8x128xf32>
      %3242 = arith.addf %3236, %3241 : vector<8x128xf32>
      %3243 = arith.mulf %188, %3216 : vector<8x128xf32>
      %3244 = arith.addf %116, %3243 : vector<8x128xf32>
      %3245 = math.tanh %3244 : vector<8x128xf32>
      %3246 = vector.broadcast %35 : f32 to vector<8x128xf32>
      %3247 = arith.mulf %3246, %3245 : vector<8x128xf32>
      %3248 = arith.addf %3242, %3247 : vector<8x128xf32>
      %3249 = arith.mulf %196, %3216 : vector<8x128xf32>
      %3250 = arith.addf %126, %3249 : vector<8x128xf32>
      %3251 = math.tanh %3250 : vector<8x128xf32>
      %3252 = vector.broadcast %36 : f32 to vector<8x128xf32>
      %3253 = arith.mulf %3252, %3251 : vector<8x128xf32>
      %3254 = arith.addf %3248, %3253 : vector<8x128xf32>
      %3255 = arith.mulf %204, %3216 : vector<8x128xf32>
      %3256 = arith.addf %136, %3255 : vector<8x128xf32>
      %3257 = math.tanh %3256 : vector<8x128xf32>
      %3258 = vector.broadcast %37 : f32 to vector<8x128xf32>
      %3259 = arith.mulf %3258, %3257 : vector<8x128xf32>
      %3260 = arith.addf %3254, %3259 : vector<8x128xf32>
      %3261 = arith.mulf %212, %3216 : vector<8x128xf32>
      %3262 = arith.addf %146, %3261 : vector<8x128xf32>
      %3263 = math.tanh %3262 : vector<8x128xf32>
      %3264 = vector.broadcast %38 : f32 to vector<8x128xf32>
      %3265 = arith.mulf %3264, %3263 : vector<8x128xf32>
      %3266 = arith.addf %3260, %3265 : vector<8x128xf32>
      %3267 = arith.mulf %220, %3216 : vector<8x128xf32>
      %3268 = arith.addf %156, %3267 : vector<8x128xf32>
      %3269 = math.tanh %3268 : vector<8x128xf32>
      %3270 = vector.broadcast %39 : f32 to vector<8x128xf32>
      %3271 = arith.mulf %3270, %3269 : vector<8x128xf32>
      %3272 = arith.addf %3266, %3271 : vector<8x128xf32>
      %cst_409 = arith.constant 5.000000e-02 : f32
      %3273 = vector.broadcast %cst_409 : f32 to vector<8x128xf32>
      %3274 = arith.mulf %3273, %3272 : vector<8x128xf32>
      %3275 = arith.addf %3225, %3274 : vector<8x128xf32>
      %cst_410 = arith.constant 0.000000e+00 : f32
      %3276 = vector.broadcast %cst_410 : f32 to vector<8x128xf32>
      %3277 = arith.cmpf ogt, %3275, %3276 : vector<8x128xf32>
      %cst_411 = arith.constant 0.000000e+00 : f32
      %3278 = vector.broadcast %cst_411 : f32 to vector<8x128xf32>
      %3279 = arith.cmpf olt, %3275, %3278 : vector<8x128xf32>
      %3280 = arith.select %3277, %3216, %3204 : vector<8x128xi1>, vector<8x128xf32>
      %3281 = arith.select %3277, %3275, %3205 : vector<8x128xi1>, vector<8x128xf32>
      %3282 = arith.select %3279, %3216, %3183 : vector<8x128xi1>, vector<8x128xf32>
      %3283 = arith.select %3279, %3275, %3180#2 : vector<8x128xi1>, vector<8x128xf32>
      %3284 = arith.subf %3283, %3281 : vector<8x128xf32>
      %cst_412 = arith.constant 0.000000e+00 : f32
      %3285 = vector.broadcast %cst_412 : f32 to vector<8x128xf32>
      %3286 = arith.cmpf one, %3284, %3285 : vector<8x128xf32>
      %cst_413 = arith.constant 1.000000e+00 : f32
      %3287 = vector.broadcast %cst_413 : f32 to vector<8x128xf32>
      %3288 = arith.select %3286, %3284, %3287 : vector<8x128xi1>, vector<8x128xf32>
      %3289 = tpu.reciprocal %3288 {approx = true} : vector<8x128xf32> -> vector<8x128xf32>
      %3290 = arith.subf %3282, %3280 : vector<8x128xf32>
      %3291 = arith.mulf %3281, %3290 : vector<8x128xf32>
      %3292 = arith.mulf %3291, %3289 : vector<8x128xf32>
      %3293 = arith.subf %3280, %3292 : vector<8x128xf32>
      %3294 = arith.select %3286, %3293, %3280 : vector<8x128xi1>, vector<8x128xf32>
      %3295 = arith.mulf %76, %3294 : vector<8x128xf32>
      %3296 = arith.addf %71, %3295 : vector<8x128xf32>
      %3297 = arith.mulf %3294, %3296 : vector<8x128xf32>
      %3298 = arith.addf %64, %3297 : vector<8x128xf32>
      %cst_414 = arith.constant 0.000000e+00 : f32
      %3299 = vector.broadcast %cst_414 : f32 to vector<8x128xf32>
      %3300 = arith.maximumf %3298, %3299 : vector<8x128xf32>
      %3301 = math.sqrt %3300 : vector<8x128xf32>
      %cst_415 = arith.constant 6.000000e-01 : f32
      %3302 = vector.broadcast %cst_415 : f32 to vector<8x128xf32>
      %3303 = arith.subf %3301, %3302 : vector<8x128xf32>
      %3304 = arith.mulf %164, %3294 : vector<8x128xf32>
      %3305 = arith.addf %86, %3304 : vector<8x128xf32>
      %3306 = math.tanh %3305 : vector<8x128xf32>
      %3307 = vector.broadcast %32 : f32 to vector<8x128xf32>
      %3308 = arith.mulf %3307, %3306 : vector<8x128xf32>
      %3309 = arith.mulf %172, %3294 : vector<8x128xf32>
      %3310 = arith.addf %96, %3309 : vector<8x128xf32>
      %3311 = math.tanh %3310 : vector<8x128xf32>
      %3312 = vector.broadcast %33 : f32 to vector<8x128xf32>
      %3313 = arith.mulf %3312, %3311 : vector<8x128xf32>
      %3314 = arith.addf %3308, %3313 : vector<8x128xf32>
      %3315 = arith.mulf %180, %3294 : vector<8x128xf32>
      %3316 = arith.addf %106, %3315 : vector<8x128xf32>
      %3317 = math.tanh %3316 : vector<8x128xf32>
      %3318 = vector.broadcast %34 : f32 to vector<8x128xf32>
      %3319 = arith.mulf %3318, %3317 : vector<8x128xf32>
      %3320 = arith.addf %3314, %3319 : vector<8x128xf32>
      %3321 = arith.mulf %188, %3294 : vector<8x128xf32>
      %3322 = arith.addf %116, %3321 : vector<8x128xf32>
      %3323 = math.tanh %3322 : vector<8x128xf32>
      %3324 = vector.broadcast %35 : f32 to vector<8x128xf32>
      %3325 = arith.mulf %3324, %3323 : vector<8x128xf32>
      %3326 = arith.addf %3320, %3325 : vector<8x128xf32>
      %3327 = arith.mulf %196, %3294 : vector<8x128xf32>
      %3328 = arith.addf %126, %3327 : vector<8x128xf32>
      %3329 = math.tanh %3328 : vector<8x128xf32>
      %3330 = vector.broadcast %36 : f32 to vector<8x128xf32>
      %3331 = arith.mulf %3330, %3329 : vector<8x128xf32>
      %3332 = arith.addf %3326, %3331 : vector<8x128xf32>
      %3333 = arith.mulf %204, %3294 : vector<8x128xf32>
      %3334 = arith.addf %136, %3333 : vector<8x128xf32>
      %3335 = math.tanh %3334 : vector<8x128xf32>
      %3336 = vector.broadcast %37 : f32 to vector<8x128xf32>
      %3337 = arith.mulf %3336, %3335 : vector<8x128xf32>
      %3338 = arith.addf %3332, %3337 : vector<8x128xf32>
      %3339 = arith.mulf %212, %3294 : vector<8x128xf32>
      %3340 = arith.addf %146, %3339 : vector<8x128xf32>
      %3341 = math.tanh %3340 : vector<8x128xf32>
      %3342 = vector.broadcast %38 : f32 to vector<8x128xf32>
      %3343 = arith.mulf %3342, %3341 : vector<8x128xf32>
      %3344 = arith.addf %3338, %3343 : vector<8x128xf32>
      %3345 = arith.mulf %220, %3294 : vector<8x128xf32>
      %3346 = arith.addf %156, %3345 : vector<8x128xf32>
      %3347 = math.tanh %3346 : vector<8x128xf32>
      %3348 = vector.broadcast %39 : f32 to vector<8x128xf32>
      %3349 = arith.mulf %3348, %3347 : vector<8x128xf32>
      %3350 = arith.addf %3344, %3349 : vector<8x128xf32>
      %cst_416 = arith.constant 5.000000e-02 : f32
      %3351 = vector.broadcast %cst_416 : f32 to vector<8x128xf32>
      %3352 = arith.mulf %3351, %3350 : vector<8x128xf32>
      %3353 = arith.addf %3303, %3352 : vector<8x128xf32>
      %cst_417 = arith.constant 0.000000e+00 : f32
      %3354 = vector.broadcast %cst_417 : f32 to vector<8x128xf32>
      %3355 = arith.cmpf ogt, %3353, %3354 : vector<8x128xf32>
      %cst_418 = arith.constant 0.000000e+00 : f32
      %3356 = vector.broadcast %cst_418 : f32 to vector<8x128xf32>
      %3357 = arith.cmpf olt, %3353, %3356 : vector<8x128xf32>
      %3358 = arith.select %3355, %3294, %3280 : vector<8x128xi1>, vector<8x128xf32>
      %3359 = arith.select %3355, %3353, %3281 : vector<8x128xi1>, vector<8x128xf32>
      %3360 = arith.select %3357, %3294, %3282 : vector<8x128xi1>, vector<8x128xf32>
      %3361 = arith.select %3357, %3353, %3283 : vector<8x128xi1>, vector<8x128xf32>
      %3362 = arith.subf %3361, %3359 : vector<8x128xf32>
      %cst_419 = arith.constant 0.000000e+00 : f32
      %3363 = vector.broadcast %cst_419 : f32 to vector<8x128xf32>
      %3364 = arith.cmpf one, %3362, %3363 : vector<8x128xf32>
      %cst_420 = arith.constant 1.000000e+00 : f32
      %3365 = vector.broadcast %cst_420 : f32 to vector<8x128xf32>
      %3366 = arith.select %3364, %3362, %3365 : vector<8x128xi1>, vector<8x128xf32>
      %3367 = tpu.reciprocal %3366 {approx = true} : vector<8x128xf32> -> vector<8x128xf32>
      %3368 = arith.subf %3360, %3358 : vector<8x128xf32>
      %3369 = arith.mulf %3359, %3368 : vector<8x128xf32>
      %3370 = arith.mulf %3369, %3367 : vector<8x128xf32>
      %3371 = arith.subf %3358, %3370 : vector<8x128xf32>
      %3372 = arith.select %3364, %3371, %3358 : vector<8x128xi1>, vector<8x128xf32>
      %3373 = arith.mulf %76, %3372 : vector<8x128xf32>
      %3374 = arith.addf %71, %3373 : vector<8x128xf32>
      %3375 = arith.mulf %3372, %3374 : vector<8x128xf32>
      %3376 = arith.addf %64, %3375 : vector<8x128xf32>
      %cst_421 = arith.constant 0.000000e+00 : f32
      %3377 = vector.broadcast %cst_421 : f32 to vector<8x128xf32>
      %3378 = arith.maximumf %3376, %3377 : vector<8x128xf32>
      %3379 = math.sqrt %3378 : vector<8x128xf32>
      %cst_422 = arith.constant 6.000000e-01 : f32
      %3380 = vector.broadcast %cst_422 : f32 to vector<8x128xf32>
      %3381 = arith.subf %3379, %3380 : vector<8x128xf32>
      %3382 = arith.mulf %164, %3372 : vector<8x128xf32>
      %3383 = arith.addf %86, %3382 : vector<8x128xf32>
      %3384 = math.tanh %3383 : vector<8x128xf32>
      %3385 = vector.broadcast %32 : f32 to vector<8x128xf32>
      %3386 = arith.mulf %3385, %3384 : vector<8x128xf32>
      %3387 = arith.mulf %172, %3372 : vector<8x128xf32>
      %3388 = arith.addf %96, %3387 : vector<8x128xf32>
      %3389 = math.tanh %3388 : vector<8x128xf32>
      %3390 = vector.broadcast %33 : f32 to vector<8x128xf32>
      %3391 = arith.mulf %3390, %3389 : vector<8x128xf32>
      %3392 = arith.addf %3386, %3391 : vector<8x128xf32>
      %3393 = arith.mulf %180, %3372 : vector<8x128xf32>
      %3394 = arith.addf %106, %3393 : vector<8x128xf32>
      %3395 = math.tanh %3394 : vector<8x128xf32>
      %3396 = vector.broadcast %34 : f32 to vector<8x128xf32>
      %3397 = arith.mulf %3396, %3395 : vector<8x128xf32>
      %3398 = arith.addf %3392, %3397 : vector<8x128xf32>
      %3399 = arith.mulf %188, %3372 : vector<8x128xf32>
      %3400 = arith.addf %116, %3399 : vector<8x128xf32>
      %3401 = math.tanh %3400 : vector<8x128xf32>
      %3402 = vector.broadcast %35 : f32 to vector<8x128xf32>
      %3403 = arith.mulf %3402, %3401 : vector<8x128xf32>
      %3404 = arith.addf %3398, %3403 : vector<8x128xf32>
      %3405 = arith.mulf %196, %3372 : vector<8x128xf32>
      %3406 = arith.addf %126, %3405 : vector<8x128xf32>
      %3407 = math.tanh %3406 : vector<8x128xf32>
      %3408 = vector.broadcast %36 : f32 to vector<8x128xf32>
      %3409 = arith.mulf %3408, %3407 : vector<8x128xf32>
      %3410 = arith.addf %3404, %3409 : vector<8x128xf32>
      %3411 = arith.mulf %204, %3372 : vector<8x128xf32>
      %3412 = arith.addf %136, %3411 : vector<8x128xf32>
      %3413 = math.tanh %3412 : vector<8x128xf32>
      %3414 = vector.broadcast %37 : f32 to vector<8x128xf32>
      %3415 = arith.mulf %3414, %3413 : vector<8x128xf32>
      %3416 = arith.addf %3410, %3415 : vector<8x128xf32>
      %3417 = arith.mulf %212, %3372 : vector<8x128xf32>
      %3418 = arith.addf %146, %3417 : vector<8x128xf32>
      %3419 = math.tanh %3418 : vector<8x128xf32>
      %3420 = vector.broadcast %38 : f32 to vector<8x128xf32>
      %3421 = arith.mulf %3420, %3419 : vector<8x128xf32>
      %3422 = arith.addf %3416, %3421 : vector<8x128xf32>
      %3423 = arith.mulf %220, %3372 : vector<8x128xf32>
      %3424 = arith.addf %156, %3423 : vector<8x128xf32>
      %3425 = math.tanh %3424 : vector<8x128xf32>
      %3426 = vector.broadcast %39 : f32 to vector<8x128xf32>
      %3427 = arith.mulf %3426, %3425 : vector<8x128xf32>
      %3428 = arith.addf %3422, %3427 : vector<8x128xf32>
      %cst_423 = arith.constant 5.000000e-02 : f32
      %3429 = vector.broadcast %cst_423 : f32 to vector<8x128xf32>
      %3430 = arith.mulf %3429, %3428 : vector<8x128xf32>
      %3431 = arith.addf %3381, %3430 : vector<8x128xf32>
      %cst_424 = arith.constant 0.000000e+00 : f32
      %3432 = vector.broadcast %cst_424 : f32 to vector<8x128xf32>
      %3433 = arith.cmpf ogt, %3431, %3432 : vector<8x128xf32>
      %cst_425 = arith.constant 0.000000e+00 : f32
      %3434 = vector.broadcast %cst_425 : f32 to vector<8x128xf32>
      %3435 = arith.cmpf olt, %3431, %3434 : vector<8x128xf32>
      %3436 = arith.select %3433, %3372, %3358 : vector<8x128xi1>, vector<8x128xf32>
      %3437 = arith.select %3433, %3431, %3359 : vector<8x128xi1>, vector<8x128xf32>
      %3438 = arith.select %3435, %3372, %3360 : vector<8x128xi1>, vector<8x128xf32>
      %3439 = arith.select %3435, %3431, %3361 : vector<8x128xi1>, vector<8x128xf32>
      %3440 = arith.subf %3439, %3437 : vector<8x128xf32>
      %cst_426 = arith.constant 0.000000e+00 : f32
      %3441 = vector.broadcast %cst_426 : f32 to vector<8x128xf32>
      %3442 = arith.cmpf one, %3440, %3441 : vector<8x128xf32>
      %cst_427 = arith.constant 1.000000e+00 : f32
      %3443 = vector.broadcast %cst_427 : f32 to vector<8x128xf32>
      %3444 = arith.select %3442, %3440, %3443 : vector<8x128xi1>, vector<8x128xf32>
      %3445 = tpu.reciprocal %3444 {approx = true} : vector<8x128xf32> -> vector<8x128xf32>
      %3446 = arith.subf %3438, %3436 : vector<8x128xf32>
      %3447 = arith.mulf %3437, %3446 : vector<8x128xf32>
      %3448 = arith.mulf %3447, %3445 : vector<8x128xf32>
      %3449 = arith.subf %3436, %3448 : vector<8x128xf32>
      %3450 = arith.select %3442, %3449, %3436 : vector<8x128xi1>, vector<8x128xf32>
      %3451 = arith.mulf %76, %3450 : vector<8x128xf32>
      %3452 = arith.addf %71, %3451 : vector<8x128xf32>
      %3453 = arith.mulf %3450, %3452 : vector<8x128xf32>
      %3454 = arith.addf %64, %3453 : vector<8x128xf32>
      %cst_428 = arith.constant 0.000000e+00 : f32
      %3455 = vector.broadcast %cst_428 : f32 to vector<8x128xf32>
      %3456 = arith.maximumf %3454, %3455 : vector<8x128xf32>
      %3457 = math.sqrt %3456 : vector<8x128xf32>
      %cst_429 = arith.constant 6.000000e-01 : f32
      %3458 = vector.broadcast %cst_429 : f32 to vector<8x128xf32>
      %3459 = arith.subf %3457, %3458 : vector<8x128xf32>
      %3460 = arith.mulf %164, %3450 : vector<8x128xf32>
      %3461 = arith.addf %86, %3460 : vector<8x128xf32>
      %3462 = math.tanh %3461 : vector<8x128xf32>
      %3463 = vector.broadcast %32 : f32 to vector<8x128xf32>
      %3464 = arith.mulf %3463, %3462 : vector<8x128xf32>
      %3465 = arith.mulf %172, %3450 : vector<8x128xf32>
      %3466 = arith.addf %96, %3465 : vector<8x128xf32>
      %3467 = math.tanh %3466 : vector<8x128xf32>
      %3468 = vector.broadcast %33 : f32 to vector<8x128xf32>
      %3469 = arith.mulf %3468, %3467 : vector<8x128xf32>
      %3470 = arith.addf %3464, %3469 : vector<8x128xf32>
      %3471 = arith.mulf %180, %3450 : vector<8x128xf32>
      %3472 = arith.addf %106, %3471 : vector<8x128xf32>
      %3473 = math.tanh %3472 : vector<8x128xf32>
      %3474 = vector.broadcast %34 : f32 to vector<8x128xf32>
      %3475 = arith.mulf %3474, %3473 : vector<8x128xf32>
      %3476 = arith.addf %3470, %3475 : vector<8x128xf32>
      %3477 = arith.mulf %188, %3450 : vector<8x128xf32>
      %3478 = arith.addf %116, %3477 : vector<8x128xf32>
      %3479 = math.tanh %3478 : vector<8x128xf32>
      %3480 = vector.broadcast %35 : f32 to vector<8x128xf32>
      %3481 = arith.mulf %3480, %3479 : vector<8x128xf32>
      %3482 = arith.addf %3476, %3481 : vector<8x128xf32>
      %3483 = arith.mulf %196, %3450 : vector<8x128xf32>
      %3484 = arith.addf %126, %3483 : vector<8x128xf32>
      %3485 = math.tanh %3484 : vector<8x128xf32>
      %3486 = vector.broadcast %36 : f32 to vector<8x128xf32>
      %3487 = arith.mulf %3486, %3485 : vector<8x128xf32>
      %3488 = arith.addf %3482, %3487 : vector<8x128xf32>
      %3489 = arith.mulf %204, %3450 : vector<8x128xf32>
      %3490 = arith.addf %136, %3489 : vector<8x128xf32>
      %3491 = math.tanh %3490 : vector<8x128xf32>
      %3492 = vector.broadcast %37 : f32 to vector<8x128xf32>
      %3493 = arith.mulf %3492, %3491 : vector<8x128xf32>
      %3494 = arith.addf %3488, %3493 : vector<8x128xf32>
      %3495 = arith.mulf %212, %3450 : vector<8x128xf32>
      %3496 = arith.addf %146, %3495 : vector<8x128xf32>
      %3497 = math.tanh %3496 : vector<8x128xf32>
      %3498 = vector.broadcast %38 : f32 to vector<8x128xf32>
      %3499 = arith.mulf %3498, %3497 : vector<8x128xf32>
      %3500 = arith.addf %3494, %3499 : vector<8x128xf32>
      %3501 = arith.mulf %220, %3450 : vector<8x128xf32>
      %3502 = arith.addf %156, %3501 : vector<8x128xf32>
      %3503 = math.tanh %3502 : vector<8x128xf32>
      %3504 = vector.broadcast %39 : f32 to vector<8x128xf32>
      %3505 = arith.mulf %3504, %3503 : vector<8x128xf32>
      %3506 = arith.addf %3500, %3505 : vector<8x128xf32>
      %cst_430 = arith.constant 5.000000e-02 : f32
      %3507 = vector.broadcast %cst_430 : f32 to vector<8x128xf32>
      %3508 = arith.mulf %3507, %3506 : vector<8x128xf32>
      %3509 = arith.addf %3459, %3508 : vector<8x128xf32>
      %cst_431 = arith.constant 0.000000e+00 : f32
      %3510 = vector.broadcast %cst_431 : f32 to vector<8x128xf32>
      %3511 = arith.cmpf ogt, %3509, %3510 : vector<8x128xf32>
      %cst_432 = arith.constant 0.000000e+00 : f32
      %3512 = vector.broadcast %cst_432 : f32 to vector<8x128xf32>
      %3513 = arith.cmpf olt, %3509, %3512 : vector<8x128xf32>
      %3514 = arith.select %3511, %3450, %3436 : vector<8x128xi1>, vector<8x128xf32>
      %3515 = arith.select %3511, %3509, %3437 : vector<8x128xi1>, vector<8x128xf32>
      %3516 = arith.select %3513, %3450, %3438 : vector<8x128xi1>, vector<8x128xf32>
      %3517 = arith.select %3513, %3509, %3439 : vector<8x128xi1>, vector<8x128xf32>
      %3518 = arith.subf %3517, %3515 : vector<8x128xf32>
      %cst_433 = arith.constant 0.000000e+00 : f32
      %3519 = vector.broadcast %cst_433 : f32 to vector<8x128xf32>
      %3520 = arith.cmpf one, %3518, %3519 : vector<8x128xf32>
      %cst_434 = arith.constant 1.000000e+00 : f32
      %3521 = vector.broadcast %cst_434 : f32 to vector<8x128xf32>
      %3522 = arith.select %3520, %3518, %3521 : vector<8x128xi1>, vector<8x128xf32>
      %3523 = tpu.reciprocal %3522 {approx = true} : vector<8x128xf32> -> vector<8x128xf32>
      %3524 = arith.subf %3516, %3514 : vector<8x128xf32>
      %3525 = arith.mulf %3515, %3524 : vector<8x128xf32>
      %3526 = arith.mulf %3525, %3523 : vector<8x128xf32>
      %3527 = arith.subf %3514, %3526 : vector<8x128xf32>
      %3528 = arith.select %3520, %3527, %3514 : vector<8x128xi1>, vector<8x128xf32>
      %3529 = arith.mulf %76, %3528 : vector<8x128xf32>
      %3530 = arith.addf %71, %3529 : vector<8x128xf32>
      %3531 = arith.mulf %3528, %3530 : vector<8x128xf32>
      %3532 = arith.addf %64, %3531 : vector<8x128xf32>
      %cst_435 = arith.constant 0.000000e+00 : f32
      %3533 = vector.broadcast %cst_435 : f32 to vector<8x128xf32>
      %3534 = arith.maximumf %3532, %3533 : vector<8x128xf32>
      %3535 = math.sqrt %3534 : vector<8x128xf32>
      %cst_436 = arith.constant 6.000000e-01 : f32
      %3536 = vector.broadcast %cst_436 : f32 to vector<8x128xf32>
      %3537 = arith.subf %3535, %3536 : vector<8x128xf32>
      %3538 = arith.mulf %164, %3528 : vector<8x128xf32>
      %3539 = arith.addf %86, %3538 : vector<8x128xf32>
      %3540 = math.tanh %3539 : vector<8x128xf32>
      %3541 = vector.broadcast %32 : f32 to vector<8x128xf32>
      %3542 = arith.mulf %3541, %3540 : vector<8x128xf32>
      %3543 = arith.mulf %172, %3528 : vector<8x128xf32>
      %3544 = arith.addf %96, %3543 : vector<8x128xf32>
      %3545 = math.tanh %3544 : vector<8x128xf32>
      %3546 = vector.broadcast %33 : f32 to vector<8x128xf32>
      %3547 = arith.mulf %3546, %3545 : vector<8x128xf32>
      %3548 = arith.addf %3542, %3547 : vector<8x128xf32>
      %3549 = arith.mulf %180, %3528 : vector<8x128xf32>
      %3550 = arith.addf %106, %3549 : vector<8x128xf32>
      %3551 = math.tanh %3550 : vector<8x128xf32>
      %3552 = vector.broadcast %34 : f32 to vector<8x128xf32>
      %3553 = arith.mulf %3552, %3551 : vector<8x128xf32>
      %3554 = arith.addf %3548, %3553 : vector<8x128xf32>
      %3555 = arith.mulf %188, %3528 : vector<8x128xf32>
      %3556 = arith.addf %116, %3555 : vector<8x128xf32>
      %3557 = math.tanh %3556 : vector<8x128xf32>
      %3558 = vector.broadcast %35 : f32 to vector<8x128xf32>
      %3559 = arith.mulf %3558, %3557 : vector<8x128xf32>
      %3560 = arith.addf %3554, %3559 : vector<8x128xf32>
      %3561 = arith.mulf %196, %3528 : vector<8x128xf32>
      %3562 = arith.addf %126, %3561 : vector<8x128xf32>
      %3563 = math.tanh %3562 : vector<8x128xf32>
      %3564 = vector.broadcast %36 : f32 to vector<8x128xf32>
      %3565 = arith.mulf %3564, %3563 : vector<8x128xf32>
      %3566 = arith.addf %3560, %3565 : vector<8x128xf32>
      %3567 = arith.mulf %204, %3528 : vector<8x128xf32>
      %3568 = arith.addf %136, %3567 : vector<8x128xf32>
      %3569 = math.tanh %3568 : vector<8x128xf32>
      %3570 = vector.broadcast %37 : f32 to vector<8x128xf32>
      %3571 = arith.mulf %3570, %3569 : vector<8x128xf32>
      %3572 = arith.addf %3566, %3571 : vector<8x128xf32>
      %3573 = arith.mulf %212, %3528 : vector<8x128xf32>
      %3574 = arith.addf %146, %3573 : vector<8x128xf32>
      %3575 = math.tanh %3574 : vector<8x128xf32>
      %3576 = vector.broadcast %38 : f32 to vector<8x128xf32>
      %3577 = arith.mulf %3576, %3575 : vector<8x128xf32>
      %3578 = arith.addf %3572, %3577 : vector<8x128xf32>
      %3579 = arith.mulf %220, %3528 : vector<8x128xf32>
      %3580 = arith.addf %156, %3579 : vector<8x128xf32>
      %3581 = math.tanh %3580 : vector<8x128xf32>
      %3582 = vector.broadcast %39 : f32 to vector<8x128xf32>
      %3583 = arith.mulf %3582, %3581 : vector<8x128xf32>
      %3584 = arith.addf %3578, %3583 : vector<8x128xf32>
      %cst_437 = arith.constant 5.000000e-02 : f32
      %3585 = vector.broadcast %cst_437 : f32 to vector<8x128xf32>
      %3586 = arith.mulf %3585, %3584 : vector<8x128xf32>
      %3587 = arith.addf %3537, %3586 : vector<8x128xf32>
      %cst_438 = arith.constant 0.000000e+00 : f32
      %3588 = vector.broadcast %cst_438 : f32 to vector<8x128xf32>
      %3589 = arith.cmpf ogt, %3587, %3588 : vector<8x128xf32>
      %cst_439 = arith.constant 0.000000e+00 : f32
      %3590 = vector.broadcast %cst_439 : f32 to vector<8x128xf32>
      %3591 = arith.cmpf olt, %3587, %3590 : vector<8x128xf32>
      %3592 = arith.select %3589, %3528, %3514 : vector<8x128xi1>, vector<8x128xf32>
      %3593 = arith.select %3589, %3587, %3515 : vector<8x128xi1>, vector<8x128xf32>
      %3594 = arith.select %3591, %3528, %3516 : vector<8x128xi1>, vector<8x128xf32>
      %3595 = arith.select %3591, %3587, %3517 : vector<8x128xi1>, vector<8x128xf32>
      %3596 = arith.subf %3595, %3593 : vector<8x128xf32>
      %cst_440 = arith.constant 0.000000e+00 : f32
      %3597 = vector.broadcast %cst_440 : f32 to vector<8x128xf32>
      %3598 = arith.cmpf one, %3596, %3597 : vector<8x128xf32>
      %cst_441 = arith.constant 1.000000e+00 : f32
      %3599 = vector.broadcast %cst_441 : f32 to vector<8x128xf32>
      %3600 = arith.select %3598, %3596, %3599 : vector<8x128xi1>, vector<8x128xf32>
      %3601 = tpu.reciprocal %3600 {approx = true} : vector<8x128xf32> -> vector<8x128xf32>
      %3602 = arith.subf %3594, %3592 : vector<8x128xf32>
      %3603 = arith.mulf %3593, %3602 : vector<8x128xf32>
      %3604 = arith.mulf %3603, %3601 : vector<8x128xf32>
      %3605 = arith.subf %3592, %3604 : vector<8x128xf32>
      %3606 = arith.select %3598, %3605, %3592 : vector<8x128xi1>, vector<8x128xf32>
      %3607 = arith.mulf %76, %3606 : vector<8x128xf32>
      %3608 = arith.addf %71, %3607 : vector<8x128xf32>
      %3609 = arith.mulf %3606, %3608 : vector<8x128xf32>
      %3610 = arith.addf %64, %3609 : vector<8x128xf32>
      %cst_442 = arith.constant 0.000000e+00 : f32
      %3611 = vector.broadcast %cst_442 : f32 to vector<8x128xf32>
      %3612 = arith.maximumf %3610, %3611 : vector<8x128xf32>
      %3613 = math.sqrt %3612 : vector<8x128xf32>
      %cst_443 = arith.constant 6.000000e-01 : f32
      %3614 = vector.broadcast %cst_443 : f32 to vector<8x128xf32>
      %3615 = arith.subf %3613, %3614 : vector<8x128xf32>
      %3616 = arith.mulf %164, %3606 : vector<8x128xf32>
      %3617 = arith.addf %86, %3616 : vector<8x128xf32>
      %3618 = math.tanh %3617 : vector<8x128xf32>
      %3619 = vector.broadcast %32 : f32 to vector<8x128xf32>
      %3620 = arith.mulf %3619, %3618 : vector<8x128xf32>
      %3621 = arith.mulf %172, %3606 : vector<8x128xf32>
      %3622 = arith.addf %96, %3621 : vector<8x128xf32>
      %3623 = math.tanh %3622 : vector<8x128xf32>
      %3624 = vector.broadcast %33 : f32 to vector<8x128xf32>
      %3625 = arith.mulf %3624, %3623 : vector<8x128xf32>
      %3626 = arith.addf %3620, %3625 : vector<8x128xf32>
      %3627 = arith.mulf %180, %3606 : vector<8x128xf32>
      %3628 = arith.addf %106, %3627 : vector<8x128xf32>
      %3629 = math.tanh %3628 : vector<8x128xf32>
      %3630 = vector.broadcast %34 : f32 to vector<8x128xf32>
      %3631 = arith.mulf %3630, %3629 : vector<8x128xf32>
      %3632 = arith.addf %3626, %3631 : vector<8x128xf32>
      %3633 = arith.mulf %188, %3606 : vector<8x128xf32>
      %3634 = arith.addf %116, %3633 : vector<8x128xf32>
      %3635 = math.tanh %3634 : vector<8x128xf32>
      %3636 = vector.broadcast %35 : f32 to vector<8x128xf32>
      %3637 = arith.mulf %3636, %3635 : vector<8x128xf32>
      %3638 = arith.addf %3632, %3637 : vector<8x128xf32>
      %3639 = arith.mulf %196, %3606 : vector<8x128xf32>
      %3640 = arith.addf %126, %3639 : vector<8x128xf32>
      %3641 = math.tanh %3640 : vector<8x128xf32>
      %3642 = vector.broadcast %36 : f32 to vector<8x128xf32>
      %3643 = arith.mulf %3642, %3641 : vector<8x128xf32>
      %3644 = arith.addf %3638, %3643 : vector<8x128xf32>
      %3645 = arith.mulf %204, %3606 : vector<8x128xf32>
      %3646 = arith.addf %136, %3645 : vector<8x128xf32>
      %3647 = math.tanh %3646 : vector<8x128xf32>
      %3648 = vector.broadcast %37 : f32 to vector<8x128xf32>
      %3649 = arith.mulf %3648, %3647 : vector<8x128xf32>
      %3650 = arith.addf %3644, %3649 : vector<8x128xf32>
      %3651 = arith.mulf %212, %3606 : vector<8x128xf32>
      %3652 = arith.addf %146, %3651 : vector<8x128xf32>
      %3653 = math.tanh %3652 : vector<8x128xf32>
      %3654 = vector.broadcast %38 : f32 to vector<8x128xf32>
      %3655 = arith.mulf %3654, %3653 : vector<8x128xf32>
      %3656 = arith.addf %3650, %3655 : vector<8x128xf32>
      %3657 = arith.mulf %220, %3606 : vector<8x128xf32>
      %3658 = arith.addf %156, %3657 : vector<8x128xf32>
      %3659 = math.tanh %3658 : vector<8x128xf32>
      %3660 = vector.broadcast %39 : f32 to vector<8x128xf32>
      %3661 = arith.mulf %3660, %3659 : vector<8x128xf32>
      %3662 = arith.addf %3656, %3661 : vector<8x128xf32>
      %cst_444 = arith.constant 5.000000e-02 : f32
      %3663 = vector.broadcast %cst_444 : f32 to vector<8x128xf32>
      %3664 = arith.mulf %3663, %3662 : vector<8x128xf32>
      %3665 = arith.addf %3615, %3664 : vector<8x128xf32>
      %cst_445 = arith.constant 0.000000e+00 : f32
      %3666 = vector.broadcast %cst_445 : f32 to vector<8x128xf32>
      %3667 = arith.cmpf ogt, %3665, %3666 : vector<8x128xf32>
      %cst_446 = arith.constant 0.000000e+00 : f32
      %3668 = vector.broadcast %cst_446 : f32 to vector<8x128xf32>
      %3669 = arith.cmpf olt, %3665, %3668 : vector<8x128xf32>
      %3670 = arith.select %3667, %3606, %3592 : vector<8x128xi1>, vector<8x128xf32>
      %3671 = arith.select %3667, %3665, %3593 : vector<8x128xi1>, vector<8x128xf32>
      %3672 = arith.select %3669, %3606, %3594 : vector<8x128xi1>, vector<8x128xf32>
      %3673 = arith.select %3669, %3665, %3595 : vector<8x128xi1>, vector<8x128xf32>
      %3674 = arith.subf %3673, %3671 : vector<8x128xf32>
      %cst_447 = arith.constant 0.000000e+00 : f32
      %3675 = vector.broadcast %cst_447 : f32 to vector<8x128xf32>
      %3676 = arith.cmpf one, %3674, %3675 : vector<8x128xf32>
      %cst_448 = arith.constant 1.000000e+00 : f32
      %3677 = vector.broadcast %cst_448 : f32 to vector<8x128xf32>
      %3678 = arith.select %3676, %3674, %3677 : vector<8x128xi1>, vector<8x128xf32>
      %3679 = tpu.reciprocal %3678 {approx = true} : vector<8x128xf32> -> vector<8x128xf32>
      %3680 = arith.subf %3672, %3670 : vector<8x128xf32>
      %3681 = arith.mulf %3671, %3680 : vector<8x128xf32>
      %3682 = arith.mulf %3681, %3679 : vector<8x128xf32>
      %3683 = arith.subf %3670, %3682 : vector<8x128xf32>
      %3684 = arith.select %3676, %3683, %3670 : vector<8x128xi1>, vector<8x128xf32>
      %3685 = arith.mulf %76, %3684 : vector<8x128xf32>
      %3686 = arith.addf %71, %3685 : vector<8x128xf32>
      %3687 = arith.mulf %3684, %3686 : vector<8x128xf32>
      %3688 = arith.addf %64, %3687 : vector<8x128xf32>
      %cst_449 = arith.constant 0.000000e+00 : f32
      %3689 = vector.broadcast %cst_449 : f32 to vector<8x128xf32>
      %3690 = arith.maximumf %3688, %3689 : vector<8x128xf32>
      %3691 = math.sqrt %3690 : vector<8x128xf32>
      %cst_450 = arith.constant 6.000000e-01 : f32
      %3692 = vector.broadcast %cst_450 : f32 to vector<8x128xf32>
      %3693 = arith.subf %3691, %3692 : vector<8x128xf32>
      %3694 = arith.mulf %164, %3684 : vector<8x128xf32>
      %3695 = arith.addf %86, %3694 : vector<8x128xf32>
      %3696 = math.tanh %3695 : vector<8x128xf32>
      %3697 = vector.broadcast %32 : f32 to vector<8x128xf32>
      %3698 = arith.mulf %3697, %3696 : vector<8x128xf32>
      %3699 = arith.mulf %172, %3684 : vector<8x128xf32>
      %3700 = arith.addf %96, %3699 : vector<8x128xf32>
      %3701 = math.tanh %3700 : vector<8x128xf32>
      %3702 = vector.broadcast %33 : f32 to vector<8x128xf32>
      %3703 = arith.mulf %3702, %3701 : vector<8x128xf32>
      %3704 = arith.addf %3698, %3703 : vector<8x128xf32>
      %3705 = arith.mulf %180, %3684 : vector<8x128xf32>
      %3706 = arith.addf %106, %3705 : vector<8x128xf32>
      %3707 = math.tanh %3706 : vector<8x128xf32>
      %3708 = vector.broadcast %34 : f32 to vector<8x128xf32>
      %3709 = arith.mulf %3708, %3707 : vector<8x128xf32>
      %3710 = arith.addf %3704, %3709 : vector<8x128xf32>
      %3711 = arith.mulf %188, %3684 : vector<8x128xf32>
      %3712 = arith.addf %116, %3711 : vector<8x128xf32>
      %3713 = math.tanh %3712 : vector<8x128xf32>
      %3714 = vector.broadcast %35 : f32 to vector<8x128xf32>
      %3715 = arith.mulf %3714, %3713 : vector<8x128xf32>
      %3716 = arith.addf %3710, %3715 : vector<8x128xf32>
      %3717 = arith.mulf %196, %3684 : vector<8x128xf32>
      %3718 = arith.addf %126, %3717 : vector<8x128xf32>
      %3719 = math.tanh %3718 : vector<8x128xf32>
      %3720 = vector.broadcast %36 : f32 to vector<8x128xf32>
      %3721 = arith.mulf %3720, %3719 : vector<8x128xf32>
      %3722 = arith.addf %3716, %3721 : vector<8x128xf32>
      %3723 = arith.mulf %204, %3684 : vector<8x128xf32>
      %3724 = arith.addf %136, %3723 : vector<8x128xf32>
      %3725 = math.tanh %3724 : vector<8x128xf32>
      %3726 = vector.broadcast %37 : f32 to vector<8x128xf32>
      %3727 = arith.mulf %3726, %3725 : vector<8x128xf32>
      %3728 = arith.addf %3722, %3727 : vector<8x128xf32>
      %3729 = arith.mulf %212, %3684 : vector<8x128xf32>
      %3730 = arith.addf %146, %3729 : vector<8x128xf32>
      %3731 = math.tanh %3730 : vector<8x128xf32>
      %3732 = vector.broadcast %38 : f32 to vector<8x128xf32>
      %3733 = arith.mulf %3732, %3731 : vector<8x128xf32>
      %3734 = arith.addf %3728, %3733 : vector<8x128xf32>
      %3735 = arith.mulf %220, %3684 : vector<8x128xf32>
      %3736 = arith.addf %156, %3735 : vector<8x128xf32>
      %3737 = math.tanh %3736 : vector<8x128xf32>
      %3738 = vector.broadcast %39 : f32 to vector<8x128xf32>
      %3739 = arith.mulf %3738, %3737 : vector<8x128xf32>
      %3740 = arith.addf %3734, %3739 : vector<8x128xf32>
      %cst_451 = arith.constant 5.000000e-02 : f32
      %3741 = vector.broadcast %cst_451 : f32 to vector<8x128xf32>
      %3742 = arith.mulf %3741, %3740 : vector<8x128xf32>
      %3743 = arith.addf %3693, %3742 : vector<8x128xf32>
      %cst_452 = arith.constant 0.000000e+00 : f32
      %3744 = vector.broadcast %cst_452 : f32 to vector<8x128xf32>
      %3745 = arith.cmpf ogt, %3743, %3744 : vector<8x128xf32>
      %cst_453 = arith.constant 0.000000e+00 : f32
      %3746 = vector.broadcast %cst_453 : f32 to vector<8x128xf32>
      %3747 = arith.cmpf olt, %3743, %3746 : vector<8x128xf32>
      %3748 = arith.select %3745, %3684, %3670 : vector<8x128xi1>, vector<8x128xf32>
      %3749 = arith.select %3745, %3743, %3671 : vector<8x128xi1>, vector<8x128xf32>
      %3750 = arith.select %3747, %3684, %3672 : vector<8x128xi1>, vector<8x128xf32>
      %3751 = arith.select %3747, %3743, %3673 : vector<8x128xi1>, vector<8x128xf32>
      %3752 = arith.subf %3751, %3749 : vector<8x128xf32>
      %cst_454 = arith.constant 0.000000e+00 : f32
      %3753 = vector.broadcast %cst_454 : f32 to vector<8x128xf32>
      %3754 = arith.cmpf one, %3752, %3753 : vector<8x128xf32>
      %cst_455 = arith.constant 1.000000e+00 : f32
      %3755 = vector.broadcast %cst_455 : f32 to vector<8x128xf32>
      %3756 = arith.select %3754, %3752, %3755 : vector<8x128xi1>, vector<8x128xf32>
      %3757 = tpu.reciprocal %3756 {approx = true} : vector<8x128xf32> -> vector<8x128xf32>
      %3758 = arith.subf %3750, %3748 : vector<8x128xf32>
      %3759 = arith.mulf %3749, %3758 : vector<8x128xf32>
      %3760 = arith.mulf %3759, %3757 : vector<8x128xf32>
      %3761 = arith.subf %3748, %3760 : vector<8x128xf32>
      %3762 = arith.select %3754, %3761, %3748 : vector<8x128xi1>, vector<8x128xf32>
      %3763 = arith.mulf %76, %3762 : vector<8x128xf32>
      %3764 = arith.addf %71, %3763 : vector<8x128xf32>
      %3765 = arith.mulf %3762, %3764 : vector<8x128xf32>
      %3766 = arith.addf %64, %3765 : vector<8x128xf32>
      %cst_456 = arith.constant 0.000000e+00 : f32
      %3767 = vector.broadcast %cst_456 : f32 to vector<8x128xf32>
      %3768 = arith.maximumf %3766, %3767 : vector<8x128xf32>
      %3769 = math.sqrt %3768 : vector<8x128xf32>
      %cst_457 = arith.constant 6.000000e-01 : f32
      %3770 = vector.broadcast %cst_457 : f32 to vector<8x128xf32>
      %3771 = arith.subf %3769, %3770 : vector<8x128xf32>
      %3772 = arith.mulf %164, %3762 : vector<8x128xf32>
      %3773 = arith.addf %86, %3772 : vector<8x128xf32>
      %3774 = math.tanh %3773 : vector<8x128xf32>
      %3775 = vector.broadcast %32 : f32 to vector<8x128xf32>
      %3776 = arith.mulf %3775, %3774 : vector<8x128xf32>
      %3777 = arith.mulf %172, %3762 : vector<8x128xf32>
      %3778 = arith.addf %96, %3777 : vector<8x128xf32>
      %3779 = math.tanh %3778 : vector<8x128xf32>
      %3780 = vector.broadcast %33 : f32 to vector<8x128xf32>
      %3781 = arith.mulf %3780, %3779 : vector<8x128xf32>
      %3782 = arith.addf %3776, %3781 : vector<8x128xf32>
      %3783 = arith.mulf %180, %3762 : vector<8x128xf32>
      %3784 = arith.addf %106, %3783 : vector<8x128xf32>
      %3785 = math.tanh %3784 : vector<8x128xf32>
      %3786 = vector.broadcast %34 : f32 to vector<8x128xf32>
      %3787 = arith.mulf %3786, %3785 : vector<8x128xf32>
      %3788 = arith.addf %3782, %3787 : vector<8x128xf32>
      %3789 = arith.mulf %188, %3762 : vector<8x128xf32>
      %3790 = arith.addf %116, %3789 : vector<8x128xf32>
      %3791 = math.tanh %3790 : vector<8x128xf32>
      %3792 = vector.broadcast %35 : f32 to vector<8x128xf32>
      %3793 = arith.mulf %3792, %3791 : vector<8x128xf32>
      %3794 = arith.addf %3788, %3793 : vector<8x128xf32>
      %3795 = arith.mulf %196, %3762 : vector<8x128xf32>
      %3796 = arith.addf %126, %3795 : vector<8x128xf32>
      %3797 = math.tanh %3796 : vector<8x128xf32>
      %3798 = vector.broadcast %36 : f32 to vector<8x128xf32>
      %3799 = arith.mulf %3798, %3797 : vector<8x128xf32>
      %3800 = arith.addf %3794, %3799 : vector<8x128xf32>
      %3801 = arith.mulf %204, %3762 : vector<8x128xf32>
      %3802 = arith.addf %136, %3801 : vector<8x128xf32>
      %3803 = math.tanh %3802 : vector<8x128xf32>
      %3804 = vector.broadcast %37 : f32 to vector<8x128xf32>
      %3805 = arith.mulf %3804, %3803 : vector<8x128xf32>
      %3806 = arith.addf %3800, %3805 : vector<8x128xf32>
      %3807 = arith.mulf %212, %3762 : vector<8x128xf32>
      %3808 = arith.addf %146, %3807 : vector<8x128xf32>
      %3809 = math.tanh %3808 : vector<8x128xf32>
      %3810 = vector.broadcast %38 : f32 to vector<8x128xf32>
      %3811 = arith.mulf %3810, %3809 : vector<8x128xf32>
      %3812 = arith.addf %3806, %3811 : vector<8x128xf32>
      %3813 = arith.mulf %220, %3762 : vector<8x128xf32>
      %3814 = arith.addf %156, %3813 : vector<8x128xf32>
      %3815 = math.tanh %3814 : vector<8x128xf32>
      %3816 = vector.broadcast %39 : f32 to vector<8x128xf32>
      %3817 = arith.mulf %3816, %3815 : vector<8x128xf32>
      %3818 = arith.addf %3812, %3817 : vector<8x128xf32>
      %cst_458 = arith.constant 5.000000e-02 : f32
      %3819 = vector.broadcast %cst_458 : f32 to vector<8x128xf32>
      %3820 = arith.mulf %3819, %3818 : vector<8x128xf32>
      %3821 = arith.addf %3771, %3820 : vector<8x128xf32>
      %cst_459 = arith.constant 0.000000e+00 : f32
      %3822 = vector.broadcast %cst_459 : f32 to vector<8x128xf32>
      %3823 = arith.cmpf ogt, %3821, %3822 : vector<8x128xf32>
      %cst_460 = arith.constant 0.000000e+00 : f32
      %3824 = vector.broadcast %cst_460 : f32 to vector<8x128xf32>
      %3825 = arith.cmpf olt, %3821, %3824 : vector<8x128xf32>
      %3826 = arith.select %3823, %3762, %3748 : vector<8x128xi1>, vector<8x128xf32>
      %3827 = arith.select %3823, %3821, %3749 : vector<8x128xi1>, vector<8x128xf32>
      %3828 = arith.select %3825, %3762, %3750 : vector<8x128xi1>, vector<8x128xf32>
      %3829 = arith.select %3825, %3821, %3751 : vector<8x128xi1>, vector<8x128xf32>
      %3830 = arith.subf %3829, %3827 : vector<8x128xf32>
      %cst_461 = arith.constant 0.000000e+00 : f32
      %3831 = vector.broadcast %cst_461 : f32 to vector<8x128xf32>
      %3832 = arith.cmpf one, %3830, %3831 : vector<8x128xf32>
      %cst_462 = arith.constant 1.000000e+00 : f32
      %3833 = vector.broadcast %cst_462 : f32 to vector<8x128xf32>
      %3834 = arith.select %3832, %3830, %3833 : vector<8x128xi1>, vector<8x128xf32>
      %3835 = tpu.reciprocal %3834 {approx = true} : vector<8x128xf32> -> vector<8x128xf32>
      %3836 = arith.subf %3828, %3826 : vector<8x128xf32>
      %3837 = arith.mulf %3827, %3836 : vector<8x128xf32>
      %3838 = arith.mulf %3837, %3835 : vector<8x128xf32>
      %3839 = arith.subf %3826, %3838 : vector<8x128xf32>
      %3840 = arith.select %3832, %3839, %3826 : vector<8x128xi1>, vector<8x128xf32>
      %3841 = arith.andi %3190, %3188 : vector<8x128xi1>
      %3842 = arith.select %3192, %3195, %3183 : vector<8x128xi1>, vector<8x128xf32>
      %3843 = arith.select %3841, %3840, %3842 : vector<8x128xi1>, vector<8x128xf32>
      %3844 = arith.select %3126, %3843, %3057 : vector<8x128xi1>, vector<8x128xf32>
      %3845 = arith.index_cast %41 : i32 to index
      %c0_463 = arith.constant 0 : index
      %c0_464 = arith.constant 0 : index
      %3846 = vector.load %arg9[%3845, %c0_463, %c0_464] : memref<1x8x128xf32, #tpu.memory_space<vmem>>, vector<1x8x128xf32>
      %3847 = vector.shape_cast %3846 : vector<1x8x128xf32> to vector<8x128xf32>
      %3848 = vector.shape_cast %3844 : vector<8x128xf32> to vector<1x8x128xf32>
      tpu.vector_store %arg9[%3845, %c0_463, %c0_464], %3848 {strides = array<i32>} : memref<1x8x128xf32, #tpu.memory_space<vmem>>, vector<1x8x128xf32>,
      %3849 = arith.mulf %3844, %53 : vector<8x128xf32>
      %3850 = arith.addf %44, %3849 : vector<8x128xf32>
      %c0_465 = arith.constant 0 : index
      %3851 = arith.index_cast %41 : i32 to index
      %c0_466 = arith.constant 0 : index
      %c0_467 = arith.constant 0 : index
      %3852 = vector.load %arg7[%c0_465, %3851, %c0_466, %c0_467] : memref<3x1x8x128xf32, #tpu.memory_space<vmem>>, vector<1x1x8x128xf32>
      %3853 = vector.shape_cast %3852 : vector<1x1x8x128xf32> to vector<8x128xf32>
      %3854 = vector.shape_cast %3850 : vector<8x128xf32> to vector<1x1x8x128xf32>
      tpu.vector_store %arg7[%c0_465, %3851, %c0_466, %c0_467], %3854 {strides = array<i32>} : memref<3x1x8x128xf32, #tpu.memory_space<vmem>>, vector<1x1x8x128xf32>,
      %3855 = arith.mulf %3844, %56 : vector<8x128xf32>
      %3856 = arith.addf %47, %3855 : vector<8x128xf32>
      %c1_468 = arith.constant 1 : index
      %3857 = arith.index_cast %41 : i32 to index
      %c0_469 = arith.constant 0 : index
      %c0_470 = arith.constant 0 : index
      %3858 = vector.load %arg7[%c1_468, %3857, %c0_469, %c0_470] : memref<3x1x8x128xf32, #tpu.memory_space<vmem>>, vector<1x1x8x128xf32>
      %3859 = vector.shape_cast %3858 : vector<1x1x8x128xf32> to vector<8x128xf32>
      %3860 = vector.shape_cast %3856 : vector<8x128xf32> to vector<1x1x8x128xf32>
      tpu.vector_store %arg7[%c1_468, %3857, %c0_469, %c0_470], %3860 {strides = array<i32>} : memref<3x1x8x128xf32, #tpu.memory_space<vmem>>, vector<1x1x8x128xf32>,
      %3861 = arith.mulf %3844, %59 : vector<8x128xf32>
      %3862 = arith.addf %50, %3861 : vector<8x128xf32>
      %c2_471 = arith.constant 2 : index
      %3863 = arith.index_cast %41 : i32 to index
      %c0_472 = arith.constant 0 : index
      %c0_473 = arith.constant 0 : index
      %3864 = vector.load %arg7[%c2_471, %3863, %c0_472, %c0_473] : memref<3x1x8x128xf32, #tpu.memory_space<vmem>>, vector<1x1x8x128xf32>
      %3865 = vector.shape_cast %3864 : vector<1x1x8x128xf32> to vector<8x128xf32>
      %3866 = vector.shape_cast %3862 : vector<8x128xf32> to vector<1x1x8x128xf32>
      tpu.vector_store %arg7[%c2_471, %3863, %c0_472, %c0_473], %3866 {strides = array<i32>} : memref<3x1x8x128xf32, #tpu.memory_space<vmem>>, vector<1x1x8x128xf32>,
      %3867 = arith.index_cast %41 : i32 to index
      %c0_474 = arith.constant 0 : index
      %c0_475 = arith.constant 0 : index
      %3868 = vector.load %arg8[%3867, %c0_474, %c0_475] : memref<1x8x128xi32, #tpu.memory_space<vmem>>, vector<1x8x128xi32>
      %3869 = vector.shape_cast %3868 : vector<1x8x128xi32> to vector<8x128xi32>
      %3870 = arith.extui %3190 : vector<8x128xi1> to vector<8x128xi32>
      %c1_i32_476 = arith.constant 1 : i32
      %3871 = vector.broadcast %c1_i32_476 : i32 to vector<8x128xi32>
      %3872 = arith.andi %3869, %3871 : vector<8x128xi32>
      %3873 = arith.select %3126, %3870, %3872 : vector<8x128xi1>, vector<8x128xi32>
      %c-2_i32 = arith.constant -2 : i32
      %3874 = vector.broadcast %c-2_i32 : i32 to vector<8x128xi32>
      %3875 = arith.andi %3869, %3874 : vector<8x128xi32>
      %3876 = arith.ori %3875, %3873 : vector<8x128xi32>
      %3877 = arith.index_cast %41 : i32 to index
      %c0_477 = arith.constant 0 : index
      %c0_478 = arith.constant 0 : index
      %3878 = vector.load %arg8[%3877, %c0_477, %c0_478] : memref<1x8x128xi32, #tpu.memory_space<vmem>>, vector<1x8x128xi32>
      %3879 = vector.shape_cast %3878 : vector<1x8x128xi32> to vector<8x128xi32>
      %3880 = vector.shape_cast %3876 : vector<8x128xi32> to vector<1x8x128xi32>
      tpu.vector_store %arg8[%3877, %c0_477, %c0_478], %3880 {strides = array<i32>} : memref<1x8x128xi32, #tpu.memory_space<vmem>>, vector<1x8x128xi32>,
    } else {
    }
    %c1_i32_390 = arith.constant 1 : i32
    return
  }
  func.func @transform_0(%arg0: i32) -> (i32, i32) {
    %c0_i32 = arith.constant 0 : i32
    %c0_i32_0 = arith.constant 0 : i32
    %c0_i32_1 = arith.constant 0 : i32
    return %c0_i32, %c0_i32_0 : i32, i32
  }
  func.func @transform_1(%arg0: i32) -> i32 {
    %c0_i32 = arith.constant 0 : i32
    %c0_i32_0 = arith.constant 0 : i32
    return %c0_i32 : i32
  }
  func.func @transform_2(%arg0: i32) -> i32 {
    %c0_i32 = arith.constant 0 : i32
    %c0_i32_0 = arith.constant 0 : i32
    return %c0_i32 : i32
  }
  func.func @transform_3(%arg0: i32) -> (i32, i32, i32, i32) {
    %c0_i32 = arith.constant 0 : i32
    %c0_i32_0 = arith.constant 0 : i32
    %c0_i32_1 = arith.constant 0 : i32
    %c0_i32_2 = arith.constant 0 : i32
    return %c0_i32, %arg0, %c0_i32_0, %c0_i32_1 : i32, i32, i32, i32
  }
  func.func @transform_4(%arg0: i32) -> (i32, i32, i32, i32) {
    %c0_i32 = arith.constant 0 : i32
    %c0_i32_0 = arith.constant 0 : i32
    %c0_i32_1 = arith.constant 0 : i32
    %c0_i32_2 = arith.constant 0 : i32
    return %c0_i32, %arg0, %c0_i32_0, %c0_i32_1 : i32, i32, i32, i32
  }
  func.func @transform_5(%arg0: i32) -> (i32, i32, i32) {
    %c0_i32 = arith.constant 0 : i32
    %c0_i32_0 = arith.constant 0 : i32
    %c0_i32_1 = arith.constant 0 : i32
    return %arg0, %c0_i32, %c0_i32_0 : i32, i32, i32
  }
  func.func @transform_6(%arg0: i32) -> (i32, i32, i32, i32) {
    %c0_i32 = arith.constant 0 : i32
    %c0_i32_0 = arith.constant 0 : i32
    %c0_i32_1 = arith.constant 0 : i32
    %c0_i32_2 = arith.constant 0 : i32
    return %c0_i32, %arg0, %c0_i32_0, %c0_i32_1 : i32, i32, i32, i32
  }
  func.func @transform_7(%arg0: i32) -> (i32, i32, i32) {
    %c0_i32 = arith.constant 0 : i32
    %c0_i32_0 = arith.constant 0 : i32
    %c0_i32_1 = arith.constant 0 : i32
    return %arg0, %c0_i32, %c0_i32_0 : i32, i32, i32
  }
  func.func @transform_8(%arg0: i32) -> (i32, i32, i32) {
    %c0_i32 = arith.constant 0 : i32
    %c0_i32_0 = arith.constant 0 : i32
    %c0_i32_1 = arith.constant 0 : i32
    return %arg0, %c0_i32, %c0_i32_0 : i32, i32, i32
  }
}

</mosaic_0001>

<llo_original>
// kernel: ray_tracing_forward.1
$region0: #{ray_tracing_forward.1}
  #allocation0 [shape = 'u32[]', space=smem, size = 0x4, offset = 0x4, fixed_abs, tag = 'smem constant byte address 0x4 - core index']
  #allocation1 [shape = 'u32[144,128]{1,0:T(1,128)}', space=vmem, size = 0x12000, scoped, tag = 'internal scratch']
  %s0 = inlined_call_operand.vmem [shape: f32[3,8], index: 0, kind: input, shape index: {}]
  %s1 = inlined_call_operand.vmem [shape: f32[8], index: 1, kind: input, shape index: {}]
  %s2 = inlined_call_operand.vmem [shape: f32[8], index: 2, kind: input, shape index: {}]
  %s3 = inlined_call_operand.vmem [shape: f32[3,2,8,128], index: 3, kind: input, shape index: {}]
  %s4 = inlined_call_operand.vmem [shape: f32[3,2,8,128], index: 4, kind: input, shape index: {}]
  %s5 = inlined_call_operand.vmem [shape: s32[2,8,128], index: 5, kind: input, shape index: {}]
  %s6 = inlined_call_operand.vmem [shape: f32[3,2,8,128], index: 6, kind: output, shape index: {0}]
  %s7 = inlined_call_operand.vmem [shape: s32[2,8,128], index: 7, kind: output, shape index: {1}]
  %s8 = inlined_call_operand.hbm [shape: f32[2,8,128], index: 8, kind: output, shape index: {2}]
  %9 = xla_tuple %s6, %s7, %s8
  %s10 = sld [smem:[#allocation0]]
  $region206: #{ray_tracing_forward.1} parent=0
    _
  %s12 = ssub.s32 1, %s10
  %s13 = scalar_select 0, %s12, %s10
  $region1: #{ray_tracing_forward.1} parent=0
    #allocation2 [shape = 'u8[2048]{0}', space=smem, size = 0x800, scoped, tag = 'input window, operand 0, single buffered']
    #allocation3 [shape = 's32[2]{0}', space=sflag, size = 0x8, scoped, tag = 'scoped memory for ray_tracing_forward.1']
    #allocation4 [shape = 's32[2]{0}', space=sflag, size = 0x8, scoped, tag = 'scoped memory for ray_tracing_forward.1']
    #allocation5 [shape = 'u8[512]{0}', space=smem, size = 0x200, scoped, tag = 'input window, operand 1, single buffered']
    #allocation6 [shape = 's32[1]{0}', space=sflag, size = 0x4, scoped, tag = 'scoped memory for ray_tracing_forward.1']
    #allocation7 [shape = 'u8[512]{0}', space=smem, size = 0x200, scoped, tag = 'input window, operand 2, single buffered']
    #allocation8 [shape = 'u8[24576]{0}', space=vmem, size = 0x6000, scoped, tag = 'input window, operand 3']
    #allocation9 [shape = 'u8[24576]{0}', space=vmem, size = 0x6000, scoped, tag = 'input window, operand 4']
    #allocation10 [shape = 'u8[24576]{0}', space=vmem, size = 0x6000, scoped, tag = 'output window, operand 0']
    #allocation11 [shape = 'u8[8192]{0}', space=vmem, size = 0x2000, scoped, tag = 'output window, operand 2']
    %14 = vsyncpa [#allocation4], 0
    %15 = vsyncpa [#allocation6], 0
    %16 = vsyncpa [#allocation3], 0
    %s17 = scalar_lea.sflag [#allocation3], 1
    %18 = vsyncpa %s17, 0
    loop: start=0, step=1, limit=4
    $region2: #{ray_tracing_forward.1} parent=1 // loop_pre_header
      _
    $region3: #{ray_tracing_forward.1} parent=1 // loop_header
      %s20 = sphi 0, %s24
      %p21 = scmp.ge.s32.totalorder %s20, 4
      %s28 = sphi 0, %s28
      %s30 = sphi 0, %s28
      %s31 = sphi 0, %s30
      %s45 = sphi 0, %s31
      %s49 = sphi 0, %s49
      %s51 = sphi 0, %s49
      %s52 = sphi 0, %s51
      %s66 = sphi 0, %s52
      %s70 = sphi 0, %s70
      %s72 = sphi 0, %s70
      %s73 = sphi 0, %s72
      %s87 = sphi 0, %s73
      %s93 = sphi 0, %s95
      %s96 = sphi 0, %s93
      %s97 = sphi 0, %s96
      %s113 = sphi 0, %s97
      %s119 = sphi 0, %s121
      %s122 = sphi 0, %s119
      %s123 = sphi 0, %s122
      %s139 = sphi 0, %s123
      %s145 = sphi 0, %s147
      %s148 = sphi 0, %s145
      %s149 = sphi 0, %s148
      %s165 = sphi 0, %s149
      %s171 = sphi 0, %s173
      %s174 = sphi 0, %s171
      %s175 = sphi 0, %s174
      %s191 = sphi 0, %s175
      %s197 = sphi 0, %s199
      %s200 = sphi 0, %s197
      %s201 = sphi 0, %s200
      %s217 = sphi 0, %s201
      %s223 = sphi 0, %s225
      %s226 = sphi 0, %s223
      %s227 = sphi 0, %s226
      %s243 = sphi 0, %s227
    $region4: #{ray_tracing_forward.1} parent=1 // loop_header_branch
      %23 = sbr.rel (%p21) target = $region8
    $region5: #{ray_tracing_forward.1} parent=1 // loop_body
      %s25 = ssub.s32 %s20, 1
      %s26 = ssub.s32 %s20, 2
      %s27 = sadd.s32 %s20, 1
      %s29 = sadd.s32 %s28, 1
      %p32 = scmp.eq.s32.totalorder %s20, 1
      %p33 = scmp.ne.s32.totalorder %s28, %s30
      %p34 = scmp.eq.s32.totalorder %s20, 0
      %p35 = por %p33, %p34
      %p36 = scmp.ne.s32.totalorder %s28, %s30
      %p37 = scmp.eq.s32.totalorder %s25, 1
      %p38 = por %p36, %p37
      %p39 = scmp.ne.s32.totalorder %s30, %s31
      %p40 = scmp.eq.s32.totalorder %s25, 0
      %p41 = por %p39, %p40
      %p42 = scmp.ne.s32.totalorder %s30, %s31
      %p43 = scmp.eq.s32.totalorder %s26, 1
      %p44 = por %p42, %p43
      %p46 = scmp.ne.s32.totalorder %s31, %s45
      %p47 = scmp.eq.s32.totalorder %s26, 0
      %p48 = por %p46, %p47
      %s50 = sadd.s32 %s49, 1
      %p53 = scmp.eq.s32.totalorder %s20, 1
      %p54 = scmp.ne.s32.totalorder %s49, %s51
      %p55 = scmp.eq.s32.totalorder %s20, 0
      %p56 = por %p54, %p55
      %p57 = scmp.ne.s32.totalorder %s49, %s51
      %p58 = scmp.eq.s32.totalorder %s25, 1
      %p59 = por %p57, %p58
      %p60 = scmp.ne.s32.totalorder %s51, %s52
      %p61 = scmp.eq.s32.totalorder %s25, 0
      %p62 = por %p60, %p61
      %p63 = scmp.ne.s32.totalorder %s51, %s52
      %p64 = scmp.eq.s32.totalorder %s26, 1
      %p65 = por %p63, %p64
      %p67 = scmp.ne.s32.totalorder %s52, %s66
      %p68 = scmp.eq.s32.totalorder %s26, 0
      %p69 = por %p67, %p68
      %s71 = sadd.s32 %s70, 1
      %p74 = scmp.eq.s32.totalorder %s20, 1
      %p75 = scmp.ne.s32.totalorder %s70, %s72
      %p76 = scmp.eq.s32.totalorder %s20, 0
      %p77 = por %p75, %p76
      %p78 = scmp.ne.s32.totalorder %s70, %s72
      %p79 = scmp.eq.s32.totalorder %s25, 1
      %p80 = por %p78, %p79
      %p81 = scmp.ne.s32.totalorder %s72, %s73
      %p82 = scmp.eq.s32.totalorder %s25, 0
      %p83 = por %p81, %p82
      %p84 = scmp.ne.s32.totalorder %s72, %s73
      %p85 = scmp.eq.s32.totalorder %s26, 1
      %p86 = por %p84, %p85
      %p88 = scmp.ne.s32.totalorder %s73, %s87
      %p89 = scmp.eq.s32.totalorder %s26, 0
      %p90 = por %p88, %p89
      %s91 = ssub.s32 %s20, %s27
      %p92 = scmp.eq.s32.totalorder %s91, 0
      %s94 = sadd.s32 %s93, 1
      %s95 = scalar_select %p92, %s93, %s94
      %p98 = pneg %p92
      %p99 = scmp.eq.s32.totalorder %s20, 1
      %p100 = por %p98, %p99
      %p101 = scmp.ne.s32.totalorder %s93, %s96
      %p102 = scmp.eq.s32.totalorder %s20, 0
      %p103 = por %p101, %p102
      %p104 = scmp.ne.s32.totalorder %s93, %s96
      %p105 = scmp.eq.s32.totalorder %s25, 1
      %p106 = por %p104, %p105
      %p107 = scmp.ne.s32.totalorder %s96, %s97
      %p108 = scmp.eq.s32.totalorder %s25, 0
      %p109 = por %p107, %p108
      %p110 = scmp.ne.s32.totalorder %s96, %s97
      %p111 = scmp.eq.s32.totalorder %s26, 1
      %p112 = por %p110, %p111
      %p114 = scmp.ne.s32.totalorder %s97, %s113
      %p115 = scmp.eq.s32.totalorder %s26, 0
      %p116 = por %p114, %p115
      %s117 = ssub.s32 %s20, %s27
      %p118 = scmp.eq.s32.totalorder %s117, 0
      %s120 = sadd.s32 %s119, 1
      %s121 = scalar_select %p118, %s119, %s120
      %p124 = pneg %p118
      %p125 = scmp.eq.s32.totalorder %s20, 1
      %p126 = por %p124, %p125
      %p127 = scmp.ne.s32.totalorder %s119, %s122
      %p128 = scmp.eq.s32.totalorder %s20, 0
      %p129 = por %p127, %p128
      %p130 = scmp.ne.s32.totalorder %s119, %s122
      %p131 = scmp.eq.s32.totalorder %s25, 1
      %p132 = por %p130, %p131
      %p133 = scmp.ne.s32.totalorder %s122, %s123
      %p134 = scmp.eq.s32.totalorder %s25, 0
      %p135 = por %p133, %p134
      %p136 = scmp.ne.s32.totalorder %s122, %s123
      %p137 = scmp.eq.s32.totalorder %s26, 1
      %p138 = por %p136, %p137
      %p140 = scmp.ne.s32.totalorder %s123, %s139
      %p141 = scmp.eq.s32.totalorder %s26, 0
      %p142 = por %p140, %p141
      %s143 = ssub.s32 %s20, %s27
      %p144 = scmp.eq.s32.totalorder %s143, 0
      %s146 = sadd.s32 %s145, 1
      %s147 = scalar_select %p144, %s145, %s146
      %p150 = pneg %p144
      %p151 = scmp.eq.s32.totalorder %s20, 1
      %p152 = por %p150, %p151
      %p153 = scmp.ne.s32.totalorder %s145, %s148
      %p154 = scmp.eq.s32.totalorder %s20, 0
      %p155 = por %p153, %p154
      %p156 = scmp.ne.s32.totalorder %s145, %s148
      %p157 = scmp.eq.s32.totalorder %s25, 1
      %p158 = por %p156, %p157
      %p159 = scmp.ne.s32.totalorder %s148, %s149
      %p160 = scmp.eq.s32.totalorder %s25, 0
      %p161 = por %p159, %p160
      %p162 = scmp.ne.s32.totalorder %s148, %s149
      %p163 = scmp.eq.s32.totalorder %s26, 1
      %p164 = por %p162, %p163
      %p166 = scmp.ne.s32.totalorder %s149, %s165
      %p167 = scmp.eq.s32.totalorder %s26, 0
      %p168 = por %p166, %p167
      %s169 = ssub.s32 %s20, %s27
      %p170 = scmp.eq.s32.totalorder %s169, 0
      %s172 = sadd.s32 %s171, 1
      %s173 = scalar_select %p170, %s171, %s172
      %p176 = pneg %p170
      %p177 = scmp.eq.s32.totalorder %s20, 1
      %p178 = por %p176, %p177
      %p179 = scmp.ne.s32.totalorder %s171, %s174
      %p180 = scmp.eq.s32.totalorder %s20, 0
      %p181 = por %p179, %p180
      %p182 = scmp.ne.s32.totalorder %s171, %s174
      %p183 = scmp.eq.s32.totalorder %s25, 1
      %p184 = por %p182, %p183
      %p185 = scmp.ne.s32.totalorder %s174, %s175
      %p186 = scmp.eq.s32.totalorder %s25, 0
      %p187 = por %p185, %p186
      %p188 = scmp.ne.s32.totalorder %s174, %s175
      %p189 = scmp.eq.s32.totalorder %s26, 1
      %p190 = por %p188, %p189
      %p192 = scmp.ne.s32.totalorder %s175, %s191
      %p193 = scmp.eq.s32.totalorder %s26, 0
      %p194 = por %p192, %p193
      %s195 = ssub.s32 %s20, %s27
      %p196 = scmp.eq.s32.totalorder %s195, 0
      %s198 = sadd.s32 %s197, 1
      %s199 = scalar_select %p196, %s197, %s198
      %p202 = pneg %p196
      %p203 = scmp.eq.s32.totalorder %s20, 1
      %p204 = por %p202, %p203
      %p205 = scmp.ne.s32.totalorder %s197, %s200
      %p206 = scmp.eq.s32.totalorder %s20, 0
      %p207 = por %p205, %p206
      %p208 = scmp.ne.s32.totalorder %s197, %s200
      %p209 = scmp.eq.s32.totalorder %s25, 1
      %p210 = por %p208, %p209
      %p211 = scmp.ne.s32.totalorder %s200, %s201
      %p212 = scmp.eq.s32.totalorder %s25, 0
      %p213 = por %p211, %p212
      %p214 = scmp.ne.s32.totalorder %s200, %s201
      %p215 = scmp.eq.s32.totalorder %s26, 1
      %p216 = por %p214, %p215
      %p218 = scmp.ne.s32.totalorder %s201, %s217
      %p219 = scmp.eq.s32.totalorder %s26, 0
      %p220 = por %p218, %p219
      %s221 = ssub.s32 %s20, %s27
      %p222 = scmp.eq.s32.totalorder %s221, 0
      %s224 = sadd.s32 %s223, 1
      %s225 = scalar_select %p222, %s223, %s224
      %p228 = pneg %p222
      %p229 = scmp.eq.s32.totalorder %s20, 1
      %p230 = por %p228, %p229
      %p231 = scmp.ne.s32.totalorder %s223, %s226
      %p232 = scmp.eq.s32.totalorder %s20, 0
      %p233 = por %p231, %p232
      %p234 = scmp.ne.s32.totalorder %s223, %s226
      %p235 = scmp.eq.s32.totalorder %s25, 1
      %p236 = por %p234, %p235
      %p237 = scmp.ne.s32.totalorder %s226, %s227
      %p238 = scmp.eq.s32.totalorder %s25, 0
      %p239 = por %p237, %p238
      %p240 = scmp.ne.s32.totalorder %s226, %s227
      %p241 = scmp.eq.s32.totalorder %s26, 1
      %p242 = por %p240, %p241
      %p244 = scmp.ne.s32.totalorder %s227, %s243
      %p245 = scmp.eq.s32.totalorder %s26, 0
      %p246 = por %p244, %p245
      %p247 = scmp.le.s32.totalorder 1, %s20
      %p248 = scmp.lt.s32.totalorder %s20, 3
      %p249 = pnand %p247, %p248
      %p250 = pneg %p249
      // Predicated region
      $region9: #{ray_tracing_forward.1} parent=5 // pred_check
        _
      $region10: #{ray_tracing_forward.1} parent=5 // pred_check_branch
        %252 = sbr.rel (%p249) target = $region12
      $region11: #{ray_tracing_forward.1} parent=5 // pred_region
        %s253 = ssub.s32 %s20, 1
        // Predicated region
        $region13: #{ray_tracing_forward.1} parent=11 // pred_check
          %p254 = pneg %p41
        $region14: #{ray_tracing_forward.1} parent=11 // pred_check_branch
          %256 = sbr.rel (%p254) target = $region16
        $region15: #{ray_tracing_forward.1} parent=11 // pred_region
          %s258 = ssub.s32 64, 64
          %259 = vsyncadd [#allocation4], %s258
          %s261 = sshll.u32 %s0, 4
          %s262 = int_to_ptr.vmem [resolvable:$true] %s261
          %264 = dma.vmem_to_smem %s262, 64, [#allocation2], [#allocation4]
        $region16: #{ray_tracing_forward.1} parent=11 // pred_fallthru
          _
        // Predicated region
        $region17: #{ray_tracing_forward.1} parent=11 // pred_check
          %p265 = pneg %p62
        $region18: #{ray_tracing_forward.1} parent=11 // pred_check_branch
          %267 = sbr.rel (%p265) target = $region20
        $region19: #{ray_tracing_forward.1} parent=11 // pred_region
          %s269 = ssub.s32 16, 16
          %270 = vsyncadd [#allocation6], %s269
          %s272 = sshll.u32 %s1, 4
          %s273 = int_to_ptr.vmem [resolvable:$true] %s272
          %275 = dma.vmem_to_smem %s273, 16, [#allocation5], [#allocation6]
        $region20: #{ray_tracing_forward.1} parent=11 // pred_fallthru
          _
        // Predicated region
        $region21: #{ray_tracing_forward.1} parent=11 // pred_check
          %p276 = pneg %p83
        $region22: #{ray_tracing_forward.1} parent=11 // pred_check_branch
          %278 = sbr.rel (%p276) target = $region24
        $region23: #{ray_tracing_forward.1} parent=11 // pred_region
          %s280 = ssub.s32 16, 16
          %281 = vsyncadd [#allocation6], %s280
          %s283 = sshll.u32 %s2, 4
          %s284 = int_to_ptr.vmem [resolvable:$true] %s283
          %286 = dma.vmem_to_smem %s284, 16, [#allocation7], [#allocation6]
        $region24: #{ray_tracing_forward.1} parent=11 // pred_fallthru
          _
      $region12: #{ray_tracing_forward.1} parent=5 // pred_fallthru
        _
      %p287 = scmp.lt.s32.totalorder %s20, 2
      // Predicated region
      $region25: #{ray_tracing_forward.1} parent=5 // pred_check
        %p288 = pneg %p287
      $region26: #{ray_tracing_forward.1} parent=5 // pred_check_branch
        %290 = sbr.rel (%p288) target = $region28
      $region27: #{ray_tracing_forward.1} parent=5 // pred_region
        // Predicated region
        $region29: #{ray_tracing_forward.1} parent=27 // pred_check
          %p291 = pneg %p103
        $region30: #{ray_tracing_forward.1} parent=27 // pred_check_branch
          %293 = sbr.rel (%p291) target = $region32
        $region31: #{ray_tracing_forward.1} parent=27 // pred_region
          %s294 = sand.u32 %s93, 1
          %s295 = sand.u32 %s93, 1
          %s296 = smul.addr %s295, 24
          %s297 = scalar_lea.vmem [#allocation8], %s296
          %s298 = smul.addr %s20, 8
          %s299 = scalar_lea.vmem %s3, %s298
          // Predicated region
          $region33: #{ray_tracing_forward.1} parent=31 // pred_check
            _
          $region34: #{ray_tracing_forward.1} parent=31 // pred_check_branch
            %301 = sbr.rel (0) target = $region36
          $region35: #{ray_tracing_forward.1} parent=31 // pred_region
            // Predicated region
            $region37: #{ray_tracing_forward.1} parent=35 // pred_check
              _
            $region38: #{ray_tracing_forward.1} parent=35 // pred_check_branch
              %303 = sbr.rel (0) target = $region40
            $region39: #{ray_tracing_forward.1} parent=35 // pred_region
              // Predicated region
              $region52: #{ray_tracing_forward.1} parent=39 // pred_check
                _
              $region53: #{ray_tracing_forward.1} parent=39 // pred_check_branch
                %322 = sbr.rel (0) target = $region55
              $region54: #{ray_tracing_forward.1} parent=39 // pred_region
                loop: start=0, step=1, limit=1
                $region56: #{ray_tracing_forward.1} parent=54 // loop_pre_header
                  _
                $region57: #{ray_tracing_forward.1} parent=54 // loop_header
                  %s324 = sphi 0, %s328
                  %p325 = scmp.ge.s32.totalorder %s324, 1
                  %s329 = sphi %s299, %s299
                  %s330 = sphi %s297, %s297
                $region58: #{ray_tracing_forward.1} parent=54 // loop_header_branch
                  %327 = sbr.rel (%p325) target = $region62
                $region59: #{ray_tracing_forward.1} parent=54 // loop_body
                  %v331 = vld [vmem:[%s329] sm:$0xff]
                  %332 = vst [vmem:[%s330] sm:$0xff] %v331
                  %v333 = vld [vmem:[%s329 + $0x10] sm:$0xff]
                  %334 = vst [vmem:[%s330 + $0x8] sm:$0xff] %v333
                  %v335 = vld [vmem:[%s329 + $0x20] sm:$0xff]
                  %336 = vst [vmem:[%s330 + $0x10] sm:$0xff] %v335
                $region60: #{ray_tracing_forward.1} parent=54 // loop_footer
                  %s328 = sadd.s32 1, %s324
                $region61: #{ray_tracing_forward.1} parent=54 // loop_footer_branch
                  %323 = sbr.rel target = $region57
                $region62: #{ray_tracing_forward.1} parent=54 // loop_exit
                  _
              $region55: #{ray_tracing_forward.1} parent=39 // pred_fallthru
                _
              // Predicated region
              $region63: #{ray_tracing_forward.1} parent=39 // pred_check
                _
              $region64: #{ray_tracing_forward.1} parent=39 // pred_check_branch
                %338 = sbr.rel target = $region66
              $region65: #{ray_tracing_forward.1} parent=39 // pred_region
                _
              $region66: #{ray_tracing_forward.1} parent=39 // pred_fallthru
                _
            $region40: #{ray_tracing_forward.1} parent=35 // pred_fallthru
              _
            // Predicated region
            $region41: #{ray_tracing_forward.1} parent=35 // pred_check
              _
            $region42: #{ray_tracing_forward.1} parent=35 // pred_check_branch
              %305 = sbr.rel target = $region44
            $region43: #{ray_tracing_forward.1} parent=35 // pred_region
              loop: start=0, step=1, limit=1
              $region45: #{ray_tracing_forward.1} parent=43 // loop_pre_header
                _
              $region46: #{ray_tracing_forward.1} parent=43 // loop_header
                %s308 = sphi 0, %s312
                %p309 = scmp.ge.s32.totalorder %s308, 1
                %s313 = sphi %s299, %s299
                %s314 = sphi %s297, %s297
              $region47: #{ray_tracing_forward.1} parent=43 // loop_header_branch
                %311 = sbr.rel (%p309) target = $region51
              $region48: #{ray_tracing_forward.1} parent=43 // loop_body
                %v315 = vld [vmem:[%s313] sm:$0xff]
                %316 = vst [vmem:[%s314] sm:$0xff] %v315
                %v317 = vld [vmem:[%s313 + $0x10] sm:$0xff]
                %318 = vst [vmem:[%s314 + $0x8] sm:$0xff] %v317
                %v319 = vld [vmem:[%s313 + $0x20] sm:$0xff]
                %320 = vst [vmem:[%s314 + $0x10] sm:$0xff] %v319
              $region49: #{ray_tracing_forward.1} parent=43 // loop_footer
                %s312 = sadd.s32 1, %s308
              $region50: #{ray_tracing_forward.1} parent=43 // loop_footer_branch
                %307 = sbr.rel target = $region46
              $region51: #{ray_tracing_forward.1} parent=43 // loop_exit
                _
            $region44: #{ray_tracing_forward.1} parent=35 // pred_fallthru
              _
          $region36: #{ray_tracing_forward.1} parent=31 // pred_fallthru
            _
          %339 = vnop
        $region32: #{ray_tracing_forward.1} parent=27 // pred_fallthru
          _
        // Predicated region
        $region67: #{ray_tracing_forward.1} parent=27 // pred_check
          %p340 = pneg %p129
        $region68: #{ray_tracing_forward.1} parent=27 // pred_check_branch
          %342 = sbr.rel (%p340) target = $region70
        $region69: #{ray_tracing_forward.1} parent=27 // pred_region
          %s343 = sand.u32 %s119, 1
          %s344 = sand.u32 %s119, 1
          %s345 = smul.addr %s344, 24
          %s346 = scalar_lea.vmem [#allocation9], %s345
          %s347 = smul.addr %s20, 8
          %s348 = scalar_lea.vmem %s4, %s347
          // Predicated region
          $region71: #{ray_tracing_forward.1} parent=69 // pred_check
            _
          $region72: #{ray_tracing_forward.1} parent=69 // pred_check_branch
            %350 = sbr.rel (0) target = $region74
          $region73: #{ray_tracing_forward.1} parent=69 // pred_region
            // Predicated region
            $region75: #{ray_tracing_forward.1} parent=73 // pred_check
              _
            $region76: #{ray_tracing_forward.1} parent=73 // pred_check_branch
              %352 = sbr.rel (0) target = $region78
            $region77: #{ray_tracing_forward.1} parent=73 // pred_region
              // Predicated region
              $region90: #{ray_tracing_forward.1} parent=77 // pred_check
                _
              $region91: #{ray_tracing_forward.1} parent=77 // pred_check_branch
                %371 = sbr.rel (0) target = $region93
              $region92: #{ray_tracing_forward.1} parent=77 // pred_region
                loop: start=0, step=1, limit=1
                $region94: #{ray_tracing_forward.1} parent=92 // loop_pre_header
                  _
                $region95: #{ray_tracing_forward.1} parent=92 // loop_header
                  %s373 = sphi 0, %s377
                  %p374 = scmp.ge.s32.totalorder %s373, 1
                  %s378 = sphi %s348, %s348
                  %s379 = sphi %s346, %s346
                $region96: #{ray_tracing_forward.1} parent=92 // loop_header_branch
                  %376 = sbr.rel (%p374) target = $region100
                $region97: #{ray_tracing_forward.1} parent=92 // loop_body
                  %v380 = vld [vmem:[%s378] sm:$0xff]
                  %381 = vst [vmem:[%s379] sm:$0xff] %v380
                  %v382 = vld [vmem:[%s378 + $0x10] sm:$0xff]
                  %383 = vst [vmem:[%s379 + $0x8] sm:$0xff] %v382
                  %v384 = vld [vmem:[%s378 + $0x20] sm:$0xff]
                  %385 = vst [vmem:[%s379 + $0x10] sm:$0xff] %v384
                $region98: #{ray_tracing_forward.1} parent=92 // loop_footer
                  %s377 = sadd.s32 1, %s373
                $region99: #{ray_tracing_forward.1} parent=92 // loop_footer_branch
                  %372 = sbr.rel target = $region95
                $region100: #{ray_tracing_forward.1} parent=92 // loop_exit
                  _
              $region93: #{ray_tracing_forward.1} parent=77 // pred_fallthru
                _
              // Predicated region
              $region101: #{ray_tracing_forward.1} parent=77 // pred_check
                _
              $region102: #{ray_tracing_forward.1} parent=77 // pred_check_branch
                %387 = sbr.rel target = $region104
              $region103: #{ray_tracing_forward.1} parent=77 // pred_region
                _
              $region104: #{ray_tracing_forward.1} parent=77 // pred_fallthru
                _
            $region78: #{ray_tracing_forward.1} parent=73 // pred_fallthru
              _
            // Predicated region
            $region79: #{ray_tracing_forward.1} parent=73 // pred_check
              _
            $region80: #{ray_tracing_forward.1} parent=73 // pred_check_branch
              %354 = sbr.rel target = $region82
            $region81: #{ray_tracing_forward.1} parent=73 // pred_region
              loop: start=0, step=1, limit=1
              $region83: #{ray_tracing_forward.1} parent=81 // loop_pre_header
                _
              $region84: #{ray_tracing_forward.1} parent=81 // loop_header
                %s357 = sphi 0, %s361
                %p358 = scmp.ge.s32.totalorder %s357, 1
                %s362 = sphi %s348, %s348
                %s363 = sphi %s346, %s346
              $region85: #{ray_tracing_forward.1} parent=81 // loop_header_branch
                %360 = sbr.rel (%p358) target = $region89
              $region86: #{ray_tracing_forward.1} parent=81 // loop_body
                %v364 = vld [vmem:[%s362] sm:$0xff]
                %365 = vst [vmem:[%s363] sm:$0xff] %v364
                %v366 = vld [vmem:[%s362 + $0x10] sm:$0xff]
                %367 = vst [vmem:[%s363 + $0x8] sm:$0xff] %v366
                %v368 = vld [vmem:[%s362 + $0x20] sm:$0xff]
                %369 = vst [vmem:[%s363 + $0x10] sm:$0xff] %v368
              $region87: #{ray_tracing_forward.1} parent=81 // loop_footer
                %s361 = sadd.s32 1, %s357
              $region88: #{ray_tracing_forward.1} parent=81 // loop_footer_branch
                %356 = sbr.rel target = $region84
              $region89: #{ray_tracing_forward.1} parent=81 // loop_exit
                _
            $region82: #{ray_tracing_forward.1} parent=73 // pred_fallthru
              _
          $region74: #{ray_tracing_forward.1} parent=69 // pred_fallthru
            _
          %388 = vnop
        $region70: #{ray_tracing_forward.1} parent=27 // pred_fallthru
          _
        // Predicated region
        $region105: #{ray_tracing_forward.1} parent=27 // pred_check
          %p389 = pneg %p155
        $region106: #{ray_tracing_forward.1} parent=27 // pred_check_branch
          %391 = sbr.rel (%p389) target = $region108
        $region107: #{ray_tracing_forward.1} parent=27 // pred_region
          %p392 = scmp.lt.s32.totalorder %s20, 1
          %s393 = scalar_select %p392, %s20, 1
          %s394 = smul.addr %s393, 8
          %s395 = scalar_lea.vmem %s5, %s394
        $region108: #{ray_tracing_forward.1} parent=27 // pred_fallthru
          _
      $region28: #{ray_tracing_forward.1} parent=5 // pred_fallthru
        _
      %p396 = scmp.le.s32.totalorder 1, %s20
      %p397 = scmp.lt.s32.totalorder %s20, 3
      %p398 = pnand %p396, %p397
      %p399 = pneg %p398
      // Predicated region
      $region109: #{ray_tracing_forward.1} parent=5 // pred_check
        _
      $region110: #{ray_tracing_forward.1} parent=5 // pred_check_branch
        %401 = sbr.rel (%p398) target = $region112
      $region111: #{ray_tracing_forward.1} parent=5 // pred_region
        %s402 = ssub.s32 %s20, 1
        // Predicated region
        $region113: #{ray_tracing_forward.1} parent=111 // pred_check
          %p403 = pneg %p41
        $region114: #{ray_tracing_forward.1} parent=111 // pred_check_branch
          %405 = sbr.rel (%p403) target = $region116
        $region115: #{ray_tracing_forward.1} parent=111 // pred_region
          %406 = dma.done [#allocation4], 64
        $region116: #{ray_tracing_forward.1} parent=111 // pred_fallthru
          _
        // Predicated region
        $region117: #{ray_tracing_forward.1} parent=111 // pred_check
          %p407 = pneg %p62
        $region118: #{ray_tracing_forward.1} parent=111 // pred_check_branch
          %409 = sbr.rel (%p407) target = $region120
        $region119: #{ray_tracing_forward.1} parent=111 // pred_region
          %410 = dma.done [#allocation6], 16
        $region120: #{ray_tracing_forward.1} parent=111 // pred_fallthru
          _
        // Predicated region
        $region121: #{ray_tracing_forward.1} parent=111 // pred_check
          %p411 = pneg %p83
        $region122: #{ray_tracing_forward.1} parent=111 // pred_check_branch
          %413 = sbr.rel (%p411) target = $region124
        $region123: #{ray_tracing_forward.1} parent=111 // pred_region
          %414 = dma.done [#allocation6], 16
        $region124: #{ray_tracing_forward.1} parent=111 // pred_fallthru
          _
        %s415 = sand.u32 %s96, 1
        %s416 = sand.u32 %s96, 1
        %s417 = smul.addr %s416, 24
        %s418 = scalar_lea.vmem [#allocation8], %s417
        // Predicated region
        $region125: #{ray_tracing_forward.1} parent=111 // pred_check
          %p419 = pneg %p109
        $region126: #{ray_tracing_forward.1} parent=111 // pred_check_branch
          %421 = sbr.rel (%p419) target = $region128
        $region127: #{ray_tracing_forward.1} parent=111 // pred_region
          _
        $region128: #{ray_tracing_forward.1} parent=111 // pred_fallthru
          _
        %s422 = sand.u32 %s122, 1
        %s423 = sand.u32 %s122, 1
        %s424 = smul.addr %s423, 24
        %s425 = scalar_lea.vmem [#allocation9], %s424
        // Predicated region
        $region129: #{ray_tracing_forward.1} parent=111 // pred_check
          %p426 = pneg %p135
        $region130: #{ray_tracing_forward.1} parent=111 // pred_check_branch
          %428 = sbr.rel (%p426) target = $region132
        $region131: #{ray_tracing_forward.1} parent=111 // pred_region
          _
        $region132: #{ray_tracing_forward.1} parent=111 // pred_fallthru
          _
        %429 = sfence
        %p430 = pneg %p41
        %p431 = pneg %p38
        %p432 = pneg %p62
        %p433 = pneg %p59
        %p434 = pneg %p83
        %p435 = pneg %p80
        %s436 = sand.u32 %s96, 1
        %s437 = sand.u32 %s96, 1
        %s438 = smul.addr %s437, 24
        %s439 = scalar_lea.vmem [#allocation8], %s438
        %p440 = pneg %p109
        %p441 = pneg %p106
        %s442 = sand.u32 %s122, 1
        %s443 = sand.u32 %s122, 1
        %s444 = smul.addr %s443, 24
        %s445 = scalar_lea.vmem [#allocation9], %s444
        %p446 = pneg %p135
        %p447 = pneg %p132
        %p448 = scmp.lt.s32.totalorder %s25, 1
        %s449 = scalar_select %p448, %s25, 1
        %s450 = smul.addr %s449, 8
        %s451 = scalar_lea.vmem %s5, %s450
        %p452 = pneg %p161
        %p453 = pneg %p158
        %p454 = pneg %p187
        %p455 = pneg %p184
        %s456 = sand.u32 %s174, 1
        %s457 = sand.u32 %s174, 1
        %s458 = smul.addr %s457, 24
        %s459 = scalar_lea.vmem [#allocation10], %s458
        %p460 = pneg %p213
        %p461 = pneg %p210
        %p462 = scmp.lt.s32.totalorder %s25, 1
        %s463 = scalar_select %p462, %s25, 1
        %s464 = smul.addr %s463, 8
        %s465 = scalar_lea.vmem %s7, %s464
        %p466 = pneg %p239
        %p467 = pneg %p236
        %s468 = sand.u32 %s226, 1
        %s469 = scalar_lea.sflag [#allocation3], %s468
        %s470 = sand.u32 %s226, 1
        %s471 = smul.addr %s470, 8
        %s472 = scalar_lea.vmem [#allocation11], %s471
        %p473 = scmp.lt.s32.totalorder %s25, 1
        %s474 = scalar_select %p473, %s25, 1
        %s475 = smul.addr %s474, 8
        %s476 = scalar_lea.vmem %s5, %s475
        %p477 = scmp.lt.s32.totalorder %s25, 1
        %s478 = scalar_select %p477, %s25, 1
        %s479 = smul.addr %s478, 8
        %s480 = scalar_lea.vmem %s7, %s479
        %s481 = sld [smem:[#allocation2]]
        %s482 = sld [smem:[#allocation2 + $0x1]]
        %s483 = sld [smem:[#allocation2 + $0x2]]
        %s484 = sld [smem:[#allocation2 + $0x3]]
        %s485 = sld [smem:[#allocation2 + $0x4]]
        %s486 = sld [smem:[#allocation2 + $0x5]]
        %s487 = sld [smem:[#allocation2 + $0x6]]
        %s488 = sld [smem:[#allocation2 + $0x7]]
        %s489 = sld [smem:[#allocation2 + $0x80]]
        %s490 = sld [smem:[#allocation2 + $0x81]]
        %s491 = sld [smem:[#allocation2 + $0x82]]
        %s492 = sld [smem:[#allocation2 + $0x83]]
        %s493 = sld [smem:[#allocation2 + $0x84]]
        %s494 = sld [smem:[#allocation2 + $0x85]]
        %s495 = sld [smem:[#allocation2 + $0x86]]
        %s496 = sld [smem:[#allocation2 + $0x87]]
        %s497 = sld [smem:[#allocation2 + $0x100]]
        %s498 = sld [smem:[#allocation2 + $0x101]]
        %s499 = sld [smem:[#allocation2 + $0x102]]
        %s500 = sld [smem:[#allocation2 + $0x103]]
        %s501 = sld [smem:[#allocation2 + $0x104]]
        %s502 = sld [smem:[#allocation2 + $0x105]]
        %s503 = sld [smem:[#allocation2 + $0x106]]
        %s504 = sld [smem:[#allocation2 + $0x107]]
        %s505 = sld [smem:[#allocation5]]
        %s506 = sld [smem:[#allocation5 + $0x1]]
        %s507 = sld [smem:[#allocation5 + $0x2]]
        %s508 = sld [smem:[#allocation5 + $0x3]]
        %s509 = sld [smem:[#allocation5 + $0x4]]
        %s510 = sld [smem:[#allocation5 + $0x5]]
        %s511 = sld [smem:[#allocation5 + $0x6]]
        %s512 = sld [smem:[#allocation5 + $0x7]]
        %s513 = sld [smem:[#allocation7]]
        %s514 = sld [smem:[#allocation7 + $0x1]]
        %s515 = sld [smem:[#allocation7 + $0x2]]
        %s516 = sld [smem:[#allocation7 + $0x3]]
        %s517 = sld [smem:[#allocation7 + $0x4]]
        %s518 = sld [smem:[#allocation7 + $0x5]]
        %s519 = sld [smem:[#allocation7 + $0x6]]
        %s520 = sld [smem:[#allocation7 + $0x7]]
        %v521 = vld [vmem:[%s418] sm:$0xff]
        %s522 = scalar_lea.vmem %s418, 8 [#allocation8]
        %v523 = vld [vmem:[%s522] sm:$0xff]
        %s524 = scalar_lea.vmem %s418, 16 [#allocation8]
        %v525 = vld [vmem:[%s524] sm:$0xff]
        %v526 = vld [vmem:[%s425] sm:$0xff]
        %s527 = scalar_lea.vmem %s425, 8 [#allocation9]
        %v528 = vld [vmem:[%s527] sm:$0xff]
        %s529 = scalar_lea.vmem %s425, 16 [#allocation9]
        %v530 = vld [vmem:[%s529] sm:$0xff]
        %v531 = vmul.f32 %v521, %v521
        %v532 = vmul.f32 %v523, %v523
        %v533 = vadd.f32 %v531, %v532
        %v534 = vmul.f32 %v525, %v525
        %v535 = vadd.f32 %v533, %v534
        %v536 = vmul.f32 %v521, %v526
        %v537 = vmul.f32 %v523, %v528
        %v538 = vadd.f32 %v536, %v537
        %v539 = vmul.f32 %v525, %v530
        %v540 = vadd.f32 %v538, %v539
        %v541 = vmul.f32 %v540, 2.0
        %v542 = vmul.f32 %v526, %v526
        %v543 = vmul.f32 %v528, %v528
        %v544 = vadd.f32 %v542, %v543
        %v545 = vmul.f32 %v530, %v530
        %v546 = vadd.f32 %v544, %v545
        %v547 = vstv %s481
        %v548 = vmul.f32 %v521, %v547
        %v549 = vstv %s489
        %v550 = vmul.f32 %v523, %v549
        %v551 = vadd.f32 %v548, %v550
        %v552 = vstv %s497
        %v553 = vmul.f32 %v525, %v552
        %v554 = vadd.f32 %v551, %v553
        %v555 = vstv %s505
        %v556 = vadd.f32 %v554, %v555
        %v557 = vstv %s482
        %v558 = vmul.f32 %v521, %v557
        %v559 = vstv %s490
        %v560 = vmul.f32 %v523, %v559
        %v561 = vadd.f32 %v558, %v560
        %v562 = vstv %s498
        %v563 = vmul.f32 %v525, %v562
        %v564 = vadd.f32 %v561, %v563
        %v565 = vstv %s506
        %v566 = vadd.f32 %v564, %v565
        %v567 = vstv %s483
        %v568 = vmul.f32 %v521, %v567
        %v569 = vstv %s491
        %v570 = vmul.f32 %v523, %v569
        %v571 = vadd.f32 %v568, %v570
        %v572 = vstv %s499
        %v573 = vmul.f32 %v525, %v572
        %v574 = vadd.f32 %v571, %v573
        %v575 = vstv %s507
        %v576 = vadd.f32 %v574, %v575
        %v577 = vstv %s484
        %v578 = vmul.f32 %v521, %v577
        %v579 = vstv %s492
        %v580 = vmul.f32 %v523, %v579
        %v581 = vadd.f32 %v578, %v580
        %v582 = vstv %s500
        %v583 = vmul.f32 %v525, %v582
        %v584 = vadd.f32 %v581, %v583
        %v585 = vstv %s508
        %v586 = vadd.f32 %v584, %v585
        %v587 = vstv %s485
        %v588 = vmul.f32 %v521, %v587
        %v589 = vstv %s493
        %v590 = vmul.f32 %v523, %v589
        %v591 = vadd.f32 %v588, %v590
        %v592 = vstv %s501
        %v593 = vmul.f32 %v525, %v592
        %v594 = vadd.f32 %v591, %v593
        %v595 = vstv %s509
        %v596 = vadd.f32 %v594, %v595
        %v597 = vstv %s486
        %v598 = vmul.f32 %v521, %v597
        %v599 = vstv %s494
        %v600 = vmul.f32 %v523, %v599
        %v601 = vadd.f32 %v598, %v600
        %v602 = vstv %s502
        %v603 = vmul.f32 %v525, %v602
        %v604 = vadd.f32 %v601, %v603
        %v605 = vstv %s510
        %v606 = vadd.f32 %v604, %v605
        %v607 = vstv %s487
        %v608 = vmul.f32 %v521, %v607
        %v609 = vstv %s495
        %v610 = vmul.f32 %v523, %v609
        %v611 = vadd.f32 %v608, %v610
        %v612 = vstv %s503
        %v613 = vmul.f32 %v525, %v612
        %v614 = vadd.f32 %v611, %v613
        %v615 = vstv %s511
        %v616 = vadd.f32 %v614, %v615
        %v617 = vstv %s488
        %v618 = vmul.f32 %v521, %v617
        %v619 = vstv %s496
        %v620 = vmul.f32 %v523, %v619
        %v621 = vadd.f32 %v618, %v620
        %v622 = vstv %s504
        %v623 = vmul.f32 %v525, %v622
        %v624 = vadd.f32 %v621, %v623
        %v625 = vstv %s512
        %v626 = vadd.f32 %v624, %v625
        %v627 = vmul.f32 %v526, %v547
        %v628 = vmul.f32 %v528, %v549
        %v629 = vadd.f32 %v627, %v628
        %v630 = vmul.f32 %v530, %v552
        %v631 = vadd.f32 %v629, %v630
        %v632 = vmul.f32 %v526, %v557
        %v633 = vmul.f32 %v528, %v559
        %v634 = vadd.f32 %v632, %v633
        %v635 = vmul.f32 %v530, %v562
        %v636 = vadd.f32 %v634, %v635
        %v637 = vmul.f32 %v526, %v567
        %v638 = vmul.f32 %v528, %v569
        %v639 = vadd.f32 %v637, %v638
        %v640 = vmul.f32 %v530, %v572
        %v641 = vadd.f32 %v639, %v640
        %v642 = vmul.f32 %v526, %v577
        %v643 = vmul.f32 %v528, %v579
        %v644 = vadd.f32 %v642, %v643
        %v645 = vmul.f32 %v530, %v582
        %v646 = vadd.f32 %v644, %v645
        %v647 = vmul.f32 %v526, %v587
        %v648 = vmul.f32 %v528, %v589
        %v649 = vadd.f32 %v647, %v648
        %v650 = vmul.f32 %v530, %v592
        %v651 = vadd.f32 %v649, %v650
        %v652 = vmul.f32 %v526, %v597
        %v653 = vmul.f32 %v528, %v599
        %v654 = vadd.f32 %v652, %v653
        %v655 = vmul.f32 %v530, %v602
        %v656 = vadd.f32 %v654, %v655
        %v657 = vmul.f32 %v526, %v607
        %v658 = vmul.f32 %v528, %v609
        %v659 = vadd.f32 %v657, %v658
        %v660 = vmul.f32 %v530, %v612
        %v661 = vadd.f32 %v659, %v660
        %v662 = vmul.f32 %v526, %v617
        %v663 = vmul.f32 %v528, %v619
        %v664 = vadd.f32 %v662, %v663
        %v665 = vmul.f32 %v530, %v622
        %v666 = vadd.f32 %v664, %v665
        %v667 = vmul.f32 %v540, %v540
        %v668 = vsub.f32 %v535, 1.0
        %v669 = vsub.f32 %v667, %v668
        %vm670 = vcmp.gt.f32.partialorder %v669, 0.0
        %v671 = vmax.f32 %v669, 0.0
        %v672 = vrsqrt.pop %v671
        %v673 = vmul.f32 %v671, %v672
        %vm674 = vcmp.eq.f32.partialorder %v671, inf
        %v675 = vsel %vm674, %v671, %v673
        %vm676 = vcmp.eq.f32.partialorder %v671, 0.0
        %v677 = vand.u32 %v671, 2147483648
        %v678 = vsel %vm676, %v677, %v675
        %v679 = vsub.f32 0.0, %v678
        %v680 = vsub.f32 %v679, %v540
        %v681 = vmax.f32 %v680, 0.0
        %v682 = vsel %vm670, %v681, 0.0
        %v683 = vsub.f32 %v678, %v540
        %v684 = vmax.f32 %v683, 0.0
        %v685 = vsel %vm670, %v684, 0.0
        %v686 = vmul.f32 %v546, %v682
        %v687 = vadd.f32 %v541, %v686
        %v688 = vmul.f32 %v682, %v687
        %v689 = vadd.f32 %v535, %v688
        %v690 = vmax.f32 %v689, 0.0
        %v691 = vrsqrt.pop %v690
        %v692 = vmul.f32 %v690, %v691
        %vm693 = vcmp.eq.f32.partialorder %v690, inf
        %v694 = vsel %vm693, %v690, %v692
        %vm695 = vcmp.eq.f32.partialorder %v690, 0.0
        %v696 = vand.u32 %v690, 2147483648
        %v697 = vsel %vm695, %v696, %v694
        %v698 = vsub.f32 %v697, 0.6
        %v699 = vmul.f32 %v631, %v682
        %v700 = vadd.f32 %v556, %v699
        %v701 = vtanh.pop %v700
        %v702 = vstv %s513
        %v703 = vmul.f32 %v702, %v701
        %v704 = vmul.f32 %v636, %v682
        %v705 = vadd.f32 %v566, %v704
        %v706 = vtanh.pop %v705
        %v707 = vstv %s514
        %v708 = vmul.f32 %v707, %v706
        %v709 = vadd.f32 %v703, %v708
        %v710 = vmul.f32 %v641, %v682
        %v711 = vadd.f32 %v576, %v710
        %v712 = vtanh.pop %v711
        %v713 = vstv %s515
        %v714 = vmul.f32 %v713, %v712
        %v715 = vadd.f32 %v709, %v714
        %v716 = vmul.f32 %v646, %v682
        %v717 = vadd.f32 %v586, %v716
        %v718 = vtanh.pop %v717
        %v719 = vstv %s516
        %v720 = vmul.f32 %v719, %v718
        %v721 = vadd.f32 %v715, %v720
        %v722 = vmul.f32 %v651, %v682
        %v723 = vadd.f32 %v596, %v722
        %v724 = vtanh.pop %v723
        %v725 = vstv %s517
        %v726 = vmul.f32 %v725, %v724
        %v727 = vadd.f32 %v721, %v726
        %v728 = vmul.f32 %v656, %v682
        %v729 = vadd.f32 %v606, %v728
        %v730 = vtanh.pop %v729
        %v731 = vstv %s518
        %v732 = vmul.f32 %v731, %v730
        %v733 = vadd.f32 %v727, %v732
        %v734 = vmul.f32 %v661, %v682
        %v735 = vadd.f32 %v616, %v734
        %v736 = vtanh.pop %v735
        %v737 = vstv %s519
        %v738 = vmul.f32 %v737, %v736
        %v739 = vadd.f32 %v733, %v738
        %v740 = vmul.f32 %v666, %v682
        %v741 = vadd.f32 %v626, %v740
        %v742 = vtanh.pop %v741
        %v743 = vstv %s520
        %v744 = vmul.f32 %v743, %v742
        %v745 = vadd.f32 %v739, %v744
        %v746 = vmul.f32 %v745, 0.05
        %v747 = vadd.f32 %v698, %v746
        %v748 = vsel %vm670, %v747, 0.0
        %v749 = vmul.f32 %v546, %v685
        %v750 = vadd.f32 %v541, %v749
        %v751 = vmul.f32 %v685, %v750
        %v752 = vadd.f32 %v535, %v751
        %v753 = vmax.f32 %v752, 0.0
        %v754 = vrsqrt.pop %v753
        %v755 = vmul.f32 %v753, %v754
        %vm756 = vcmp.eq.f32.partialorder %v753, inf
        %v757 = vsel %vm756, %v753, %v755
        %vm758 = vcmp.eq.f32.partialorder %v753, 0.0
        %v759 = vand.u32 %v753, 2147483648
        %v760 = vsel %vm758, %v759, %v757
        %v761 = vsub.f32 %v760, 0.6
        %v762 = vmul.f32 %v631, %v685
        %v763 = vadd.f32 %v556, %v762
        %v764 = vtanh.pop %v763
        %v765 = vmul.f32 %v702, %v764
        %v766 = vmul.f32 %v636, %v685
        %v767 = vadd.f32 %v566, %v766
        %v768 = vtanh.pop %v767
        %v769 = vmul.f32 %v707, %v768
        %v770 = vadd.f32 %v765, %v769
        %v771 = vmul.f32 %v641, %v685
        %v772 = vadd.f32 %v576, %v771
        %v773 = vtanh.pop %v772
        %v774 = vmul.f32 %v713, %v773
        %v775 = vadd.f32 %v770, %v774
        %v776 = vmul.f32 %v646, %v685
        %v777 = vadd.f32 %v586, %v776
        %v778 = vtanh.pop %v777
        %v779 = vmul.f32 %v719, %v778
        %v780 = vadd.f32 %v775, %v779
        %v781 = vmul.f32 %v651, %v685
        %v782 = vadd.f32 %v596, %v781
        %v783 = vtanh.pop %v782
        %v784 = vmul.f32 %v725, %v783
        %v785 = vadd.f32 %v780, %v784
        %v786 = vmul.f32 %v656, %v685
        %v787 = vadd.f32 %v606, %v786
        %v788 = vtanh.pop %v787
        %v789 = vmul.f32 %v731, %v788
        %v790 = vadd.f32 %v785, %v789
        %v791 = vmul.f32 %v661, %v685
        %v792 = vadd.f32 %v616, %v791
        %v793 = vtanh.pop %v792
        %v794 = vmul.f32 %v737, %v793
        %v795 = vadd.f32 %v790, %v794
        %v796 = vmul.f32 %v666, %v685
        %v797 = vadd.f32 %v626, %v796
        %v798 = vtanh.pop %v797
        %v799 = vmul.f32 %v743, %v798
        %v800 = vadd.f32 %v795, %v799
        %v801 = vmul.f32 %v800, 0.05
        %v802 = vadd.f32 %v761, %v801
        %v803 = vsel %vm670, %v802, 0.0
        %vm804 = vcmp.lt.f32.partialorder %v803, 0.0
        %vm805 = vcmp.lt.f32.partialorder %v748, 0.0
        %vm806 = vmand %vm804, %vm805
        %vm807 = vcmp.gt.f32.partialorder %v748, 5e-05
        %vm808 = vcmp.gt.f32.partialorder %v803, 5e-05
        %vm809 = vmor %vm807, %vm808
        %vm810 = vmand %vm670, %vm809
        %vm811 = vmand %vm670, %vm807
        %vm812 = vmand %vm670, %vm808
        %v813 = vsel %vm811, %v748, 0.0
        %v814 = vsel %vm812, %v803, 0.0
        %v815 = vmax.f32 %v813, -0.5
        %v816 = vmin.f32 %v815, 0.5
        %v817 = vmax.f32 %v814, -0.5
        %v818 = vmin.f32 %v817, 0.5
        %v819 = vmul.f32 %v816, 1.2
        %v820 = vadd.f32 %v682, %v819
        %v821 = vmul.f32 %v818, 1.2
        %v822 = vsub.f32 %v685, %v821
        %v823 = vmul.f32 %v546, %v820
        %v824 = vadd.f32 %v541, %v823
        %v825 = vmul.f32 %v820, %v824
        %v826 = vadd.f32 %v535, %v825
        %v827 = vmax.f32 %v826, 0.0
        %v828 = vrsqrt.pop %v827
        %v829 = vmul.f32 %v827, %v828
        %vm830 = vcmp.eq.f32.partialorder %v827, inf
        %v831 = vsel %vm830, %v827, %v829
        %vm832 = vcmp.eq.f32.partialorder %v827, 0.0
        %v833 = vand.u32 %v827, 2147483648
        %v834 = vsel %vm832, %v833, %v831
        %v835 = vsub.f32 %v834, 0.6
        %v836 = vmul.f32 %v631, %v820
        %v837 = vadd.f32 %v556, %v836
        %v838 = vtanh.pop %v837
        %v839 = vmul.f32 %v702, %v838
        %v840 = vmul.f32 %v636, %v820
        %v841 = vadd.f32 %v566, %v840
        %v842 = vtanh.pop %v841
        %v843 = vmul.f32 %v707, %v842
        %v844 = vadd.f32 %v839, %v843
        %v845 = vmul.f32 %v641, %v820
        %v846 = vadd.f32 %v576, %v845
        %v847 = vtanh.pop %v846
        %v848 = vmul.f32 %v713, %v847
        %v849 = vadd.f32 %v844, %v848
        %v850 = vmul.f32 %v646, %v820
        %v851 = vadd.f32 %v586, %v850
        %v852 = vtanh.pop %v851
        %v853 = vmul.f32 %v719, %v852
        %v854 = vadd.f32 %v849, %v853
        %v855 = vmul.f32 %v651, %v820
        %v856 = vadd.f32 %v596, %v855
        %v857 = vtanh.pop %v856
        %v858 = vmul.f32 %v725, %v857
        %v859 = vadd.f32 %v854, %v858
        %v860 = vmul.f32 %v656, %v820
        %v861 = vadd.f32 %v606, %v860
        %v862 = vtanh.pop %v861
        %v863 = vmul.f32 %v731, %v862
        %v864 = vadd.f32 %v859, %v863
        %v865 = vmul.f32 %v661, %v820
        %v866 = vadd.f32 %v616, %v865
        %v867 = vtanh.pop %v866
        %v868 = vmul.f32 %v737, %v867
        %v869 = vadd.f32 %v864, %v868
        %v870 = vmul.f32 %v666, %v820
        %v871 = vadd.f32 %v626, %v870
        %v872 = vtanh.pop %v871
        %v873 = vmul.f32 %v743, %v872
        %v874 = vadd.f32 %v869, %v873
        %v875 = vmul.f32 %v874, 0.05
        %v876 = vadd.f32 %v835, %v875
        %v877 = vsel %vm811, %v876, 0.0
        %v878 = vmul.f32 %v546, %v822
        %v879 = vadd.f32 %v541, %v878
        %v880 = vmul.f32 %v822, %v879
        %v881 = vadd.f32 %v535, %v880
        %v882 = vmax.f32 %v881, 0.0
        %v883 = vrsqrt.pop %v882
        %v884 = vmul.f32 %v882, %v883
        %vm885 = vcmp.eq.f32.partialorder %v882, inf
        %v886 = vsel %vm885, %v882, %v884
        %vm887 = vcmp.eq.f32.partialorder %v882, 0.0
        %v888 = vand.u32 %v882, 2147483648
        %v889 = vsel %vm887, %v888, %v886
        %v890 = vsub.f32 %v889, 0.6
        %v891 = vmul.f32 %v631, %v822
        %v892 = vadd.f32 %v556, %v891
        %v893 = vtanh.pop %v892
        %v894 = vmul.f32 %v702, %v893
        %v895 = vmul.f32 %v636, %v822
        %v896 = vadd.f32 %v566, %v895
        %v897 = vtanh.pop %v896
        %v898 = vmul.f32 %v707, %v897
        %v899 = vadd.f32 %v894, %v898
        %v900 = vmul.f32 %v641, %v822
        %v901 = vadd.f32 %v576, %v900
        %v902 = vtanh.pop %v901
        %v903 = vmul.f32 %v713, %v902
        %v904 = vadd.f32 %v899, %v903
        %v905 = vmul.f32 %v646, %v822
        %v906 = vadd.f32 %v586, %v905
        %v907 = vtanh.pop %v906
        %v908 = vmul.f32 %v719, %v907
        %v909 = vadd.f32 %v904, %v908
        %v910 = vmul.f32 %v651, %v822
        %v911 = vadd.f32 %v596, %v910
        %v912 = vtanh.pop %v911
        %v913 = vmul.f32 %v725, %v912
        %v914 = vadd.f32 %v909, %v913
        %v915 = vmul.f32 %v656, %v822
        %v916 = vadd.f32 %v606, %v915
        %v917 = vtanh.pop %v916
        %v918 = vmul.f32 %v731, %v917
        %v919 = vadd.f32 %v914, %v918
        %v920 = vmul.f32 %v661, %v822
        %v921 = vadd.f32 %v616, %v920
        %v922 = vtanh.pop %v921
        %v923 = vmul.f32 %v737, %v922
        %v924 = vadd.f32 %v919, %v923
        %v925 = vmul.f32 %v666, %v822
        %v926 = vadd.f32 %v626, %v925
        %v927 = vtanh.pop %v926
        %v928 = vmul.f32 %v743, %v927
        %v929 = vadd.f32 %v924, %v928
        %v930 = vmul.f32 %v929, 0.05
        %v931 = vadd.f32 %v890, %v930
        %v932 = vsel %vm812, %v931, 0.0
        %vm933 = vcmp.lt.f32.partialorder %v877, 0.0
        %vm934 = vcmp.lt.f32.partialorder %v932, 0.0
        %v935 = vmul.f32 %v816, 0.5
        %v936 = vsub.f32 %v820, %v935
        %v937 = vsel %vm933, %v936, %v820
        %v938 = vmul.f32 %v818, 0.5
        %v939 = vadd.f32 %v822, %v938
        %v940 = vsel %vm934, %v939, %v822
        %v941 = vmul.f32 %v546, %v937
        %v942 = vadd.f32 %v541, %v941
        %v943 = vmul.f32 %v937, %v942
        %v944 = vadd.f32 %v535, %v943
        %v945 = vmax.f32 %v944, 0.0
        %v946 = vrsqrt.pop %v945
        %v947 = vmul.f32 %v945, %v946
        %vm948 = vcmp.eq.f32.partialorder %v945, inf
        %v949 = vsel %vm948, %v945, %v947
        %vm950 = vcmp.eq.f32.partialorder %v945, 0.0
        %v951 = vand.u32 %v945, 2147483648
        %v952 = vsel %vm950, %v951, %v949
        %v953 = vsub.f32 %v952, 0.6
        %v954 = vmul.f32 %v631, %v937
        %v955 = vadd.f32 %v556, %v954
        %v956 = vtanh.pop %v955
        %v957 = vmul.f32 %v702, %v956
        %v958 = vmul.f32 %v636, %v937
        %v959 = vadd.f32 %v566, %v958
        %v960 = vtanh.pop %v959
        %v961 = vmul.f32 %v707, %v960
        %v962 = vadd.f32 %v957, %v961
        %v963 = vmul.f32 %v641, %v937
        %v964 = vadd.f32 %v576, %v963
        %v965 = vtanh.pop %v964
        %v966 = vmul.f32 %v713, %v965
        %v967 = vadd.f32 %v962, %v966
        %v968 = vmul.f32 %v646, %v937
        %v969 = vadd.f32 %v586, %v968
        %v970 = vtanh.pop %v969
        %v971 = vmul.f32 %v719, %v970
        %v972 = vadd.f32 %v967, %v971
        %v973 = vmul.f32 %v651, %v937
        %v974 = vadd.f32 %v596, %v973
        %v975 = vtanh.pop %v974
        %v976 = vmul.f32 %v725, %v975
        %v977 = vadd.f32 %v972, %v976
        %v978 = vmul.f32 %v656, %v937
        %v979 = vadd.f32 %v606, %v978
        %v980 = vtanh.pop %v979
        %v981 = vmul.f32 %v731, %v980
        %v982 = vadd.f32 %v977, %v981
        %v983 = vmul.f32 %v661, %v937
        %v984 = vadd.f32 %v616, %v983
        %v985 = vtanh.pop %v984
        %v986 = vmul.f32 %v737, %v985
        %v987 = vadd.f32 %v982, %v986
        %v988 = vmul.f32 %v666, %v937
        %v989 = vadd.f32 %v626, %v988
        %v990 = vtanh.pop %v989
        %v991 = vmul.f32 %v743, %v990
        %v992 = vadd.f32 %v987, %v991
        %v993 = vmul.f32 %v992, 0.05
        %v994 = vadd.f32 %v953, %v993
        %v995 = vsel %vm933, %v994, %v877
        %v996 = vmul.f32 %v546, %v940
        %v997 = vadd.f32 %v541, %v996
        %v998 = vmul.f32 %v940, %v997
        %v999 = vadd.f32 %v535, %v998
        %v1000 = vmax.f32 %v999, 0.0
        %v1001 = vrsqrt.pop %v1000
        %v1002 = vmul.f32 %v1000, %v1001
        %vm1003 = vcmp.eq.f32.partialorder %v1000, inf
        %v1004 = vsel %vm1003, %v1000, %v1002
        %vm1005 = vcmp.eq.f32.partialorder %v1000, 0.0
        %v1006 = vand.u32 %v1000, 2147483648
        %v1007 = vsel %vm1005, %v1006, %v1004
        %v1008 = vsub.f32 %v1007, 0.6
        %v1009 = vmul.f32 %v631, %v940
        %v1010 = vadd.f32 %v556, %v1009
        %v1011 = vtanh.pop %v1010
        %v1012 = vmul.f32 %v702, %v1011
        %v1013 = vmul.f32 %v636, %v940
        %v1014 = vadd.f32 %v566, %v1013
        %v1015 = vtanh.pop %v1014
        %v1016 = vmul.f32 %v707, %v1015
        %v1017 = vadd.f32 %v1012, %v1016
        %v1018 = vmul.f32 %v641, %v940
        %v1019 = vadd.f32 %v576, %v1018
        %v1020 = vtanh.pop %v1019
        %v1021 = vmul.f32 %v713, %v1020
        %v1022 = vadd.f32 %v1017, %v1021
        %v1023 = vmul.f32 %v646, %v940
        %v1024 = vadd.f32 %v586, %v1023
        %v1025 = vtanh.pop %v1024
        %v1026 = vmul.f32 %v719, %v1025
        %v1027 = vadd.f32 %v1022, %v1026
        %v1028 = vmul.f32 %v651, %v940
        %v1029 = vadd.f32 %v596, %v1028
        %v1030 = vtanh.pop %v1029
        %v1031 = vmul.f32 %v725, %v1030
        %v1032 = vadd.f32 %v1027, %v1031
        %v1033 = vmul.f32 %v656, %v940
        %v1034 = vadd.f32 %v606, %v1033
        %v1035 = vtanh.pop %v1034
        %v1036 = vmul.f32 %v731, %v1035
        %v1037 = vadd.f32 %v1032, %v1036
        %v1038 = vmul.f32 %v661, %v940
        %v1039 = vadd.f32 %v616, %v1038
        %v1040 = vtanh.pop %v1039
        %v1041 = vmul.f32 %v737, %v1040
        %v1042 = vadd.f32 %v1037, %v1041
        %v1043 = vmul.f32 %v666, %v940
        %v1044 = vadd.f32 %v626, %v1043
        %v1045 = vtanh.pop %v1044
        %v1046 = vmul.f32 %v743, %v1045
        %v1047 = vadd.f32 %v1042, %v1046
        %v1048 = vmul.f32 %v1047, 0.05
        %v1049 = vadd.f32 %v1008, %v1048
        %v1050 = vsel %vm934, %v1049, %v932
        %vm1051 = vcmp.lt.f32.partialorder %v937, %v940
        %vm1052 = vmand %vm811, %vm1051
        %vm1053 = vmand %vm812, %vm1051
        %vm1054 = vcmp.gt.f32.partialorder %v995, 5e-05
        %vm1055 = vmand %vm1052, %vm1054
        %vm1056 = vcmp.gt.f32.partialorder %v1050, 5e-05
        %vm1057 = vmand %vm1053, %vm1056
        %v1058 = vsel %vm1055, %v995, 0.0
        %v1059 = vsel %vm1057, %v1050, 0.0
        %v1060 = vmax.f32 %v1058, -0.5
        %v1061 = vmin.f32 %v1060, 0.5
        %v1062 = vmax.f32 %v1059, -0.5
        %v1063 = vmin.f32 %v1062, 0.5
        %v1064 = vmul.f32 %v1061, 1.2
        %v1065 = vadd.f32 %v937, %v1064
        %v1066 = vmul.f32 %v1063, 1.2
        %v1067 = vsub.f32 %v940, %v1066
        %v1068 = vmul.f32 %v546, %v1065
        %v1069 = vadd.f32 %v541, %v1068
        %v1070 = vmul.f32 %v1065, %v1069
        %v1071 = vadd.f32 %v535, %v1070
        %v1072 = vmax.f32 %v1071, 0.0
        %v1073 = vrsqrt.pop %v1072
        %v1074 = vmul.f32 %v1072, %v1073
        %vm1075 = vcmp.eq.f32.partialorder %v1072, inf
        %v1076 = vsel %vm1075, %v1072, %v1074
        %vm1077 = vcmp.eq.f32.partialorder %v1072, 0.0
        %v1078 = vand.u32 %v1072, 2147483648
        %v1079 = vsel %vm1077, %v1078, %v1076
        %v1080 = vsub.f32 %v1079, 0.6
        %v1081 = vmul.f32 %v631, %v1065
        %v1082 = vadd.f32 %v556, %v1081
        %v1083 = vtanh.pop %v1082
        %v1084 = vmul.f32 %v702, %v1083
        %v1085 = vmul.f32 %v636, %v1065
        %v1086 = vadd.f32 %v566, %v1085
        %v1087 = vtanh.pop %v1086
        %v1088 = vmul.f32 %v707, %v1087
        %v1089 = vadd.f32 %v1084, %v1088
        %v1090 = vmul.f32 %v641, %v1065
        %v1091 = vadd.f32 %v576, %v1090
        %v1092 = vtanh.pop %v1091
        %v1093 = vmul.f32 %v713, %v1092
        %v1094 = vadd.f32 %v1089, %v1093
        %v1095 = vmul.f32 %v646, %v1065
        %v1096 = vadd.f32 %v586, %v1095
        %v1097 = vtanh.pop %v1096
        %v1098 = vmul.f32 %v719, %v1097
        %v1099 = vadd.f32 %v1094, %v1098
        %v1100 = vmul.f32 %v651, %v1065
        %v1101 = vadd.f32 %v596, %v1100
        %v1102 = vtanh.pop %v1101
        %v1103 = vmul.f32 %v725, %v1102
        %v1104 = vadd.f32 %v1099, %v1103
        %v1105 = vmul.f32 %v656, %v1065
        %v1106 = vadd.f32 %v606, %v1105
        %v1107 = vtanh.pop %v1106
        %v1108 = vmul.f32 %v731, %v1107
        %v1109 = vadd.f32 %v1104, %v1108
        %v1110 = vmul.f32 %v661, %v1065
        %v1111 = vadd.f32 %v616, %v1110
        %v1112 = vtanh.pop %v1111
        %v1113 = vmul.f32 %v737, %v1112
        %v1114 = vadd.f32 %v1109, %v1113
        %v1115 = vmul.f32 %v666, %v1065
        %v1116 = vadd.f32 %v626, %v1115
        %v1117 = vtanh.pop %v1116
        %v1118 = vmul.f32 %v743, %v1117
        %v1119 = vadd.f32 %v1114, %v1118
        %v1120 = vmul.f32 %v1119, 0.05
        %v1121 = vadd.f32 %v1080, %v1120
        %v1122 = vsel %vm1055, %v1121, 0.0
        %v1123 = vmul.f32 %v546, %v1067
        %v1124 = vadd.f32 %v541, %v1123
        %v1125 = vmul.f32 %v1067, %v1124
        %v1126 = vadd.f32 %v535, %v1125
        %v1127 = vmax.f32 %v1126, 0.0
        %v1128 = vrsqrt.pop %v1127
        %v1129 = vmul.f32 %v1127, %v1128
        %vm1130 = vcmp.eq.f32.partialorder %v1127, inf
        %v1131 = vsel %vm1130, %v1127, %v1129
        %vm1132 = vcmp.eq.f32.partialorder %v1127, 0.0
        %v1133 = vand.u32 %v1127, 2147483648
        %v1134 = vsel %vm1132, %v1133, %v1131
        %v1135 = vsub.f32 %v1134, 0.6
        %v1136 = vmul.f32 %v631, %v1067
        %v1137 = vadd.f32 %v556, %v1136
        %v1138 = vtanh.pop %v1137
        %v1139 = vmul.f32 %v702, %v1138
        %v1140 = vmul.f32 %v636, %v1067
        %v1141 = vadd.f32 %v566, %v1140
        %v1142 = vtanh.pop %v1141
        %v1143 = vmul.f32 %v707, %v1142
        %v1144 = vadd.f32 %v1139, %v1143
        %v1145 = vmul.f32 %v641, %v1067
        %v1146 = vadd.f32 %v576, %v1145
        %v1147 = vtanh.pop %v1146
        %v1148 = vmul.f32 %v713, %v1147
        %v1149 = vadd.f32 %v1144, %v1148
        %v1150 = vmul.f32 %v646, %v1067
        %v1151 = vadd.f32 %v586, %v1150
        %v1152 = vtanh.pop %v1151
        %v1153 = vmul.f32 %v719, %v1152
        %v1154 = vadd.f32 %v1149, %v1153
        %v1155 = vmul.f32 %v651, %v1067
        %v1156 = vadd.f32 %v596, %v1155
        %v1157 = vtanh.pop %v1156
        %v1158 = vmul.f32 %v725, %v1157
        %v1159 = vadd.f32 %v1154, %v1158
        %v1160 = vmul.f32 %v656, %v1067
        %v1161 = vadd.f32 %v606, %v1160
        %v1162 = vtanh.pop %v1161
        %v1163 = vmul.f32 %v731, %v1162
        %v1164 = vadd.f32 %v1159, %v1163
        %v1165 = vmul.f32 %v661, %v1067
        %v1166 = vadd.f32 %v616, %v1165
        %v1167 = vtanh.pop %v1166
        %v1168 = vmul.f32 %v737, %v1167
        %v1169 = vadd.f32 %v1164, %v1168
        %v1170 = vmul.f32 %v666, %v1067
        %v1171 = vadd.f32 %v626, %v1170
        %v1172 = vtanh.pop %v1171
        %v1173 = vmul.f32 %v743, %v1172
        %v1174 = vadd.f32 %v1169, %v1173
        %v1175 = vmul.f32 %v1174, 0.05
        %v1176 = vadd.f32 %v1135, %v1175
        %v1177 = vsel %vm1057, %v1176, 0.0
        %vm1178 = vcmp.lt.f32.partialorder %v1122, 0.0
        %vm1179 = vcmp.lt.f32.partialorder %v1177, 0.0
        %v1180 = vmul.f32 %v1061, 0.5
        %v1181 = vsub.f32 %v1065, %v1180
        %v1182 = vsel %vm1178, %v1181, %v1065
        %v1183 = vmul.f32 %v1063, 0.5
        %v1184 = vadd.f32 %v1067, %v1183
        %v1185 = vsel %vm1179, %v1184, %v1067
        %v1186 = vmul.f32 %v546, %v1182
        %v1187 = vadd.f32 %v541, %v1186
        %v1188 = vmul.f32 %v1182, %v1187
        %v1189 = vadd.f32 %v535, %v1188
        %v1190 = vmax.f32 %v1189, 0.0
        %v1191 = vrsqrt.pop %v1190
        %v1192 = vmul.f32 %v1190, %v1191
        %vm1193 = vcmp.eq.f32.partialorder %v1190, inf
        %v1194 = vsel %vm1193, %v1190, %v1192
        %vm1195 = vcmp.eq.f32.partialorder %v1190, 0.0
        %v1196 = vand.u32 %v1190, 2147483648
        %v1197 = vsel %vm1195, %v1196, %v1194
        %v1198 = vsub.f32 %v1197, 0.6
        %v1199 = vmul.f32 %v631, %v1182
        %v1200 = vadd.f32 %v556, %v1199
        %v1201 = vtanh.pop %v1200
        %v1202 = vmul.f32 %v702, %v1201
        %v1203 = vmul.f32 %v636, %v1182
        %v1204 = vadd.f32 %v566, %v1203
        %v1205 = vtanh.pop %v1204
        %v1206 = vmul.f32 %v707, %v1205
        %v1207 = vadd.f32 %v1202, %v1206
        %v1208 = vmul.f32 %v641, %v1182
        %v1209 = vadd.f32 %v576, %v1208
        %v1210 = vtanh.pop %v1209
        %v1211 = vmul.f32 %v713, %v1210
        %v1212 = vadd.f32 %v1207, %v1211
        %v1213 = vmul.f32 %v646, %v1182
        %v1214 = vadd.f32 %v586, %v1213
        %v1215 = vtanh.pop %v1214
        %v1216 = vmul.f32 %v719, %v1215
        %v1217 = vadd.f32 %v1212, %v1216
        %v1218 = vmul.f32 %v651, %v1182
        %v1219 = vadd.f32 %v596, %v1218
        %v1220 = vtanh.pop %v1219
        %v1221 = vmul.f32 %v725, %v1220
        %v1222 = vadd.f32 %v1217, %v1221
        %v1223 = vmul.f32 %v656, %v1182
        %v1224 = vadd.f32 %v606, %v1223
        %v1225 = vtanh.pop %v1224
        %v1226 = vmul.f32 %v731, %v1225
        %v1227 = vadd.f32 %v1222, %v1226
        %v1228 = vmul.f32 %v661, %v1182
        %v1229 = vadd.f32 %v616, %v1228
        %v1230 = vtanh.pop %v1229
        %v1231 = vmul.f32 %v737, %v1230
        %v1232 = vadd.f32 %v1227, %v1231
        %v1233 = vmul.f32 %v666, %v1182
        %v1234 = vadd.f32 %v626, %v1233
        %v1235 = vtanh.pop %v1234
        %v1236 = vmul.f32 %v743, %v1235
        %v1237 = vadd.f32 %v1232, %v1236
        %v1238 = vmul.f32 %v1237, 0.05
        %v1239 = vadd.f32 %v1198, %v1238
        %v1240 = vsel %vm1178, %v1239, %v1122
        %v1241 = vmul.f32 %v546, %v1185
        %v1242 = vadd.f32 %v541, %v1241
        %v1243 = vmul.f32 %v1185, %v1242
        %v1244 = vadd.f32 %v535, %v1243
        %v1245 = vmax.f32 %v1244, 0.0
        %v1246 = vrsqrt.pop %v1245
        %v1247 = vmul.f32 %v1245, %v1246
        %vm1248 = vcmp.eq.f32.partialorder %v1245, inf
        %v1249 = vsel %vm1248, %v1245, %v1247
        %vm1250 = vcmp.eq.f32.partialorder %v1245, 0.0
        %v1251 = vand.u32 %v1245, 2147483648
        %v1252 = vsel %vm1250, %v1251, %v1249
        %v1253 = vsub.f32 %v1252, 0.6
        %v1254 = vmul.f32 %v631, %v1185
        %v1255 = vadd.f32 %v556, %v1254
        %v1256 = vtanh.pop %v1255
        %v1257 = vmul.f32 %v702, %v1256
        %v1258 = vmul.f32 %v636, %v1185
        %v1259 = vadd.f32 %v566, %v1258
        %v1260 = vtanh.pop %v1259
        %v1261 = vmul.f32 %v707, %v1260
        %v1262 = vadd.f32 %v1257, %v1261
        %v1263 = vmul.f32 %v641, %v1185
        %v1264 = vadd.f32 %v576, %v1263
        %v1265 = vtanh.pop %v1264
        %v1266 = vmul.f32 %v713, %v1265
        %v1267 = vadd.f32 %v1262, %v1266
        %v1268 = vmul.f32 %v646, %v1185
        %v1269 = vadd.f32 %v586, %v1268
        %v1270 = vtanh.pop %v1269
        %v1271 = vmul.f32 %v719, %v1270
        %v1272 = vadd.f32 %v1267, %v1271
        %v1273 = vmul.f32 %v651, %v1185
        %v1274 = vadd.f32 %v596, %v1273
        %v1275 = vtanh.pop %v1274
        %v1276 = vmul.f32 %v725, %v1275
        %v1277 = vadd.f32 %v1272, %v1276
        %v1278 = vmul.f32 %v656, %v1185
        %v1279 = vadd.f32 %v606, %v1278
        %v1280 = vtanh.pop %v1279
        %v1281 = vmul.f32 %v731, %v1280
        %v1282 = vadd.f32 %v1277, %v1281
        %v1283 = vmul.f32 %v661, %v1185
        %v1284 = vadd.f32 %v616, %v1283
        %v1285 = vtanh.pop %v1284
        %v1286 = vmul.f32 %v737, %v1285
        %v1287 = vadd.f32 %v1282, %v1286
        %v1288 = vmul.f32 %v666, %v1185
        %v1289 = vadd.f32 %v626, %v1288
        %v1290 = vtanh.pop %v1289
        %v1291 = vmul.f32 %v743, %v1290
        %v1292 = vadd.f32 %v1287, %v1291
        %v1293 = vmul.f32 %v1292, 0.05
        %v1294 = vadd.f32 %v1253, %v1293
        %v1295 = vsel %vm1179, %v1294, %v1177
        %vm1296 = vcmp.lt.f32.partialorder %v1182, %v1185
        %vm1297 = vmand %vm1055, %vm1296
        %vm1298 = vmand %vm1057, %vm1296
        %vm1299 = vcmp.gt.f32.partialorder %v1240, 5e-05
        %vm1300 = vmand %vm1297, %vm1299
        %vm1301 = vcmp.gt.f32.partialorder %v1295, 5e-05
        %vm1302 = vmand %vm1298, %vm1301
        %v1303 = vsel %vm1300, %v1240, 0.0
        %v1304 = vsel %vm1302, %v1295, 0.0
        %v1305 = vmax.f32 %v1303, -0.5
        %v1306 = vmin.f32 %v1305, 0.5
        %v1307 = vmax.f32 %v1304, -0.5
        %v1308 = vmin.f32 %v1307, 0.5
        %v1309 = vmul.f32 %v1306, 1.2
        %v1310 = vadd.f32 %v1182, %v1309
        %v1311 = vmul.f32 %v1308, 1.2
        %v1312 = vsub.f32 %v1185, %v1311
        %v1313 = vmul.f32 %v546, %v1310
        %v1314 = vadd.f32 %v541, %v1313
        %v1315 = vmul.f32 %v1310, %v1314
        %v1316 = vadd.f32 %v535, %v1315
        %v1317 = vmax.f32 %v1316, 0.0
        %v1318 = vrsqrt.pop %v1317
        %v1319 = vmul.f32 %v1317, %v1318
        %vm1320 = vcmp.eq.f32.partialorder %v1317, inf
        %v1321 = vsel %vm1320, %v1317, %v1319
        %vm1322 = vcmp.eq.f32.partialorder %v1317, 0.0
        %v1323 = vand.u32 %v1317, 2147483648
        %v1324 = vsel %vm1322, %v1323, %v1321
        %v1325 = vsub.f32 %v1324, 0.6
        %v1326 = vmul.f32 %v631, %v1310
        %v1327 = vadd.f32 %v556, %v1326
        %v1328 = vtanh.pop %v1327
        %v1329 = vmul.f32 %v702, %v1328
        %v1330 = vmul.f32 %v636, %v1310
        %v1331 = vadd.f32 %v566, %v1330
        %v1332 = vtanh.pop %v1331
        %v1333 = vmul.f32 %v707, %v1332
        %v1334 = vadd.f32 %v1329, %v1333
        %v1335 = vmul.f32 %v641, %v1310
        %v1336 = vadd.f32 %v576, %v1335
        %v1337 = vtanh.pop %v1336
        %v1338 = vmul.f32 %v713, %v1337
        %v1339 = vadd.f32 %v1334, %v1338
        %v1340 = vmul.f32 %v646, %v1310
        %v1341 = vadd.f32 %v586, %v1340
        %v1342 = vtanh.pop %v1341
        %v1343 = vmul.f32 %v719, %v1342
        %v1344 = vadd.f32 %v1339, %v1343
        %v1345 = vmul.f32 %v651, %v1310
        %v1346 = vadd.f32 %v596, %v1345
        %v1347 = vtanh.pop %v1346
        %v1348 = vmul.f32 %v725, %v1347
        %v1349 = vadd.f32 %v1344, %v1348
        %v1350 = vmul.f32 %v656, %v1310
        %v1351 = vadd.f32 %v606, %v1350
        %v1352 = vtanh.pop %v1351
        %v1353 = vmul.f32 %v731, %v1352
        %v1354 = vadd.f32 %v1349, %v1353
        %v1355 = vmul.f32 %v661, %v1310
        %v1356 = vadd.f32 %v616, %v1355
        %v1357 = vtanh.pop %v1356
        %v1358 = vmul.f32 %v737, %v1357
        %v1359 = vadd.f32 %v1354, %v1358
        %v1360 = vmul.f32 %v666, %v1310
        %v1361 = vadd.f32 %v626, %v1360
        %v1362 = vtanh.pop %v1361
        %v1363 = vmul.f32 %v743, %v1362
        %v1364 = vadd.f32 %v1359, %v1363
        %v1365 = vmul.f32 %v1364, 0.05
        %v1366 = vadd.f32 %v1325, %v1365
        %v1367 = vsel %vm1300, %v1366, 0.0
        %v1368 = vmul.f32 %v546, %v1312
        %v1369 = vadd.f32 %v541, %v1368
        %v1370 = vmul.f32 %v1312, %v1369
        %v1371 = vadd.f32 %v535, %v1370
        %v1372 = vmax.f32 %v1371, 0.0
        %v1373 = vrsqrt.pop %v1372
        %v1374 = vmul.f32 %v1372, %v1373
        %vm1375 = vcmp.eq.f32.partialorder %v1372, inf
        %v1376 = vsel %vm1375, %v1372, %v1374
        %vm1377 = vcmp.eq.f32.partialorder %v1372, 0.0
        %v1378 = vand.u32 %v1372, 2147483648
        %v1379 = vsel %vm1377, %v1378, %v1376
        %v1380 = vsub.f32 %v1379, 0.6
        %v1381 = vmul.f32 %v631, %v1312
        %v1382 = vadd.f32 %v556, %v1381
        %v1383 = vtanh.pop %v1382
        %v1384 = vmul.f32 %v702, %v1383
        %v1385 = vmul.f32 %v636, %v1312
        %v1386 = vadd.f32 %v566, %v1385
        %v1387 = vtanh.pop %v1386
        %v1388 = vmul.f32 %v707, %v1387
        %v1389 = vadd.f32 %v1384, %v1388
        %v1390 = vmul.f32 %v641, %v1312
        %v1391 = vadd.f32 %v576, %v1390
        %v1392 = vtanh.pop %v1391
        %v1393 = vmul.f32 %v713, %v1392
        %v1394 = vadd.f32 %v1389, %v1393
        %v1395 = vmul.f32 %v646, %v1312
        %v1396 = vadd.f32 %v586, %v1395
        %v1397 = vtanh.pop %v1396
        %v1398 = vmul.f32 %v719, %v1397
        %v1399 = vadd.f32 %v1394, %v1398
        %v1400 = vmul.f32 %v651, %v1312
        %v1401 = vadd.f32 %v596, %v1400
        %v1402 = vtanh.pop %v1401
        %v1403 = vmul.f32 %v725, %v1402
        %v1404 = vadd.f32 %v1399, %v1403
        %v1405 = vmul.f32 %v656, %v1312
        %v1406 = vadd.f32 %v606, %v1405
        %v1407 = vtanh.pop %v1406
        %v1408 = vmul.f32 %v731, %v1407
        %v1409 = vadd.f32 %v1404, %v1408
        %v1410 = vmul.f32 %v661, %v1312
        %v1411 = vadd.f32 %v616, %v1410
        %v1412 = vtanh.pop %v1411
        %v1413 = vmul.f32 %v737, %v1412
        %v1414 = vadd.f32 %v1409, %v1413
        %v1415 = vmul.f32 %v666, %v1312
        %v1416 = vadd.f32 %v626, %v1415
        %v1417 = vtanh.pop %v1416
        %v1418 = vmul.f32 %v743, %v1417
        %v1419 = vadd.f32 %v1414, %v1418
        %v1420 = vmul.f32 %v1419, 0.05
        %v1421 = vadd.f32 %v1380, %v1420
        %v1422 = vsel %vm1302, %v1421, 0.0
        %vm1423 = vcmp.lt.f32.partialorder %v1367, 0.0
        %vm1424 = vcmp.lt.f32.partialorder %v1422, 0.0
        %v1425 = vmul.f32 %v1306, 0.5
        %v1426 = vsub.f32 %v1310, %v1425
        %v1427 = vsel %vm1423, %v1426, %v1310
        %v1428 = vmul.f32 %v1308, 0.5
        %v1429 = vadd.f32 %v1312, %v1428
        %v1430 = vsel %vm1424, %v1429, %v1312
        %v1431 = vmul.f32 %v546, %v1427
        %v1432 = vadd.f32 %v541, %v1431
        %v1433 = vmul.f32 %v1427, %v1432
        %v1434 = vadd.f32 %v535, %v1433
        %v1435 = vmax.f32 %v1434, 0.0
        %v1436 = vrsqrt.pop %v1435
        %v1437 = vmul.f32 %v1435, %v1436
        %vm1438 = vcmp.eq.f32.partialorder %v1435, inf
        %v1439 = vsel %vm1438, %v1435, %v1437
        %vm1440 = vcmp.eq.f32.partialorder %v1435, 0.0
        %v1441 = vand.u32 %v1435, 2147483648
        %v1442 = vsel %vm1440, %v1441, %v1439
        %v1443 = vsub.f32 %v1442, 0.6
        %v1444 = vmul.f32 %v631, %v1427
        %v1445 = vadd.f32 %v556, %v1444
        %v1446 = vtanh.pop %v1445
        %v1447 = vmul.f32 %v702, %v1446
        %v1448 = vmul.f32 %v636, %v1427
        %v1449 = vadd.f32 %v566, %v1448
        %v1450 = vtanh.pop %v1449
        %v1451 = vmul.f32 %v707, %v1450
        %v1452 = vadd.f32 %v1447, %v1451
        %v1453 = vmul.f32 %v641, %v1427
        %v1454 = vadd.f32 %v576, %v1453
        %v1455 = vtanh.pop %v1454
        %v1456 = vmul.f32 %v713, %v1455
        %v1457 = vadd.f32 %v1452, %v1456
        %v1458 = vmul.f32 %v646, %v1427
        %v1459 = vadd.f32 %v586, %v1458
        %v1460 = vtanh.pop %v1459
        %v1461 = vmul.f32 %v719, %v1460
        %v1462 = vadd.f32 %v1457, %v1461
        %v1463 = vmul.f32 %v651, %v1427
        %v1464 = vadd.f32 %v596, %v1463
        %v1465 = vtanh.pop %v1464
        %v1466 = vmul.f32 %v725, %v1465
        %v1467 = vadd.f32 %v1462, %v1466
        %v1468 = vmul.f32 %v656, %v1427
        %v1469 = vadd.f32 %v606, %v1468
        %v1470 = vtanh.pop %v1469
        %v1471 = vmul.f32 %v731, %v1470
        %v1472 = vadd.f32 %v1467, %v1471
        %v1473 = vmul.f32 %v661, %v1427
        %v1474 = vadd.f32 %v616, %v1473
        %v1475 = vtanh.pop %v1474
        %v1476 = vmul.f32 %v737, %v1475
        %v1477 = vadd.f32 %v1472, %v1476
        %v1478 = vmul.f32 %v666, %v1427
        %v1479 = vadd.f32 %v626, %v1478
        %v1480 = vtanh.pop %v1479
        %v1481 = vmul.f32 %v743, %v1480
        %v1482 = vadd.f32 %v1477, %v1481
        %v1483 = vmul.f32 %v1482, 0.05
        %v1484 = vadd.f32 %v1443, %v1483
        %v1485 = vsel %vm1423, %v1484, %v1367
        %v1486 = vmul.f32 %v546, %v1430
        %v1487 = vadd.f32 %v541, %v1486
        %v1488 = vmul.f32 %v1430, %v1487
        %v1489 = vadd.f32 %v535, %v1488
        %v1490 = vmax.f32 %v1489, 0.0
        %v1491 = vrsqrt.pop %v1490
        %v1492 = vmul.f32 %v1490, %v1491
        %vm1493 = vcmp.eq.f32.partialorder %v1490, inf
        %v1494 = vsel %vm1493, %v1490, %v1492
        %vm1495 = vcmp.eq.f32.partialorder %v1490, 0.0
        %v1496 = vand.u32 %v1490, 2147483648
        %v1497 = vsel %vm1495, %v1496, %v1494
        %v1498 = vsub.f32 %v1497, 0.6
        %v1499 = vmul.f32 %v631, %v1430
        %v1500 = vadd.f32 %v556, %v1499
        %v1501 = vtanh.pop %v1500
        %v1502 = vmul.f32 %v702, %v1501
        %v1503 = vmul.f32 %v636, %v1430
        %v1504 = vadd.f32 %v566, %v1503
        %v1505 = vtanh.pop %v1504
        %v1506 = vmul.f32 %v707, %v1505
        %v1507 = vadd.f32 %v1502, %v1506
        %v1508 = vmul.f32 %v641, %v1430
        %v1509 = vadd.f32 %v576, %v1508
        %v1510 = vtanh.pop %v1509
        %v1511 = vmul.f32 %v713, %v1510
        %v1512 = vadd.f32 %v1507, %v1511
        %v1513 = vmul.f32 %v646, %v1430
        %v1514 = vadd.f32 %v586, %v1513
        %v1515 = vtanh.pop %v1514
        %v1516 = vmul.f32 %v719, %v1515
        %v1517 = vadd.f32 %v1512, %v1516
        %v1518 = vmul.f32 %v651, %v1430
        %v1519 = vadd.f32 %v596, %v1518
        %v1520 = vtanh.pop %v1519
        %v1521 = vmul.f32 %v725, %v1520
        %v1522 = vadd.f32 %v1517, %v1521
        %v1523 = vmul.f32 %v656, %v1430
        %v1524 = vadd.f32 %v606, %v1523
        %v1525 = vtanh.pop %v1524
        %v1526 = vmul.f32 %v731, %v1525
        %v1527 = vadd.f32 %v1522, %v1526
        %v1528 = vmul.f32 %v661, %v1430
        %v1529 = vadd.f32 %v616, %v1528
        %v1530 = vtanh.pop %v1529
        %v1531 = vmul.f32 %v737, %v1530
        %v1532 = vadd.f32 %v1527, %v1531
        %v1533 = vmul.f32 %v666, %v1430
        %v1534 = vadd.f32 %v626, %v1533
        %v1535 = vtanh.pop %v1534
        %v1536 = vmul.f32 %v743, %v1535
        %v1537 = vadd.f32 %v1532, %v1536
        %v1538 = vmul.f32 %v1537, 0.05
        %v1539 = vadd.f32 %v1498, %v1538
        %v1540 = vsel %vm1424, %v1539, %v1422
        %vm1541 = vcmp.lt.f32.partialorder %v1427, %v1430
        %vm1542 = vmand %vm1300, %vm1541
        %vm1543 = vmand %vm1302, %vm1541
        %vm1544 = vcmp.gt.f32.partialorder %v1485, 5e-05
        %vm1545 = vmand %vm1542, %vm1544
        %vm1546 = vcmp.gt.f32.partialorder %v1540, 5e-05
        %vm1547 = vmand %vm1543, %vm1546
        %v1548 = vsel %vm1545, %v1485, 0.0
        %v1549 = vsel %vm1547, %v1540, 0.0
        %v1550 = vmax.f32 %v1548, -0.5
        %v1551 = vmin.f32 %v1550, 0.5
        %v1552 = vmax.f32 %v1549, -0.5
        %v1553 = vmin.f32 %v1552, 0.5
        %v1554 = vmul.f32 %v1551, 1.2
        %v1555 = vadd.f32 %v1427, %v1554
        %v1556 = vmul.f32 %v1553, 1.2
        %v1557 = vsub.f32 %v1430, %v1556
        %v1558 = vmul.f32 %v546, %v1555
        %v1559 = vadd.f32 %v541, %v1558
        %v1560 = vmul.f32 %v1555, %v1559
        %v1561 = vadd.f32 %v535, %v1560
        %v1562 = vmax.f32 %v1561, 0.0
        %v1563 = vrsqrt.pop %v1562
        %v1564 = vmul.f32 %v1562, %v1563
        %vm1565 = vcmp.eq.f32.partialorder %v1562, inf
        %v1566 = vsel %vm1565, %v1562, %v1564
        %vm1567 = vcmp.eq.f32.partialorder %v1562, 0.0
        %v1568 = vand.u32 %v1562, 2147483648
        %v1569 = vsel %vm1567, %v1568, %v1566
        %v1570 = vsub.f32 %v1569, 0.6
        %v1571 = vmul.f32 %v631, %v1555
        %v1572 = vadd.f32 %v556, %v1571
        %v1573 = vtanh.pop %v1572
        %v1574 = vmul.f32 %v702, %v1573
        %v1575 = vmul.f32 %v636, %v1555
        %v1576 = vadd.f32 %v566, %v1575
        %v1577 = vtanh.pop %v1576
        %v1578 = vmul.f32 %v707, %v1577
        %v1579 = vadd.f32 %v1574, %v1578
        %v1580 = vmul.f32 %v641, %v1555
        %v1581 = vadd.f32 %v576, %v1580
        %v1582 = vtanh.pop %v1581
        %v1583 = vmul.f32 %v713, %v1582
        %v1584 = vadd.f32 %v1579, %v1583
        %v1585 = vmul.f32 %v646, %v1555
        %v1586 = vadd.f32 %v586, %v1585
        %v1587 = vtanh.pop %v1586
        %v1588 = vmul.f32 %v719, %v1587
        %v1589 = vadd.f32 %v1584, %v1588
        %v1590 = vmul.f32 %v651, %v1555
        %v1591 = vadd.f32 %v596, %v1590
        %v1592 = vtanh.pop %v1591
        %v1593 = vmul.f32 %v725, %v1592
        %v1594 = vadd.f32 %v1589, %v1593
        %v1595 = vmul.f32 %v656, %v1555
        %v1596 = vadd.f32 %v606, %v1595
        %v1597 = vtanh.pop %v1596
        %v1598 = vmul.f32 %v731, %v1597
        %v1599 = vadd.f32 %v1594, %v1598
        %v1600 = vmul.f32 %v661, %v1555
        %v1601 = vadd.f32 %v616, %v1600
        %v1602 = vtanh.pop %v1601
        %v1603 = vmul.f32 %v737, %v1602
        %v1604 = vadd.f32 %v1599, %v1603
        %v1605 = vmul.f32 %v666, %v1555
        %v1606 = vadd.f32 %v626, %v1605
        %v1607 = vtanh.pop %v1606
        %v1608 = vmul.f32 %v743, %v1607
        %v1609 = vadd.f32 %v1604, %v1608
        %v1610 = vmul.f32 %v1609, 0.05
        %v1611 = vadd.f32 %v1570, %v1610
        %v1612 = vsel %vm1545, %v1611, 0.0
        %v1613 = vmul.f32 %v546, %v1557
        %v1614 = vadd.f32 %v541, %v1613
        %v1615 = vmul.f32 %v1557, %v1614
        %v1616 = vadd.f32 %v535, %v1615
        %v1617 = vmax.f32 %v1616, 0.0
        %v1618 = vrsqrt.pop %v1617
        %v1619 = vmul.f32 %v1617, %v1618
        %vm1620 = vcmp.eq.f32.partialorder %v1617, inf
        %v1621 = vsel %vm1620, %v1617, %v1619
        %vm1622 = vcmp.eq.f32.partialorder %v1617, 0.0
        %v1623 = vand.u32 %v1617, 2147483648
        %v1624 = vsel %vm1622, %v1623, %v1621
        %v1625 = vsub.f32 %v1624, 0.6
        %v1626 = vmul.f32 %v631, %v1557
        %v1627 = vadd.f32 %v556, %v1626
        %v1628 = vtanh.pop %v1627
        %v1629 = vmul.f32 %v702, %v1628
        %v1630 = vmul.f32 %v636, %v1557
        %v1631 = vadd.f32 %v566, %v1630
        %v1632 = vtanh.pop %v1631
        %v1633 = vmul.f32 %v707, %v1632
        %v1634 = vadd.f32 %v1629, %v1633
        %v1635 = vmul.f32 %v641, %v1557
        %v1636 = vadd.f32 %v576, %v1635
        %v1637 = vtanh.pop %v1636
        %v1638 = vmul.f32 %v713, %v1637
        %v1639 = vadd.f32 %v1634, %v1638
        %v1640 = vmul.f32 %v646, %v1557
        %v1641 = vadd.f32 %v586, %v1640
        %v1642 = vtanh.pop %v1641
        %v1643 = vmul.f32 %v719, %v1642
        %v1644 = vadd.f32 %v1639, %v1643
        %v1645 = vmul.f32 %v651, %v1557
        %v1646 = vadd.f32 %v596, %v1645
        %v1647 = vtanh.pop %v1646
        %v1648 = vmul.f32 %v725, %v1647
        %v1649 = vadd.f32 %v1644, %v1648
        %v1650 = vmul.f32 %v656, %v1557
        %v1651 = vadd.f32 %v606, %v1650
        %v1652 = vtanh.pop %v1651
        %v1653 = vmul.f32 %v731, %v1652
        %v1654 = vadd.f32 %v1649, %v1653
        %v1655 = vmul.f32 %v661, %v1557
        %v1656 = vadd.f32 %v616, %v1655
        %v1657 = vtanh.pop %v1656
        %v1658 = vmul.f32 %v737, %v1657
        %v1659 = vadd.f32 %v1654, %v1658
        %v1660 = vmul.f32 %v666, %v1557
        %v1661 = vadd.f32 %v626, %v1660
        %v1662 = vtanh.pop %v1661
        %v1663 = vmul.f32 %v743, %v1662
        %v1664 = vadd.f32 %v1659, %v1663
        %v1665 = vmul.f32 %v1664, 0.05
        %v1666 = vadd.f32 %v1625, %v1665
        %v1667 = vsel %vm1547, %v1666, 0.0
        %vm1668 = vcmp.lt.f32.partialorder %v1612, 0.0
        %vm1669 = vcmp.lt.f32.partialorder %v1667, 0.0
        %v1670 = vmul.f32 %v1551, 0.5
        %v1671 = vsub.f32 %v1555, %v1670
        %v1672 = vsel %vm1668, %v1671, %v1555
        %v1673 = vmul.f32 %v1553, 0.5
        %v1674 = vadd.f32 %v1557, %v1673
        %v1675 = vsel %vm1669, %v1674, %v1557
        %v1676 = vmul.f32 %v546, %v1672
        %v1677 = vadd.f32 %v541, %v1676
        %v1678 = vmul.f32 %v1672, %v1677
        %v1679 = vadd.f32 %v535, %v1678
        %v1680 = vmax.f32 %v1679, 0.0
        %v1681 = vrsqrt.pop %v1680
        %v1682 = vmul.f32 %v1680, %v1681
        %vm1683 = vcmp.eq.f32.partialorder %v1680, inf
        %v1684 = vsel %vm1683, %v1680, %v1682
        %vm1685 = vcmp.eq.f32.partialorder %v1680, 0.0
        %v1686 = vand.u32 %v1680, 2147483648
        %v1687 = vsel %vm1685, %v1686, %v1684
        %v1688 = vsub.f32 %v1687, 0.6
        %v1689 = vmul.f32 %v631, %v1672
        %v1690 = vadd.f32 %v556, %v1689
        %v1691 = vtanh.pop %v1690
        %v1692 = vmul.f32 %v702, %v1691
        %v1693 = vmul.f32 %v636, %v1672
        %v1694 = vadd.f32 %v566, %v1693
        %v1695 = vtanh.pop %v1694
        %v1696 = vmul.f32 %v707, %v1695
        %v1697 = vadd.f32 %v1692, %v1696
        %v1698 = vmul.f32 %v641, %v1672
        %v1699 = vadd.f32 %v576, %v1698
        %v1700 = vtanh.pop %v1699
        %v1701 = vmul.f32 %v713, %v1700
        %v1702 = vadd.f32 %v1697, %v1701
        %v1703 = vmul.f32 %v646, %v1672
        %v1704 = vadd.f32 %v586, %v1703
        %v1705 = vtanh.pop %v1704
        %v1706 = vmul.f32 %v719, %v1705
        %v1707 = vadd.f32 %v1702, %v1706
        %v1708 = vmul.f32 %v651, %v1672
        %v1709 = vadd.f32 %v596, %v1708
        %v1710 = vtanh.pop %v1709
        %v1711 = vmul.f32 %v725, %v1710
        %v1712 = vadd.f32 %v1707, %v1711
        %v1713 = vmul.f32 %v656, %v1672
        %v1714 = vadd.f32 %v606, %v1713
        %v1715 = vtanh.pop %v1714
        %v1716 = vmul.f32 %v731, %v1715
        %v1717 = vadd.f32 %v1712, %v1716
        %v1718 = vmul.f32 %v661, %v1672
        %v1719 = vadd.f32 %v616, %v1718
        %v1720 = vtanh.pop %v1719
        %v1721 = vmul.f32 %v737, %v1720
        %v1722 = vadd.f32 %v1717, %v1721
        %v1723 = vmul.f32 %v666, %v1672
        %v1724 = vadd.f32 %v626, %v1723
        %v1725 = vtanh.pop %v1724
        %v1726 = vmul.f32 %v743, %v1725
        %v1727 = vadd.f32 %v1722, %v1726
        %v1728 = vmul.f32 %v1727, 0.05
        %v1729 = vadd.f32 %v1688, %v1728
        %v1730 = vsel %vm1668, %v1729, %v1612
        %v1731 = vmul.f32 %v546, %v1675
        %v1732 = vadd.f32 %v541, %v1731
        %v1733 = vmul.f32 %v1675, %v1732
        %v1734 = vadd.f32 %v535, %v1733
        %v1735 = vmax.f32 %v1734, 0.0
        %v1736 = vrsqrt.pop %v1735
        %v1737 = vmul.f32 %v1735, %v1736
        %vm1738 = vcmp.eq.f32.partialorder %v1735, inf
        %v1739 = vsel %vm1738, %v1735, %v1737
        %vm1740 = vcmp.eq.f32.partialorder %v1735, 0.0
        %v1741 = vand.u32 %v1735, 2147483648
        %v1742 = vsel %vm1740, %v1741, %v1739
        %v1743 = vsub.f32 %v1742, 0.6
        %v1744 = vmul.f32 %v631, %v1675
        %v1745 = vadd.f32 %v556, %v1744
        %v1746 = vtanh.pop %v1745
        %v1747 = vmul.f32 %v702, %v1746
        %v1748 = vmul.f32 %v636, %v1675
        %v1749 = vadd.f32 %v566, %v1748
        %v1750 = vtanh.pop %v1749
        %v1751 = vmul.f32 %v707, %v1750
        %v1752 = vadd.f32 %v1747, %v1751
        %v1753 = vmul.f32 %v641, %v1675
        %v1754 = vadd.f32 %v576, %v1753
        %v1755 = vtanh.pop %v1754
        %v1756 = vmul.f32 %v713, %v1755
        %v1757 = vadd.f32 %v1752, %v1756
        %v1758 = vmul.f32 %v646, %v1675
        %v1759 = vadd.f32 %v586, %v1758
        %v1760 = vtanh.pop %v1759
        %v1761 = vmul.f32 %v719, %v1760
        %v1762 = vadd.f32 %v1757, %v1761
        %v1763 = vmul.f32 %v651, %v1675
        %v1764 = vadd.f32 %v596, %v1763
        %v1765 = vtanh.pop %v1764
        %v1766 = vmul.f32 %v725, %v1765
        %v1767 = vadd.f32 %v1762, %v1766
        %v1768 = vmul.f32 %v656, %v1675
        %v1769 = vadd.f32 %v606, %v1768
        %v1770 = vtanh.pop %v1769
        %v1771 = vmul.f32 %v731, %v1770
        %v1772 = vadd.f32 %v1767, %v1771
        %v1773 = vmul.f32 %v661, %v1675
        %v1774 = vadd.f32 %v616, %v1773
        %v1775 = vtanh.pop %v1774
        %v1776 = vmul.f32 %v737, %v1775
        %v1777 = vadd.f32 %v1772, %v1776
        %v1778 = vmul.f32 %v666, %v1675
        %v1779 = vadd.f32 %v626, %v1778
        %v1780 = vtanh.pop %v1779
        %v1781 = vmul.f32 %v743, %v1780
        %v1782 = vadd.f32 %v1777, %v1781
        %v1783 = vmul.f32 %v1782, 0.05
        %v1784 = vadd.f32 %v1743, %v1783
        %v1785 = vsel %vm1669, %v1784, %v1667
        %vm1786 = vcmp.lt.f32.partialorder %v1672, %v1675
        %vm1787 = vmand %vm1545, %vm1786
        %vm1788 = vmand %vm1547, %vm1786
        %vm1789 = vcmp.gt.f32.partialorder %v1730, 5e-05
        %vm1790 = vmand %vm1787, %vm1789
        %vm1791 = vcmp.gt.f32.partialorder %v1785, 5e-05
        %vm1792 = vmand %vm1788, %vm1791
        %v1793 = vsel %vm1790, %v1730, 0.0
        %v1794 = vsel %vm1792, %v1785, 0.0
        %v1795 = vmax.f32 %v1793, -0.5
        %v1796 = vmin.f32 %v1795, 0.5
        %v1797 = vmax.f32 %v1794, -0.5
        %v1798 = vmin.f32 %v1797, 0.5
        %v1799 = vmul.f32 %v1796, 1.2
        %v1800 = vadd.f32 %v1672, %v1799
        %v1801 = vmul.f32 %v1798, 1.2
        %v1802 = vsub.f32 %v1675, %v1801
        %v1803 = vmul.f32 %v546, %v1800
        %v1804 = vadd.f32 %v541, %v1803
        %v1805 = vmul.f32 %v1800, %v1804
        %v1806 = vadd.f32 %v535, %v1805
        %v1807 = vmax.f32 %v1806, 0.0
        %v1808 = vrsqrt.pop %v1807
        %v1809 = vmul.f32 %v1807, %v1808
        %vm1810 = vcmp.eq.f32.partialorder %v1807, inf
        %v1811 = vsel %vm1810, %v1807, %v1809
        %vm1812 = vcmp.eq.f32.partialorder %v1807, 0.0
        %v1813 = vand.u32 %v1807, 2147483648
        %v1814 = vsel %vm1812, %v1813, %v1811
        %v1815 = vsub.f32 %v1814, 0.6
        %v1816 = vmul.f32 %v631, %v1800
        %v1817 = vadd.f32 %v556, %v1816
        %v1818 = vtanh.pop %v1817
        %v1819 = vmul.f32 %v702, %v1818
        %v1820 = vmul.f32 %v636, %v1800
        %v1821 = vadd.f32 %v566, %v1820
        %v1822 = vtanh.pop %v1821
        %v1823 = vmul.f32 %v707, %v1822
        %v1824 = vadd.f32 %v1819, %v1823
        %v1825 = vmul.f32 %v641, %v1800
        %v1826 = vadd.f32 %v576, %v1825
        %v1827 = vtanh.pop %v1826
        %v1828 = vmul.f32 %v713, %v1827
        %v1829 = vadd.f32 %v1824, %v1828
        %v1830 = vmul.f32 %v646, %v1800
        %v1831 = vadd.f32 %v586, %v1830
        %v1832 = vtanh.pop %v1831
        %v1833 = vmul.f32 %v719, %v1832
        %v1834 = vadd.f32 %v1829, %v1833
        %v1835 = vmul.f32 %v651, %v1800
        %v1836 = vadd.f32 %v596, %v1835
        %v1837 = vtanh.pop %v1836
        %v1838 = vmul.f32 %v725, %v1837
        %v1839 = vadd.f32 %v1834, %v1838
        %v1840 = vmul.f32 %v656, %v1800
        %v1841 = vadd.f32 %v606, %v1840
        %v1842 = vtanh.pop %v1841
        %v1843 = vmul.f32 %v731, %v1842
        %v1844 = vadd.f32 %v1839, %v1843
        %v1845 = vmul.f32 %v661, %v1800
        %v1846 = vadd.f32 %v616, %v1845
        %v1847 = vtanh.pop %v1846
        %v1848 = vmul.f32 %v737, %v1847
        %v1849 = vadd.f32 %v1844, %v1848
        %v1850 = vmul.f32 %v666, %v1800
        %v1851 = vadd.f32 %v626, %v1850
        %v1852 = vtanh.pop %v1851
        %v1853 = vmul.f32 %v743, %v1852
        %v1854 = vadd.f32 %v1849, %v1853
        %v1855 = vmul.f32 %v1854, 0.05
        %v1856 = vadd.f32 %v1815, %v1855
        %v1857 = vsel %vm1790, %v1856, 0.0
        %v1858 = vmul.f32 %v546, %v1802
        %v1859 = vadd.f32 %v541, %v1858
        %v1860 = vmul.f32 %v1802, %v1859
        %v1861 = vadd.f32 %v535, %v1860
        %v1862 = vmax.f32 %v1861, 0.0
        %v1863 = vrsqrt.pop %v1862
        %v1864 = vmul.f32 %v1862, %v1863
        %vm1865 = vcmp.eq.f32.partialorder %v1862, inf
        %v1866 = vsel %vm1865, %v1862, %v1864
        %vm1867 = vcmp.eq.f32.partialorder %v1862, 0.0
        %v1868 = vand.u32 %v1862, 2147483648
        %v1869 = vsel %vm1867, %v1868, %v1866
        %v1870 = vsub.f32 %v1869, 0.6
        %v1871 = vmul.f32 %v631, %v1802
        %v1872 = vadd.f32 %v556, %v1871
        %v1873 = vtanh.pop %v1872
        %v1874 = vmul.f32 %v702, %v1873
        %v1875 = vmul.f32 %v636, %v1802
        %v1876 = vadd.f32 %v566, %v1875
        %v1877 = vtanh.pop %v1876
        %v1878 = vmul.f32 %v707, %v1877
        %v1879 = vadd.f32 %v1874, %v1878
        %v1880 = vmul.f32 %v641, %v1802
        %v1881 = vadd.f32 %v576, %v1880
        %v1882 = vtanh.pop %v1881
        %v1883 = vmul.f32 %v713, %v1882
        %v1884 = vadd.f32 %v1879, %v1883
        %v1885 = vmul.f32 %v646, %v1802
        %v1886 = vadd.f32 %v586, %v1885
        %v1887 = vtanh.pop %v1886
        %v1888 = vmul.f32 %v719, %v1887
        %v1889 = vadd.f32 %v1884, %v1888
        %v1890 = vmul.f32 %v651, %v1802
        %v1891 = vadd.f32 %v596, %v1890
        %v1892 = vtanh.pop %v1891
        %v1893 = vmul.f32 %v725, %v1892
        %v1894 = vadd.f32 %v1889, %v1893
        %v1895 = vmul.f32 %v656, %v1802
        %v1896 = vadd.f32 %v606, %v1895
        %v1897 = vtanh.pop %v1896
        %v1898 = vmul.f32 %v731, %v1897
        %v1899 = vadd.f32 %v1894, %v1898
        %v1900 = vmul.f32 %v661, %v1802
        %v1901 = vadd.f32 %v616, %v1900
        %v1902 = vtanh.pop %v1901
        %v1903 = vmul.f32 %v737, %v1902
        %v1904 = vadd.f32 %v1899, %v1903
        %v1905 = vmul.f32 %v666, %v1802
        %v1906 = vadd.f32 %v626, %v1905
        %v1907 = vtanh.pop %v1906
        %v1908 = vmul.f32 %v743, %v1907
        %v1909 = vadd.f32 %v1904, %v1908
        %v1910 = vmul.f32 %v1909, 0.05
        %v1911 = vadd.f32 %v1870, %v1910
        %v1912 = vsel %vm1792, %v1911, 0.0
        %vm1913 = vcmp.lt.f32.partialorder %v1857, 0.0
        %vm1914 = vcmp.lt.f32.partialorder %v1912, 0.0
        %v1915 = vmul.f32 %v1796, 0.5
        %v1916 = vsub.f32 %v1800, %v1915
        %v1917 = vsel %vm1913, %v1916, %v1800
        %v1918 = vmul.f32 %v1798, 0.5
        %v1919 = vadd.f32 %v1802, %v1918
        %v1920 = vsel %vm1914, %v1919, %v1802
        %v1921 = vmul.f32 %v546, %v1917
        %v1922 = vadd.f32 %v541, %v1921
        %v1923 = vmul.f32 %v1917, %v1922
        %v1924 = vadd.f32 %v535, %v1923
        %v1925 = vmax.f32 %v1924, 0.0
        %v1926 = vrsqrt.pop %v1925
        %v1927 = vmul.f32 %v1925, %v1926
        %vm1928 = vcmp.eq.f32.partialorder %v1925, inf
        %v1929 = vsel %vm1928, %v1925, %v1927
        %vm1930 = vcmp.eq.f32.partialorder %v1925, 0.0
        %v1931 = vand.u32 %v1925, 2147483648
        %v1932 = vsel %vm1930, %v1931, %v1929
        %v1933 = vsub.f32 %v1932, 0.6
        %v1934 = vmul.f32 %v631, %v1917
        %v1935 = vadd.f32 %v556, %v1934
        %v1936 = vtanh.pop %v1935
        %v1937 = vmul.f32 %v702, %v1936
        %v1938 = vmul.f32 %v636, %v1917
        %v1939 = vadd.f32 %v566, %v1938
        %v1940 = vtanh.pop %v1939
        %v1941 = vmul.f32 %v707, %v1940
        %v1942 = vadd.f32 %v1937, %v1941
        %v1943 = vmul.f32 %v641, %v1917
        %v1944 = vadd.f32 %v576, %v1943
        %v1945 = vtanh.pop %v1944
        %v1946 = vmul.f32 %v713, %v1945
        %v1947 = vadd.f32 %v1942, %v1946
        %v1948 = vmul.f32 %v646, %v1917
        %v1949 = vadd.f32 %v586, %v1948
        %v1950 = vtanh.pop %v1949
        %v1951 = vmul.f32 %v719, %v1950
        %v1952 = vadd.f32 %v1947, %v1951
        %v1953 = vmul.f32 %v651, %v1917
        %v1954 = vadd.f32 %v596, %v1953
        %v1955 = vtanh.pop %v1954
        %v1956 = vmul.f32 %v725, %v1955
        %v1957 = vadd.f32 %v1952, %v1956
        %v1958 = vmul.f32 %v656, %v1917
        %v1959 = vadd.f32 %v606, %v1958
        %v1960 = vtanh.pop %v1959
        %v1961 = vmul.f32 %v731, %v1960
        %v1962 = vadd.f32 %v1957, %v1961
        %v1963 = vmul.f32 %v661, %v1917
        %v1964 = vadd.f32 %v616, %v1963
        %v1965 = vtanh.pop %v1964
        %v1966 = vmul.f32 %v737, %v1965
        %v1967 = vadd.f32 %v1962, %v1966
        %v1968 = vmul.f32 %v666, %v1917
        %v1969 = vadd.f32 %v626, %v1968
        %v1970 = vtanh.pop %v1969
        %v1971 = vmul.f32 %v743, %v1970
        %v1972 = vadd.f32 %v1967, %v1971
        %v1973 = vmul.f32 %v1972, 0.05
        %v1974 = vadd.f32 %v1933, %v1973
        %v1975 = vsel %vm1913, %v1974, %v1857
        %v1976 = vmul.f32 %v546, %v1920
        %v1977 = vadd.f32 %v541, %v1976
        %v1978 = vmul.f32 %v1920, %v1977
        %v1979 = vadd.f32 %v535, %v1978
        %v1980 = vmax.f32 %v1979, 0.0
        %v1981 = vrsqrt.pop %v1980
        %v1982 = vmul.f32 %v1980, %v1981
        %vm1983 = vcmp.eq.f32.partialorder %v1980, inf
        %v1984 = vsel %vm1983, %v1980, %v1982
        %vm1985 = vcmp.eq.f32.partialorder %v1980, 0.0
        %v1986 = vand.u32 %v1980, 2147483648
        %v1987 = vsel %vm1985, %v1986, %v1984
        %v1988 = vsub.f32 %v1987, 0.6
        %v1989 = vmul.f32 %v631, %v1920
        %v1990 = vadd.f32 %v556, %v1989
        %v1991 = vtanh.pop %v1990
        %v1992 = vmul.f32 %v702, %v1991
        %v1993 = vmul.f32 %v636, %v1920
        %v1994 = vadd.f32 %v566, %v1993
        %v1995 = vtanh.pop %v1994
        %v1996 = vmul.f32 %v707, %v1995
        %v1997 = vadd.f32 %v1992, %v1996
        %v1998 = vmul.f32 %v641, %v1920
        %v1999 = vadd.f32 %v576, %v1998
        %v2000 = vtanh.pop %v1999
        %v2001 = vmul.f32 %v713, %v2000
        %v2002 = vadd.f32 %v1997, %v2001
        %v2003 = vmul.f32 %v646, %v1920
        %v2004 = vadd.f32 %v586, %v2003
        %v2005 = vtanh.pop %v2004
        %v2006 = vmul.f32 %v719, %v2005
        %v2007 = vadd.f32 %v2002, %v2006
        %v2008 = vmul.f32 %v651, %v1920
        %v2009 = vadd.f32 %v596, %v2008
        %v2010 = vtanh.pop %v2009
        %v2011 = vmul.f32 %v725, %v2010
        %v2012 = vadd.f32 %v2007, %v2011
        %v2013 = vmul.f32 %v656, %v1920
        %v2014 = vadd.f32 %v606, %v2013
        %v2015 = vtanh.pop %v2014
        %v2016 = vmul.f32 %v731, %v2015
        %v2017 = vadd.f32 %v2012, %v2016
        %v2018 = vmul.f32 %v661, %v1920
        %v2019 = vadd.f32 %v616, %v2018
        %v2020 = vtanh.pop %v2019
        %v2021 = vmul.f32 %v737, %v2020
        %v2022 = vadd.f32 %v2017, %v2021
        %v2023 = vmul.f32 %v666, %v1920
        %v2024 = vadd.f32 %v626, %v2023
        %v2025 = vtanh.pop %v2024
        %v2026 = vmul.f32 %v743, %v2025
        %v2027 = vadd.f32 %v2022, %v2026
        %v2028 = vmul.f32 %v2027, 0.05
        %v2029 = vadd.f32 %v1988, %v2028
        %v2030 = vsel %vm1914, %v2029, %v1912
        %vm2031 = vcmp.lt.f32.partialorder %v1917, %v1920
        %vm2032 = vmand %vm1790, %vm2031
        %vm2033 = vmand %vm1792, %vm2031
        %vm2034 = vcmp.gt.f32.partialorder %v1975, 5e-05
        %vm2035 = vmand %vm2032, %vm2034
        %vm2036 = vcmp.gt.f32.partialorder %v2030, 5e-05
        %vm2037 = vmand %vm2033, %vm2036
        %v2038 = vsel %vm2035, %v1975, 0.0
        %v2039 = vsel %vm2037, %v2030, 0.0
        %v2040 = vmax.f32 %v2038, -0.5
        %v2041 = vmin.f32 %v2040, 0.5
        %v2042 = vmax.f32 %v2039, -0.5
        %v2043 = vmin.f32 %v2042, 0.5
        %v2044 = vmul.f32 %v2041, 1.2
        %v2045 = vadd.f32 %v1917, %v2044
        %v2046 = vmul.f32 %v2043, 1.2
        %v2047 = vsub.f32 %v1920, %v2046
        %v2048 = vmul.f32 %v546, %v2045
        %v2049 = vadd.f32 %v541, %v2048
        %v2050 = vmul.f32 %v2045, %v2049
        %v2051 = vadd.f32 %v535, %v2050
        %v2052 = vmax.f32 %v2051, 0.0
        %v2053 = vrsqrt.pop %v2052
        %v2054 = vmul.f32 %v2052, %v2053
        %vm2055 = vcmp.eq.f32.partialorder %v2052, inf
        %v2056 = vsel %vm2055, %v2052, %v2054
        %vm2057 = vcmp.eq.f32.partialorder %v2052, 0.0
        %v2058 = vand.u32 %v2052, 2147483648
        %v2059 = vsel %vm2057, %v2058, %v2056
        %v2060 = vsub.f32 %v2059, 0.6
        %v2061 = vmul.f32 %v631, %v2045
        %v2062 = vadd.f32 %v556, %v2061
        %v2063 = vtanh.pop %v2062
        %v2064 = vmul.f32 %v702, %v2063
        %v2065 = vmul.f32 %v636, %v2045
        %v2066 = vadd.f32 %v566, %v2065
        %v2067 = vtanh.pop %v2066
        %v2068 = vmul.f32 %v707, %v2067
        %v2069 = vadd.f32 %v2064, %v2068
        %v2070 = vmul.f32 %v641, %v2045
        %v2071 = vadd.f32 %v576, %v2070
        %v2072 = vtanh.pop %v2071
        %v2073 = vmul.f32 %v713, %v2072
        %v2074 = vadd.f32 %v2069, %v2073
        %v2075 = vmul.f32 %v646, %v2045
        %v2076 = vadd.f32 %v586, %v2075
        %v2077 = vtanh.pop %v2076
        %v2078 = vmul.f32 %v719, %v2077
        %v2079 = vadd.f32 %v2074, %v2078
        %v2080 = vmul.f32 %v651, %v2045
        %v2081 = vadd.f32 %v596, %v2080
        %v2082 = vtanh.pop %v2081
        %v2083 = vmul.f32 %v725, %v2082
        %v2084 = vadd.f32 %v2079, %v2083
        %v2085 = vmul.f32 %v656, %v2045
        %v2086 = vadd.f32 %v606, %v2085
        %v2087 = vtanh.pop %v2086
        %v2088 = vmul.f32 %v731, %v2087
        %v2089 = vadd.f32 %v2084, %v2088
        %v2090 = vmul.f32 %v661, %v2045
        %v2091 = vadd.f32 %v616, %v2090
        %v2092 = vtanh.pop %v2091
        %v2093 = vmul.f32 %v737, %v2092
        %v2094 = vadd.f32 %v2089, %v2093
        %v2095 = vmul.f32 %v666, %v2045
        %v2096 = vadd.f32 %v626, %v2095
        %v2097 = vtanh.pop %v2096
        %v2098 = vmul.f32 %v743, %v2097
        %v2099 = vadd.f32 %v2094, %v2098
        %v2100 = vmul.f32 %v2099, 0.05
        %v2101 = vadd.f32 %v2060, %v2100
        %v2102 = vsel %vm2035, %v2101, 0.0
        %v2103 = vmul.f32 %v546, %v2047
        %v2104 = vadd.f32 %v541, %v2103
        %v2105 = vmul.f32 %v2047, %v2104
        %v2106 = vadd.f32 %v535, %v2105
        %v2107 = vmax.f32 %v2106, 0.0
        %v2108 = vrsqrt.pop %v2107
        %v2109 = vmul.f32 %v2107, %v2108
        %vm2110 = vcmp.eq.f32.partialorder %v2107, inf
        %v2111 = vsel %vm2110, %v2107, %v2109
        %vm2112 = vcmp.eq.f32.partialorder %v2107, 0.0
        %v2113 = vand.u32 %v2107, 2147483648
        %v2114 = vsel %vm2112, %v2113, %v2111
        %v2115 = vsub.f32 %v2114, 0.6
        %v2116 = vmul.f32 %v631, %v2047
        %v2117 = vadd.f32 %v556, %v2116
        %v2118 = vtanh.pop %v2117
        %v2119 = vmul.f32 %v702, %v2118
        %v2120 = vmul.f32 %v636, %v2047
        %v2121 = vadd.f32 %v566, %v2120
        %v2122 = vtanh.pop %v2121
        %v2123 = vmul.f32 %v707, %v2122
        %v2124 = vadd.f32 %v2119, %v2123
        %v2125 = vmul.f32 %v641, %v2047
        %v2126 = vadd.f32 %v576, %v2125
        %v2127 = vtanh.pop %v2126
        %v2128 = vmul.f32 %v713, %v2127
        %v2129 = vadd.f32 %v2124, %v2128
        %v2130 = vmul.f32 %v646, %v2047
        %v2131 = vadd.f32 %v586, %v2130
        %v2132 = vtanh.pop %v2131
        %v2133 = vmul.f32 %v719, %v2132
        %v2134 = vadd.f32 %v2129, %v2133
        %v2135 = vmul.f32 %v651, %v2047
        %v2136 = vadd.f32 %v596, %v2135
        %v2137 = vtanh.pop %v2136
        %v2138 = vmul.f32 %v725, %v2137
        %v2139 = vadd.f32 %v2134, %v2138
        %v2140 = vmul.f32 %v656, %v2047
        %v2141 = vadd.f32 %v606, %v2140
        %v2142 = vtanh.pop %v2141
        %v2143 = vmul.f32 %v731, %v2142
        %v2144 = vadd.f32 %v2139, %v2143
        %v2145 = vmul.f32 %v661, %v2047
        %v2146 = vadd.f32 %v616, %v2145
        %v2147 = vtanh.pop %v2146
        %v2148 = vmul.f32 %v737, %v2147
        %v2149 = vadd.f32 %v2144, %v2148
        %v2150 = vmul.f32 %v666, %v2047
        %v2151 = vadd.f32 %v626, %v2150
        %v2152 = vtanh.pop %v2151
        %v2153 = vmul.f32 %v743, %v2152
        %v2154 = vadd.f32 %v2149, %v2153
        %v2155 = vmul.f32 %v2154, 0.05
        %v2156 = vadd.f32 %v2115, %v2155
        %v2157 = vsel %vm2037, %v2156, 0.0
        %vm2158 = vcmp.lt.f32.partialorder %v2102, 0.0
        %vm2159 = vcmp.lt.f32.partialorder %v2157, 0.0
        %v2160 = vmul.f32 %v2041, 0.5
        %v2161 = vsub.f32 %v2045, %v2160
        %v2162 = vsel %vm2158, %v2161, %v2045
        %v2163 = vmul.f32 %v2043, 0.5
        %v2164 = vadd.f32 %v2047, %v2163
        %v2165 = vsel %vm2159, %v2164, %v2047
        %v2166 = vmul.f32 %v546, %v2162
        %v2167 = vadd.f32 %v541, %v2166
        %v2168 = vmul.f32 %v2162, %v2167
        %v2169 = vadd.f32 %v535, %v2168
        %v2170 = vmax.f32 %v2169, 0.0
        %v2171 = vrsqrt.pop %v2170
        %v2172 = vmul.f32 %v2170, %v2171
        %vm2173 = vcmp.eq.f32.partialorder %v2170, inf
        %v2174 = vsel %vm2173, %v2170, %v2172
        %vm2175 = vcmp.eq.f32.partialorder %v2170, 0.0
        %v2176 = vand.u32 %v2170, 2147483648
        %v2177 = vsel %vm2175, %v2176, %v2174
        %v2178 = vsub.f32 %v2177, 0.6
        %v2179 = vmul.f32 %v631, %v2162
        %v2180 = vadd.f32 %v556, %v2179
        %v2181 = vtanh.pop %v2180
        %v2182 = vmul.f32 %v702, %v2181
        %v2183 = vmul.f32 %v636, %v2162
        %v2184 = vadd.f32 %v566, %v2183
        %v2185 = vtanh.pop %v2184
        %v2186 = vmul.f32 %v707, %v2185
        %v2187 = vadd.f32 %v2182, %v2186
        %v2188 = vmul.f32 %v641, %v2162
        %v2189 = vadd.f32 %v576, %v2188
        %v2190 = vtanh.pop %v2189
        %v2191 = vmul.f32 %v713, %v2190
        %v2192 = vadd.f32 %v2187, %v2191
        %v2193 = vmul.f32 %v646, %v2162
        %v2194 = vadd.f32 %v586, %v2193
        %v2195 = vtanh.pop %v2194
        %v2196 = vmul.f32 %v719, %v2195
        %v2197 = vadd.f32 %v2192, %v2196
        %v2198 = vmul.f32 %v651, %v2162
        %v2199 = vadd.f32 %v596, %v2198
        %v2200 = vtanh.pop %v2199
        %v2201 = vmul.f32 %v725, %v2200
        %v2202 = vadd.f32 %v2197, %v2201
        %v2203 = vmul.f32 %v656, %v2162
        %v2204 = vadd.f32 %v606, %v2203
        %v2205 = vtanh.pop %v2204
        %v2206 = vmul.f32 %v731, %v2205
        %v2207 = vadd.f32 %v2202, %v2206
        %v2208 = vmul.f32 %v661, %v2162
        %v2209 = vadd.f32 %v616, %v2208
        %v2210 = vtanh.pop %v2209
        %v2211 = vmul.f32 %v737, %v2210
        %v2212 = vadd.f32 %v2207, %v2211
        %v2213 = vmul.f32 %v666, %v2162
        %v2214 = vadd.f32 %v626, %v2213
        %v2215 = vtanh.pop %v2214
        %v2216 = vmul.f32 %v743, %v2215
        %v2217 = vadd.f32 %v2212, %v2216
        %v2218 = vmul.f32 %v2217, 0.05
        %v2219 = vadd.f32 %v2178, %v2218
        %v2220 = vsel %vm2158, %v2219, %v2102
        %v2221 = vmul.f32 %v546, %v2165
        %v2222 = vadd.f32 %v541, %v2221
        %v2223 = vmul.f32 %v2165, %v2222
        %v2224 = vadd.f32 %v535, %v2223
        %v2225 = vmax.f32 %v2224, 0.0
        %v2226 = vrsqrt.pop %v2225
        %v2227 = vmul.f32 %v2225, %v2226
        %vm2228 = vcmp.eq.f32.partialorder %v2225, inf
        %v2229 = vsel %vm2228, %v2225, %v2227
        %vm2230 = vcmp.eq.f32.partialorder %v2225, 0.0
        %v2231 = vand.u32 %v2225, 2147483648
        %v2232 = vsel %vm2230, %v2231, %v2229
        %v2233 = vsub.f32 %v2232, 0.6
        %v2234 = vmul.f32 %v631, %v2165
        %v2235 = vadd.f32 %v556, %v2234
        %v2236 = vtanh.pop %v2235
        %v2237 = vmul.f32 %v702, %v2236
        %v2238 = vmul.f32 %v636, %v2165
        %v2239 = vadd.f32 %v566, %v2238
        %v2240 = vtanh.pop %v2239
        %v2241 = vmul.f32 %v707, %v2240
        %v2242 = vadd.f32 %v2237, %v2241
        %v2243 = vmul.f32 %v641, %v2165
        %v2244 = vadd.f32 %v576, %v2243
        %v2245 = vtanh.pop %v2244
        %v2246 = vmul.f32 %v713, %v2245
        %v2247 = vadd.f32 %v2242, %v2246
        %v2248 = vmul.f32 %v646, %v2165
        %v2249 = vadd.f32 %v586, %v2248
        %v2250 = vtanh.pop %v2249
        %v2251 = vmul.f32 %v719, %v2250
        %v2252 = vadd.f32 %v2247, %v2251
        %v2253 = vmul.f32 %v651, %v2165
        %v2254 = vadd.f32 %v596, %v2253
        %v2255 = vtanh.pop %v2254
        %v2256 = vmul.f32 %v725, %v2255
        %v2257 = vadd.f32 %v2252, %v2256
        %v2258 = vmul.f32 %v656, %v2165
        %v2259 = vadd.f32 %v606, %v2258
        %v2260 = vtanh.pop %v2259
        %v2261 = vmul.f32 %v731, %v2260
        %v2262 = vadd.f32 %v2257, %v2261
        %v2263 = vmul.f32 %v661, %v2165
        %v2264 = vadd.f32 %v616, %v2263
        %v2265 = vtanh.pop %v2264
        %v2266 = vmul.f32 %v737, %v2265
        %v2267 = vadd.f32 %v2262, %v2266
        %v2268 = vmul.f32 %v666, %v2165
        %v2269 = vadd.f32 %v626, %v2268
        %v2270 = vtanh.pop %v2269
        %v2271 = vmul.f32 %v743, %v2270
        %v2272 = vadd.f32 %v2267, %v2271
        %v2273 = vmul.f32 %v2272, 0.05
        %v2274 = vadd.f32 %v2233, %v2273
        %v2275 = vsel %vm2159, %v2274, %v2157
        %vm2276 = vcmp.lt.f32.partialorder %v2162, %v2165
        %vm2277 = vmand %vm2035, %vm2276
        %vm2278 = vmand %vm2037, %vm2276
        %vm2279 = vcmp.gt.f32.partialorder %v2220, 5e-05
        %vm2280 = vmand %vm2277, %vm2279
        %vm2281 = vcmp.gt.f32.partialorder %v2275, 5e-05
        %vm2282 = vmand %vm2278, %vm2281
        %v2283 = vsel %vm2280, %v2220, 0.0
        %v2284 = vsel %vm2282, %v2275, 0.0
        %v2285 = vmax.f32 %v2283, -0.5
        %v2286 = vmin.f32 %v2285, 0.5
        %v2287 = vmax.f32 %v2284, -0.5
        %v2288 = vmin.f32 %v2287, 0.5
        %v2289 = vmul.f32 %v2286, 1.2
        %v2290 = vadd.f32 %v2162, %v2289
        %v2291 = vmul.f32 %v2288, 1.2
        %v2292 = vsub.f32 %v2165, %v2291
        %v2293 = vmul.f32 %v546, %v2290
        %v2294 = vadd.f32 %v541, %v2293
        %v2295 = vmul.f32 %v2290, %v2294
        %v2296 = vadd.f32 %v535, %v2295
        %v2297 = vmax.f32 %v2296, 0.0
        %v2298 = vrsqrt.pop %v2297
        %v2299 = vmul.f32 %v2297, %v2298
        %vm2300 = vcmp.eq.f32.partialorder %v2297, inf
        %v2301 = vsel %vm2300, %v2297, %v2299
        %vm2302 = vcmp.eq.f32.partialorder %v2297, 0.0
        %v2303 = vand.u32 %v2297, 2147483648
        %v2304 = vsel %vm2302, %v2303, %v2301
        %v2305 = vsub.f32 %v2304, 0.6
        %v2306 = vmul.f32 %v631, %v2290
        %v2307 = vadd.f32 %v556, %v2306
        %v2308 = vtanh.pop %v2307
        %v2309 = vmul.f32 %v702, %v2308
        %v2310 = vmul.f32 %v636, %v2290
        %v2311 = vadd.f32 %v566, %v2310
        %v2312 = vtanh.pop %v2311
        %v2313 = vmul.f32 %v707, %v2312
        %v2314 = vadd.f32 %v2309, %v2313
        %v2315 = vmul.f32 %v641, %v2290
        %v2316 = vadd.f32 %v576, %v2315
        %v2317 = vtanh.pop %v2316
        %v2318 = vmul.f32 %v713, %v2317
        %v2319 = vadd.f32 %v2314, %v2318
        %v2320 = vmul.f32 %v646, %v2290
        %v2321 = vadd.f32 %v586, %v2320
        %v2322 = vtanh.pop %v2321
        %v2323 = vmul.f32 %v719, %v2322
        %v2324 = vadd.f32 %v2319, %v2323
        %v2325 = vmul.f32 %v651, %v2290
        %v2326 = vadd.f32 %v596, %v2325
        %v2327 = vtanh.pop %v2326
        %v2328 = vmul.f32 %v725, %v2327
        %v2329 = vadd.f32 %v2324, %v2328
        %v2330 = vmul.f32 %v656, %v2290
        %v2331 = vadd.f32 %v606, %v2330
        %v2332 = vtanh.pop %v2331
        %v2333 = vmul.f32 %v731, %v2332
        %v2334 = vadd.f32 %v2329, %v2333
        %v2335 = vmul.f32 %v661, %v2290
        %v2336 = vadd.f32 %v616, %v2335
        %v2337 = vtanh.pop %v2336
        %v2338 = vmul.f32 %v737, %v2337
        %v2339 = vadd.f32 %v2334, %v2338
        %v2340 = vmul.f32 %v666, %v2290
        %v2341 = vadd.f32 %v626, %v2340
        %v2342 = vtanh.pop %v2341
        %v2343 = vmul.f32 %v743, %v2342
        %v2344 = vadd.f32 %v2339, %v2343
        %v2345 = vmul.f32 %v2344, 0.05
        %v2346 = vadd.f32 %v2305, %v2345
        %v2347 = vsel %vm2280, %v2346, 0.0
        %v2348 = vmul.f32 %v546, %v2292
        %v2349 = vadd.f32 %v541, %v2348
        %v2350 = vmul.f32 %v2292, %v2349
        %v2351 = vadd.f32 %v535, %v2350
        %v2352 = vmax.f32 %v2351, 0.0
        %v2353 = vrsqrt.pop %v2352
        %v2354 = vmul.f32 %v2352, %v2353
        %vm2355 = vcmp.eq.f32.partialorder %v2352, inf
        %v2356 = vsel %vm2355, %v2352, %v2354
        %vm2357 = vcmp.eq.f32.partialorder %v2352, 0.0
        %v2358 = vand.u32 %v2352, 2147483648
        %v2359 = vsel %vm2357, %v2358, %v2356
        %v2360 = vsub.f32 %v2359, 0.6
        %v2361 = vmul.f32 %v631, %v2292
        %v2362 = vadd.f32 %v556, %v2361
        %v2363 = vtanh.pop %v2362
        %v2364 = vmul.f32 %v702, %v2363
        %v2365 = vmul.f32 %v636, %v2292
        %v2366 = vadd.f32 %v566, %v2365
        %v2367 = vtanh.pop %v2366
        %v2368 = vmul.f32 %v707, %v2367
        %v2369 = vadd.f32 %v2364, %v2368
        %v2370 = vmul.f32 %v641, %v2292
        %v2371 = vadd.f32 %v576, %v2370
        %v2372 = vtanh.pop %v2371
        %v2373 = vmul.f32 %v713, %v2372
        %v2374 = vadd.f32 %v2369, %v2373
        %v2375 = vmul.f32 %v646, %v2292
        %v2376 = vadd.f32 %v586, %v2375
        %v2377 = vtanh.pop %v2376
        %v2378 = vmul.f32 %v719, %v2377
        %v2379 = vadd.f32 %v2374, %v2378
        %v2380 = vmul.f32 %v651, %v2292
        %v2381 = vadd.f32 %v596, %v2380
        %v2382 = vtanh.pop %v2381
        %v2383 = vmul.f32 %v725, %v2382
        %v2384 = vadd.f32 %v2379, %v2383
        %v2385 = vmul.f32 %v656, %v2292
        %v2386 = vadd.f32 %v606, %v2385
        %v2387 = vtanh.pop %v2386
        %v2388 = vmul.f32 %v731, %v2387
        %v2389 = vadd.f32 %v2384, %v2388
        %v2390 = vmul.f32 %v661, %v2292
        %v2391 = vadd.f32 %v616, %v2390
        %v2392 = vtanh.pop %v2391
        %v2393 = vmul.f32 %v737, %v2392
        %v2394 = vadd.f32 %v2389, %v2393
        %v2395 = vmul.f32 %v666, %v2292
        %v2396 = vadd.f32 %v626, %v2395
        %v2397 = vtanh.pop %v2396
        %v2398 = vmul.f32 %v743, %v2397
        %v2399 = vadd.f32 %v2394, %v2398
        %v2400 = vmul.f32 %v2399, 0.05
        %v2401 = vadd.f32 %v2360, %v2400
        %v2402 = vsel %vm2282, %v2401, 0.0
        %vm2403 = vcmp.lt.f32.partialorder %v2347, 0.0
        %vm2404 = vcmp.lt.f32.partialorder %v2402, 0.0
        %v2405 = vmul.f32 %v2286, 0.5
        %v2406 = vsub.f32 %v2290, %v2405
        %v2407 = vsel %vm2403, %v2406, %v2290
        %v2408 = vmul.f32 %v2288, 0.5
        %v2409 = vadd.f32 %v2292, %v2408
        %v2410 = vsel %vm2404, %v2409, %v2292
        %v2411 = vmul.f32 %v546, %v2407
        %v2412 = vadd.f32 %v541, %v2411
        %v2413 = vmul.f32 %v2407, %v2412
        %v2414 = vadd.f32 %v535, %v2413
        %v2415 = vmax.f32 %v2414, 0.0
        %v2416 = vrsqrt.pop %v2415
        %v2417 = vmul.f32 %v2415, %v2416
        %vm2418 = vcmp.eq.f32.partialorder %v2415, inf
        %v2419 = vsel %vm2418, %v2415, %v2417
        %vm2420 = vcmp.eq.f32.partialorder %v2415, 0.0
        %v2421 = vand.u32 %v2415, 2147483648
        %v2422 = vsel %vm2420, %v2421, %v2419
        %v2423 = vsub.f32 %v2422, 0.6
        %v2424 = vmul.f32 %v631, %v2407
        %v2425 = vadd.f32 %v556, %v2424
        %v2426 = vtanh.pop %v2425
        %v2427 = vmul.f32 %v702, %v2426
        %v2428 = vmul.f32 %v636, %v2407
        %v2429 = vadd.f32 %v566, %v2428
        %v2430 = vtanh.pop %v2429
        %v2431 = vmul.f32 %v707, %v2430
        %v2432 = vadd.f32 %v2427, %v2431
        %v2433 = vmul.f32 %v641, %v2407
        %v2434 = vadd.f32 %v576, %v2433
        %v2435 = vtanh.pop %v2434
        %v2436 = vmul.f32 %v713, %v2435
        %v2437 = vadd.f32 %v2432, %v2436
        %v2438 = vmul.f32 %v646, %v2407
        %v2439 = vadd.f32 %v586, %v2438
        %v2440 = vtanh.pop %v2439
        %v2441 = vmul.f32 %v719, %v2440
        %v2442 = vadd.f32 %v2437, %v2441
        %v2443 = vmul.f32 %v651, %v2407
        %v2444 = vadd.f32 %v596, %v2443
        %v2445 = vtanh.pop %v2444
        %v2446 = vmul.f32 %v725, %v2445
        %v2447 = vadd.f32 %v2442, %v2446
        %v2448 = vmul.f32 %v656, %v2407
        %v2449 = vadd.f32 %v606, %v2448
        %v2450 = vtanh.pop %v2449
        %v2451 = vmul.f32 %v731, %v2450
        %v2452 = vadd.f32 %v2447, %v2451
        %v2453 = vmul.f32 %v661, %v2407
        %v2454 = vadd.f32 %v616, %v2453
        %v2455 = vtanh.pop %v2454
        %v2456 = vmul.f32 %v737, %v2455
        %v2457 = vadd.f32 %v2452, %v2456
        %v2458 = vmul.f32 %v666, %v2407
        %v2459 = vadd.f32 %v626, %v2458
        %v2460 = vtanh.pop %v2459
        %v2461 = vmul.f32 %v743, %v2460
        %v2462 = vadd.f32 %v2457, %v2461
        %v2463 = vmul.f32 %v2462, 0.05
        %v2464 = vadd.f32 %v2423, %v2463
        %v2465 = vsel %vm2403, %v2464, %v2347
        %v2466 = vmul.f32 %v546, %v2410
        %v2467 = vadd.f32 %v541, %v2466
        %v2468 = vmul.f32 %v2410, %v2467
        %v2469 = vadd.f32 %v535, %v2468
        %v2470 = vmax.f32 %v2469, 0.0
        %v2471 = vrsqrt.pop %v2470
        %v2472 = vmul.f32 %v2470, %v2471
        %vm2473 = vcmp.eq.f32.partialorder %v2470, inf
        %v2474 = vsel %vm2473, %v2470, %v2472
        %vm2475 = vcmp.eq.f32.partialorder %v2470, 0.0
        %v2476 = vand.u32 %v2470, 2147483648
        %v2477 = vsel %vm2475, %v2476, %v2474
        %v2478 = vsub.f32 %v2477, 0.6
        %v2479 = vmul.f32 %v631, %v2410
        %v2480 = vadd.f32 %v556, %v2479
        %v2481 = vtanh.pop %v2480
        %v2482 = vmul.f32 %v702, %v2481
        %v2483 = vmul.f32 %v636, %v2410
        %v2484 = vadd.f32 %v566, %v2483
        %v2485 = vtanh.pop %v2484
        %v2486 = vmul.f32 %v707, %v2485
        %v2487 = vadd.f32 %v2482, %v2486
        %v2488 = vmul.f32 %v641, %v2410
        %v2489 = vadd.f32 %v576, %v2488
        %v2490 = vtanh.pop %v2489
        %v2491 = vmul.f32 %v713, %v2490
        %v2492 = vadd.f32 %v2487, %v2491
        %v2493 = vmul.f32 %v646, %v2410
        %v2494 = vadd.f32 %v586, %v2493
        %v2495 = vtanh.pop %v2494
        %v2496 = vmul.f32 %v719, %v2495
        %v2497 = vadd.f32 %v2492, %v2496
        %v2498 = vmul.f32 %v651, %v2410
        %v2499 = vadd.f32 %v596, %v2498
        %v2500 = vtanh.pop %v2499
        %v2501 = vmul.f32 %v725, %v2500
        %v2502 = vadd.f32 %v2497, %v2501
        %v2503 = vmul.f32 %v656, %v2410
        %v2504 = vadd.f32 %v606, %v2503
        %v2505 = vtanh.pop %v2504
        %v2506 = vmul.f32 %v731, %v2505
        %v2507 = vadd.f32 %v2502, %v2506
        %v2508 = vmul.f32 %v661, %v2410
        %v2509 = vadd.f32 %v616, %v2508
        %v2510 = vtanh.pop %v2509
        %v2511 = vmul.f32 %v737, %v2510
        %v2512 = vadd.f32 %v2507, %v2511
        %v2513 = vmul.f32 %v666, %v2410
        %v2514 = vadd.f32 %v626, %v2513
        %v2515 = vtanh.pop %v2514
        %v2516 = vmul.f32 %v743, %v2515
        %v2517 = vadd.f32 %v2512, %v2516
        %v2518 = vmul.f32 %v2517, 0.05
        %v2519 = vadd.f32 %v2478, %v2518
        %v2520 = vsel %vm2404, %v2519, %v2402
        %vm2521 = vcmp.lt.f32.partialorder %v2407, %v2410
        %vm2522 = vmand %vm2280, %vm2521
        %vm2523 = vmand %vm2282, %vm2521
        %vm2524 = vcmp.gt.f32.partialorder %v2465, 5e-05
        %vm2525 = vmand %vm2522, %vm2524
        %vm2526 = vcmp.gt.f32.partialorder %v2520, 5e-05
        %vm2527 = vmand %vm2523, %vm2526
        %v2528 = vsel %vm2525, %v2465, 0.0
        %v2529 = vsel %vm2527, %v2520, 0.0
        %v2530 = vmax.f32 %v2528, -0.5
        %v2531 = vmin.f32 %v2530, 0.5
        %v2532 = vmax.f32 %v2529, -0.5
        %v2533 = vmin.f32 %v2532, 0.5
        %v2534 = vmul.f32 %v2531, 1.2
        %v2535 = vadd.f32 %v2407, %v2534
        %v2536 = vmul.f32 %v2533, 1.2
        %v2537 = vsub.f32 %v2410, %v2536
        %v2538 = vmul.f32 %v546, %v2535
        %v2539 = vadd.f32 %v541, %v2538
        %v2540 = vmul.f32 %v2535, %v2539
        %v2541 = vadd.f32 %v535, %v2540
        %v2542 = vmax.f32 %v2541, 0.0
        %v2543 = vrsqrt.pop %v2542
        %v2544 = vmul.f32 %v2542, %v2543
        %vm2545 = vcmp.eq.f32.partialorder %v2542, inf
        %v2546 = vsel %vm2545, %v2542, %v2544
        %vm2547 = vcmp.eq.f32.partialorder %v2542, 0.0
        %v2548 = vand.u32 %v2542, 2147483648
        %v2549 = vsel %vm2547, %v2548, %v2546
        %v2550 = vsub.f32 %v2549, 0.6
        %v2551 = vmul.f32 %v631, %v2535
        %v2552 = vadd.f32 %v556, %v2551
        %v2553 = vtanh.pop %v2552
        %v2554 = vmul.f32 %v702, %v2553
        %v2555 = vmul.f32 %v636, %v2535
        %v2556 = vadd.f32 %v566, %v2555
        %v2557 = vtanh.pop %v2556
        %v2558 = vmul.f32 %v707, %v2557
        %v2559 = vadd.f32 %v2554, %v2558
        %v2560 = vmul.f32 %v641, %v2535
        %v2561 = vadd.f32 %v576, %v2560
        %v2562 = vtanh.pop %v2561
        %v2563 = vmul.f32 %v713, %v2562
        %v2564 = vadd.f32 %v2559, %v2563
        %v2565 = vmul.f32 %v646, %v2535
        %v2566 = vadd.f32 %v586, %v2565
        %v2567 = vtanh.pop %v2566
        %v2568 = vmul.f32 %v719, %v2567
        %v2569 = vadd.f32 %v2564, %v2568
        %v2570 = vmul.f32 %v651, %v2535
        %v2571 = vadd.f32 %v596, %v2570
        %v2572 = vtanh.pop %v2571
        %v2573 = vmul.f32 %v725, %v2572
        %v2574 = vadd.f32 %v2569, %v2573
        %v2575 = vmul.f32 %v656, %v2535
        %v2576 = vadd.f32 %v606, %v2575
        %v2577 = vtanh.pop %v2576
        %v2578 = vmul.f32 %v731, %v2577
        %v2579 = vadd.f32 %v2574, %v2578
        %v2580 = vmul.f32 %v661, %v2535
        %v2581 = vadd.f32 %v616, %v2580
        %v2582 = vtanh.pop %v2581
        %v2583 = vmul.f32 %v737, %v2582
        %v2584 = vadd.f32 %v2579, %v2583
        %v2585 = vmul.f32 %v666, %v2535
        %v2586 = vadd.f32 %v626, %v2585
        %v2587 = vtanh.pop %v2586
        %v2588 = vmul.f32 %v743, %v2587
        %v2589 = vadd.f32 %v2584, %v2588
        %v2590 = vmul.f32 %v2589, 0.05
        %v2591 = vadd.f32 %v2550, %v2590
        %v2592 = vsel %vm2525, %v2591, 0.0
        %v2593 = vmul.f32 %v546, %v2537
        %v2594 = vadd.f32 %v541, %v2593
        %v2595 = vmul.f32 %v2537, %v2594
        %v2596 = vadd.f32 %v535, %v2595
        %v2597 = vmax.f32 %v2596, 0.0
        %v2598 = vrsqrt.pop %v2597
        %v2599 = vmul.f32 %v2597, %v2598
        %vm2600 = vcmp.eq.f32.partialorder %v2597, inf
        %v2601 = vsel %vm2600, %v2597, %v2599
        %vm2602 = vcmp.eq.f32.partialorder %v2597, 0.0
        %v2603 = vand.u32 %v2597, 2147483648
        %v2604 = vsel %vm2602, %v2603, %v2601
        %v2605 = vsub.f32 %v2604, 0.6
        %v2606 = vmul.f32 %v631, %v2537
        %v2607 = vadd.f32 %v556, %v2606
        %v2608 = vtanh.pop %v2607
        %v2609 = vmul.f32 %v702, %v2608
        %v2610 = vmul.f32 %v636, %v2537
        %v2611 = vadd.f32 %v566, %v2610
        %v2612 = vtanh.pop %v2611
        %v2613 = vmul.f32 %v707, %v2612
        %v2614 = vadd.f32 %v2609, %v2613
        %v2615 = vmul.f32 %v641, %v2537
        %v2616 = vadd.f32 %v576, %v2615
        %v2617 = vtanh.pop %v2616
        %v2618 = vmul.f32 %v713, %v2617
        %v2619 = vadd.f32 %v2614, %v2618
        %v2620 = vmul.f32 %v646, %v2537
        %v2621 = vadd.f32 %v586, %v2620
        %v2622 = vtanh.pop %v2621
        %v2623 = vmul.f32 %v719, %v2622
        %v2624 = vadd.f32 %v2619, %v2623
        %v2625 = vmul.f32 %v651, %v2537
        %v2626 = vadd.f32 %v596, %v2625
        %v2627 = vtanh.pop %v2626
        %v2628 = vmul.f32 %v725, %v2627
        %v2629 = vadd.f32 %v2624, %v2628
        %v2630 = vmul.f32 %v656, %v2537
        %v2631 = vadd.f32 %v606, %v2630
        %v2632 = vtanh.pop %v2631
        %v2633 = vmul.f32 %v731, %v2632
        %v2634 = vadd.f32 %v2629, %v2633
        %v2635 = vmul.f32 %v661, %v2537
        %v2636 = vadd.f32 %v616, %v2635
        %v2637 = vtanh.pop %v2636
        %v2638 = vmul.f32 %v737, %v2637
        %v2639 = vadd.f32 %v2634, %v2638
        %v2640 = vmul.f32 %v666, %v2537
        %v2641 = vadd.f32 %v626, %v2640
        %v2642 = vtanh.pop %v2641
        %v2643 = vmul.f32 %v743, %v2642
        %v2644 = vadd.f32 %v2639, %v2643
        %v2645 = vmul.f32 %v2644, 0.05
        %v2646 = vadd.f32 %v2605, %v2645
        %v2647 = vsel %vm2527, %v2646, 0.0
        %vm2648 = vcmp.lt.f32.partialorder %v2592, 0.0
        %vm2649 = vcmp.lt.f32.partialorder %v2647, 0.0
        %v2650 = vmul.f32 %v2531, 0.5
        %v2651 = vsub.f32 %v2535, %v2650
        %v2652 = vsel %vm2648, %v2651, %v2535
        %v2653 = vmul.f32 %v2533, 0.5
        %v2654 = vadd.f32 %v2537, %v2653
        %v2655 = vsel %vm2649, %v2654, %v2537
        %v2656 = vmul.f32 %v546, %v2652
        %v2657 = vadd.f32 %v541, %v2656
        %v2658 = vmul.f32 %v2652, %v2657
        %v2659 = vadd.f32 %v535, %v2658
        %v2660 = vmax.f32 %v2659, 0.0
        %v2661 = vrsqrt.pop %v2660
        %v2662 = vmul.f32 %v2660, %v2661
        %vm2663 = vcmp.eq.f32.partialorder %v2660, inf
        %v2664 = vsel %vm2663, %v2660, %v2662
        %vm2665 = vcmp.eq.f32.partialorder %v2660, 0.0
        %v2666 = vand.u32 %v2660, 2147483648
        %v2667 = vsel %vm2665, %v2666, %v2664
        %v2668 = vsub.f32 %v2667, 0.6
        %v2669 = vmul.f32 %v631, %v2652
        %v2670 = vadd.f32 %v556, %v2669
        %v2671 = vtanh.pop %v2670
        %v2672 = vmul.f32 %v702, %v2671
        %v2673 = vmul.f32 %v636, %v2652
        %v2674 = vadd.f32 %v566, %v2673
        %v2675 = vtanh.pop %v2674
        %v2676 = vmul.f32 %v707, %v2675
        %v2677 = vadd.f32 %v2672, %v2676
        %v2678 = vmul.f32 %v641, %v2652
        %v2679 = vadd.f32 %v576, %v2678
        %v2680 = vtanh.pop %v2679
        %v2681 = vmul.f32 %v713, %v2680
        %v2682 = vadd.f32 %v2677, %v2681
        %v2683 = vmul.f32 %v646, %v2652
        %v2684 = vadd.f32 %v586, %v2683
        %v2685 = vtanh.pop %v2684
        %v2686 = vmul.f32 %v719, %v2685
        %v2687 = vadd.f32 %v2682, %v2686
        %v2688 = vmul.f32 %v651, %v2652
        %v2689 = vadd.f32 %v596, %v2688
        %v2690 = vtanh.pop %v2689
        %v2691 = vmul.f32 %v725, %v2690
        %v2692 = vadd.f32 %v2687, %v2691
        %v2693 = vmul.f32 %v656, %v2652
        %v2694 = vadd.f32 %v606, %v2693
        %v2695 = vtanh.pop %v2694
        %v2696 = vmul.f32 %v731, %v2695
        %v2697 = vadd.f32 %v2692, %v2696
        %v2698 = vmul.f32 %v661, %v2652
        %v2699 = vadd.f32 %v616, %v2698
        %v2700 = vtanh.pop %v2699
        %v2701 = vmul.f32 %v737, %v2700
        %v2702 = vadd.f32 %v2697, %v2701
        %v2703 = vmul.f32 %v666, %v2652
        %v2704 = vadd.f32 %v626, %v2703
        %v2705 = vtanh.pop %v2704
        %v2706 = vmul.f32 %v743, %v2705
        %v2707 = vadd.f32 %v2702, %v2706
        %v2708 = vmul.f32 %v2707, 0.05
        %v2709 = vadd.f32 %v2668, %v2708
        %v2710 = vsel %vm2648, %v2709, %v2592
        %v2711 = vmul.f32 %v546, %v2655
        %v2712 = vadd.f32 %v541, %v2711
        %v2713 = vmul.f32 %v2655, %v2712
        %v2714 = vadd.f32 %v535, %v2713
        %v2715 = vmax.f32 %v2714, 0.0
        %v2716 = vrsqrt.pop %v2715
        %v2717 = vmul.f32 %v2715, %v2716
        %vm2718 = vcmp.eq.f32.partialorder %v2715, inf
        %v2719 = vsel %vm2718, %v2715, %v2717
        %vm2720 = vcmp.eq.f32.partialorder %v2715, 0.0
        %v2721 = vand.u32 %v2715, 2147483648
        %v2722 = vsel %vm2720, %v2721, %v2719
        %v2723 = vsub.f32 %v2722, 0.6
        %v2724 = vmul.f32 %v631, %v2655
        %v2725 = vadd.f32 %v556, %v2724
        %v2726 = vtanh.pop %v2725
        %v2727 = vmul.f32 %v702, %v2726
        %v2728 = vmul.f32 %v636, %v2655
        %v2729 = vadd.f32 %v566, %v2728
        %v2730 = vtanh.pop %v2729
        %v2731 = vmul.f32 %v707, %v2730
        %v2732 = vadd.f32 %v2727, %v2731
        %v2733 = vmul.f32 %v641, %v2655
        %v2734 = vadd.f32 %v576, %v2733
        %v2735 = vtanh.pop %v2734
        %v2736 = vmul.f32 %v713, %v2735
        %v2737 = vadd.f32 %v2732, %v2736
        %v2738 = vmul.f32 %v646, %v2655
        %v2739 = vadd.f32 %v586, %v2738
        %v2740 = vtanh.pop %v2739
        %v2741 = vmul.f32 %v719, %v2740
        %v2742 = vadd.f32 %v2737, %v2741
        %v2743 = vmul.f32 %v651, %v2655
        %v2744 = vadd.f32 %v596, %v2743
        %v2745 = vtanh.pop %v2744
        %v2746 = vmul.f32 %v725, %v2745
        %v2747 = vadd.f32 %v2742, %v2746
        %v2748 = vmul.f32 %v656, %v2655
        %v2749 = vadd.f32 %v606, %v2748
        %v2750 = vtanh.pop %v2749
        %v2751 = vmul.f32 %v731, %v2750
        %v2752 = vadd.f32 %v2747, %v2751
        %v2753 = vmul.f32 %v661, %v2655
        %v2754 = vadd.f32 %v616, %v2753
        %v2755 = vtanh.pop %v2754
        %v2756 = vmul.f32 %v737, %v2755
        %v2757 = vadd.f32 %v2752, %v2756
        %v2758 = vmul.f32 %v666, %v2655
        %v2759 = vadd.f32 %v626, %v2758
        %v2760 = vtanh.pop %v2759
        %v2761 = vmul.f32 %v743, %v2760
        %v2762 = vadd.f32 %v2757, %v2761
        %v2763 = vmul.f32 %v2762, 0.05
        %v2764 = vadd.f32 %v2723, %v2763
        %v2765 = vsel %vm2649, %v2764, %v2647
        %vm2766 = vcmp.lt.f32.partialorder %v2652, %v2655
        %vm2767 = vmand %vm2525, %vm2766
        %vm2768 = vmand %vm2527, %vm2766
        %vm2769 = vcmp.gt.f32.partialorder %v2710, 5e-05
        %vm2770 = vmand %vm2767, %vm2769
        %vm2771 = vcmp.gt.f32.partialorder %v2765, 5e-05
        %vm2772 = vmand %vm2768, %vm2771
        %v2773 = vsel %vm2770, %v2710, 0.0
        %v2774 = vsel %vm2772, %v2765, 0.0
        %v2775 = vmax.f32 %v2773, -0.5
        %v2776 = vmin.f32 %v2775, 0.5
        %v2777 = vmax.f32 %v2774, -0.5
        %v2778 = vmin.f32 %v2777, 0.5
        %v2779 = vmul.f32 %v2776, 1.2
        %v2780 = vadd.f32 %v2652, %v2779
        %v2781 = vmul.f32 %v2778, 1.2
        %v2782 = vsub.f32 %v2655, %v2781
        %v2783 = vmul.f32 %v546, %v2780
        %v2784 = vadd.f32 %v541, %v2783
        %v2785 = vmul.f32 %v2780, %v2784
        %v2786 = vadd.f32 %v535, %v2785
        %v2787 = vmax.f32 %v2786, 0.0
        %v2788 = vrsqrt.pop %v2787
        %v2789 = vmul.f32 %v2787, %v2788
        %vm2790 = vcmp.eq.f32.partialorder %v2787, inf
        %v2791 = vsel %vm2790, %v2787, %v2789
        %vm2792 = vcmp.eq.f32.partialorder %v2787, 0.0
        %v2793 = vand.u32 %v2787, 2147483648
        %v2794 = vsel %vm2792, %v2793, %v2791
        %v2795 = vsub.f32 %v2794, 0.6
        %v2796 = vmul.f32 %v631, %v2780
        %v2797 = vadd.f32 %v556, %v2796
        %v2798 = vtanh.pop %v2797
        %v2799 = vmul.f32 %v702, %v2798
        %v2800 = vmul.f32 %v636, %v2780
        %v2801 = vadd.f32 %v566, %v2800
        %v2802 = vtanh.pop %v2801
        %v2803 = vmul.f32 %v707, %v2802
        %v2804 = vadd.f32 %v2799, %v2803
        %v2805 = vmul.f32 %v641, %v2780
        %v2806 = vadd.f32 %v576, %v2805
        %v2807 = vtanh.pop %v2806
        %v2808 = vmul.f32 %v713, %v2807
        %v2809 = vadd.f32 %v2804, %v2808
        %v2810 = vmul.f32 %v646, %v2780
        %v2811 = vadd.f32 %v586, %v2810
        %v2812 = vtanh.pop %v2811
        %v2813 = vmul.f32 %v719, %v2812
        %v2814 = vadd.f32 %v2809, %v2813
        %v2815 = vmul.f32 %v651, %v2780
        %v2816 = vadd.f32 %v596, %v2815
        %v2817 = vtanh.pop %v2816
        %v2818 = vmul.f32 %v725, %v2817
        %v2819 = vadd.f32 %v2814, %v2818
        %v2820 = vmul.f32 %v656, %v2780
        %v2821 = vadd.f32 %v606, %v2820
        %v2822 = vtanh.pop %v2821
        %v2823 = vmul.f32 %v731, %v2822
        %v2824 = vadd.f32 %v2819, %v2823
        %v2825 = vmul.f32 %v661, %v2780
        %v2826 = vadd.f32 %v616, %v2825
        %v2827 = vtanh.pop %v2826
        %v2828 = vmul.f32 %v737, %v2827
        %v2829 = vadd.f32 %v2824, %v2828
        %v2830 = vmul.f32 %v666, %v2780
        %v2831 = vadd.f32 %v626, %v2830
        %v2832 = vtanh.pop %v2831
        %v2833 = vmul.f32 %v743, %v2832
        %v2834 = vadd.f32 %v2829, %v2833
        %v2835 = vmul.f32 %v2834, 0.05
        %v2836 = vadd.f32 %v2795, %v2835
        %v2837 = vsel %vm2770, %v2836, 0.0
        %v2838 = vmul.f32 %v546, %v2782
        %v2839 = vadd.f32 %v541, %v2838
        %v2840 = vmul.f32 %v2782, %v2839
        %v2841 = vadd.f32 %v535, %v2840
        %v2842 = vmax.f32 %v2841, 0.0
        %v2843 = vrsqrt.pop %v2842
        %v2844 = vmul.f32 %v2842, %v2843
        %vm2845 = vcmp.eq.f32.partialorder %v2842, inf
        %v2846 = vsel %vm2845, %v2842, %v2844
        %vm2847 = vcmp.eq.f32.partialorder %v2842, 0.0
        %v2848 = vand.u32 %v2842, 2147483648
        %v2849 = vsel %vm2847, %v2848, %v2846
        %v2850 = vsub.f32 %v2849, 0.6
        %v2851 = vmul.f32 %v631, %v2782
        %v2852 = vadd.f32 %v556, %v2851
        %v2853 = vtanh.pop %v2852
        %v2854 = vmul.f32 %v702, %v2853
        %v2855 = vmul.f32 %v636, %v2782
        %v2856 = vadd.f32 %v566, %v2855
        %v2857 = vtanh.pop %v2856
        %v2858 = vmul.f32 %v707, %v2857
        %v2859 = vadd.f32 %v2854, %v2858
        %v2860 = vmul.f32 %v641, %v2782
        %v2861 = vadd.f32 %v576, %v2860
        %v2862 = vtanh.pop %v2861
        %v2863 = vmul.f32 %v713, %v2862
        %v2864 = vadd.f32 %v2859, %v2863
        %v2865 = vmul.f32 %v646, %v2782
        %v2866 = vadd.f32 %v586, %v2865
        %v2867 = vtanh.pop %v2866
        %v2868 = vmul.f32 %v719, %v2867
        %v2869 = vadd.f32 %v2864, %v2868
        %v2870 = vmul.f32 %v651, %v2782
        %v2871 = vadd.f32 %v596, %v2870
        %v2872 = vtanh.pop %v2871
        %v2873 = vmul.f32 %v725, %v2872
        %v2874 = vadd.f32 %v2869, %v2873
        %v2875 = vmul.f32 %v656, %v2782
        %v2876 = vadd.f32 %v606, %v2875
        %v2877 = vtanh.pop %v2876
        %v2878 = vmul.f32 %v731, %v2877
        %v2879 = vadd.f32 %v2874, %v2878
        %v2880 = vmul.f32 %v661, %v2782
        %v2881 = vadd.f32 %v616, %v2880
        %v2882 = vtanh.pop %v2881
        %v2883 = vmul.f32 %v737, %v2882
        %v2884 = vadd.f32 %v2879, %v2883
        %v2885 = vmul.f32 %v666, %v2782
        %v2886 = vadd.f32 %v626, %v2885
        %v2887 = vtanh.pop %v2886
        %v2888 = vmul.f32 %v743, %v2887
        %v2889 = vadd.f32 %v2884, %v2888
        %v2890 = vmul.f32 %v2889, 0.05
        %v2891 = vadd.f32 %v2850, %v2890
        %v2892 = vsel %vm2772, %v2891, 0.0
        %vm2893 = vcmp.lt.f32.partialorder %v2837, 0.0
        %vm2894 = vcmp.lt.f32.partialorder %v2892, 0.0
        %v2895 = vmul.f32 %v2776, 0.5
        %v2896 = vsub.f32 %v2780, %v2895
        %v2897 = vsel %vm2893, %v2896, %v2780
        %v2898 = vmul.f32 %v2778, 0.5
        %v2899 = vadd.f32 %v2782, %v2898
        %v2900 = vsel %vm2894, %v2899, %v2782
        %v2901 = vmul.f32 %v546, %v2897
        %v2902 = vadd.f32 %v541, %v2901
        %v2903 = vmul.f32 %v2897, %v2902
        %v2904 = vadd.f32 %v535, %v2903
        %v2905 = vmax.f32 %v2904, 0.0
        %v2906 = vrsqrt.pop %v2905
        %v2907 = vmul.f32 %v2905, %v2906
        %vm2908 = vcmp.eq.f32.partialorder %v2905, inf
        %v2909 = vsel %vm2908, %v2905, %v2907
        %vm2910 = vcmp.eq.f32.partialorder %v2905, 0.0
        %v2911 = vand.u32 %v2905, 2147483648
        %v2912 = vsel %vm2910, %v2911, %v2909
        %v2913 = vsub.f32 %v2912, 0.6
        %v2914 = vmul.f32 %v631, %v2897
        %v2915 = vadd.f32 %v556, %v2914
        %v2916 = vtanh.pop %v2915
        %v2917 = vmul.f32 %v702, %v2916
        %v2918 = vmul.f32 %v636, %v2897
        %v2919 = vadd.f32 %v566, %v2918
        %v2920 = vtanh.pop %v2919
        %v2921 = vmul.f32 %v707, %v2920
        %v2922 = vadd.f32 %v2917, %v2921
        %v2923 = vmul.f32 %v641, %v2897
        %v2924 = vadd.f32 %v576, %v2923
        %v2925 = vtanh.pop %v2924
        %v2926 = vmul.f32 %v713, %v2925
        %v2927 = vadd.f32 %v2922, %v2926
        %v2928 = vmul.f32 %v646, %v2897
        %v2929 = vadd.f32 %v586, %v2928
        %v2930 = vtanh.pop %v2929
        %v2931 = vmul.f32 %v719, %v2930
        %v2932 = vadd.f32 %v2927, %v2931
        %v2933 = vmul.f32 %v651, %v2897
        %v2934 = vadd.f32 %v596, %v2933
        %v2935 = vtanh.pop %v2934
        %v2936 = vmul.f32 %v725, %v2935
        %v2937 = vadd.f32 %v2932, %v2936
        %v2938 = vmul.f32 %v656, %v2897
        %v2939 = vadd.f32 %v606, %v2938
        %v2940 = vtanh.pop %v2939
        %v2941 = vmul.f32 %v731, %v2940
        %v2942 = vadd.f32 %v2937, %v2941
        %v2943 = vmul.f32 %v661, %v2897
        %v2944 = vadd.f32 %v616, %v2943
        %v2945 = vtanh.pop %v2944
        %v2946 = vmul.f32 %v737, %v2945
        %v2947 = vadd.f32 %v2942, %v2946
        %v2948 = vmul.f32 %v666, %v2897
        %v2949 = vadd.f32 %v626, %v2948
        %v2950 = vtanh.pop %v2949
        %v2951 = vmul.f32 %v743, %v2950
        %v2952 = vadd.f32 %v2947, %v2951
        %v2953 = vmul.f32 %v2952, 0.05
        %v2954 = vadd.f32 %v2913, %v2953
        %v2955 = vsel %vm2893, %v2954, %v2837
        %v2956 = vmul.f32 %v546, %v2900
        %v2957 = vadd.f32 %v541, %v2956
        %v2958 = vmul.f32 %v2900, %v2957
        %v2959 = vadd.f32 %v535, %v2958
        %v2960 = vmax.f32 %v2959, 0.0
        %v2961 = vrsqrt.pop %v2960
        %v2962 = vmul.f32 %v2960, %v2961
        %vm2963 = vcmp.eq.f32.partialorder %v2960, inf
        %v2964 = vsel %vm2963, %v2960, %v2962
        %vm2965 = vcmp.eq.f32.partialorder %v2960, 0.0
        %v2966 = vand.u32 %v2960, 2147483648
        %v2967 = vsel %vm2965, %v2966, %v2964
        %v2968 = vsub.f32 %v2967, 0.6
        %v2969 = vmul.f32 %v631, %v2900
        %v2970 = vadd.f32 %v556, %v2969
        %v2971 = vtanh.pop %v2970
        %v2972 = vmul.f32 %v702, %v2971
        %v2973 = vmul.f32 %v636, %v2900
        %v2974 = vadd.f32 %v566, %v2973
        %v2975 = vtanh.pop %v2974
        %v2976 = vmul.f32 %v707, %v2975
        %v2977 = vadd.f32 %v2972, %v2976
        %v2978 = vmul.f32 %v641, %v2900
        %v2979 = vadd.f32 %v576, %v2978
        %v2980 = vtanh.pop %v2979
        %v2981 = vmul.f32 %v713, %v2980
        %v2982 = vadd.f32 %v2977, %v2981
        %v2983 = vmul.f32 %v646, %v2900
        %v2984 = vadd.f32 %v586, %v2983
        %v2985 = vtanh.pop %v2984
        %v2986 = vmul.f32 %v719, %v2985
        %v2987 = vadd.f32 %v2982, %v2986
        %v2988 = vmul.f32 %v651, %v2900
        %v2989 = vadd.f32 %v596, %v2988
        %v2990 = vtanh.pop %v2989
        %v2991 = vmul.f32 %v725, %v2990
        %v2992 = vadd.f32 %v2987, %v2991
        %v2993 = vmul.f32 %v656, %v2900
        %v2994 = vadd.f32 %v606, %v2993
        %v2995 = vtanh.pop %v2994
        %v2996 = vmul.f32 %v731, %v2995
        %v2997 = vadd.f32 %v2992, %v2996
        %v2998 = vmul.f32 %v661, %v2900
        %v2999 = vadd.f32 %v616, %v2998
        %v3000 = vtanh.pop %v2999
        %v3001 = vmul.f32 %v737, %v3000
        %v3002 = vadd.f32 %v2997, %v3001
        %v3003 = vmul.f32 %v666, %v2900
        %v3004 = vadd.f32 %v626, %v3003
        %v3005 = vtanh.pop %v3004
        %v3006 = vmul.f32 %v743, %v3005
        %v3007 = vadd.f32 %v3002, %v3006
        %v3008 = vmul.f32 %v3007, 0.05
        %v3009 = vadd.f32 %v2968, %v3008
        %v3010 = vsel %vm2894, %v3009, %v2892
        %vm3011 = vcmp.lt.f32.partialorder %v2897, %v2900
        %vm3012 = vmand %vm2770, %vm3011
        %vm3013 = vmand %vm2772, %vm3011
        %vm3014 = vcmp.gt.f32.partialorder %v2955, 5e-05
        %vm3015 = vmand %vm3012, %vm3014
        %vm3016 = vcmp.gt.f32.partialorder %v3010, 5e-05
        %vm3017 = vmand %vm3013, %vm3016
        %v3018 = vsel %vm3015, %v2955, 0.0
        %v3019 = vsel %vm3017, %v3010, 0.0
        %v3020 = vmax.f32 %v3018, -0.5
        %v3021 = vmin.f32 %v3020, 0.5
        %v3022 = vmax.f32 %v3019, -0.5
        %v3023 = vmin.f32 %v3022, 0.5
        %v3024 = vmul.f32 %v3021, 1.2
        %v3025 = vadd.f32 %v2897, %v3024
        %v3026 = vmul.f32 %v3023, 1.2
        %v3027 = vsub.f32 %v2900, %v3026
        %v3028 = vmul.f32 %v546, %v3025
        %v3029 = vadd.f32 %v541, %v3028
        %v3030 = vmul.f32 %v3025, %v3029
        %v3031 = vadd.f32 %v535, %v3030
        %v3032 = vmax.f32 %v3031, 0.0
        %v3033 = vrsqrt.pop %v3032
        %v3034 = vmul.f32 %v3032, %v3033
        %vm3035 = vcmp.eq.f32.partialorder %v3032, inf
        %v3036 = vsel %vm3035, %v3032, %v3034
        %vm3037 = vcmp.eq.f32.partialorder %v3032, 0.0
        %v3038 = vand.u32 %v3032, 2147483648
        %v3039 = vsel %vm3037, %v3038, %v3036
        %v3040 = vsub.f32 %v3039, 0.6
        %v3041 = vmul.f32 %v631, %v3025
        %v3042 = vadd.f32 %v556, %v3041
        %v3043 = vtanh.pop %v3042
        %v3044 = vmul.f32 %v702, %v3043
        %v3045 = vmul.f32 %v636, %v3025
        %v3046 = vadd.f32 %v566, %v3045
        %v3047 = vtanh.pop %v3046
        %v3048 = vmul.f32 %v707, %v3047
        %v3049 = vadd.f32 %v3044, %v3048
        %v3050 = vmul.f32 %v641, %v3025
        %v3051 = vadd.f32 %v576, %v3050
        %v3052 = vtanh.pop %v3051
        %v3053 = vmul.f32 %v713, %v3052
        %v3054 = vadd.f32 %v3049, %v3053
        %v3055 = vmul.f32 %v646, %v3025
        %v3056 = vadd.f32 %v586, %v3055
        %v3057 = vtanh.pop %v3056
        %v3058 = vmul.f32 %v719, %v3057
        %v3059 = vadd.f32 %v3054, %v3058
        %v3060 = vmul.f32 %v651, %v3025
        %v3061 = vadd.f32 %v596, %v3060
        %v3062 = vtanh.pop %v3061
        %v3063 = vmul.f32 %v725, %v3062
        %v3064 = vadd.f32 %v3059, %v3063
        %v3065 = vmul.f32 %v656, %v3025
        %v3066 = vadd.f32 %v606, %v3065
        %v3067 = vtanh.pop %v3066
        %v3068 = vmul.f32 %v731, %v3067
        %v3069 = vadd.f32 %v3064, %v3068
        %v3070 = vmul.f32 %v661, %v3025
        %v3071 = vadd.f32 %v616, %v3070
        %v3072 = vtanh.pop %v3071
        %v3073 = vmul.f32 %v737, %v3072
        %v3074 = vadd.f32 %v3069, %v3073
        %v3075 = vmul.f32 %v666, %v3025
        %v3076 = vadd.f32 %v626, %v3075
        %v3077 = vtanh.pop %v3076
        %v3078 = vmul.f32 %v743, %v3077
        %v3079 = vadd.f32 %v3074, %v3078
        %v3080 = vmul.f32 %v3079, 0.05
        %v3081 = vadd.f32 %v3040, %v3080
        %v3082 = vsel %vm3015, %v3081, 0.0
        %v3083 = vmul.f32 %v546, %v3027
        %v3084 = vadd.f32 %v541, %v3083
        %v3085 = vmul.f32 %v3027, %v3084
        %v3086 = vadd.f32 %v535, %v3085
        %v3087 = vmax.f32 %v3086, 0.0
        %v3088 = vrsqrt.pop %v3087
        %v3089 = vmul.f32 %v3087, %v3088
        %vm3090 = vcmp.eq.f32.partialorder %v3087, inf
        %v3091 = vsel %vm3090, %v3087, %v3089
        %vm3092 = vcmp.eq.f32.partialorder %v3087, 0.0
        %v3093 = vand.u32 %v3087, 2147483648
        %v3094 = vsel %vm3092, %v3093, %v3091
        %v3095 = vsub.f32 %v3094, 0.6
        %v3096 = vmul.f32 %v631, %v3027
        %v3097 = vadd.f32 %v556, %v3096
        %v3098 = vtanh.pop %v3097
        %v3099 = vmul.f32 %v702, %v3098
        %v3100 = vmul.f32 %v636, %v3027
        %v3101 = vadd.f32 %v566, %v3100
        %v3102 = vtanh.pop %v3101
        %v3103 = vmul.f32 %v707, %v3102
        %v3104 = vadd.f32 %v3099, %v3103
        %v3105 = vmul.f32 %v641, %v3027
        %v3106 = vadd.f32 %v576, %v3105
        %v3107 = vtanh.pop %v3106
        %v3108 = vmul.f32 %v713, %v3107
        %v3109 = vadd.f32 %v3104, %v3108
        %v3110 = vmul.f32 %v646, %v3027
        %v3111 = vadd.f32 %v586, %v3110
        %v3112 = vtanh.pop %v3111
        %v3113 = vmul.f32 %v719, %v3112
        %v3114 = vadd.f32 %v3109, %v3113
        %v3115 = vmul.f32 %v651, %v3027
        %v3116 = vadd.f32 %v596, %v3115
        %v3117 = vtanh.pop %v3116
        %v3118 = vmul.f32 %v725, %v3117
        %v3119 = vadd.f32 %v3114, %v3118
        %v3120 = vmul.f32 %v656, %v3027
        %v3121 = vadd.f32 %v606, %v3120
        %v3122 = vtanh.pop %v3121
        %v3123 = vmul.f32 %v731, %v3122
        %v3124 = vadd.f32 %v3119, %v3123
        %v3125 = vmul.f32 %v661, %v3027
        %v3126 = vadd.f32 %v616, %v3125
        %v3127 = vtanh.pop %v3126
        %v3128 = vmul.f32 %v737, %v3127
        %v3129 = vadd.f32 %v3124, %v3128
        %v3130 = vmul.f32 %v666, %v3027
        %v3131 = vadd.f32 %v626, %v3130
        %v3132 = vtanh.pop %v3131
        %v3133 = vmul.f32 %v743, %v3132
        %v3134 = vadd.f32 %v3129, %v3133
        %v3135 = vmul.f32 %v3134, 0.05
        %v3136 = vadd.f32 %v3095, %v3135
        %v3137 = vsel %vm3017, %v3136, 0.0
        %vm3138 = vcmp.lt.f32.partialorder %v3082, 0.0
        %vm3139 = vcmp.lt.f32.partialorder %v3137, 0.0
        %v3140 = vmul.f32 %v3021, 0.5
        %v3141 = vsub.f32 %v3025, %v3140
        %v3142 = vsel %vm3138, %v3141, %v3025
        %v3143 = vmul.f32 %v3023, 0.5
        %v3144 = vadd.f32 %v3027, %v3143
        %v3145 = vsel %vm3139, %v3144, %v3027
        %v3146 = vmul.f32 %v546, %v3142
        %v3147 = vadd.f32 %v541, %v3146
        %v3148 = vmul.f32 %v3142, %v3147
        %v3149 = vadd.f32 %v535, %v3148
        %v3150 = vmax.f32 %v3149, 0.0
        %v3151 = vrsqrt.pop %v3150
        %v3152 = vmul.f32 %v3150, %v3151
        %vm3153 = vcmp.eq.f32.partialorder %v3150, inf
        %v3154 = vsel %vm3153, %v3150, %v3152
        %vm3155 = vcmp.eq.f32.partialorder %v3150, 0.0
        %v3156 = vand.u32 %v3150, 2147483648
        %v3157 = vsel %vm3155, %v3156, %v3154
        %v3158 = vsub.f32 %v3157, 0.6
        %v3159 = vmul.f32 %v631, %v3142
        %v3160 = vadd.f32 %v556, %v3159
        %v3161 = vtanh.pop %v3160
        %v3162 = vmul.f32 %v702, %v3161
        %v3163 = vmul.f32 %v636, %v3142
        %v3164 = vadd.f32 %v566, %v3163
        %v3165 = vtanh.pop %v3164
        %v3166 = vmul.f32 %v707, %v3165
        %v3167 = vadd.f32 %v3162, %v3166
        %v3168 = vmul.f32 %v641, %v3142
        %v3169 = vadd.f32 %v576, %v3168
        %v3170 = vtanh.pop %v3169
        %v3171 = vmul.f32 %v713, %v3170
        %v3172 = vadd.f32 %v3167, %v3171
        %v3173 = vmul.f32 %v646, %v3142
        %v3174 = vadd.f32 %v586, %v3173
        %v3175 = vtanh.pop %v3174
        %v3176 = vmul.f32 %v719, %v3175
        %v3177 = vadd.f32 %v3172, %v3176
        %v3178 = vmul.f32 %v651, %v3142
        %v3179 = vadd.f32 %v596, %v3178
        %v3180 = vtanh.pop %v3179
        %v3181 = vmul.f32 %v725, %v3180
        %v3182 = vadd.f32 %v3177, %v3181
        %v3183 = vmul.f32 %v656, %v3142
        %v3184 = vadd.f32 %v606, %v3183
        %v3185 = vtanh.pop %v3184
        %v3186 = vmul.f32 %v731, %v3185
        %v3187 = vadd.f32 %v3182, %v3186
        %v3188 = vmul.f32 %v661, %v3142
        %v3189 = vadd.f32 %v616, %v3188
        %v3190 = vtanh.pop %v3189
        %v3191 = vmul.f32 %v737, %v3190
        %v3192 = vadd.f32 %v3187, %v3191
        %v3193 = vmul.f32 %v666, %v3142
        %v3194 = vadd.f32 %v626, %v3193
        %v3195 = vtanh.pop %v3194
        %v3196 = vmul.f32 %v743, %v3195
        %v3197 = vadd.f32 %v3192, %v3196
        %v3198 = vmul.f32 %v3197, 0.05
        %v3199 = vadd.f32 %v3158, %v3198
        %v3200 = vsel %vm3138, %v3199, %v3082
        %vm3201 = vcmp.lt.f32.partialorder %v3142, %v3145
        %vm3202 = vmand %vm3015, %vm3201
        %vm3203 = vcmp.gt.f32.partialorder %v3200, 5e-05
        %vm3204 = vmand %vm3202, %vm3203
        %vm3205 = vmxor %vm806, 1
        %vm3206 = vmand %vm3201, %vm3205
        %v3207 = vmul.f32 %v3142, %v526
        %v3208 = vadd.f32 %v521, %v3207
        %3209 = vst [vmem:[%s459] sm:$0xff] %v3208
        %v3210 = vmul.f32 %v3142, %v528
        %v3211 = vadd.f32 %v523, %v3210
        %s3212 = scalar_lea.vmem %s459, 8 [#allocation10]
        %3213 = vst [vmem:[%s3212] sm:$0xff] %v3211
        %v3214 = vmul.f32 %v3142, %v530
        %v3215 = vadd.f32 %v525, %v3214
        %s3216 = scalar_lea.vmem %s459, 16 [#allocation10]
        %3217 = vst [vmem:[%s3216] sm:$0xff] %v3215
        %3218 = vst [vmem:[%s472] sm:$0xff] %v3142
        %v3219 = vsel %vm3206, 1, 0
        %v3220 = vsel %vm670, 1, 0
        %v3221 = vmul.u32 %v3220, 2
        %v3222 = vadd.s32 %v3219, %v3221
        %v3223 = vsel %vm810, 1, 0
        %v3224 = vmul.u32 %v3223, 4
        %v3225 = vadd.s32 %v3222, %v3224
        %3226 = vst [vmem:[%s480] sm:$0xff] %v3225
        %v3227 = vsel %vm3204, 1, 0
        %v3228 = vand.u32 %v3227, 65535
        %v3229 = vshra.s32 %v3227, 16
        %v3230 = vcvt.s32.f32 %v3228
        %v3231 = vcvt.s32.f32 %v3229
        %3232 = vmax.xlane.f32.xlu0 %v3231
        %v3233 = vpop.xlane.xlu0 %3232
        %vm3234 = vcmp.eq.f32.partialorder %v3231, %v3233
        %v3235 = vsel %vm3234, %v3230, -inf
        %3236 = vmax.xlane.f32.xlu0 %v3235
        %v3237 = vpop.xlane.xlu0 %3236
        %v3238 = vcvt.f32.s32 %v3237
        %v3239 = vcvt.f32.s32 %v3233
        %v3240 = vshll.u32 %v3239, 16
        %v3241 = vadd.s32 %v3240, %v3238
        %v3242 = vrot.slane %v3241, 4
        %vm3243 = vcmp.gt.s32.totalorder %v3241, %v3242
        %v3244 = vsel %vm3243, %v3241, %v3242
        %v3245 = vrot.slane %v3244, 2
        %vm3246 = vcmp.gt.s32.totalorder %v3244, %v3245
        %v3247 = vsel %vm3246, %v3244, %v3245
        %v3248 = vrot.slane %v3247, 1
        %vm3249 = vcmp.gt.s32.totalorder %v3247, %v3248
        %v3250 = vsel %vm3249, %v3247, %v3248
        %s3251 = vtos %v3250
        %p3252 = scmp.gt.s32.totalorder %s3251, 0
        // Predicated region
        $region133: #{ray_tracing_forward.1} parent=111 // pred_check
          %p3253 = pneg %p3252
        $region134: #{ray_tracing_forward.1} parent=111 // pred_check_branch
          %3255 = sbr.rel (%p3253) target = $region136
        $region135: #{ray_tracing_forward.1} parent=111 // pred_region
          %v3256 = vsub.f32 %v3145, %v3142
          %v3257 = vmul.f32 %v3256, 0.01010101
          loop: start=0, step=1, limit=100
          $region137: #{ray_tracing_forward.1} parent=135 // loop_pre_header
            _
          $region138: #{ray_tracing_forward.1} parent=135 // loop_header
            %s3259 = sphi 0, %s3263
            %p3260 = scmp.ge.s32.totalorder %s3259, 100
            %v3264 = vphi inf, %v3337
            %v3265 = vphi 0, %v3339
            %v3266 = vphi 0.0, %v3340
            %v3267 = vphi 0.0, %v3341
            %v3268 = vphi inf, %v3343
            %v3269 = vphi 0, %v3344
            %v3270 = vphi 0.0, %v3328
          $region139: #{ray_tracing_forward.1} parent=135 // loop_header_branch
            %3262 = sbr.rel (%p3260) target = $region143
          $region140: #{ray_tracing_forward.1} parent=135 // loop_body
            %s3271 = scvt.s32.f32 %s3259
            %v3272 = vstv %s3271
            %v3273 = vmul.f32 %v3272, %v3257
            %v3274 = vadd.f32 %v3142, %v3273
            %v3275 = vmul.f32 %v546, %v3274
            %v3276 = vadd.f32 %v541, %v3275
            %v3277 = vmul.f32 %v3274, %v3276
            %v3278 = vadd.f32 %v535, %v3277
            %v3279 = vmax.f32 %v3278, 0.0
            %v3280 = vrsqrt.pop %v3279
            %v3281 = vmul.f32 %v3279, %v3280
            %vm3282 = vcmp.eq.f32.partialorder %v3279, inf
            %v3283 = vsel %vm3282, %v3279, %v3281
            %vm3284 = vcmp.eq.f32.partialorder %v3279, 0.0
            %v3285 = vand.u32 %v3279, 2147483648
            %v3286 = vsel %vm3284, %v3285, %v3283
            %v3287 = vsub.f32 %v3286, 0.6
            %v3288 = vmul.f32 %v631, %v3274
            %v3289 = vadd.f32 %v556, %v3288
            %v3290 = vtanh.pop %v3289
            %v3291 = vmul.f32 %v702, %v3290
            %v3292 = vmul.f32 %v636, %v3274
            %v3293 = vadd.f32 %v566, %v3292
            %v3294 = vtanh.pop %v3293
            %v3295 = vmul.f32 %v707, %v3294
            %v3296 = vadd.f32 %v3291, %v3295
            %v3297 = vmul.f32 %v641, %v3274
            %v3298 = vadd.f32 %v576, %v3297
            %v3299 = vtanh.pop %v3298
            %v3300 = vmul.f32 %v713, %v3299
            %v3301 = vadd.f32 %v3296, %v3300
            %v3302 = vmul.f32 %v646, %v3274
            %v3303 = vadd.f32 %v586, %v3302
            %v3304 = vtanh.pop %v3303
            %v3305 = vmul.f32 %v719, %v3304
            %v3306 = vadd.f32 %v3301, %v3305
            %v3307 = vmul.f32 %v651, %v3274
            %v3308 = vadd.f32 %v596, %v3307
            %v3309 = vtanh.pop %v3308
            %v3310 = vmul.f32 %v725, %v3309
            %v3311 = vadd.f32 %v3306, %v3310
            %v3312 = vmul.f32 %v656, %v3274
            %v3313 = vadd.f32 %v606, %v3312
            %v3314 = vtanh.pop %v3313
            %v3315 = vmul.f32 %v731, %v3314
            %v3316 = vadd.f32 %v3311, %v3315
            %v3317 = vmul.f32 %v661, %v3274
            %v3318 = vadd.f32 %v616, %v3317
            %v3319 = vtanh.pop %v3318
            %v3320 = vmul.f32 %v737, %v3319
            %v3321 = vadd.f32 %v3316, %v3320
            %v3322 = vmul.f32 %v666, %v3274
            %v3323 = vadd.f32 %v626, %v3322
            %v3324 = vtanh.pop %v3323
            %v3325 = vmul.f32 %v743, %v3324
            %v3326 = vadd.f32 %v3321, %v3325
            %v3327 = vmul.f32 %v3326, 0.05
            %v3328 = vadd.f32 %v3287, %v3327
            %s3329 = ssub.f32 100.0, %s3271
            %vm3330 = vcmp.gt.f32.partialorder %v3328, 0.0
            %vm3331 = vcmp.lt.f32.partialorder %v3328, 0.0
            %v3332 = vsel %vm3331, -1.0, 0.0
            %v3333 = vsel %vm3330, 1.0, %v3332
            %v3334 = vstv %s3329
            %v3335 = vmul.f32 %v3333, %v3334
            %vm3336 = vcmp.lt.f32.partialorder %v3335, %v3264
            %v3337 = vsel %vm3336, %v3335, %v3264
            %v3338 = vstv %s3259
            %v3339 = vsel %vm3336, %v3338, %v3265
            %v3340 = vsel %vm3336, %v3328, %v3266
            %v3341 = vsel %vm3336, %v3270, %v3267
            %vm3342 = vcmp.lt.f32.partialorder %v3328, %v3268
            %v3343 = vsel %vm3342, %v3328, %v3268
            %v3344 = vsel %vm3342, %v3338, %v3269
          $region141: #{ray_tracing_forward.1} parent=135 // loop_footer
            %s3263 = sadd.s32 1, %s3259
          $region142: #{ray_tracing_forward.1} parent=135 // loop_footer_branch
            %3258 = sbr.rel target = $region138
          $region143: #{ray_tracing_forward.1} parent=135 // loop_exit
            _
          %v3345 = vcvt.s32.f32 %v3265
          %v3346 = vmul.f32 %v3345, %v3257
          %v3347 = vadd.f32 %v3142, %v3346
          %v3348 = vld [vmem:[%s476] sm:$0xff]
          %vm3349 = vcmp.ne.s32.totalorder %v3348, 0
          %vm3350 = vcmp.lt.f32.partialorder %v3266, 0.0
          %vm3351 = vmand %vm3349, %vm3350
          %vm3352 = vmxor %vm3351, 1
          %v3353 = vcvt.s32.f32 %v3269
          %v3354 = vmul.f32 %v3353, %v3257
          %v3355 = vadd.f32 %v3142, %v3354
          %vm3356 = vcmp.eq.s32.totalorder %v3265, 0
          %v3357 = vsub.s32 %v3265, 1
          %v3358 = vsel %vm3356, 99, %v3357
          %v3359 = vcvt.s32.f32 %v3358
          %v3360 = vmul.f32 %v3359, %v3257
          %v3361 = vadd.f32 %v3142, %v3360
          %v3362 = vsel %vm3356, %v3270, %v3267
          %v3363 = vsub.f32 %v3266, %v3362
          %vm3364 = vcmp.ne.f32.partialorder %v3363, 0.0
          %v3365 = vsel %vm3364, %v3363, 1.0
          %v3366 = vrcp.pop %v3365
          %v3367 = vsub.f32 %v3347, %v3361
          %v3368 = vmul.f32 %v3362, %v3367
          %v3369 = vmul.f32 %v3368, %v3366
          %v3370 = vsub.f32 %v3361, %v3369
          %v3371 = vsel %vm3364, %v3370, %v3361
          %v3372 = vmul.f32 %v546, %v3371
          %v3373 = vadd.f32 %v541, %v3372
          %v3374 = vmul.f32 %v3371, %v3373
          %v3375 = vadd.f32 %v535, %v3374
          %v3376 = vmax.f32 %v3375, 0.0
          %v3377 = vrsqrt.pop %v3376
          %v3378 = vmul.f32 %v3376, %v3377
          %vm3379 = vcmp.eq.f32.partialorder %v3376, inf
          %v3380 = vsel %vm3379, %v3376, %v3378
          %vm3381 = vcmp.eq.f32.partialorder %v3376, 0.0
          %v3382 = vand.u32 %v3376, 2147483648
          %v3383 = vsel %vm3381, %v3382, %v3380
          %v3384 = vsub.f32 %v3383, 0.6
          %v3385 = vmul.f32 %v631, %v3371
          %v3386 = vadd.f32 %v556, %v3385
          %v3387 = vtanh.pop %v3386
          %v3388 = vmul.f32 %v702, %v3387
          %v3389 = vmul.f32 %v636, %v3371
          %v3390 = vadd.f32 %v566, %v3389
          %v3391 = vtanh.pop %v3390
          %v3392 = vmul.f32 %v707, %v3391
          %v3393 = vadd.f32 %v3388, %v3392
          %v3394 = vmul.f32 %v641, %v3371
          %v3395 = vadd.f32 %v576, %v3394
          %v3396 = vtanh.pop %v3395
          %v3397 = vmul.f32 %v713, %v3396
          %v3398 = vadd.f32 %v3393, %v3397
          %v3399 = vmul.f32 %v646, %v3371
          %v3400 = vadd.f32 %v586, %v3399
          %v3401 = vtanh.pop %v3400
          %v3402 = vmul.f32 %v719, %v3401
          %v3403 = vadd.f32 %v3398, %v3402
          %v3404 = vmul.f32 %v651, %v3371
          %v3405 = vadd.f32 %v596, %v3404
          %v3406 = vtanh.pop %v3405
          %v3407 = vmul.f32 %v725, %v3406
          %v3408 = vadd.f32 %v3403, %v3407
          %v3409 = vmul.f32 %v656, %v3371
          %v3410 = vadd.f32 %v606, %v3409
          %v3411 = vtanh.pop %v3410
          %v3412 = vmul.f32 %v731, %v3411
          %v3413 = vadd.f32 %v3408, %v3412
          %v3414 = vmul.f32 %v661, %v3371
          %v3415 = vadd.f32 %v616, %v3414
          %v3416 = vtanh.pop %v3415
          %v3417 = vmul.f32 %v737, %v3416
          %v3418 = vadd.f32 %v3413, %v3417
          %v3419 = vmul.f32 %v666, %v3371
          %v3420 = vadd.f32 %v626, %v3419
          %v3421 = vtanh.pop %v3420
          %v3422 = vmul.f32 %v743, %v3421
          %v3423 = vadd.f32 %v3418, %v3422
          %v3424 = vmul.f32 %v3423, 0.05
          %v3425 = vadd.f32 %v3384, %v3424
          %vm3426 = vcmp.gt.f32.partialorder %v3425, 0.0
          %vm3427 = vcmp.lt.f32.partialorder %v3425, 0.0
          %v3428 = vsel %vm3426, %v3371, %v3361
          %v3429 = vsel %vm3426, %v3425, %v3362
          %v3430 = vsel %vm3427, %v3371, %v3347
          %v3431 = vsel %vm3427, %v3425, %v3266
          %v3432 = vsub.f32 %v3431, %v3429
          %vm3433 = vcmp.ne.f32.partialorder %v3432, 0.0
          %v3434 = vsel %vm3433, %v3432, 1.0
          %v3435 = vrcp.pop %v3434
          %v3436 = vsub.f32 %v3430, %v3428
          %v3437 = vmul.f32 %v3429, %v3436
          %v3438 = vmul.f32 %v3437, %v3435
          %v3439 = vsub.f32 %v3428, %v3438
          %v3440 = vsel %vm3433, %v3439, %v3428
          %v3441 = vmul.f32 %v546, %v3440
          %v3442 = vadd.f32 %v541, %v3441
          %v3443 = vmul.f32 %v3440, %v3442
          %v3444 = vadd.f32 %v535, %v3443
          %v3445 = vmax.f32 %v3444, 0.0
          %v3446 = vrsqrt.pop %v3445
          %v3447 = vmul.f32 %v3445, %v3446
          %vm3448 = vcmp.eq.f32.partialorder %v3445, inf
          %v3449 = vsel %vm3448, %v3445, %v3447
          %vm3450 = vcmp.eq.f32.partialorder %v3445, 0.0
          %v3451 = vand.u32 %v3445, 2147483648
          %v3452 = vsel %vm3450, %v3451, %v3449
          %v3453 = vsub.f32 %v3452, 0.6
          %v3454 = vmul.f32 %v631, %v3440
          %v3455 = vadd.f32 %v556, %v3454
          %v3456 = vtanh.pop %v3455
          %v3457 = vmul.f32 %v702, %v3456
          %v3458 = vmul.f32 %v636, %v3440
          %v3459 = vadd.f32 %v566, %v3458
          %v3460 = vtanh.pop %v3459
          %v3461 = vmul.f32 %v707, %v3460
          %v3462 = vadd.f32 %v3457, %v3461
          %v3463 = vmul.f32 %v641, %v3440
          %v3464 = vadd.f32 %v576, %v3463
          %v3465 = vtanh.pop %v3464
          %v3466 = vmul.f32 %v713, %v3465
          %v3467 = vadd.f32 %v3462, %v3466
          %v3468 = vmul.f32 %v646, %v3440
          %v3469 = vadd.f32 %v586, %v3468
          %v3470 = vtanh.pop %v3469
          %v3471 = vmul.f32 %v719, %v3470
          %v3472 = vadd.f32 %v3467, %v3471
          %v3473 = vmul.f32 %v651, %v3440
          %v3474 = vadd.f32 %v596, %v3473
          %v3475 = vtanh.pop %v3474
          %v3476 = vmul.f32 %v725, %v3475
          %v3477 = vadd.f32 %v3472, %v3476
          %v3478 = vmul.f32 %v656, %v3440
          %v3479 = vadd.f32 %v606, %v3478
          %v3480 = vtanh.pop %v3479
          %v3481 = vmul.f32 %v731, %v3480
          %v3482 = vadd.f32 %v3477, %v3481
          %v3483 = vmul.f32 %v661, %v3440
          %v3484 = vadd.f32 %v616, %v3483
          %v3485 = vtanh.pop %v3484
          %v3486 = vmul.f32 %v737, %v3485
          %v3487 = vadd.f32 %v3482, %v3486
          %v3488 = vmul.f32 %v666, %v3440
          %v3489 = vadd.f32 %v626, %v3488
          %v3490 = vtanh.pop %v3489
          %v3491 = vmul.f32 %v743, %v3490
          %v3492 = vadd.f32 %v3487, %v3491
          %v3493 = vmul.f32 %v3492, 0.05
          %v3494 = vadd.f32 %v3453, %v3493
          %vm3495 = vcmp.gt.f32.partialorder %v3494, 0.0
          %vm3496 = vcmp.lt.f32.partialorder %v3494, 0.0
          %v3497 = vsel %vm3495, %v3440, %v3428
          %v3498 = vsel %vm3495, %v3494, %v3429
          %v3499 = vsel %vm3496, %v3440, %v3430
          %v3500 = vsel %vm3496, %v3494, %v3431
          %v3501 = vsub.f32 %v3500, %v3498
          %vm3502 = vcmp.ne.f32.partialorder %v3501, 0.0
          %v3503 = vsel %vm3502, %v3501, 1.0
          %v3504 = vrcp.pop %v3503
          %v3505 = vsub.f32 %v3499, %v3497
          %v3506 = vmul.f32 %v3498, %v3505
          %v3507 = vmul.f32 %v3506, %v3504
          %v3508 = vsub.f32 %v3497, %v3507
          %v3509 = vsel %vm3502, %v3508, %v3497
          %v3510 = vmul.f32 %v546, %v3509
          %v3511 = vadd.f32 %v541, %v3510
          %v3512 = vmul.f32 %v3509, %v3511
          %v3513 = vadd.f32 %v535, %v3512
          %v3514 = vmax.f32 %v3513, 0.0
          %v3515 = vrsqrt.pop %v3514
          %v3516 = vmul.f32 %v3514, %v3515
          %vm3517 = vcmp.eq.f32.partialorder %v3514, inf
          %v3518 = vsel %vm3517, %v3514, %v3516
          %vm3519 = vcmp.eq.f32.partialorder %v3514, 0.0
          %v3520 = vand.u32 %v3514, 2147483648
          %v3521 = vsel %vm3519, %v3520, %v3518
          %v3522 = vsub.f32 %v3521, 0.6
          %v3523 = vmul.f32 %v631, %v3509
          %v3524 = vadd.f32 %v556, %v3523
          %v3525 = vtanh.pop %v3524
          %v3526 = vmul.f32 %v702, %v3525
          %v3527 = vmul.f32 %v636, %v3509
          %v3528 = vadd.f32 %v566, %v3527
          %v3529 = vtanh.pop %v3528
          %v3530 = vmul.f32 %v707, %v3529
          %v3531 = vadd.f32 %v3526, %v3530
          %v3532 = vmul.f32 %v641, %v3509
          %v3533 = vadd.f32 %v576, %v3532
          %v3534 = vtanh.pop %v3533
          %v3535 = vmul.f32 %v713, %v3534
          %v3536 = vadd.f32 %v3531, %v3535
          %v3537 = vmul.f32 %v646, %v3509
          %v3538 = vadd.f32 %v586, %v3537
          %v3539 = vtanh.pop %v3538
          %v3540 = vmul.f32 %v719, %v3539
          %v3541 = vadd.f32 %v3536, %v3540
          %v3542 = vmul.f32 %v651, %v3509
          %v3543 = vadd.f32 %v596, %v3542
          %v3544 = vtanh.pop %v3543
          %v3545 = vmul.f32 %v725, %v3544
          %v3546 = vadd.f32 %v3541, %v3545
          %v3547 = vmul.f32 %v656, %v3509
          %v3548 = vadd.f32 %v606, %v3547
          %v3549 = vtanh.pop %v3548
          %v3550 = vmul.f32 %v731, %v3549
          %v3551 = vadd.f32 %v3546, %v3550
          %v3552 = vmul.f32 %v661, %v3509
          %v3553 = vadd.f32 %v616, %v3552
          %v3554 = vtanh.pop %v3553
          %v3555 = vmul.f32 %v737, %v3554
          %v3556 = vadd.f32 %v3551, %v3555
          %v3557 = vmul.f32 %v666, %v3509
          %v3558 = vadd.f32 %v626, %v3557
          %v3559 = vtanh.pop %v3558
          %v3560 = vmul.f32 %v743, %v3559
          %v3561 = vadd.f32 %v3556, %v3560
          %v3562 = vmul.f32 %v3561, 0.05
          %v3563 = vadd.f32 %v3522, %v3562
          %vm3564 = vcmp.gt.f32.partialorder %v3563, 0.0
          %vm3565 = vcmp.lt.f32.partialorder %v3563, 0.0
          %v3566 = vsel %vm3564, %v3509, %v3497
          %v3567 = vsel %vm3564, %v3563, %v3498
          %v3568 = vsel %vm3565, %v3509, %v3499
          %v3569 = vsel %vm3565, %v3563, %v3500
          %v3570 = vsub.f32 %v3569, %v3567
          %vm3571 = vcmp.ne.f32.partialorder %v3570, 0.0
          %v3572 = vsel %vm3571, %v3570, 1.0
          %v3573 = vrcp.pop %v3572
          %v3574 = vsub.f32 %v3568, %v3566
          %v3575 = vmul.f32 %v3567, %v3574
          %v3576 = vmul.f32 %v3575, %v3573
          %v3577 = vsub.f32 %v3566, %v3576
          %v3578 = vsel %vm3571, %v3577, %v3566
          %v3579 = vmul.f32 %v546, %v3578
          %v3580 = vadd.f32 %v541, %v3579
          %v3581 = vmul.f32 %v3578, %v3580
          %v3582 = vadd.f32 %v535, %v3581
          %v3583 = vmax.f32 %v3582, 0.0
          %v3584 = vrsqrt.pop %v3583
          %v3585 = vmul.f32 %v3583, %v3584
          %vm3586 = vcmp.eq.f32.partialorder %v3583, inf
          %v3587 = vsel %vm3586, %v3583, %v3585
          %vm3588 = vcmp.eq.f32.partialorder %v3583, 0.0
          %v3589 = vand.u32 %v3583, 2147483648
          %v3590 = vsel %vm3588, %v3589, %v3587
          %v3591 = vsub.f32 %v3590, 0.6
          %v3592 = vmul.f32 %v631, %v3578
          %v3593 = vadd.f32 %v556, %v3592
          %v3594 = vtanh.pop %v3593
          %v3595 = vmul.f32 %v702, %v3594
          %v3596 = vmul.f32 %v636, %v3578
          %v3597 = vadd.f32 %v566, %v3596
          %v3598 = vtanh.pop %v3597
          %v3599 = vmul.f32 %v707, %v3598
          %v3600 = vadd.f32 %v3595, %v3599
          %v3601 = vmul.f32 %v641, %v3578
          %v3602 = vadd.f32 %v576, %v3601
          %v3603 = vtanh.pop %v3602
          %v3604 = vmul.f32 %v713, %v3603
          %v3605 = vadd.f32 %v3600, %v3604
          %v3606 = vmul.f32 %v646, %v3578
          %v3607 = vadd.f32 %v586, %v3606
          %v3608 = vtanh.pop %v3607
          %v3609 = vmul.f32 %v719, %v3608
          %v3610 = vadd.f32 %v3605, %v3609
          %v3611 = vmul.f32 %v651, %v3578
          %v3612 = vadd.f32 %v596, %v3611
          %v3613 = vtanh.pop %v3612
          %v3614 = vmul.f32 %v725, %v3613
          %v3615 = vadd.f32 %v3610, %v3614
          %v3616 = vmul.f32 %v656, %v3578
          %v3617 = vadd.f32 %v606, %v3616
          %v3618 = vtanh.pop %v3617
          %v3619 = vmul.f32 %v731, %v3618
          %v3620 = vadd.f32 %v3615, %v3619
          %v3621 = vmul.f32 %v661, %v3578
          %v3622 = vadd.f32 %v616, %v3621
          %v3623 = vtanh.pop %v3622
          %v3624 = vmul.f32 %v737, %v3623
          %v3625 = vadd.f32 %v3620, %v3624
          %v3626 = vmul.f32 %v666, %v3578
          %v3627 = vadd.f32 %v626, %v3626
          %v3628 = vtanh.pop %v3627
          %v3629 = vmul.f32 %v743, %v3628
          %v3630 = vadd.f32 %v3625, %v3629
          %v3631 = vmul.f32 %v3630, 0.05
          %v3632 = vadd.f32 %v3591, %v3631
          %vm3633 = vcmp.gt.f32.partialorder %v3632, 0.0
          %vm3634 = vcmp.lt.f32.partialorder %v3632, 0.0
          %v3635 = vsel %vm3633, %v3578, %v3566
          %v3636 = vsel %vm3633, %v3632, %v3567
          %v3637 = vsel %vm3634, %v3578, %v3568
          %v3638 = vsel %vm3634, %v3632, %v3569
          %v3639 = vsub.f32 %v3638, %v3636
          %vm3640 = vcmp.ne.f32.partialorder %v3639, 0.0
          %v3641 = vsel %vm3640, %v3639, 1.0
          %v3642 = vrcp.pop %v3641
          %v3643 = vsub.f32 %v3637, %v3635
          %v3644 = vmul.f32 %v3636, %v3643
          %v3645 = vmul.f32 %v3644, %v3642
          %v3646 = vsub.f32 %v3635, %v3645
          %v3647 = vsel %vm3640, %v3646, %v3635
          %v3648 = vmul.f32 %v546, %v3647
          %v3649 = vadd.f32 %v541, %v3648
          %v3650 = vmul.f32 %v3647, %v3649
          %v3651 = vadd.f32 %v535, %v3650
          %v3652 = vmax.f32 %v3651, 0.0
          %v3653 = vrsqrt.pop %v3652
          %v3654 = vmul.f32 %v3652, %v3653
          %vm3655 = vcmp.eq.f32.partialorder %v3652, inf
          %v3656 = vsel %vm3655, %v3652, %v3654
          %vm3657 = vcmp.eq.f32.partialorder %v3652, 0.0
          %v3658 = vand.u32 %v3652, 2147483648
          %v3659 = vsel %vm3657, %v3658, %v3656
          %v3660 = vsub.f32 %v3659, 0.6
          %v3661 = vmul.f32 %v631, %v3647
          %v3662 = vadd.f32 %v556, %v3661
          %v3663 = vtanh.pop %v3662
          %v3664 = vmul.f32 %v702, %v3663
          %v3665 = vmul.f32 %v636, %v3647
          %v3666 = vadd.f32 %v566, %v3665
          %v3667 = vtanh.pop %v3666
          %v3668 = vmul.f32 %v707, %v3667
          %v3669 = vadd.f32 %v3664, %v3668
          %v3670 = vmul.f32 %v641, %v3647
          %v3671 = vadd.f32 %v576, %v3670
          %v3672 = vtanh.pop %v3671
          %v3673 = vmul.f32 %v713, %v3672
          %v3674 = vadd.f32 %v3669, %v3673
          %v3675 = vmul.f32 %v646, %v3647
          %v3676 = vadd.f32 %v586, %v3675
          %v3677 = vtanh.pop %v3676
          %v3678 = vmul.f32 %v719, %v3677
          %v3679 = vadd.f32 %v3674, %v3678
          %v3680 = vmul.f32 %v651, %v3647
          %v3681 = vadd.f32 %v596, %v3680
          %v3682 = vtanh.pop %v3681
          %v3683 = vmul.f32 %v725, %v3682
          %v3684 = vadd.f32 %v3679, %v3683
          %v3685 = vmul.f32 %v656, %v3647
          %v3686 = vadd.f32 %v606, %v3685
          %v3687 = vtanh.pop %v3686
          %v3688 = vmul.f32 %v731, %v3687
          %v3689 = vadd.f32 %v3684, %v3688
          %v3690 = vmul.f32 %v661, %v3647
          %v3691 = vadd.f32 %v616, %v3690
          %v3692 = vtanh.pop %v3691
          %v3693 = vmul.f32 %v737, %v3692
          %v3694 = vadd.f32 %v3689, %v3693
          %v3695 = vmul.f32 %v666, %v3647
          %v3696 = vadd.f32 %v626, %v3695
          %v3697 = vtanh.pop %v3696
          %v3698 = vmul.f32 %v743, %v3697
          %v3699 = vadd.f32 %v3694, %v3698
          %v3700 = vmul.f32 %v3699, 0.05
          %v3701 = vadd.f32 %v3660, %v3700
          %vm3702 = vcmp.gt.f32.partialorder %v3701, 0.0
          %vm3703 = vcmp.lt.f32.partialorder %v3701, 0.0
          %v3704 = vsel %vm3702, %v3647, %v3635
          %v3705 = vsel %vm3702, %v3701, %v3636
          %v3706 = vsel %vm3703, %v3647, %v3637
          %v3707 = vsel %vm3703, %v3701, %v3638
          %v3708 = vsub.f32 %v3707, %v3705
          %vm3709 = vcmp.ne.f32.partialorder %v3708, 0.0
          %v3710 = vsel %vm3709, %v3708, 1.0
          %v3711 = vrcp.pop %v3710
          %v3712 = vsub.f32 %v3706, %v3704
          %v3713 = vmul.f32 %v3705, %v3712
          %v3714 = vmul.f32 %v3713, %v3711
          %v3715 = vsub.f32 %v3704, %v3714
          %v3716 = vsel %vm3709, %v3715, %v3704
          %v3717 = vmul.f32 %v546, %v3716
          %v3718 = vadd.f32 %v541, %v3717
          %v3719 = vmul.f32 %v3716, %v3718
          %v3720 = vadd.f32 %v535, %v3719
          %v3721 = vmax.f32 %v3720, 0.0
          %v3722 = vrsqrt.pop %v3721
          %v3723 = vmul.f32 %v3721, %v3722
          %vm3724 = vcmp.eq.f32.partialorder %v3721, inf
          %v3725 = vsel %vm3724, %v3721, %v3723
          %vm3726 = vcmp.eq.f32.partialorder %v3721, 0.0
          %v3727 = vand.u32 %v3721, 2147483648
          %v3728 = vsel %vm3726, %v3727, %v3725
          %v3729 = vsub.f32 %v3728, 0.6
          %v3730 = vmul.f32 %v631, %v3716
          %v3731 = vadd.f32 %v556, %v3730
          %v3732 = vtanh.pop %v3731
          %v3733 = vmul.f32 %v702, %v3732
          %v3734 = vmul.f32 %v636, %v3716
          %v3735 = vadd.f32 %v566, %v3734
          %v3736 = vtanh.pop %v3735
          %v3737 = vmul.f32 %v707, %v3736
          %v3738 = vadd.f32 %v3733, %v3737
          %v3739 = vmul.f32 %v641, %v3716
          %v3740 = vadd.f32 %v576, %v3739
          %v3741 = vtanh.pop %v3740
          %v3742 = vmul.f32 %v713, %v3741
          %v3743 = vadd.f32 %v3738, %v3742
          %v3744 = vmul.f32 %v646, %v3716
          %v3745 = vadd.f32 %v586, %v3744
          %v3746 = vtanh.pop %v3745
          %v3747 = vmul.f32 %v719, %v3746
          %v3748 = vadd.f32 %v3743, %v3747
          %v3749 = vmul.f32 %v651, %v3716
          %v3750 = vadd.f32 %v596, %v3749
          %v3751 = vtanh.pop %v3750
          %v3752 = vmul.f32 %v725, %v3751
          %v3753 = vadd.f32 %v3748, %v3752
          %v3754 = vmul.f32 %v656, %v3716
          %v3755 = vadd.f32 %v606, %v3754
          %v3756 = vtanh.pop %v3755
          %v3757 = vmul.f32 %v731, %v3756
          %v3758 = vadd.f32 %v3753, %v3757
          %v3759 = vmul.f32 %v661, %v3716
          %v3760 = vadd.f32 %v616, %v3759
          %v3761 = vtanh.pop %v3760
          %v3762 = vmul.f32 %v737, %v3761
          %v3763 = vadd.f32 %v3758, %v3762
          %v3764 = vmul.f32 %v666, %v3716
          %v3765 = vadd.f32 %v626, %v3764
          %v3766 = vtanh.pop %v3765
          %v3767 = vmul.f32 %v743, %v3766
          %v3768 = vadd.f32 %v3763, %v3767
          %v3769 = vmul.f32 %v3768, 0.05
          %v3770 = vadd.f32 %v3729, %v3769
          %vm3771 = vcmp.gt.f32.partialorder %v3770, 0.0
          %vm3772 = vcmp.lt.f32.partialorder %v3770, 0.0
          %v3773 = vsel %vm3771, %v3716, %v3704
          %v3774 = vsel %vm3771, %v3770, %v3705
          %v3775 = vsel %vm3772, %v3716, %v3706
          %v3776 = vsel %vm3772, %v3770, %v3707
          %v3777 = vsub.f32 %v3776, %v3774
          %vm3778 = vcmp.ne.f32.partialorder %v3777, 0.0
          %v3779 = vsel %vm3778, %v3777, 1.0
          %v3780 = vrcp.pop %v3779
          %v3781 = vsub.f32 %v3775, %v3773
          %v3782 = vmul.f32 %v3774, %v3781
          %v3783 = vmul.f32 %v3782, %v3780
          %v3784 = vsub.f32 %v3773, %v3783
          %v3785 = vsel %vm3778, %v3784, %v3773
          %v3786 = vmul.f32 %v546, %v3785
          %v3787 = vadd.f32 %v541, %v3786
          %v3788 = vmul.f32 %v3785, %v3787
          %v3789 = vadd.f32 %v535, %v3788
          %v3790 = vmax.f32 %v3789, 0.0
          %v3791 = vrsqrt.pop %v3790
          %v3792 = vmul.f32 %v3790, %v3791
          %vm3793 = vcmp.eq.f32.partialorder %v3790, inf
          %v3794 = vsel %vm3793, %v3790, %v3792
          %vm3795 = vcmp.eq.f32.partialorder %v3790, 0.0
          %v3796 = vand.u32 %v3790, 2147483648
          %v3797 = vsel %vm3795, %v3796, %v3794
          %v3798 = vsub.f32 %v3797, 0.6
          %v3799 = vmul.f32 %v631, %v3785
          %v3800 = vadd.f32 %v556, %v3799
          %v3801 = vtanh.pop %v3800
          %v3802 = vmul.f32 %v702, %v3801
          %v3803 = vmul.f32 %v636, %v3785
          %v3804 = vadd.f32 %v566, %v3803
          %v3805 = vtanh.pop %v3804
          %v3806 = vmul.f32 %v707, %v3805
          %v3807 = vadd.f32 %v3802, %v3806
          %v3808 = vmul.f32 %v641, %v3785
          %v3809 = vadd.f32 %v576, %v3808
          %v3810 = vtanh.pop %v3809
          %v3811 = vmul.f32 %v713, %v3810
          %v3812 = vadd.f32 %v3807, %v3811
          %v3813 = vmul.f32 %v646, %v3785
          %v3814 = vadd.f32 %v586, %v3813
          %v3815 = vtanh.pop %v3814
          %v3816 = vmul.f32 %v719, %v3815
          %v3817 = vadd.f32 %v3812, %v3816
          %v3818 = vmul.f32 %v651, %v3785
          %v3819 = vadd.f32 %v596, %v3818
          %v3820 = vtanh.pop %v3819
          %v3821 = vmul.f32 %v725, %v3820
          %v3822 = vadd.f32 %v3817, %v3821
          %v3823 = vmul.f32 %v656, %v3785
          %v3824 = vadd.f32 %v606, %v3823
          %v3825 = vtanh.pop %v3824
          %v3826 = vmul.f32 %v731, %v3825
          %v3827 = vadd.f32 %v3822, %v3826
          %v3828 = vmul.f32 %v661, %v3785
          %v3829 = vadd.f32 %v616, %v3828
          %v3830 = vtanh.pop %v3829
          %v3831 = vmul.f32 %v737, %v3830
          %v3832 = vadd.f32 %v3827, %v3831
          %v3833 = vmul.f32 %v666, %v3785
          %v3834 = vadd.f32 %v626, %v3833
          %v3835 = vtanh.pop %v3834
          %v3836 = vmul.f32 %v743, %v3835
          %v3837 = vadd.f32 %v3832, %v3836
          %v3838 = vmul.f32 %v3837, 0.05
          %v3839 = vadd.f32 %v3798, %v3838
          %vm3840 = vcmp.gt.f32.partialorder %v3839, 0.0
          %vm3841 = vcmp.lt.f32.partialorder %v3839, 0.0
          %v3842 = vsel %vm3840, %v3785, %v3773
          %v3843 = vsel %vm3840, %v3839, %v3774
          %v3844 = vsel %vm3841, %v3785, %v3775
          %v3845 = vsel %vm3841, %v3839, %v3776
          %v3846 = vsub.f32 %v3845, %v3843
          %vm3847 = vcmp.ne.f32.partialorder %v3846, 0.0
          %v3848 = vsel %vm3847, %v3846, 1.0
          %v3849 = vrcp.pop %v3848
          %v3850 = vsub.f32 %v3844, %v3842
          %v3851 = vmul.f32 %v3843, %v3850
          %v3852 = vmul.f32 %v3851, %v3849
          %v3853 = vsub.f32 %v3842, %v3852
          %v3854 = vsel %vm3847, %v3853, %v3842
          %v3855 = vmul.f32 %v546, %v3854
          %v3856 = vadd.f32 %v541, %v3855
          %v3857 = vmul.f32 %v3854, %v3856
          %v3858 = vadd.f32 %v535, %v3857
          %v3859 = vmax.f32 %v3858, 0.0
          %v3860 = vrsqrt.pop %v3859
          %v3861 = vmul.f32 %v3859, %v3860
          %vm3862 = vcmp.eq.f32.partialorder %v3859, inf
          %v3863 = vsel %vm3862, %v3859, %v3861
          %vm3864 = vcmp.eq.f32.partialorder %v3859, 0.0
          %v3865 = vand.u32 %v3859, 2147483648
          %v3866 = vsel %vm3864, %v3865, %v3863
          %v3867 = vsub.f32 %v3866, 0.6
          %v3868 = vmul.f32 %v631, %v3854
          %v3869 = vadd.f32 %v556, %v3868
          %v3870 = vtanh.pop %v3869
          %v3871 = vmul.f32 %v702, %v3870
          %v3872 = vmul.f32 %v636, %v3854
          %v3873 = vadd.f32 %v566, %v3872
          %v3874 = vtanh.pop %v3873
          %v3875 = vmul.f32 %v707, %v3874
          %v3876 = vadd.f32 %v3871, %v3875
          %v3877 = vmul.f32 %v641, %v3854
          %v3878 = vadd.f32 %v576, %v3877
          %v3879 = vtanh.pop %v3878
          %v3880 = vmul.f32 %v713, %v3879
          %v3881 = vadd.f32 %v3876, %v3880
          %v3882 = vmul.f32 %v646, %v3854
          %v3883 = vadd.f32 %v586, %v3882
          %v3884 = vtanh.pop %v3883
          %v3885 = vmul.f32 %v719, %v3884
          %v3886 = vadd.f32 %v3881, %v3885
          %v3887 = vmul.f32 %v651, %v3854
          %v3888 = vadd.f32 %v596, %v3887
          %v3889 = vtanh.pop %v3888
          %v3890 = vmul.f32 %v725, %v3889
          %v3891 = vadd.f32 %v3886, %v3890
          %v3892 = vmul.f32 %v656, %v3854
          %v3893 = vadd.f32 %v606, %v3892
          %v3894 = vtanh.pop %v3893
          %v3895 = vmul.f32 %v731, %v3894
          %v3896 = vadd.f32 %v3891, %v3895
          %v3897 = vmul.f32 %v661, %v3854
          %v3898 = vadd.f32 %v616, %v3897
          %v3899 = vtanh.pop %v3898
          %v3900 = vmul.f32 %v737, %v3899
          %v3901 = vadd.f32 %v3896, %v3900
          %v3902 = vmul.f32 %v666, %v3854
          %v3903 = vadd.f32 %v626, %v3902
          %v3904 = vtanh.pop %v3903
          %v3905 = vmul.f32 %v743, %v3904
          %v3906 = vadd.f32 %v3901, %v3905
          %v3907 = vmul.f32 %v3906, 0.05
          %v3908 = vadd.f32 %v3867, %v3907
          %vm3909 = vcmp.gt.f32.partialorder %v3908, 0.0
          %vm3910 = vcmp.lt.f32.partialorder %v3908, 0.0
          %v3911 = vsel %vm3909, %v3854, %v3842
          %v3912 = vsel %vm3909, %v3908, %v3843
          %v3913 = vsel %vm3910, %v3854, %v3844
          %v3914 = vsel %vm3910, %v3908, %v3845
          %v3915 = vsub.f32 %v3914, %v3912
          %vm3916 = vcmp.ne.f32.partialorder %v3915, 0.0
          %v3917 = vsel %vm3916, %v3915, 1.0
          %v3918 = vrcp.pop %v3917
          %v3919 = vsub.f32 %v3913, %v3911
          %v3920 = vmul.f32 %v3912, %v3919
          %v3921 = vmul.f32 %v3920, %v3918
          %v3922 = vsub.f32 %v3911, %v3921
          %v3923 = vsel %vm3916, %v3922, %v3911
          %v3924 = vsel %vm3352, %v3355, %v3347
          %v3925 = vsel %vm3351, %v3923, %v3924
          %v3926 = vsel %vm3204, %v3925, %v3142
          %3927 = vst [vmem:[%s472] sm:$0xff] %v3926
          %v3928 = vmul.f32 %v3926, %v526
          %v3929 = vadd.f32 %v521, %v3928
          %3930 = vst [vmem:[%s459] sm:$0xff] %v3929
          %v3931 = vmul.f32 %v3926, %v528
          %v3932 = vadd.f32 %v523, %v3931
          %3933 = vst [vmem:[%s3212] sm:$0xff] %v3932
          %v3934 = vmul.f32 %v3926, %v530
          %v3935 = vadd.f32 %v525, %v3934
          %3936 = vst [vmem:[%s3216] sm:$0xff] %v3935
          %v3937 = vld [vmem:[%s480] sm:$0xff]
          %v3938 = vsel %vm3350, 1, 0
          %v3939 = vand.u32 %v3937, 1
          %v3940 = vsel %vm3204, %v3938, %v3939
          %v3941 = vand.u32 %v3937, 4294967294
          %v3942 = vor.u32 %v3941, %v3940
          %3943 = vst [vmem:[%s480] sm:$0xff] %v3942
        $region136: #{ray_tracing_forward.1} parent=111 // pred_fallthru
          _
        %s3944 = sand.u32 %s174, 1
        %s3945 = sand.u32 %s174, 1
        %s3946 = smul.addr %s3945, 24
        %s3947 = scalar_lea.vmem [#allocation10], %s3946
        %p3948 = scmp.lt.s32.totalorder %s25, 1
        %s3949 = scalar_select %p3948, %s25, 1
        %s3950 = smul.addr %s3949, 8
        %s3951 = scalar_lea.vmem %s7, %s3950
        %s3952 = sand.u32 %s226, 1
        %s3953 = scalar_lea.sflag [#allocation3], %s3952
        %s3954 = sand.u32 %s226, 1
        %s3955 = smul.addr %s3954, 8
        %s3956 = scalar_lea.vmem [#allocation11], %s3955
        // Predicated region
        $region144: #{ray_tracing_forward.1} parent=111 // pred_check
          %p3957 = pneg %p184
        $region145: #{ray_tracing_forward.1} parent=111 // pred_check_branch
          %3959 = sbr.rel (%p3957) target = $region147
        $region146: #{ray_tracing_forward.1} parent=111 // pred_region
          %s3960 = smul.addr %s25, 8
          %s3961 = scalar_lea.vmem %s6, %s3960
          // Predicated region
          $region148: #{ray_tracing_forward.1} parent=146 // pred_check
            _
          $region149: #{ray_tracing_forward.1} parent=146 // pred_check_branch
            %3963 = sbr.rel (0) target = $region151
          $region150: #{ray_tracing_forward.1} parent=146 // pred_region
            // Predicated region
            $region152: #{ray_tracing_forward.1} parent=150 // pred_check
              _
            $region153: #{ray_tracing_forward.1} parent=150 // pred_check_branch
              %3965 = sbr.rel (0) target = $region155
            $region154: #{ray_tracing_forward.1} parent=150 // pred_region
              // Predicated region
              $region167: #{ray_tracing_forward.1} parent=154 // pred_check
                _
              $region168: #{ray_tracing_forward.1} parent=154 // pred_check_branch
                %3984 = sbr.rel (0) target = $region170
              $region169: #{ray_tracing_forward.1} parent=154 // pred_region
                loop: start=0, step=1, limit=1
                $region171: #{ray_tracing_forward.1} parent=169 // loop_pre_header
                  _
                $region172: #{ray_tracing_forward.1} parent=169 // loop_header
                  %s3986 = sphi 0, %s3990
                  %p3987 = scmp.ge.s32.totalorder %s3986, 1
                  %s3991 = sphi %s3947, %s3947
                  %s3992 = sphi %s3961, %s3961
                $region173: #{ray_tracing_forward.1} parent=169 // loop_header_branch
                  %3989 = sbr.rel (%p3987) target = $region177
                $region174: #{ray_tracing_forward.1} parent=169 // loop_body
                  %v3993 = vld [vmem:[%s3991] sm:$0xff]
                  %3994 = vst [vmem:[%s3992] sm:$0xff] %v3993
                  %v3995 = vld [vmem:[%s3991 + $0x8] sm:$0xff]
                  %3996 = vst [vmem:[%s3992 + $0x10] sm:$0xff] %v3995
                  %v3997 = vld [vmem:[%s3991 + $0x10] sm:$0xff]
                  %3998 = vst [vmem:[%s3992 + $0x20] sm:$0xff] %v3997
                $region175: #{ray_tracing_forward.1} parent=169 // loop_footer
                  %s3990 = sadd.s32 1, %s3986
                $region176: #{ray_tracing_forward.1} parent=169 // loop_footer_branch
                  %3985 = sbr.rel target = $region172
                $region177: #{ray_tracing_forward.1} parent=169 // loop_exit
                  _
              $region170: #{ray_tracing_forward.1} parent=154 // pred_fallthru
                _
              // Predicated region
              $region178: #{ray_tracing_forward.1} parent=154 // pred_check
                _
              $region179: #{ray_tracing_forward.1} parent=154 // pred_check_branch
                %4000 = sbr.rel target = $region181
              $region180: #{ray_tracing_forward.1} parent=154 // pred_region
                _
              $region181: #{ray_tracing_forward.1} parent=154 // pred_fallthru
                _
            $region155: #{ray_tracing_forward.1} parent=150 // pred_fallthru
              _
            // Predicated region
            $region156: #{ray_tracing_forward.1} parent=150 // pred_check
              _
            $region157: #{ray_tracing_forward.1} parent=150 // pred_check_branch
              %3967 = sbr.rel target = $region159
            $region158: #{ray_tracing_forward.1} parent=150 // pred_region
              loop: start=0, step=1, limit=1
              $region160: #{ray_tracing_forward.1} parent=158 // loop_pre_header
                _
              $region161: #{ray_tracing_forward.1} parent=158 // loop_header
                %s3970 = sphi 0, %s3974
                %p3971 = scmp.ge.s32.totalorder %s3970, 1
                %s3975 = sphi %s3947, %s3947
                %s3976 = sphi %s3961, %s3961
              $region162: #{ray_tracing_forward.1} parent=158 // loop_header_branch
                %3973 = sbr.rel (%p3971) target = $region166
              $region163: #{ray_tracing_forward.1} parent=158 // loop_body
                %v3977 = vld [vmem:[%s3975] sm:$0xff]
                %3978 = vst [vmem:[%s3976] sm:$0xff] %v3977
                %v3979 = vld [vmem:[%s3975 + $0x8] sm:$0xff]
                %3980 = vst [vmem:[%s3976 + $0x10] sm:$0xff] %v3979
                %v3981 = vld [vmem:[%s3975 + $0x10] sm:$0xff]
                %3982 = vst [vmem:[%s3976 + $0x20] sm:$0xff] %v3981
              $region164: #{ray_tracing_forward.1} parent=158 // loop_footer
                %s3974 = sadd.s32 1, %s3970
              $region165: #{ray_tracing_forward.1} parent=158 // loop_footer_branch
                %3969 = sbr.rel target = $region161
              $region166: #{ray_tracing_forward.1} parent=158 // loop_exit
                _
            $region159: #{ray_tracing_forward.1} parent=150 // pred_fallthru
              _
          $region151: #{ray_tracing_forward.1} parent=146 // pred_fallthru
            _
          %4001 = vnop
        $region147: #{ray_tracing_forward.1} parent=111 // pred_fallthru
          _
        // Predicated region
        $region182: #{ray_tracing_forward.1} parent=111 // pred_check
          %p4002 = pneg %p210
        $region183: #{ray_tracing_forward.1} parent=111 // pred_check_branch
          %4004 = sbr.rel (%p4002) target = $region185
        $region184: #{ray_tracing_forward.1} parent=111 // pred_region
          _
        $region185: #{ray_tracing_forward.1} parent=111 // pred_fallthru
          _
        // Predicated region
        $region186: #{ray_tracing_forward.1} parent=111 // pred_check
          %p4005 = pneg %p236
        $region187: #{ray_tracing_forward.1} parent=111 // pred_check_branch
          %4007 = sbr.rel (%p4005) target = $region189
        $region188: #{ray_tracing_forward.1} parent=111 // pred_region
          %s4009 = ssub.s32 128, 128
          %4010 = vsyncadd %s3953, %s4009
          %s4011 = smul.addr %s25, 128
          %s4012 = scalar_lea.hbm %s8, %s4011
          %s4014 = sshll.u32 %s3956, 4
          %s4015 = int_to_ptr.vmem [resolvable:$true] %s4014
          %4017 = dma.vmem_to_hbm [thread:$0]  %s4015, 128, %s4012, %s3953
        $region189: #{ray_tracing_forward.1} parent=111 // pred_fallthru
          _
      $region112: #{ray_tracing_forward.1} parent=5 // pred_fallthru
        _
      %p4018 = scmp.le.s32.totalorder 2, %s20
      // Predicated region
      $region190: #{ray_tracing_forward.1} parent=5 // pred_check
        %p4019 = pneg %p4018
      $region191: #{ray_tracing_forward.1} parent=5 // pred_check_branch
        %4021 = sbr.rel (%p4019) target = $region193
      $region192: #{ray_tracing_forward.1} parent=5 // pred_region
        %s4022 = ssub.s32 %s20, 2
        // Predicated region
        $region194: #{ray_tracing_forward.1} parent=192 // pred_check
          %p4023 = pneg %p190
        $region195: #{ray_tracing_forward.1} parent=192 // pred_check_branch
          %4025 = sbr.rel (%p4023) target = $region197
        $region196: #{ray_tracing_forward.1} parent=192 // pred_region
          %s4026 = sand.u32 %s175, 1
          %s4027 = sand.u32 %s175, 1
          %s4028 = smul.addr %s4027, 24
          %s4029 = scalar_lea.vmem [#allocation10], %s4028
        $region197: #{ray_tracing_forward.1} parent=192 // pred_fallthru
          _
        // Predicated region
        $region198: #{ray_tracing_forward.1} parent=192 // pred_check
          %p4030 = pneg %p216
        $region199: #{ray_tracing_forward.1} parent=192 // pred_check_branch
          %4032 = sbr.rel (%p4030) target = $region201
        $region200: #{ray_tracing_forward.1} parent=192 // pred_region
          %p4033 = scmp.lt.s32.totalorder %s26, 1
          %s4034 = scalar_select %p4033, %s26, 1
          %s4035 = smul.addr %s4034, 8
          %s4036 = scalar_lea.vmem %s7, %s4035
        $region201: #{ray_tracing_forward.1} parent=192 // pred_fallthru
          _
        // Predicated region
        $region202: #{ray_tracing_forward.1} parent=192 // pred_check
          %p4037 = pneg %p242
        $region203: #{ray_tracing_forward.1} parent=192 // pred_check_branch
          %4039 = sbr.rel (%p4037) target = $region205
        $region204: #{ray_tracing_forward.1} parent=192 // pred_region
          %s4040 = sand.u32 %s227, 1
          %s4041 = scalar_lea.sflag [#allocation3], %s4040
          %s4042 = sand.u32 %s227, 1
          %s4043 = smul.addr %s4042, 8
          %s4044 = scalar_lea.vmem [#allocation11], %s4043
          %4045 = dma.done %s4041, 128
        $region205: #{ray_tracing_forward.1} parent=192 // pred_fallthru
          _
      $region193: #{ray_tracing_forward.1} parent=5 // pred_fallthru
        _
    $region6: #{ray_tracing_forward.1} parent=1 // loop_footer
      %s24 = sadd.s32 1, %s20
    $region7: #{ray_tracing_forward.1} parent=1 // loop_footer_branch
      %19 = sbr.rel target = $region3
    $region8: #{ray_tracing_forward.1} parent=1 // loop_exit
      _
    %4046 = vsyncpa [#allocation3], 1
    %s4047 = scalar_lea.sflag [#allocation3], 1
    %4048 = vsyncpa %s4047, 1
    %4049 = vsyncpa [#allocation4], 1
    %s4050 = scalar_lea.sflag [#allocation4], 1
    %4051 = vsyncpa %s4050, 1
    %4052 = vsyncpa [#allocation6], 1

</llo_original>
